<compile_context>
chip_gen: v7x
topology: tpu7x:2x2x1
jax: 0.10.0
libtpu: 0.0.40
codegen_flags: <defaults>
</compile_context>

<pallas_src>
import functools

import jax
import jax.numpy as jnp
from jax import lax
from jax.experimental import pallas as pl
from jax.experimental.pallas import tpu as pltpu


# ----------------------------------------------------------------------------
# Pallas kernels
# ----------------------------------------------------------------------------
def _conv2x2_kernel(x_ref, w_ref, b_ref, o_ref, *, act):
    """Fused 2x2 stride-1 VALID conv + bias + activation for one image.

    x_ref: (1, Hp, Wp, Cg)  bf16     (Hp = OH+1, Wp = OW+1)
    w_ref: (2, 2, Cg, Co)   bf16
    b_ref: (1, Co)          f32
    o_ref: (1, OH, OW, Co)  out dtype
    """
    oh = o_ref.shape[1]
    ow = o_ref.shape[2]

    # Weights / bias are loop invariant -> load once, keep in VMEM/vregs.
    w00 = w_ref[0, 0]
    w01 = w_ref[0, 1]
    w10 = w_ref[1, 0]
    w11 = w_ref[1, 1]
    bias = b_ref[...]                                   # (1, Co) f32

    def row_body(m, carry):
        rows = x_ref[0, pl.ds(m, 2), :, :]              # (2, Wp, Cg) bf16
        r0 = rows[0]                                    # (Wp, Cg)
        r1 = rows[1]
        # 4 partial matmuls (one per 2x2 tap), f32 accumulation on the MXU.
        y00 = jnp.dot(r0, w00, preferred_element_type=jnp.float32)   # (Wp, Co)
        y01 = jnp.dot(r0, w01, preferred_element_type=jnp.float32)
        y10 = jnp.dot(r1, w10, preferred_element_type=jnp.float32)
        y11 = jnp.dot(r1, w11, preferred_element_type=jnp.float32)
        acc = (y00[0:ow, :] + y10[0:ow, :]
               + y01[1:1 + ow, :] + y11[1:1 + ow, :]) + bias          # (OW, Co)
        if act == "relu":
            acc = jnp.maximum(acc, 0.0)
        elif act == "sigmoid":
            acc = jax.nn.sigmoid(acc)
        o_ref[0, pl.ds(m, 1), :, :] = acc[None, :, :].astype(o_ref.dtype)
        return carry

    lax.fori_loop(0, oh, row_body, 0)


def fused_conv2x2(x, w2, b2, act, out_dtype):
    """x: (N, Hp, Wp, Cg) -> (N, Hp-1, Wp-1, Co) via the fused kernel."""
    n, hp, wp, cg = x.shape
    co = w2.shape[-1]
    oh, ow = hp - 1, wp - 1
    kernel = functools.partial(_conv2x2_kernel, act=act)
    return pl.pallas_call(
        kernel,
        out_shape=jax.ShapeDtypeStruct((n, oh, ow, co), out_dtype),
        grid=(n,),
        in_specs=[
            pl.BlockSpec((1, hp, wp, cg), lambda i: (i, 0, 0, 0)),
            # constant block index -> weights/bias stay resident across grid
            pl.BlockSpec((2, 2, cg, co), lambda i: (0, 0, 0, 0)),
            pl.BlockSpec((1, co), lambda i: (0, 0)),
        ],
        out_specs=pl.BlockSpec((1, oh, ow, co), lambda i: (i, 0, 0, 0)),
        compiler_params=pltpu.CompilerParams(
            dimension_semantics=("parallel",),          # batch is independent
            vmem_limit_bytes=32 * 1024 * 1024),
    )(x.astype(jnp.bfloat16), w2, b2)


def _fc_mu_logvar_reparam_kernel(x_ref, w_ref, b_ref, eps_ref,
                                 mu_ref, logvar_ref, z_ref):
    """One matmul for [mu | logvar] + fused reparameterization."""
    zdim = mu_ref.shape[1]
    acc = jnp.dot(x_ref[...], w_ref[...],
                  preferred_element_type=jnp.float32) + b_ref[...]   # (B, 2Z) f32
    mu = acc[:, :zdim]
    logvar = acc[:, zdim:]
    mu_ref[...] = mu
    logvar_ref[...] = logvar
    z_ref[...] = mu + eps_ref[...] * jnp.exp(0.5 * logvar)


def fc_mu_logvar_reparam(flat, w_cat, b_cat, eps):
    b, f = flat.shape
    z2 = w_cat.shape[1]
    z = z2 // 2
    out_sh = jax.ShapeDtypeStruct((b, z), jnp.float32)
    return pl.pallas_call(
        _fc_mu_logvar_reparam_kernel,
        out_shape=(out_sh, out_sh, out_sh),
        in_specs=[
            pl.BlockSpec((b, f), lambda: (0, 0)),
            pl.BlockSpec((f, z2), lambda: (0, 0)),
            pl.BlockSpec((1, z2), lambda: (0, 0)),
            pl.BlockSpec((b, z), lambda: (0, 0)),
        ],
        out_specs=tuple(pl.BlockSpec((b, z), lambda: (0, 0)) for _ in range(3)),
    )(flat.astype(jnp.bfloat16), w_cat, b_cat, eps)


def _matmul_bias_kernel(x_ref, w_ref, b_ref, o_ref):
    acc = jnp.dot(x_ref[...], w_ref[...],
                  preferred_element_type=jnp.float32) + b_ref[...]
    o_ref[...] = acc.astype(o_ref.dtype)


def matmul_bias(x, w, b, out_dtype):
    m, k = x.shape
    _, n = w.shape
    return pl.pallas_call(
        _matmul_bias_kernel,
        out_shape=jax.ShapeDtypeStruct((m, n), out_dtype),
        in_specs=[
            pl.BlockSpec((m, k), lambda: (0, 0)),
            pl.BlockSpec((k, n), lambda: (0, 0)),
            pl.BlockSpec((1, n), lambda: (0, 0)),
        ],
        out_specs=pl.BlockSpec((m, n), lambda: (0, 0)),
    )(x.astype(jnp.bfloat16), w, b)


# ----------------------------------------------------------------------------
# Conv / ConvTranspose wrappers (thin XLA data-movement glue around the kernel)
# ----------------------------------------------------------------------------
def _space_to_depth_pad1(x):
    """(N,H,W,C) -> pad 1 -> (N, H/2+1, W/2+1, 4C); channel = p*2C + q*C + c."""
    n, h, w, c = x.shape
    xp = jnp.pad(x, ((0, 0), (1, 1), (1, 1), (0, 0)))
    hh, wh = (h + 2) // 2, (w + 2) // 2
    xr = xp.reshape(n, hh, 2, wh, 2, c)
    xr = jnp.transpose(xr, (0, 1, 3, 2, 4, 5))
    return xr.reshape(n, hh, wh, 4 * c)


def conv2d_s2(x, w2, b2, act, out_dtype=jnp.bfloat16):
    """PyTorch Conv2d(k=4, s=2, p=1) as a 2x2 conv on the space-to-depth input."""
    return fused_conv2x2(_space_to_depth_pad1(x), w2, b2, act, out_dtype)


def conv_transpose2d_s2(x, w2, b2, act, out_dtype=jnp.bfloat16):
    """PyTorch ConvTranspose2d(k=4, s=2, p=1) via sub-pixel decomposition.

    A single 2x2 stride-1 conv on pad(x, 1) produces all 4 output phases
    (4*Cout channels); the phases are then interleaved into the 2H x 2W output.
    """
    n, h, w, _ = x.shape
    co4 = w2.shape[-1]
    cout = co4 // 4
    xp = jnp.pad(x, ((0, 0), (1, 1), (1, 1), (0, 0)))
    y = fused_conv2x2(xp, w2, b2, act, out_dtype)        # (N, H+1, W+1, 4*Cout)
    y = y.reshape(n, h + 1, w + 1, 2, 2, cout)
    out = jnp.zeros((n, 2 * h, 2 * w, cout), out_dtype)
    for r in range(2):
        for c in range(2):
            out = out.at[:, r::2, c::2, :].set(y[:, r:r + h, c:c + w, r, c, :])
    return out


# ----------------------------------------------------------------------------
# Parameters: deterministic synthetic init (PyTorch layout) + kernel-ready prep
# ----------------------------------------------------------------------------
def init_params(key, *, z_dim, in_channels, base, img_size):
    assert img_size % 32 == 0
    C = base * 8
    h = w = img_size // 2 ** 5
    feat = C * h * w
    keys = iter(jax.random.split(key, 64))

    def conv_p(cin, cout):
        scale = 1.0 / jnp.sqrt(cin * 16.0)
        return (jax.random.normal(next(keys), (cout, cin, 4, 4),
                                  jnp.float32) * scale,
                jax.random.normal(next(keys), (cout,), jnp.float32) * 0.01)

    def convT_p(cin, cout):
        scale = 1.0 / jnp.sqrt(cin * 16.0)
        return (jax.random.normal(next(keys), (cin, cout, 4, 4),
                                  jnp.float32) * scale,
                jax.random.normal(next(keys), (cout,), jnp.float32) * 0.01)

    def lin_p(fin, fout):
        scale = 1.0 / jnp.sqrt(float(fin))
        return (jax.random.normal(next(keys), (fout, fin),
                                  jnp.float32) * scale,
                jax.random.normal(next(keys), (fout,), jnp.float32) * 0.01)

    p = {}
    p["enc1"] = conv_p(in_channels, base)
    p["enc2"] = conv_p(base, base * 2)
    p["enc3"] = conv_p(base * 2, base * 4)
    p["enc4"] = conv_p(base * 4, base * 8)
    p["enc5"] = conv_p(base * 8, base * 8)
    p["fc_mu"] = lin_p(feat, z_dim)
    p["fc_logvar"] = lin_p(feat, z_dim)
    p["fc_dec"] = lin_p(z_dim, feat)
    p["dec5"] = convT_p(C, C)
    p["dec4"] = convT_p(C + base * 8, base * 4)
    p["dec3"] = convT_p(base * 4 + base * 4, base * 2)
    p["dec2"] = convT_p(base * 2 + base * 2, base)
    p["dec1"] = convT_p(base + base, in_channels)
    return p


def _prep_conv_weight(w):
    """(Cout,Cin,4,4) -> (2,2, 4*Cin, Cout) matching the space-to-depth layout."""
    co, ci, _, _ = w.shape
    wr = w.reshape(co, ci, 2, 2, 2, 2)                  # (co, ci, a, p, b, q)
    w2 = jnp.transpose(wr, (2, 4, 3, 5, 1, 0))          # (a, b, p, q, ci, co)
    return w2.reshape(2, 2, 4 * ci, co).astype(jnp.bfloat16)


def _prep_convT_weight(w):
    """(Cin,Cout,4,4) -> (2,2, Cin, 4*Cout) for the sub-pixel decomposition."""
    ci, co, _, _ = w.shape
    wf = w[:, :, ::-1, ::-1]                            # wf[t,u] = w[3-t,3-u]
    wr = wf.reshape(ci, co, 2, 2, 2, 2)                 # (ci, co, a, r, b, c)
    w2 = jnp.transpose(wr, (2, 4, 0, 3, 5, 1))          # (a, b, ci, r, c, co)
    return w2.reshape(2, 2, ci, 4 * co).astype(jnp.bfloat16)


def prepare_params(p):
    """Convert PyTorch-layout params to kernel-ready bf16 weights / f32 biases."""
    q = {}
    for name in ("enc1", "enc2", "enc3", "enc4", "enc5"):
        w, b = p[name]
        q[name] = (_prep_conv_weight(w), b.reshape(1, -1).astype(jnp.float32))
    for name in ("dec5", "dec4", "dec3", "dec2", "dec1"):
        w, b = p[name]
        q[name] = (_prep_convT_weight(w),
                   jnp.tile(b, 4).reshape(1, -1).astype(jnp.float32))
    w_mu, b_mu = p["fc_mu"]
    w_lv, b_lv = p["fc_logvar"]
    q["fc_mulv_w"] = jnp.concatenate([w_mu.T, w_lv.T], axis=1).astype(jnp.bfloat16)
    q["fc_mulv_b"] = jnp.concatenate([b_mu, b_lv]).reshape(1, -1).astype(jnp.float32)
    w_d, b_d = p["fc_dec"]
    q["fc_dec_w"] = w_d.T.astype(jnp.bfloat16)
    q["fc_dec_b"] = b_d.reshape(1, -1).astype(jnp.float32)
    return q


# ----------------------------------------------------------------------------
# Forward pass (mirrors ConvVAE.forward)
# ----------------------------------------------------------------------------
@jax.jit
def conv_vae_forward(params, x_nchw, eps):
    # --- encode ---
    x = jnp.transpose(x_nchw, (0, 2, 3, 1))              # NCHW -> NHWC
    e1 = conv2d_s2(x, *params["enc1"], act="relu")
    e2 = conv2d_s2(e1, *params["enc2"], act="relu")
    e3 = conv2d_s2(e2, *params["enc3"], act="relu")
    e4 = conv2d_s2(e3, *params["enc4"], act="relu")
    e5 = conv2d_s2(e4, *params["enc5"], act="relu")

    b, h, w, c = e5.shape
    # PyTorch flattens e5 in NCHW order.
    flat = jnp.transpose(e5, (0, 3, 1, 2)).reshape(b, c * h * w)

    # --- fused fc_mu / fc_logvar / reparameterize ---
    mu, logvar, z = fc_mu_logvar_reparam(
        flat, params["fc_mulv_w"], params["fc_mulv_b"], eps)

    # --- decode ---
    feat = matmul_bias(z, params["fc_dec_w"], params["fc_dec_b"],
                       out_dtype=jnp.bfloat16)
    d5in = jnp.transpose(feat.reshape(b, c, h, w), (0, 2, 3, 1))   # -> NHWC
    d5 = conv_transpose2d_s2(d5in, *params["dec5"], act="relu")
    d4 = conv_transpose2d_s2(jnp.concatenate([d5, e4], axis=-1),
                             *params["dec4"], act="relu")
    d3 = conv_transpose2d_s2(jnp.concatenate([d4, e3], axis=-1),
                             *params["dec3"], act="relu")
    d2 = conv_transpose2d_s2(jnp.concatenate([d3, e2], axis=-1),
                             *params["dec2"], act="relu")
    out = conv_transpose2d_s2(jnp.concatenate([d2, e1], axis=-1),
                              *params["dec1"], act="sigmoid",
                              out_dtype=jnp.float32)
    x_recon = jnp.transpose(out, (0, 3, 1, 2))            # NHWC -> NCHW
    return x_recon, mu, logvar


# ----------------------------------------------------------------------------
# Driver
# ----------------------------------------------------------------------------
if __name__ == "__main__":
    # Small shapes consistent with the module: img_size must be a multiple of 32.
    B, IN_CH, IMG, BASE, Z = 2, 1, 32, 8, 16

    key = jax.random.PRNGKey(0)
    k_param, k_x, k_eps = jax.random.split(key, 3)

    torch_layout_params = init_params(k_param, z_dim=Z, in_channels=IN_CH,
                                      base=BASE, img_size=IMG)
    params = prepare_params(torch_layout_params)

    x = jax.random.normal(k_x, (B, IN_CH, IMG, IMG), jnp.float32)
    eps = jax.random.normal(k_eps, (B, Z), jnp.float32)   # torch.randn_like

    x_recon, mu, logvar = conv_vae_forward(params, x, eps)
    jax.block_until_ready((x_recon, mu, logvar))

    assert x_recon.shape == (B, IN_CH, IMG, IMG), x_recon.shape
    assert mu.shape == (B, Z) and logvar.shape == (B, Z)
    assert bool(jnp.all(jnp.isfinite(x_recon)))
    assert bool(jnp.all((x_recon >= 0.0) & (x_recon <= 1.0)))   # sigmoid range

    print("KERNEL_OK")
</pallas_src>

<mosaic_0001>
module attributes {stable_mosaic.version = 11 : i64} {
  func.func @_conv2x2_kernel(%arg0: i32, %arg1: memref<1x17x17x4xbf16, #tpu.memory_space<vmem>>, %arg2: memref<2x2x4x8xbf16, #tpu.memory_space<vmem>>, %arg3: memref<1x8xf32, #tpu.memory_space<vmem>>, %arg4: memref<1x16x16x8xbf16, #tpu.memory_space<vmem>>) attributes {dimension_semantics = [#tpu.dimension_semantics<parallel>], iteration_bounds = array<i64: 2>, scalar_prefetch = 0 : i64, scratch_operands = 0 : i64, tpu.core_type = #tpu.core_type<tc>, window_params = [{transform_indices = @transform_0, window_bounds = array<i64: 1, 17, 17, 4>}, {pipeline_mode = #tpu.pipeline_mode<synchronous>, transform_indices = @transform_1, window_bounds = array<i64: 2, 2, 4, 8>}, {pipeline_mode = #tpu.pipeline_mode<synchronous>, transform_indices = @transform_2, window_bounds = array<i64: 1, 8>}, {transform_indices = @transform_3, window_bounds = array<i64: 1, 16, 16, 8>}]} {
    %c0 = arith.constant 0 : index
    %c0_0 = arith.constant 0 : index
    %c0_1 = arith.constant 0 : index
    %c0_2 = arith.constant 0 : index
    %0 = vector.load %arg2[%c0, %c0_0, %c0_1, %c0_2] : memref<2x2x4x8xbf16, #tpu.memory_space<vmem>>, vector<1x1x4x8xbf16>
    %1 = vector.shape_cast %0 : vector<1x1x4x8xbf16> to vector<4x8xbf16>
    %c0_3 = arith.constant 0 : index
    %c1 = arith.constant 1 : index
    %c0_4 = arith.constant 0 : index
    %c0_5 = arith.constant 0 : index
    %2 = vector.load %arg2[%c0_3, %c1, %c0_4, %c0_5] : memref<2x2x4x8xbf16, #tpu.memory_space<vmem>>, vector<1x1x4x8xbf16>
    %3 = vector.shape_cast %2 : vector<1x1x4x8xbf16> to vector<4x8xbf16>
    %c1_6 = arith.constant 1 : index
    %c0_7 = arith.constant 0 : index
    %c0_8 = arith.constant 0 : index
    %c0_9 = arith.constant 0 : index
    %4 = vector.load %arg2[%c1_6, %c0_7, %c0_8, %c0_9] : memref<2x2x4x8xbf16, #tpu.memory_space<vmem>>, vector<1x1x4x8xbf16>
    %5 = vector.shape_cast %4 : vector<1x1x4x8xbf16> to vector<4x8xbf16>
    %c1_10 = arith.constant 1 : index
    %c1_11 = arith.constant 1 : index
    %c0_12 = arith.constant 0 : index
    %c0_13 = arith.constant 0 : index
    %6 = vector.load %arg2[%c1_10, %c1_11, %c0_12, %c0_13] : memref<2x2x4x8xbf16, #tpu.memory_space<vmem>>, vector<1x1x4x8xbf16>
    %7 = vector.shape_cast %6 : vector<1x1x4x8xbf16> to vector<4x8xbf16>
    %c0_14 = arith.constant 0 : index
    %c0_15 = arith.constant 0 : index
    %8 = vector.load %arg3[%c0_14, %c0_15] : memref<1x8xf32, #tpu.memory_space<vmem>>, vector<1x8xf32>
    %c0_i32 = arith.constant 0 : i32
    %c16_i32 = arith.constant 16 : i32
    %9 = arith.addi %c0_i32, %c16_i32 : i32
    %c1_i32 = arith.constant 1 : i32
    scf.for %arg5 = %c0_i32 to %9 step %c1_i32  : i32 {
      %c0_17 = arith.constant 0 : index
      %10 = arith.index_cast %arg5 : i32 to index
      %c0_18 = arith.constant 0 : index
      %c0_19 = arith.constant 0 : index
      %11 = vector.load %arg1[%c0_17, %10, %c0_18, %c0_19] : memref<1x17x17x4xbf16, #tpu.memory_space<vmem>>, vector<1x2x17x4xbf16>
      %12 = vector.shape_cast %11 : vector<1x2x17x4xbf16> to vector<2x17x4xbf16>
      %13 = vector.extract_strided_slice %12 {offsets = [0, 0, 0], sizes = [1, 17, 4], strides = [1, 1, 1]} : vector<2x17x4xbf16> to vector<1x17x4xbf16>
      %14 = vector.shape_cast %13 : vector<1x17x4xbf16> to vector<17x4xbf16>
      %15 = vector.extract_strided_slice %12 {offsets = [1, 0, 0], sizes = [1, 17, 4], strides = [1, 1, 1]} : vector<2x17x4xbf16> to vector<1x17x4xbf16>
      %16 = vector.shape_cast %15 : vector<1x17x4xbf16> to vector<17x4xbf16>
      %cst = arith.constant dense<0.000000e+00> : vector<17x8xf32>
      %17 = tpu.matmul %14, %1, %cst {dimension_numbers = #tpu.dot_dimension_numbers<[1], [0], [0], [1], [0, 0, 1, 1], [], []>} : vector<17x4xbf16>, vector<4x8xbf16>, vector<17x8xf32> -> vector<17x8xf32>
      %cst_20 = arith.constant dense<0.000000e+00> : vector<17x8xf32>
      %18 = tpu.matmul %14, %3, %cst_20 {dimension_numbers = #tpu.dot_dimension_numbers<[1], [0], [0], [1], [0, 0, 1, 1], [], []>} : vector<17x4xbf16>, vector<4x8xbf16>, vector<17x8xf32> -> vector<17x8xf32>
      %cst_21 = arith.constant dense<0.000000e+00> : vector<17x8xf32>
      %19 = tpu.matmul %16, %5, %cst_21 {dimension_numbers = #tpu.dot_dimension_numbers<[1], [0], [0], [1], [0, 0, 1, 1], [], []>} : vector<17x4xbf16>, vector<4x8xbf16>, vector<17x8xf32> -> vector<17x8xf32>
      %cst_22 = arith.constant dense<0.000000e+00> : vector<17x8xf32>
      %20 = tpu.matmul %16, %7, %cst_22 {dimension_numbers = #tpu.dot_dimension_numbers<[1], [0], [0], [1], [0, 0, 1, 1], [], []>} : vector<17x4xbf16>, vector<4x8xbf16>, vector<17x8xf32> -> vector<17x8xf32>
      %21 = vector.extract_strided_slice %17 {offsets = [0, 0], sizes = [16, 8], strides = [1, 1]} : vector<17x8xf32> to vector<16x8xf32>
      %22 = vector.extract_strided_slice %19 {offsets = [0, 0], sizes = [16, 8], strides = [1, 1]} : vector<17x8xf32> to vector<16x8xf32>
      %23 = arith.addf %21, %22 : vector<16x8xf32>
      %24 = vector.extract_strided_slice %18 {offsets = [1, 0], sizes = [16, 8], strides = [1, 1]} : vector<17x8xf32> to vector<16x8xf32>
      %25 = arith.addf %23, %24 : vector<16x8xf32>
      %26 = vector.extract_strided_slice %20 {offsets = [1, 0], sizes = [16, 8], strides = [1, 1]} : vector<17x8xf32> to vector<16x8xf32>
      %27 = arith.addf %25, %26 : vector<16x8xf32>
      %28 = vector.broadcast %8 : vector<1x8xf32> to vector<16x8xf32>
      %29 = arith.addf %27, %28 : vector<16x8xf32>
      %cst_23 = arith.constant 0.000000e+00 : f32
      %30 = vector.broadcast %cst_23 : f32 to vector<16x8xf32>
      %31 = arith.maximumf %29, %30 : vector<16x8xf32>
      %32 = vector.shape_cast %31 : vector<16x8xf32> to vector<1x16x8xf32>
      %33 = arith.truncf %32 : vector<1x16x8xf32> to vector<1x16x8xbf16>
      %c0_24 = arith.constant 0 : index
      %34 = arith.index_cast %arg5 : i32 to index
      %c0_25 = arith.constant 0 : index
      %c0_26 = arith.constant 0 : index
      %35 = vector.load %arg4[%c0_24, %34, %c0_25, %c0_26] : memref<1x16x16x8xbf16, #tpu.memory_space<vmem>>, vector<1x1x16x8xbf16>
      %36 = vector.shape_cast %35 : vector<1x1x16x8xbf16> to vector<1x16x8xbf16>
      %37 = vector.shape_cast %33 : vector<1x16x8xbf16> to vector<1x1x16x8xbf16>
      tpu.vector_store %arg4[%c0_24, %34, %c0_25, %c0_26], %37 {strides = array<i32>} : memref<1x16x16x8xbf16, #tpu.memory_space<vmem>>, vector<1x1x16x8xbf16>,
    }
    %c16_i32_16 = arith.constant 16 : i32
    return
  }
  func.func @transform_0(%arg0: i32) -> (i32, i32, i32, i32) {
    %c0_i32 = arith.constant 0 : i32
    %c0_i32_0 = arith.constant 0 : i32
    %c0_i32_1 = arith.constant 0 : i32
    %c0_i32_2 = arith.constant 0 : i32
    return %arg0, %c0_i32, %c0_i32_0, %c0_i32_1 : i32, i32, i32, i32
  }
  func.func @transform_1(%arg0: i32) -> (i32, i32, i32, i32) {
    %c0_i32 = arith.constant 0 : i32
    %c0_i32_0 = arith.constant 0 : i32
    %c0_i32_1 = arith.constant 0 : i32
    %c0_i32_2 = arith.constant 0 : i32
    %c0_i32_3 = arith.constant 0 : i32
    return %c0_i32, %c0_i32_0, %c0_i32_1, %c0_i32_2 : i32, i32, i32, i32
  }
  func.func @transform_2(%arg0: i32) -> (i32, i32) {
    %c0_i32 = arith.constant 0 : i32
    %c0_i32_0 = arith.constant 0 : i32
    %c0_i32_1 = arith.constant 0 : i32
    return %c0_i32, %c0_i32_0 : i32, i32
  }
  func.func @transform_3(%arg0: i32) -> (i32, i32, i32, i32) {
    %c0_i32 = arith.constant 0 : i32
    %c0_i32_0 = arith.constant 0 : i32
    %c0_i32_1 = arith.constant 0 : i32
    %c0_i32_2 = arith.constant 0 : i32
    return %arg0, %c0_i32, %c0_i32_0, %c0_i32_1 : i32, i32, i32, i32
  }
}

module attributes {stable_mosaic.version = 11 : i64} {
  func.func @_conv2x2_kernel(%arg0: i32, %arg1: memref<1x9x9x32xbf16, #tpu.memory_space<vmem>>, %arg2: memref<2x2x32x16xbf16, #tpu.memory_space<vmem>>, %arg3: memref<1x16xf32, #tpu.memory_space<vmem>>, %arg4: memref<1x8x8x16xbf16, #tpu.memory_space<vmem>>) attributes {dimension_semantics = [#tpu.dimension_semantics<parallel>], iteration_bounds = array<i64: 2>, scalar_prefetch = 0 : i64, scratch_operands = 0 : i64, tpu.core_type = #tpu.core_type<tc>, window_params = [{transform_indices = @transform_0, window_bounds = array<i64: 1, 9, 9, 32>}, {pipeline_mode = #tpu.pipeline_mode<synchronous>, transform_indices = @transform_1, window_bounds = array<i64: 2, 2, 32, 16>}, {pipeline_mode = #tpu.pipeline_mode<synchronous>, transform_indices = @transform_2, window_bounds = array<i64: 1, 16>}, {transform_indices = @transform_3, window_bounds = array<i64: 1, 8, 8, 16>}]} {
    %c0 = arith.constant 0 : index
    %c0_0 = arith.constant 0 : index
    %c0_1 = arith.constant 0 : index
    %c0_2 = arith.constant 0 : index
    %0 = vector.load %arg2[%c0, %c0_0, %c0_1, %c0_2] : memref<2x2x32x16xbf16, #tpu.memory_space<vmem>>, vector<1x1x32x16xbf16>
    %1 = vector.shape_cast %0 : vector<1x1x32x16xbf16> to vector<32x16xbf16>
    %c0_3 = arith.constant 0 : index
    %c1 = arith.constant 1 : index
    %c0_4 = arith.constant 0 : index
    %c0_5 = arith.constant 0 : index
    %2 = vector.load %arg2[%c0_3, %c1, %c0_4, %c0_5] : memref<2x2x32x16xbf16, #tpu.memory_space<vmem>>, vector<1x1x32x16xbf16>
    %3 = vector.shape_cast %2 : vector<1x1x32x16xbf16> to vector<32x16xbf16>
    %c1_6 = arith.constant 1 : index
    %c0_7 = arith.constant 0 : index
    %c0_8 = arith.constant 0 : index
    %c0_9 = arith.constant 0 : index
    %4 = vector.load %arg2[%c1_6, %c0_7, %c0_8, %c0_9] : memref<2x2x32x16xbf16, #tpu.memory_space<vmem>>, vector<1x1x32x16xbf16>
    %5 = vector.shape_cast %4 : vector<1x1x32x16xbf16> to vector<32x16xbf16>
    %c1_10 = arith.constant 1 : index
    %c1_11 = arith.constant 1 : index
    %c0_12 = arith.constant 0 : index
    %c0_13 = arith.constant 0 : index
    %6 = vector.load %arg2[%c1_10, %c1_11, %c0_12, %c0_13] : memref<2x2x32x16xbf16, #tpu.memory_space<vmem>>, vector<1x1x32x16xbf16>
    %7 = vector.shape_cast %6 : vector<1x1x32x16xbf16> to vector<32x16xbf16>
    %c0_14 = arith.constant 0 : index
    %c0_15 = arith.constant 0 : index
    %8 = vector.load %arg3[%c0_14, %c0_15] : memref<1x16xf32, #tpu.memory_space<vmem>>, vector<1x16xf32>
    %c0_i32 = arith.constant 0 : i32
    %c8_i32 = arith.constant 8 : i32
    %9 = arith.addi %c0_i32, %c8_i32 : i32
    %c1_i32 = arith.constant 1 : i32
    scf.for %arg5 = %c0_i32 to %9 step %c1_i32  : i32 {
      %c0_17 = arith.constant 0 : index
      %10 = arith.index_cast %arg5 : i32 to index
      %c0_18 = arith.constant 0 : index
      %c0_19 = arith.constant 0 : index
      %11 = vector.load %arg1[%c0_17, %10, %c0_18, %c0_19] : memref<1x9x9x32xbf16, #tpu.memory_space<vmem>>, vector<1x2x9x32xbf16>
      %12 = vector.shape_cast %11 : vector<1x2x9x32xbf16> to vector<2x9x32xbf16>
      %13 = vector.extract_strided_slice %12 {offsets = [0, 0, 0], sizes = [1, 9, 32], strides = [1, 1, 1]} : vector<2x9x32xbf16> to vector<1x9x32xbf16>
      %14 = vector.shape_cast %13 : vector<1x9x32xbf16> to vector<9x32xbf16>
      %15 = vector.extract_strided_slice %12 {offsets = [1, 0, 0], sizes = [1, 9, 32], strides = [1, 1, 1]} : vector<2x9x32xbf16> to vector<1x9x32xbf16>
      %16 = vector.shape_cast %15 : vector<1x9x32xbf16> to vector<9x32xbf16>
      %cst = arith.constant dense<0.000000e+00> : vector<9x16xf32>
      %17 = tpu.matmul %14, %1, %cst {dimension_numbers = #tpu.dot_dimension_numbers<[1], [0], [0], [1], [0, 0, 1, 1], [], []>} : vector<9x32xbf16>, vector<32x16xbf16>, vector<9x16xf32> -> vector<9x16xf32>
      %cst_20 = arith.constant dense<0.000000e+00> : vector<9x16xf32>
      %18 = tpu.matmul %14, %3, %cst_20 {dimension_numbers = #tpu.dot_dimension_numbers<[1], [0], [0], [1], [0, 0, 1, 1], [], []>} : vector<9x32xbf16>, vector<32x16xbf16>, vector<9x16xf32> -> vector<9x16xf32>
      %cst_21 = arith.constant dense<0.000000e+00> : vector<9x16xf32>
      %19 = tpu.matmul %16, %5, %cst_21 {dimension_numbers = #tpu.dot_dimension_numbers<[1], [0], [0], [1], [0, 0, 1, 1], [], []>} : vector<9x32xbf16>, vector<32x16xbf16>, vector<9x16xf32> -> vector<9x16xf32>
      %cst_22 = arith.constant dense<0.000000e+00> : vector<9x16xf32>
      %20 = tpu.matmul %16, %7, %cst_22 {dimension_numbers = #tpu.dot_dimension_numbers<[1], [0], [0], [1], [0, 0, 1, 1], [], []>} : vector<9x32xbf16>, vector<32x16xbf16>, vector<9x16xf32> -> vector<9x16xf32>
      %21 = vector.extract_strided_slice %17 {offsets = [0, 0], sizes = [8, 16], strides = [1, 1]} : vector<9x16xf32> to vector<8x16xf32>
      %22 = vector.extract_strided_slice %19 {offsets = [0, 0], sizes = [8, 16], strides = [1, 1]} : vector<9x16xf32> to vector<8x16xf32>
      %23 = arith.addf %21, %22 : vector<8x16xf32>
      %24 = vector.extract_strided_slice %18 {offsets = [1, 0], sizes = [8, 16], strides = [1, 1]} : vector<9x16xf32> to vector<8x16xf32>
      %25 = arith.addf %23, %24 : vector<8x16xf32>
      %26 = vector.extract_strided_slice %20 {offsets = [1, 0], sizes = [8, 16], strides = [1, 1]} : vector<9x16xf32> to vector<8x16xf32>
      %27 = arith.addf %25, %26 : vector<8x16xf32>
      %28 = vector.broadcast %8 : vector<1x16xf32> to vector<8x16xf32>
      %29 = arith.addf %27, %28 : vector<8x16xf32>
      %cst_23 = arith.constant 0.000000e+00 : f32
      %30 = vector.broadcast %cst_23 : f32 to vector<8x16xf32>
      %31 = arith.maximumf %29, %30 : vector<8x16xf32>
      %32 = vector.shape_cast %31 : vector<8x16xf32> to vector<1x8x16xf32>
      %33 = arith.truncf %32 : vector<1x8x16xf32> to vector<1x8x16xbf16>
      %c0_24 = arith.constant 0 : index
      %34 = arith.index_cast %arg5 : i32 to index
      %c0_25 = arith.constant 0 : index
      %c0_26 = arith.constant 0 : index
      %35 = vector.load %arg4[%c0_24, %34, %c0_25, %c0_26] : memref<1x8x8x16xbf16, #tpu.memory_space<vmem>>, vector<1x1x8x16xbf16>
      %36 = vector.shape_cast %35 : vector<1x1x8x16xbf16> to vector<1x8x16xbf16>
      %37 = vector.shape_cast %33 : vector<1x8x16xbf16> to vector<1x1x8x16xbf16>
      tpu.vector_store %arg4[%c0_24, %34, %c0_25, %c0_26], %37 {strides = array<i32>} : memref<1x8x8x16xbf16, #tpu.memory_space<vmem>>, vector<1x1x8x16xbf16>,
    }
    %c8_i32_16 = arith.constant 8 : i32
    return
  }
  func.func @transform_0(%arg0: i32) -> (i32, i32, i32, i32) {
    %c0_i32 = arith.constant 0 : i32
    %c0_i32_0 = arith.constant 0 : i32
    %c0_i32_1 = arith.constant 0 : i32
    %c0_i32_2 = arith.constant 0 : i32
    return %arg0, %c0_i32, %c0_i32_0, %c0_i32_1 : i32, i32, i32, i32
  }
  func.func @transform_1(%arg0: i32) -> (i32, i32, i32, i32) {
    %c0_i32 = arith.constant 0 : i32
    %c0_i32_0 = arith.constant 0 : i32
    %c0_i32_1 = arith.constant 0 : i32
    %c0_i32_2 = arith.constant 0 : i32
    %c0_i32_3 = arith.constant 0 : i32
    return %c0_i32, %c0_i32_0, %c0_i32_1, %c0_i32_2 : i32, i32, i32, i32
  }
  func.func @transform_2(%arg0: i32) -> (i32, i32) {
    %c0_i32 = arith.constant 0 : i32
    %c0_i32_0 = arith.constant 0 : i32
    %c0_i32_1 = arith.constant 0 : i32
    return %c0_i32, %c0_i32_0 : i32, i32
  }
  func.func @transform_3(%arg0: i32) -> (i32, i32, i32, i32) {
    %c0_i32 = arith.constant 0 : i32
    %c0_i32_0 = arith.constant 0 : i32
    %c0_i32_1 = arith.constant 0 : i32
    %c0_i32_2 = arith.constant 0 : i32
    return %arg0, %c0_i32, %c0_i32_0, %c0_i32_1 : i32, i32, i32, i32
  }
}

module attributes {stable_mosaic.version = 11 : i64} {
  func.func @_conv2x2_kernel(%arg0: i32, %arg1: memref<1x5x5x64xbf16, #tpu.memory_space<vmem>>, %arg2: memref<2x2x64x32xbf16, #tpu.memory_space<vmem>>, %arg3: memref<1x32xf32, #tpu.memory_space<vmem>>, %arg4: memref<1x4x4x32xbf16, #tpu.memory_space<vmem>>) attributes {dimension_semantics = [#tpu.dimension_semantics<parallel>], iteration_bounds = array<i64: 2>, scalar_prefetch = 0 : i64, scratch_operands = 0 : i64, tpu.core_type = #tpu.core_type<tc>, window_params = [{transform_indices = @transform_0, window_bounds = array<i64: 1, 5, 5, 64>}, {pipeline_mode = #tpu.pipeline_mode<synchronous>, transform_indices = @transform_1, window_bounds = array<i64: 2, 2, 64, 32>}, {pipeline_mode = #tpu.pipeline_mode<synchronous>, transform_indices = @transform_2, window_bounds = array<i64: 1, 32>}, {transform_indices = @transform_3, window_bounds = array<i64: 1, 4, 4, 32>}]} {
    %c0 = arith.constant 0 : index
    %c0_0 = arith.constant 0 : index
    %c0_1 = arith.constant 0 : index
    %c0_2 = arith.constant 0 : index
    %0 = vector.load %arg2[%c0, %c0_0, %c0_1, %c0_2] : memref<2x2x64x32xbf16, #tpu.memory_space<vmem>>, vector<1x1x64x32xbf16>
    %1 = vector.shape_cast %0 : vector<1x1x64x32xbf16> to vector<64x32xbf16>
    %c0_3 = arith.constant 0 : index
    %c1 = arith.constant 1 : index
    %c0_4 = arith.constant 0 : index
    %c0_5 = arith.constant 0 : index
    %2 = vector.load %arg2[%c0_3, %c1, %c0_4, %c0_5] : memref<2x2x64x32xbf16, #tpu.memory_space<vmem>>, vector<1x1x64x32xbf16>
    %3 = vector.shape_cast %2 : vector<1x1x64x32xbf16> to vector<64x32xbf16>
    %c1_6 = arith.constant 1 : index
    %c0_7 = arith.constant 0 : index
    %c0_8 = arith.constant 0 : index
    %c0_9 = arith.constant 0 : index
    %4 = vector.load %arg2[%c1_6, %c0_7, %c0_8, %c0_9] : memref<2x2x64x32xbf16, #tpu.memory_space<vmem>>, vector<1x1x64x32xbf16>
    %5 = vector.shape_cast %4 : vector<1x1x64x32xbf16> to vector<64x32xbf16>
    %c1_10 = arith.constant 1 : index
    %c1_11 = arith.constant 1 : index
    %c0_12 = arith.constant 0 : index
    %c0_13 = arith.constant 0 : index
    %6 = vector.load %arg2[%c1_10, %c1_11, %c0_12, %c0_13] : memref<2x2x64x32xbf16, #tpu.memory_space<vmem>>, vector<1x1x64x32xbf16>
    %7 = vector.shape_cast %6 : vector<1x1x64x32xbf16> to vector<64x32xbf16>
    %c0_14 = arith.constant 0 : index
    %c0_15 = arith.constant 0 : index
    %8 = vector.load %arg3[%c0_14, %c0_15] : memref<1x32xf32, #tpu.memory_space<vmem>>, vector<1x32xf32>
    %c0_i32 = arith.constant 0 : i32
    %c4_i32 = arith.constant 4 : i32
    %9 = arith.addi %c0_i32, %c4_i32 : i32
    %c1_i32 = arith.constant 1 : i32
    scf.for %arg5 = %c0_i32 to %9 step %c1_i32  : i32 {
      %c0_17 = arith.constant 0 : index
      %10 = arith.index_cast %arg5 : i32 to index
      %c0_18 = arith.constant 0 : index
      %c0_19 = arith.constant 0 : index
      %11 = vector.load %arg1[%c0_17, %10, %c0_18, %c0_19] : memref<1x5x5x64xbf16, #tpu.memory_space<vmem>>, vector<1x2x5x64xbf16>
      %12 = vector.shape_cast %11 : vector<1x2x5x64xbf16> to vector<2x5x64xbf16>
      %13 = vector.extract_strided_slice %12 {offsets = [0, 0, 0], sizes = [1, 5, 64], strides = [1, 1, 1]} : vector<2x5x64xbf16> to vector<1x5x64xbf16>
      %14 = vector.shape_cast %13 : vector<1x5x64xbf16> to vector<5x64xbf16>
      %15 = vector.extract_strided_slice %12 {offsets = [1, 0, 0], sizes = [1, 5, 64], strides = [1, 1, 1]} : vector<2x5x64xbf16> to vector<1x5x64xbf16>
      %16 = vector.shape_cast %15 : vector<1x5x64xbf16> to vector<5x64xbf16>
      %cst = arith.constant dense<0.000000e+00> : vector<5x32xf32>
      %17 = tpu.matmul %14, %1, %cst {dimension_numbers = #tpu.dot_dimension_numbers<[1], [0], [0], [1], [0, 0, 1, 1], [], []>} : vector<5x64xbf16>, vector<64x32xbf16>, vector<5x32xf32> -> vector<5x32xf32>
      %cst_20 = arith.constant dense<0.000000e+00> : vector<5x32xf32>
      %18 = tpu.matmul %14, %3, %cst_20 {dimension_numbers = #tpu.dot_dimension_numbers<[1], [0], [0], [1], [0, 0, 1, 1], [], []>} : vector<5x64xbf16>, vector<64x32xbf16>, vector<5x32xf32> -> vector<5x32xf32>
      %cst_21 = arith.constant dense<0.000000e+00> : vector<5x32xf32>
      %19 = tpu.matmul %16, %5, %cst_21 {dimension_numbers = #tpu.dot_dimension_numbers<[1], [0], [0], [1], [0, 0, 1, 1], [], []>} : vector<5x64xbf16>, vector<64x32xbf16>, vector<5x32xf32> -> vector<5x32xf32>
      %cst_22 = arith.constant dense<0.000000e+00> : vector<5x32xf32>
      %20 = tpu.matmul %16, %7, %cst_22 {dimension_numbers = #tpu.dot_dimension_numbers<[1], [0], [0], [1], [0, 0, 1, 1], [], []>} : vector<5x64xbf16>, vector<64x32xbf16>, vector<5x32xf32> -> vector<5x32xf32>
      %21 = vector.extract_strided_slice %17 {offsets = [0, 0], sizes = [4, 32], strides = [1, 1]} : vector<5x32xf32> to vector<4x32xf32>
      %22 = vector.extract_strided_slice %19 {offsets = [0, 0], sizes = [4, 32], strides = [1, 1]} : vector<5x32xf32> to vector<4x32xf32>
      %23 = arith.addf %21, %22 : vector<4x32xf32>
      %24 = vector.extract_strided_slice %18 {offsets = [1, 0], sizes = [4, 32], strides = [1, 1]} : vector<5x32xf32> to vector<4x32xf32>
      %25 = arith.addf %23, %24 : vector<4x32xf32>
      %26 = vector.extract_strided_slice %20 {offsets = [1, 0], sizes = [4, 32], strides = [1, 1]} : vector<5x32xf32> to vector<4x32xf32>
      %27 = arith.addf %25, %26 : vector<4x32xf32>
      %28 = vector.broadcast %8 : vector<1x32xf32> to vector<4x32xf32>
      %29 = arith.addf %27, %28 : vector<4x32xf32>
      %cst_23 = arith.constant 0.000000e+00 : f32
      %30 = vector.broadcast %cst_23 : f32 to vector<4x32xf32>
      %31 = arith.maximumf %29, %30 : vector<4x32xf32>
      %32 = vector.shape_cast %31 : vector<4x32xf32> to vector<1x4x32xf32>
      %33 = arith.truncf %32 : vector<1x4x32xf32> to vector<1x4x32xbf16>
      %c0_24 = arith.constant 0 : index
      %34 = arith.index_cast %arg5 : i32 to index
      %c0_25 = arith.constant 0 : index
      %c0_26 = arith.constant 0 : index
      %35 = vector.load %arg4[%c0_24, %34, %c0_25, %c0_26] : memref<1x4x4x32xbf16, #tpu.memory_space<vmem>>, vector<1x1x4x32xbf16>
      %36 = vector.shape_cast %35 : vector<1x1x4x32xbf16> to vector<1x4x32xbf16>
      %37 = vector.shape_cast %33 : vector<1x4x32xbf16> to vector<1x1x4x32xbf16>
      tpu.vector_store %arg4[%c0_24, %34, %c0_25, %c0_26], %37 {strides = array<i32>} : memref<1x4x4x32xbf16, #tpu.memory_space<vmem>>, vector<1x1x4x32xbf16>,
    }
    %c4_i32_16 = arith.constant 4 : i32
    return
  }
  func.func @transform_0(%arg0: i32) -> (i32, i32, i32, i32) {
    %c0_i32 = arith.constant 0 : i32
    %c0_i32_0 = arith.constant 0 : i32
    %c0_i32_1 = arith.constant 0 : i32
    %c0_i32_2 = arith.constant 0 : i32
    return %arg0, %c0_i32, %c0_i32_0, %c0_i32_1 : i32, i32, i32, i32
  }
  func.func @transform_1(%arg0: i32) -> (i32, i32, i32, i32) {
    %c0_i32 = arith.constant 0 : i32
    %c0_i32_0 = arith.constant 0 : i32
    %c0_i32_1 = arith.constant 0 : i32
    %c0_i32_2 = arith.constant 0 : i32
    %c0_i32_3 = arith.constant 0 : i32
    return %c0_i32, %c0_i32_0, %c0_i32_1, %c0_i32_2 : i32, i32, i32, i32
  }
  func.func @transform_2(%arg0: i32) -> (i32, i32) {
    %c0_i32 = arith.constant 0 : i32
    %c0_i32_0 = arith.constant 0 : i32
    %c0_i32_1 = arith.constant 0 : i32
    return %c0_i32, %c0_i32_0 : i32, i32
  }
  func.func @transform_3(%arg0: i32) -> (i32, i32, i32, i32) {
    %c0_i32 = arith.constant 0 : i32
    %c0_i32_0 = arith.constant 0 : i32
    %c0_i32_1 = arith.constant 0 : i32
    %c0_i32_2 = arith.constant 0 : i32
    return %arg0, %c0_i32, %c0_i32_0, %c0_i32_1 : i32, i32, i32, i32
  }
}

module attributes {stable_mosaic.version = 11 : i64} {
  func.func @_conv2x2_kernel(%arg0: i32, %arg1: memref<1x3x3x128xbf16, #tpu.memory_space<vmem>>, %arg2: memref<2x2x128x64xbf16, #tpu.memory_space<vmem>>, %arg3: memref<1x64xf32, #tpu.memory_space<vmem>>, %arg4: memref<1x2x2x64xbf16, #tpu.memory_space<vmem>>) attributes {dimension_semantics = [#tpu.dimension_semantics<parallel>], iteration_bounds = array<i64: 2>, scalar_prefetch = 0 : i64, scratch_operands = 0 : i64, tpu.core_type = #tpu.core_type<tc>, window_params = [{transform_indices = @transform_0, window_bounds = array<i64: 1, 3, 3, 128>}, {pipeline_mode = #tpu.pipeline_mode<synchronous>, transform_indices = @transform_1, window_bounds = array<i64: 2, 2, 128, 64>}, {pipeline_mode = #tpu.pipeline_mode<synchronous>, transform_indices = @transform_2, window_bounds = array<i64: 1, 64>}, {transform_indices = @transform_3, window_bounds = array<i64: 1, 2, 2, 64>}]} {
    %c0 = arith.constant 0 : index
    %c0_0 = arith.constant 0 : index
    %c0_1 = arith.constant 0 : index
    %c0_2 = arith.constant 0 : index
    %0 = vector.load %arg2[%c0, %c0_0, %c0_1, %c0_2] : memref<2x2x128x64xbf16, #tpu.memory_space<vmem>>, vector<1x1x128x64xbf16>
    %1 = vector.shape_cast %0 : vector<1x1x128x64xbf16> to vector<128x64xbf16>
    %c0_3 = arith.constant 0 : index
    %c1 = arith.constant 1 : index
    %c0_4 = arith.constant 0 : index
    %c0_5 = arith.constant 0 : index
    %2 = vector.load %arg2[%c0_3, %c1, %c0_4, %c0_5] : memref<2x2x128x64xbf16, #tpu.memory_space<vmem>>, vector<1x1x128x64xbf16>
    %3 = vector.shape_cast %2 : vector<1x1x128x64xbf16> to vector<128x64xbf16>
    %c1_6 = arith.constant 1 : index
    %c0_7 = arith.constant 0 : index
    %c0_8 = arith.constant 0 : index
    %c0_9 = arith.constant 0 : index
    %4 = vector.load %arg2[%c1_6, %c0_7, %c0_8, %c0_9] : memref<2x2x128x64xbf16, #tpu.memory_space<vmem>>, vector<1x1x128x64xbf16>
    %5 = vector.shape_cast %4 : vector<1x1x128x64xbf16> to vector<128x64xbf16>
    %c1_10 = arith.constant 1 : index
    %c1_11 = arith.constant 1 : index
    %c0_12 = arith.constant 0 : index
    %c0_13 = arith.constant 0 : index
    %6 = vector.load %arg2[%c1_10, %c1_11, %c0_12, %c0_13] : memref<2x2x128x64xbf16, #tpu.memory_space<vmem>>, vector<1x1x128x64xbf16>
    %7 = vector.shape_cast %6 : vector<1x1x128x64xbf16> to vector<128x64xbf16>
    %c0_14 = arith.constant 0 : index
    %c0_15 = arith.constant 0 : index
    %8 = vector.load %arg3[%c0_14, %c0_15] : memref<1x64xf32, #tpu.memory_space<vmem>>, vector<1x64xf32>
    %c0_i32 = arith.constant 0 : i32
    %c2_i32 = arith.constant 2 : i32
    %9 = arith.addi %c0_i32, %c2_i32 : i32
    %c1_i32 = arith.constant 1 : i32
    scf.for %arg5 = %c0_i32 to %9 step %c1_i32  : i32 {
      %c0_17 = arith.constant 0 : index
      %10 = arith.index_cast %arg5 : i32 to index
      %c0_18 = arith.constant 0 : index
      %c0_19 = arith.constant 0 : index
      %11 = vector.load %arg1[%c0_17, %10, %c0_18, %c0_19] : memref<1x3x3x128xbf16, #tpu.memory_space<vmem>>, vector<1x2x3x128xbf16>
      %12 = vector.shape_cast %11 : vector<1x2x3x128xbf16> to vector<2x3x128xbf16>
      %13 = vector.extract_strided_slice %12 {offsets = [0, 0, 0], sizes = [1, 3, 128], strides = [1, 1, 1]} : vector<2x3x128xbf16> to vector<1x3x128xbf16>
      %14 = vector.shape_cast %13 : vector<1x3x128xbf16> to vector<3x128xbf16>
      %15 = vector.extract_strided_slice %12 {offsets = [1, 0, 0], sizes = [1, 3, 128], strides = [1, 1, 1]} : vector<2x3x128xbf16> to vector<1x3x128xbf16>
      %16 = vector.shape_cast %15 : vector<1x3x128xbf16> to vector<3x128xbf16>
      %cst = arith.constant dense<0.000000e+00> : vector<3x64xf32>
      %17 = tpu.matmul %14, %1, %cst {dimension_numbers = #tpu.dot_dimension_numbers<[1], [0], [0], [1], [0, 0, 1, 1], [], []>} : vector<3x128xbf16>, vector<128x64xbf16>, vector<3x64xf32> -> vector<3x64xf32>
      %cst_20 = arith.constant dense<0.000000e+00> : vector<3x64xf32>
      %18 = tpu.matmul %14, %3, %cst_20 {dimension_numbers = #tpu.dot_dimension_numbers<[1], [0], [0], [1], [0, 0, 1, 1], [], []>} : vector<3x128xbf16>, vector<128x64xbf16>, vector<3x64xf32> -> vector<3x64xf32>
      %cst_21 = arith.constant dense<0.000000e+00> : vector<3x64xf32>
      %19 = tpu.matmul %16, %5, %cst_21 {dimension_numbers = #tpu.dot_dimension_numbers<[1], [0], [0], [1], [0, 0, 1, 1], [], []>} : vector<3x128xbf16>, vector<128x64xbf16>, vector<3x64xf32> -> vector<3x64xf32>
      %cst_22 = arith.constant dense<0.000000e+00> : vector<3x64xf32>
      %20 = tpu.matmul %16, %7, %cst_22 {dimension_numbers = #tpu.dot_dimension_numbers<[1], [0], [0], [1], [0, 0, 1, 1], [], []>} : vector<3x128xbf16>, vector<128x64xbf16>, vector<3x64xf32> -> vector<3x64xf32>
      %21 = vector.extract_strided_slice %17 {offsets = [0, 0], sizes = [2, 64], strides = [1, 1]} : vector<3x64xf32> to vector<2x64xf32>
      %22 = vector.extract_strided_slice %19 {offsets = [0, 0], sizes = [2, 64], strides = [1, 1]} : vector<3x64xf32> to vector<2x64xf32>
      %23 = arith.addf %21, %22 : vector<2x64xf32>
      %24 = vector.extract_strided_slice %18 {offsets = [1, 0], sizes = [2, 64], strides = [1, 1]} : vector<3x64xf32> to vector<2x64xf32>
      %25 = arith.addf %23, %24 : vector<2x64xf32>
      %26 = vector.extract_strided_slice %20 {offsets = [1, 0], sizes = [2, 64], strides = [1, 1]} : vector<3x64xf32> to vector<2x64xf32>
      %27 = arith.addf %25, %26 : vector<2x64xf32>
      %28 = vector.broadcast %8 : vector<1x64xf32> to vector<2x64xf32>
      %29 = arith.addf %27, %28 : vector<2x64xf32>
      %cst_23 = arith.constant 0.000000e+00 : f32
      %30 = vector.broadcast %cst_23 : f32 to vector<2x64xf32>
      %31 = arith.maximumf %29, %30 : vector<2x64xf32>
      %32 = vector.shape_cast %31 : vector<2x64xf32> to vector<1x2x64xf32>
      %33 = arith.truncf %32 : vector<1x2x64xf32> to vector<1x2x64xbf16>
      %c0_24 = arith.constant 0 : index
      %34 = arith.index_cast %arg5 : i32 to index
      %c0_25 = arith.constant 0 : index
      %c0_26 = arith.constant 0 : index
      %35 = vector.load %arg4[%c0_24, %34, %c0_25, %c0_26] : memref<1x2x2x64xbf16, #tpu.memory_space<vmem>>, vector<1x1x2x64xbf16>
      %36 = vector.shape_cast %35 : vector<1x1x2x64xbf16> to vector<1x2x64xbf16>
      %37 = vector.shape_cast %33 : vector<1x2x64xbf16> to vector<1x1x2x64xbf16>
      tpu.vector_store %arg4[%c0_24, %34, %c0_25, %c0_26], %37 {strides = array<i32>} : memref<1x2x2x64xbf16, #tpu.memory_space<vmem>>, vector<1x1x2x64xbf16>,
    }
    %c2_i32_16 = arith.constant 2 : i32
    return
  }
  func.func @transform_0(%arg0: i32) -> (i32, i32, i32, i32) {
    %c0_i32 = arith.constant 0 : i32
    %c0_i32_0 = arith.constant 0 : i32
    %c0_i32_1 = arith.constant 0 : i32
    %c0_i32_2 = arith.constant 0 : i32
    return %arg0, %c0_i32, %c0_i32_0, %c0_i32_1 : i32, i32, i32, i32
  }
  func.func @transform_1(%arg0: i32) -> (i32, i32, i32, i32) {
    %c0_i32 = arith.constant 0 : i32
    %c0_i32_0 = arith.constant 0 : i32
    %c0_i32_1 = arith.constant 0 : i32
    %c0_i32_2 = arith.constant 0 : i32
    %c0_i32_3 = arith.constant 0 : i32
    return %c0_i32, %c0_i32_0, %c0_i32_1, %c0_i32_2 : i32, i32, i32, i32
  }
  func.func @transform_2(%arg0: i32) -> (i32, i32) {
    %c0_i32 = arith.constant 0 : i32
    %c0_i32_0 = arith.constant 0 : i32
    %c0_i32_1 = arith.constant 0 : i32
    return %c0_i32, %c0_i32_0 : i32, i32
  }
  func.func @transform_3(%arg0: i32) -> (i32, i32, i32, i32) {
    %c0_i32 = arith.constant 0 : i32
    %c0_i32_0 = arith.constant 0 : i32
    %c0_i32_1 = arith.constant 0 : i32
    %c0_i32_2 = arith.constant 0 : i32
    return %arg0, %c0_i32, %c0_i32_0, %c0_i32_1 : i32, i32, i32, i32
  }
}

module attributes {stable_mosaic.version = 11 : i64} {
  func.func @_conv2x2_kernel(%arg0: i32, %arg1: memref<1x2x2x256xbf16, #tpu.memory_space<vmem>>, %arg2: memref<2x2x256x64xbf16, #tpu.memory_space<vmem>>, %arg3: memref<1x64xf32, #tpu.memory_space<vmem>>, %arg4: memref<1x1x1x64xbf16, #tpu.memory_space<vmem>>) attributes {dimension_semantics = [#tpu.dimension_semantics<parallel>], iteration_bounds = array<i64: 2>, scalar_prefetch = 0 : i64, scratch_operands = 0 : i64, tpu.core_type = #tpu.core_type<tc>, window_params = [{transform_indices = @transform_0, window_bounds = array<i64: 1, 2, 2, 256>}, {pipeline_mode = #tpu.pipeline_mode<synchronous>, transform_indices = @transform_1, window_bounds = array<i64: 2, 2, 256, 64>}, {pipeline_mode = #tpu.pipeline_mode<synchronous>, transform_indices = @transform_2, window_bounds = array<i64: 1, 64>}, {transform_indices = @transform_3, window_bounds = array<i64: 1, 1, 1, 64>}]} {
    %c0 = arith.constant 0 : index
    %c0_0 = arith.constant 0 : index
    %c0_1 = arith.constant 0 : index
    %c0_2 = arith.constant 0 : index
    %0 = vector.load %arg2[%c0, %c0_0, %c0_1, %c0_2] : memref<2x2x256x64xbf16, #tpu.memory_space<vmem>>, vector<1x1x256x64xbf16>
    %1 = vector.shape_cast %0 : vector<1x1x256x64xbf16> to vector<256x64xbf16>
    %c0_3 = arith.constant 0 : index
    %c1 = arith.constant 1 : index
    %c0_4 = arith.constant 0 : index
    %c0_5 = arith.constant 0 : index
    %2 = vector.load %arg2[%c0_3, %c1, %c0_4, %c0_5] : memref<2x2x256x64xbf16, #tpu.memory_space<vmem>>, vector<1x1x256x64xbf16>
    %3 = vector.shape_cast %2 : vector<1x1x256x64xbf16> to vector<256x64xbf16>
    %c1_6 = arith.constant 1 : index
    %c0_7 = arith.constant 0 : index
    %c0_8 = arith.constant 0 : index
    %c0_9 = arith.constant 0 : index
    %4 = vector.load %arg2[%c1_6, %c0_7, %c0_8, %c0_9] : memref<2x2x256x64xbf16, #tpu.memory_space<vmem>>, vector<1x1x256x64xbf16>
    %5 = vector.shape_cast %4 : vector<1x1x256x64xbf16> to vector<256x64xbf16>
    %c1_10 = arith.constant 1 : index
    %c1_11 = arith.constant 1 : index
    %c0_12 = arith.constant 0 : index
    %c0_13 = arith.constant 0 : index
    %6 = vector.load %arg2[%c1_10, %c1_11, %c0_12, %c0_13] : memref<2x2x256x64xbf16, #tpu.memory_space<vmem>>, vector<1x1x256x64xbf16>
    %7 = vector.shape_cast %6 : vector<1x1x256x64xbf16> to vector<256x64xbf16>
    %c0_14 = arith.constant 0 : index
    %c0_15 = arith.constant 0 : index
    %8 = vector.load %arg3[%c0_14, %c0_15] : memref<1x64xf32, #tpu.memory_space<vmem>>, vector<1x64xf32>
    %c0_i32 = arith.constant 0 : i32
    %c0_16 = arith.constant 0 : index
    %9 = arith.index_cast %c0_i32 : i32 to index
    %c0_17 = arith.constant 0 : index
    %c0_18 = arith.constant 0 : index
    %10 = vector.load %arg1[%c0_16, %9, %c0_17, %c0_18] : memref<1x2x2x256xbf16, #tpu.memory_space<vmem>>, vector<1x2x2x256xbf16>
    %11 = vector.shape_cast %10 : vector<1x2x2x256xbf16> to vector<2x2x256xbf16>
    %12 = vector.extract_strided_slice %11 {offsets = [0, 0, 0], sizes = [1, 2, 256], strides = [1, 1, 1]} : vector<2x2x256xbf16> to vector<1x2x256xbf16>
    %13 = vector.shape_cast %12 : vector<1x2x256xbf16> to vector<2x256xbf16>
    %14 = vector.extract_strided_slice %11 {offsets = [1, 0, 0], sizes = [1, 2, 256], strides = [1, 1, 1]} : vector<2x2x256xbf16> to vector<1x2x256xbf16>
    %15 = vector.shape_cast %14 : vector<1x2x256xbf16> to vector<2x256xbf16>
    %cst = arith.constant dense<0.000000e+00> : vector<2x64xf32>
    %16 = tpu.matmul %13, %1, %cst {dimension_numbers = #tpu.dot_dimension_numbers<[1], [0], [0], [1], [0, 0, 1, 1], [], []>} : vector<2x256xbf16>, vector<256x64xbf16>, vector<2x64xf32> -> vector<2x64xf32>
    %cst_19 = arith.constant dense<0.000000e+00> : vector<2x64xf32>
    %17 = tpu.matmul %13, %3, %cst_19 {dimension_numbers = #tpu.dot_dimension_numbers<[1], [0], [0], [1], [0, 0, 1, 1], [], []>} : vector<2x256xbf16>, vector<256x64xbf16>, vector<2x64xf32> -> vector<2x64xf32>
    %cst_20 = arith.constant dense<0.000000e+00> : vector<2x64xf32>
    %18 = tpu.matmul %15, %5, %cst_20 {dimension_numbers = #tpu.dot_dimension_numbers<[1], [0], [0], [1], [0, 0, 1, 1], [], []>} : vector<2x256xbf16>, vector<256x64xbf16>, vector<2x64xf32> -> vector<2x64xf32>
    %cst_21 = arith.constant dense<0.000000e+00> : vector<2x64xf32>
    %19 = tpu.matmul %15, %7, %cst_21 {dimension_numbers = #tpu.dot_dimension_numbers<[1], [0], [0], [1], [0, 0, 1, 1], [], []>} : vector<2x256xbf16>, vector<256x64xbf16>, vector<2x64xf32> -> vector<2x64xf32>
    %20 = vector.extract_strided_slice %16 {offsets = [0, 0], sizes = [1, 64], strides = [1, 1]} : vector<2x64xf32> to vector<1x64xf32>
    %21 = vector.extract_strided_slice %18 {offsets = [0, 0], sizes = [1, 64], strides = [1, 1]} : vector<2x64xf32> to vector<1x64xf32>
    %22 = arith.addf %20, %21 : vector<1x64xf32>
    %23 = vector.extract_strided_slice %17 {offsets = [1, 0], sizes = [1, 64], strides = [1, 1]} : vector<2x64xf32> to vector<1x64xf32>
    %24 = arith.addf %22, %23 : vector<1x64xf32>
    %25 = vector.extract_strided_slice %19 {offsets = [1, 0], sizes = [1, 64], strides = [1, 1]} : vector<2x64xf32> to vector<1x64xf32>
    %26 = arith.addf %24, %25 : vector<1x64xf32>
    %27 = arith.addf %26, %8 : vector<1x64xf32>
    %cst_22 = arith.constant 0.000000e+00 : f32
    %28 = vector.broadcast %cst_22 : f32 to vector<1x64xf32>
    %29 = arith.maximumf %27, %28 : vector<1x64xf32>
    %30 = vector.shape_cast %29 : vector<1x64xf32> to vector<1x1x64xf32>
    %31 = arith.truncf %30 : vector<1x1x64xf32> to vector<1x1x64xbf16>
    %c0_23 = arith.constant 0 : index
    %32 = arith.index_cast %c0_i32 : i32 to index
    %c0_24 = arith.constant 0 : index
    %c0_25 = arith.constant 0 : index
    %33 = vector.load %arg4[%c0_23, %32, %c0_24, %c0_25] : memref<1x1x1x64xbf16, #tpu.memory_space<vmem>>, vector<1x1x1x64xbf16>
    %34 = vector.shape_cast %33 : vector<1x1x1x64xbf16> to vector<1x1x64xbf16>
    %35 = vector.shape_cast %31 : vector<1x1x64xbf16> to vector<1x1x1x64xbf16>
    tpu.vector_store %arg4[%c0_23, %32, %c0_24, %c0_25], %35 {strides = array<i32>} : memref<1x1x1x64xbf16, #tpu.memory_space<vmem>>, vector<1x1x1x64xbf16>,
    %c1_i32 = arith.constant 1 : i32
    return
  }
  func.func @transform_0(%arg0: i32) -> (i32, i32, i32, i32) {
    %c0_i32 = arith.constant 0 : i32
    %c0_i32_0 = arith.constant 0 : i32
    %c0_i32_1 = arith.constant 0 : i32
    %c0_i32_2 = arith.constant 0 : i32
    return %arg0, %c0_i32, %c0_i32_0, %c0_i32_1 : i32, i32, i32, i32
  }
  func.func @transform_1(%arg0: i32) -> (i32, i32, i32, i32) {
    %c0_i32 = arith.constant 0 : i32
    %c0_i32_0 = arith.constant 0 : i32
    %c0_i32_1 = arith.constant 0 : i32
    %c0_i32_2 = arith.constant 0 : i32
    %c0_i32_3 = arith.constant 0 : i32
    return %c0_i32, %c0_i32_0, %c0_i32_1, %c0_i32_2 : i32, i32, i32, i32
  }
  func.func @transform_2(%arg0: i32) -> (i32, i32) {
    %c0_i32 = arith.constant 0 : i32
    %c0_i32_0 = arith.constant 0 : i32
    %c0_i32_1 = arith.constant 0 : i32
    return %c0_i32, %c0_i32_0 : i32, i32
  }
  func.func @transform_3(%arg0: i32) -> (i32, i32, i32, i32) {
    %c0_i32 = arith.constant 0 : i32
    %c0_i32_0 = arith.constant 0 : i32
    %c0_i32_1 = arith.constant 0 : i32
    %c0_i32_2 = arith.constant 0 : i32
    return %arg0, %c0_i32, %c0_i32_0, %c0_i32_1 : i32, i32, i32, i32
  }
}

module attributes {stable_mosaic.version = 11 : i64} {
  func.func @_matmul_bias_kernel(%arg0: memref<2x16xbf16, #tpu.memory_space<vmem>>, %arg1: memref<16x64xbf16, #tpu.memory_space<vmem>>, %arg2: memref<1x64xf32, #tpu.memory_space<vmem>>, %arg3: memref<2x64xbf16, #tpu.memory_space<vmem>>) attributes {dimension_semantics = [], scalar_prefetch = 0 : i64, scratch_operands = 0 : i64, tpu.core_type = #tpu.core_type<tc>} {
    %c0 = arith.constant 0 : index
    %c0_0 = arith.constant 0 : index
    %0 = vector.load %arg0[%c0, %c0_0] : memref<2x16xbf16, #tpu.memory_space<vmem>>, vector<2x16xbf16>
    %c0_1 = arith.constant 0 : index
    %c0_2 = arith.constant 0 : index
    %1 = vector.load %arg1[%c0_1, %c0_2] : memref<16x64xbf16, #tpu.memory_space<vmem>>, vector<16x64xbf16>
    %cst = arith.constant dense<0.000000e+00> : vector<2x64xf32>
    %2 = tpu.matmul %0, %1, %cst {dimension_numbers = #tpu.dot_dimension_numbers<[1], [0], [0], [1], [0, 0, 1, 1], [], []>} : vector<2x16xbf16>, vector<16x64xbf16>, vector<2x64xf32> -> vector<2x64xf32>
    %c0_3 = arith.constant 0 : index
    %c0_4 = arith.constant 0 : index
    %3 = vector.load %arg2[%c0_3, %c0_4] : memref<1x64xf32, #tpu.memory_space<vmem>>, vector<1x64xf32>
    %4 = vector.broadcast %3 : vector<1x64xf32> to vector<2x64xf32>
    %5 = arith.addf %2, %4 : vector<2x64xf32>
    %6 = arith.truncf %5 : vector<2x64xf32> to vector<2x64xbf16>
    %c0_5 = arith.constant 0 : index
    %c0_6 = arith.constant 0 : index
    %7 = vector.load %arg3[%c0_5, %c0_6] : memref<2x64xbf16, #tpu.memory_space<vmem>>, vector<2x64xbf16>
    tpu.vector_store %arg3[%c0_5, %c0_6], %6 {strides = array<i32>} : memref<2x64xbf16, #tpu.memory_space<vmem>>, vector<2x64xbf16>,
    return
  }
}

module attributes {stable_mosaic.version = 11 : i64} {
  func.func @_fc_mu_logvar_reparam_kernel(%arg0: memref<2x64xbf16, #tpu.memory_space<vmem>>, %arg1: memref<64x32xbf16, #tpu.memory_space<vmem>>, %arg2: memref<1x32xf32, #tpu.memory_space<vmem>>, %arg3: memref<2x16xf32, #tpu.memory_space<vmem>>, %arg4: memref<2x16xf32, #tpu.memory_space<vmem>>, %arg5: memref<2x16xf32, #tpu.memory_space<vmem>>, %arg6: memref<2x16xf32, #tpu.memory_space<vmem>>) attributes {dimension_semantics = [], scalar_prefetch = 0 : i64, scratch_operands = 0 : i64, tpu.core_type = #tpu.core_type<tc>} {
    %c0 = arith.constant 0 : index
    %c0_0 = arith.constant 0 : index
    %0 = vector.load %arg0[%c0, %c0_0] : memref<2x64xbf16, #tpu.memory_space<vmem>>, vector<2x64xbf16>
    %c0_1 = arith.constant 0 : index
    %c0_2 = arith.constant 0 : index
    %1 = vector.load %arg1[%c0_1, %c0_2] : memref<64x32xbf16, #tpu.memory_space<vmem>>, vector<64x32xbf16>
    %cst = arith.constant dense<0.000000e+00> : vector<2x32xf32>
    %2 = tpu.matmul %0, %1, %cst {dimension_numbers = #tpu.dot_dimension_numbers<[1], [0], [0], [1], [0, 0, 1, 1], [], []>} : vector<2x64xbf16>, vector<64x32xbf16>, vector<2x32xf32> -> vector<2x32xf32>
    %c0_3 = arith.constant 0 : index
    %c0_4 = arith.constant 0 : index
    %3 = vector.load %arg2[%c0_3, %c0_4] : memref<1x32xf32, #tpu.memory_space<vmem>>, vector<1x32xf32>
    %4 = vector.broadcast %3 : vector<1x32xf32> to vector<2x32xf32>
    %5 = arith.addf %2, %4 : vector<2x32xf32>
    %6 = vector.extract_strided_slice %5 {offsets = [0, 0], sizes = [2, 16], strides = [1, 1]} : vector<2x32xf32> to vector<2x16xf32>
    %7 = vector.extract_strided_slice %5 {offsets = [0, 16], sizes = [2, 16], strides = [1, 1]} : vector<2x32xf32> to vector<2x16xf32>
    %c0_5 = arith.constant 0 : index
    %c0_6 = arith.constant 0 : index
    %8 = vector.load %arg4[%c0_5, %c0_6] : memref<2x16xf32, #tpu.memory_space<vmem>>, vector<2x16xf32>
    tpu.vector_store %arg4[%c0_5, %c0_6], %6 {strides = array<i32>} : memref<2x16xf32, #tpu.memory_space<vmem>>, vector<2x16xf32>,
    %c0_7 = arith.constant 0 : index
    %c0_8 = arith.constant 0 : index
    %9 = vector.load %arg5[%c0_7, %c0_8] : memref<2x16xf32, #tpu.memory_space<vmem>>, vector<2x16xf32>
    tpu.vector_store %arg5[%c0_7, %c0_8], %7 {strides = array<i32>} : memref<2x16xf32, #tpu.memory_space<vmem>>, vector<2x16xf32>,
    %c0_9 = arith.constant 0 : index
    %c0_10 = arith.constant 0 : index
    %10 = vector.load %arg3[%c0_9, %c0_10] : memref<2x16xf32, #tpu.memory_space<vmem>>, vector<2x16xf32>
    %cst_11 = arith.constant 5.000000e-01 : f32
    %11 = vector.broadcast %cst_11 : f32 to vector<2x16xf32>
    %12 = arith.mulf %11, %7 : vector<2x16xf32>
    %13 = math.exp %12 : vector<2x16xf32>
    %14 = arith.mulf %10, %13 : vector<2x16xf32>
    %15 = arith.addf %6, %14 : vector<2x16xf32>
    %c0_12 = arith.constant 0 : index
    %c0_13 = arith.constant 0 : index
    %16 = vector.load %arg6[%c0_12, %c0_13] : memref<2x16xf32, #tpu.memory_space<vmem>>, vector<2x16xf32>
    tpu.vector_store %arg6[%c0_12, %c0_13], %15 {strides = array<i32>} : memref<2x16xf32, #tpu.memory_space<vmem>>, vector<2x16xf32>,
    return
  }
}

module attributes {stable_mosaic.version = 11 : i64} {
  func.func @_conv2x2_kernel(%arg0: i32, %arg1: memref<1x3x3x64xbf16, #tpu.memory_space<vmem>>, %arg2: memref<2x2x64x256xbf16, #tpu.memory_space<vmem>>, %arg3: memref<1x256xf32, #tpu.memory_space<vmem>>, %arg4: memref<1x2x2x256xbf16, #tpu.memory_space<vmem>>) attributes {dimension_semantics = [#tpu.dimension_semantics<parallel>], iteration_bounds = array<i64: 2>, scalar_prefetch = 0 : i64, scratch_operands = 0 : i64, tpu.core_type = #tpu.core_type<tc>, window_params = [{transform_indices = @transform_0, window_bounds = array<i64: 1, 3, 3, 64>}, {pipeline_mode = #tpu.pipeline_mode<synchronous>, transform_indices = @transform_1, window_bounds = array<i64: 2, 2, 64, 256>}, {pipeline_mode = #tpu.pipeline_mode<synchronous>, transform_indices = @transform_2, window_bounds = array<i64: 1, 256>}, {transform_indices = @transform_3, window_bounds = array<i64: 1, 2, 2, 256>}]} {
    %c0 = arith.constant 0 : index
    %c0_0 = arith.constant 0 : index
    %c0_1 = arith.constant 0 : index
    %c0_2 = arith.constant 0 : index
    %0 = vector.load %arg2[%c0, %c0_0, %c0_1, %c0_2] : memref<2x2x64x256xbf16, #tpu.memory_space<vmem>>, vector<1x1x64x256xbf16>
    %1 = vector.shape_cast %0 : vector<1x1x64x256xbf16> to vector<64x256xbf16>
    %c0_3 = arith.constant 0 : index
    %c1 = arith.constant 1 : index
    %c0_4 = arith.constant 0 : index
    %c0_5 = arith.constant 0 : index
    %2 = vector.load %arg2[%c0_3, %c1, %c0_4, %c0_5] : memref<2x2x64x256xbf16, #tpu.memory_space<vmem>>, vector<1x1x64x256xbf16>
    %3 = vector.shape_cast %2 : vector<1x1x64x256xbf16> to vector<64x256xbf16>
    %c1_6 = arith.constant 1 : index
    %c0_7 = arith.constant 0 : index
    %c0_8 = arith.constant 0 : index
    %c0_9 = arith.constant 0 : index
    %4 = vector.load %arg2[%c1_6, %c0_7, %c0_8, %c0_9] : memref<2x2x64x256xbf16, #tpu.memory_space<vmem>>, vector<1x1x64x256xbf16>
    %5 = vector.shape_cast %4 : vector<1x1x64x256xbf16> to vector<64x256xbf16>
    %c1_10 = arith.constant 1 : index
    %c1_11 = arith.constant 1 : index
    %c0_12 = arith.constant 0 : index
    %c0_13 = arith.constant 0 : index
    %6 = vector.load %arg2[%c1_10, %c1_11, %c0_12, %c0_13] : memref<2x2x64x256xbf16, #tpu.memory_space<vmem>>, vector<1x1x64x256xbf16>
    %7 = vector.shape_cast %6 : vector<1x1x64x256xbf16> to vector<64x256xbf16>
    %c0_14 = arith.constant 0 : index
    %c0_15 = arith.constant 0 : index
    %8 = vector.load %arg3[%c0_14, %c0_15] : memref<1x256xf32, #tpu.memory_space<vmem>>, vector<1x256xf32>
    %c0_i32 = arith.constant 0 : i32
    %c2_i32 = arith.constant 2 : i32
    %9 = arith.addi %c0_i32, %c2_i32 : i32
    %c1_i32 = arith.constant 1 : i32
    scf.for %arg5 = %c0_i32 to %9 step %c1_i32  : i32 {
      %c0_17 = arith.constant 0 : index
      %10 = arith.index_cast %arg5 : i32 to index
      %c0_18 = arith.constant 0 : index
      %c0_19 = arith.constant 0 : index
      %11 = vector.load %arg1[%c0_17, %10, %c0_18, %c0_19] : memref<1x3x3x64xbf16, #tpu.memory_space<vmem>>, vector<1x2x3x64xbf16>
      %12 = vector.shape_cast %11 : vector<1x2x3x64xbf16> to vector<2x3x64xbf16>
      %13 = vector.extract_strided_slice %12 {offsets = [0, 0, 0], sizes = [1, 3, 64], strides = [1, 1, 1]} : vector<2x3x64xbf16> to vector<1x3x64xbf16>
      %14 = vector.shape_cast %13 : vector<1x3x64xbf16> to vector<3x64xbf16>
      %15 = vector.extract_strided_slice %12 {offsets = [1, 0, 0], sizes = [1, 3, 64], strides = [1, 1, 1]} : vector<2x3x64xbf16> to vector<1x3x64xbf16>
      %16 = vector.shape_cast %15 : vector<1x3x64xbf16> to vector<3x64xbf16>
      %cst = arith.constant dense<0.000000e+00> : vector<3x256xf32>
      %17 = tpu.matmul %14, %1, %cst {dimension_numbers = #tpu.dot_dimension_numbers<[1], [0], [0], [1], [0, 0, 1, 1], [], []>} : vector<3x64xbf16>, vector<64x256xbf16>, vector<3x256xf32> -> vector<3x256xf32>
      %cst_20 = arith.constant dense<0.000000e+00> : vector<3x256xf32>
      %18 = tpu.matmul %14, %3, %cst_20 {dimension_numbers = #tpu.dot_dimension_numbers<[1], [0], [0], [1], [0, 0, 1, 1], [], []>} : vector<3x64xbf16>, vector<64x256xbf16>, vector<3x256xf32> -> vector<3x256xf32>
      %cst_21 = arith.constant dense<0.000000e+00> : vector<3x256xf32>
      %19 = tpu.matmul %16, %5, %cst_21 {dimension_numbers = #tpu.dot_dimension_numbers<[1], [0], [0], [1], [0, 0, 1, 1], [], []>} : vector<3x64xbf16>, vector<64x256xbf16>, vector<3x256xf32> -> vector<3x256xf32>
      %cst_22 = arith.constant dense<0.000000e+00> : vector<3x256xf32>
      %20 = tpu.matmul %16, %7, %cst_22 {dimension_numbers = #tpu.dot_dimension_numbers<[1], [0], [0], [1], [0, 0, 1, 1], [], []>} : vector<3x64xbf16>, vector<64x256xbf16>, vector<3x256xf32> -> vector<3x256xf32>
      %21 = vector.extract_strided_slice %17 {offsets = [0, 0], sizes = [2, 256], strides = [1, 1]} : vector<3x256xf32> to vector<2x256xf32>
      %22 = vector.extract_strided_slice %19 {offsets = [0, 0], sizes = [2, 256], strides = [1, 1]} : vector<3x256xf32> to vector<2x256xf32>
      %23 = arith.addf %21, %22 : vector<2x256xf32>
      %24 = vector.extract_strided_slice %18 {offsets = [1, 0], sizes = [2, 256], strides = [1, 1]} : vector<3x256xf32> to vector<2x256xf32>
      %25 = arith.addf %23, %24 : vector<2x256xf32>
      %26 = vector.extract_strided_slice %20 {offsets = [1, 0], sizes = [2, 256], strides = [1, 1]} : vector<3x256xf32> to vector<2x256xf32>
      %27 = arith.addf %25, %26 : vector<2x256xf32>
      %28 = vector.broadcast %8 : vector<1x256xf32> to vector<2x256xf32>
      %29 = arith.addf %27, %28 : vector<2x256xf32>
      %cst_23 = arith.constant 0.000000e+00 : f32
      %30 = vector.broadcast %cst_23 : f32 to vector<2x256xf32>
      %31 = arith.maximumf %29, %30 : vector<2x256xf32>
      %32 = vector.shape_cast %31 : vector<2x256xf32> to vector<1x2x256xf32>
      %33 = arith.truncf %32 : vector<1x2x256xf32> to vector<1x2x256xbf16>
      %c0_24 = arith.constant 0 : index
      %34 = arith.index_cast %arg5 : i32 to index
      %c0_25 = arith.constant 0 : index
      %c0_26 = arith.constant 0 : index
      %35 = vector.load %arg4[%c0_24, %34, %c0_25, %c0_26] : memref<1x2x2x256xbf16, #tpu.memory_space<vmem>>, vector<1x1x2x256xbf16>
      %36 = vector.shape_cast %35 : vector<1x1x2x256xbf16> to vector<1x2x256xbf16>
      %37 = vector.shape_cast %33 : vector<1x2x256xbf16> to vector<1x1x2x256xbf16>
      tpu.vector_store %arg4[%c0_24, %34, %c0_25, %c0_26], %37 {strides = array<i32>} : memref<1x2x2x256xbf16, #tpu.memory_space<vmem>>, vector<1x1x2x256xbf16>,
    }
    %c2_i32_16 = arith.constant 2 : i32
    return
  }
  func.func @transform_0(%arg0: i32) -> (i32, i32, i32, i32) {
    %c0_i32 = arith.constant 0 : i32
    %c0_i32_0 = arith.constant 0 : i32
    %c0_i32_1 = arith.constant 0 : i32
    %c0_i32_2 = arith.constant 0 : i32
    return %arg0, %c0_i32, %c0_i32_0, %c0_i32_1 : i32, i32, i32, i32
  }
  func.func @transform_1(%arg0: i32) -> (i32, i32, i32, i32) {
    %c0_i32 = arith.constant 0 : i32
    %c0_i32_0 = arith.constant 0 : i32
    %c0_i32_1 = arith.constant 0 : i32
    %c0_i32_2 = arith.constant 0 : i32
    %c0_i32_3 = arith.constant 0 : i32
    return %c0_i32, %c0_i32_0, %c0_i32_1, %c0_i32_2 : i32, i32, i32, i32
  }
  func.func @transform_2(%arg0: i32) -> (i32, i32) {
    %c0_i32 = arith.constant 0 : i32
    %c0_i32_0 = arith.constant 0 : i32
    %c0_i32_1 = arith.constant 0 : i32
    return %c0_i32, %c0_i32_0 : i32, i32
  }
  func.func @transform_3(%arg0: i32) -> (i32, i32, i32, i32) {
    %c0_i32 = arith.constant 0 : i32
    %c0_i32_0 = arith.constant 0 : i32
    %c0_i32_1 = arith.constant 0 : i32
    %c0_i32_2 = arith.constant 0 : i32
    return %arg0, %c0_i32, %c0_i32_0, %c0_i32_1 : i32, i32, i32, i32
  }
}

module attributes {stable_mosaic.version = 11 : i64} {
  func.func @_conv2x2_kernel(%arg0: i32, %arg1: memref<1x4x4x128xbf16, #tpu.memory_space<vmem>>, %arg2: memref<2x2x128x128xbf16, #tpu.memory_space<vmem>>, %arg3: memref<1x128xf32, #tpu.memory_space<vmem>>, %arg4: memref<1x3x3x128xbf16, #tpu.memory_space<vmem>>) attributes {dimension_semantics = [#tpu.dimension_semantics<parallel>], iteration_bounds = array<i64: 2>, scalar_prefetch = 0 : i64, scratch_operands = 0 : i64, tpu.core_type = #tpu.core_type<tc>, window_params = [{transform_indices = @transform_0, window_bounds = array<i64: 1, 4, 4, 128>}, {pipeline_mode = #tpu.pipeline_mode<synchronous>, transform_indices = @transform_1, window_bounds = array<i64: 2, 2, 128, 128>}, {pipeline_mode = #tpu.pipeline_mode<synchronous>, transform_indices = @transform_2, window_bounds = array<i64: 1, 128>}, {transform_indices = @transform_3, window_bounds = array<i64: 1, 3, 3, 128>}]} {
    %c0 = arith.constant 0 : index
    %c0_0 = arith.constant 0 : index
    %c0_1 = arith.constant 0 : index
    %c0_2 = arith.constant 0 : index
    %0 = vector.load %arg2[%c0, %c0_0, %c0_1, %c0_2] : memref<2x2x128x128xbf16, #tpu.memory_space<vmem>>, vector<1x1x128x128xbf16>
    %1 = vector.shape_cast %0 : vector<1x1x128x128xbf16> to vector<128x128xbf16>
    %c0_3 = arith.constant 0 : index
    %c1 = arith.constant 1 : index
    %c0_4 = arith.constant 0 : index
    %c0_5 = arith.constant 0 : index
    %2 = vector.load %arg2[%c0_3, %c1, %c0_4, %c0_5] : memref<2x2x128x128xbf16, #tpu.memory_space<vmem>>, vector<1x1x128x128xbf16>
    %3 = vector.shape_cast %2 : vector<1x1x128x128xbf16> to vector<128x128xbf16>
    %c1_6 = arith.constant 1 : index
    %c0_7 = arith.constant 0 : index
    %c0_8 = arith.constant 0 : index
    %c0_9 = arith.constant 0 : index
    %4 = vector.load %arg2[%c1_6, %c0_7, %c0_8, %c0_9] : memref<2x2x128x128xbf16, #tpu.memory_space<vmem>>, vector<1x1x128x128xbf16>
    %5 = vector.shape_cast %4 : vector<1x1x128x128xbf16> to vector<128x128xbf16>
    %c1_10 = arith.constant 1 : index
    %c1_11 = arith.constant 1 : index
    %c0_12 = arith.constant 0 : index
    %c0_13 = arith.constant 0 : index
    %6 = vector.load %arg2[%c1_10, %c1_11, %c0_12, %c0_13] : memref<2x2x128x128xbf16, #tpu.memory_space<vmem>>, vector<1x1x128x128xbf16>
    %7 = vector.shape_cast %6 : vector<1x1x128x128xbf16> to vector<128x128xbf16>
    %c0_14 = arith.constant 0 : index
    %c0_15 = arith.constant 0 : index
    %8 = vector.load %arg3[%c0_14, %c0_15] : memref<1x128xf32, #tpu.memory_space<vmem>>, vector<1x128xf32>
    %c0_i32 = arith.constant 0 : i32
    %c3_i32 = arith.constant 3 : i32
    %9 = arith.addi %c0_i32, %c3_i32 : i32
    %c1_i32 = arith.constant 1 : i32
    scf.for %arg5 = %c0_i32 to %9 step %c1_i32  : i32 {
      %c0_17 = arith.constant 0 : index
      %10 = arith.index_cast %arg5 : i32 to index
      %c0_18 = arith.constant 0 : index
      %c0_19 = arith.constant 0 : index
      %11 = vector.load %arg1[%c0_17, %10, %c0_18, %c0_19] : memref<1x4x4x128xbf16, #tpu.memory_space<vmem>>, vector<1x2x4x128xbf16>
      %12 = vector.shape_cast %11 : vector<1x2x4x128xbf16> to vector<2x4x128xbf16>
      %13 = vector.extract_strided_slice %12 {offsets = [0, 0, 0], sizes = [1, 4, 128], strides = [1, 1, 1]} : vector<2x4x128xbf16> to vector<1x4x128xbf16>
      %14 = vector.shape_cast %13 : vector<1x4x128xbf16> to vector<4x128xbf16>
      %15 = vector.extract_strided_slice %12 {offsets = [1, 0, 0], sizes = [1, 4, 128], strides = [1, 1, 1]} : vector<2x4x128xbf16> to vector<1x4x128xbf16>
      %16 = vector.shape_cast %15 : vector<1x4x128xbf16> to vector<4x128xbf16>
      %cst = arith.constant dense<0.000000e+00> : vector<4x128xf32>
      %17 = tpu.matmul %14, %1, %cst {dimension_numbers = #tpu.dot_dimension_numbers<[1], [0], [0], [1], [0, 0, 1, 1], [], []>} : vector<4x128xbf16>, vector<128x128xbf16>, vector<4x128xf32> -> vector<4x128xf32>
      %cst_20 = arith.constant dense<0.000000e+00> : vector<4x128xf32>
      %18 = tpu.matmul %14, %3, %cst_20 {dimension_numbers = #tpu.dot_dimension_numbers<[1], [0], [0], [1], [0, 0, 1, 1], [], []>} : vector<4x128xbf16>, vector<128x128xbf16>, vector<4x128xf32> -> vector<4x128xf32>
      %cst_21 = arith.constant dense<0.000000e+00> : vector<4x128xf32>
      %19 = tpu.matmul %16, %5, %cst_21 {dimension_numbers = #tpu.dot_dimension_numbers<[1], [0], [0], [1], [0, 0, 1, 1], [], []>} : vector<4x128xbf16>, vector<128x128xbf16>, vector<4x128xf32> -> vector<4x128xf32>
      %cst_22 = arith.constant dense<0.000000e+00> : vector<4x128xf32>
      %20 = tpu.matmul %16, %7, %cst_22 {dimension_numbers = #tpu.dot_dimension_numbers<[1], [0], [0], [1], [0, 0, 1, 1], [], []>} : vector<4x128xbf16>, vector<128x128xbf16>, vector<4x128xf32> -> vector<4x128xf32>
      %21 = vector.extract_strided_slice %17 {offsets = [0, 0], sizes = [3, 128], strides = [1, 1]} : vector<4x128xf32> to vector<3x128xf32>
      %22 = vector.extract_strided_slice %19 {offsets = [0, 0], sizes = [3, 128], strides = [1, 1]} : vector<4x128xf32> to vector<3x128xf32>
      %23 = arith.addf %21, %22 : vector<3x128xf32>
      %24 = vector.extract_strided_slice %18 {offsets = [1, 0], sizes = [3, 128], strides = [1, 1]} : vector<4x128xf32> to vector<3x128xf32>
      %25 = arith.addf %23, %24 : vector<3x128xf32>
      %26 = vector.extract_strided_slice %20 {offsets = [1, 0], sizes = [3, 128], strides = [1, 1]} : vector<4x128xf32> to vector<3x128xf32>
      %27 = arith.addf %25, %26 : vector<3x128xf32>
      %28 = vector.broadcast %8 : vector<1x128xf32> to vector<3x128xf32>
      %29 = arith.addf %27, %28 : vector<3x128xf32>
      %cst_23 = arith.constant 0.000000e+00 : f32
      %30 = vector.broadcast %cst_23 : f32 to vector<3x128xf32>
      %31 = arith.maximumf %29, %30 : vector<3x128xf32>
      %32 = vector.shape_cast %31 : vector<3x128xf32> to vector<1x3x128xf32>
      %33 = arith.truncf %32 : vector<1x3x128xf32> to vector<1x3x128xbf16>
      %c0_24 = arith.constant 0 : index
      %34 = arith.index_cast %arg5 : i32 to index
      %c0_25 = arith.constant 0 : index
      %c0_26 = arith.constant 0 : index
      %35 = vector.load %arg4[%c0_24, %34, %c0_25, %c0_26] : memref<1x3x3x128xbf16, #tpu.memory_space<vmem>>, vector<1x1x3x128xbf16>
      %36 = vector.shape_cast %35 : vector<1x1x3x128xbf16> to vector<1x3x128xbf16>
      %37 = vector.shape_cast %33 : vector<1x3x128xbf16> to vector<1x1x3x128xbf16>
      tpu.vector_store %arg4[%c0_24, %34, %c0_25, %c0_26], %37 {strides = array<i32>} : memref<1x3x3x128xbf16, #tpu.memory_space<vmem>>, vector<1x1x3x128xbf16>,
    }
    %c3_i32_16 = arith.constant 3 : i32
    return
  }
  func.func @transform_0(%arg0: i32) -> (i32, i32, i32, i32) {
    %c0_i32 = arith.constant 0 : i32
    %c0_i32_0 = arith.constant 0 : i32
    %c0_i32_1 = arith.constant 0 : i32
    %c0_i32_2 = arith.constant 0 : i32
    return %arg0, %c0_i32, %c0_i32_0, %c0_i32_1 : i32, i32, i32, i32
  }
  func.func @transform_1(%arg0: i32) -> (i32, i32, i32, i32) {
    %c0_i32 = arith.constant 0 : i32
    %c0_i32_0 = arith.constant 0 : i32
    %c0_i32_1 = arith.constant 0 : i32
    %c0_i32_2 = arith.constant 0 : i32
    %c0_i32_3 = arith.constant 0 : i32
    return %c0_i32, %c0_i32_0, %c0_i32_1, %c0_i32_2 : i32, i32, i32, i32
  }
  func.func @transform_2(%arg0: i32) -> (i32, i32) {
    %c0_i32 = arith.constant 0 : i32
    %c0_i32_0 = arith.constant 0 : i32
    %c0_i32_1 = arith.constant 0 : i32
    return %c0_i32, %c0_i32_0 : i32, i32
  }
  func.func @transform_3(%arg0: i32) -> (i32, i32, i32, i32) {
    %c0_i32 = arith.constant 0 : i32
    %c0_i32_0 = arith.constant 0 : i32
    %c0_i32_1 = arith.constant 0 : i32
    %c0_i32_2 = arith.constant 0 : i32
    return %arg0, %c0_i32, %c0_i32_0, %c0_i32_1 : i32, i32, i32, i32
  }
}

module attributes {stable_mosaic.version = 11 : i64} {
  func.func @_conv2x2_kernel(%arg0: i32, %arg1: memref<1x6x6x64xbf16, #tpu.memory_space<vmem>>, %arg2: memref<2x2x64x64xbf16, #tpu.memory_space<vmem>>, %arg3: memref<1x64xf32, #tpu.memory_space<vmem>>, %arg4: memref<1x5x5x64xbf16, #tpu.memory_space<vmem>>) attributes {dimension_semantics = [#tpu.dimension_semantics<parallel>], iteration_bounds = array<i64: 2>, scalar_prefetch = 0 : i64, scratch_operands = 0 : i64, tpu.core_type = #tpu.core_type<tc>, window_params = [{transform_indices = @transform_0, window_bounds = array<i64: 1, 6, 6, 64>}, {pipeline_mode = #tpu.pipeline_mode<synchronous>, transform_indices = @transform_1, window_bounds = array<i64: 2, 2, 64, 64>}, {pipeline_mode = #tpu.pipeline_mode<synchronous>, transform_indices = @transform_2, window_bounds = array<i64: 1, 64>}, {transform_indices = @transform_3, window_bounds = array<i64: 1, 5, 5, 64>}]} {
    %c0 = arith.constant 0 : index
    %c0_0 = arith.constant 0 : index
    %c0_1 = arith.constant 0 : index
    %c0_2 = arith.constant 0 : index
    %0 = vector.load %arg2[%c0, %c0_0, %c0_1, %c0_2] : memref<2x2x64x64xbf16, #tpu.memory_space<vmem>>, vector<1x1x64x64xbf16>
    %1 = vector.shape_cast %0 : vector<1x1x64x64xbf16> to vector<64x64xbf16>
    %c0_3 = arith.constant 0 : index
    %c1 = arith.constant 1 : index
    %c0_4 = arith.constant 0 : index
    %c0_5 = arith.constant 0 : index
    %2 = vector.load %arg2[%c0_3, %c1, %c0_4, %c0_5] : memref<2x2x64x64xbf16, #tpu.memory_space<vmem>>, vector<1x1x64x64xbf16>
    %3 = vector.shape_cast %2 : vector<1x1x64x64xbf16> to vector<64x64xbf16>
    %c1_6 = arith.constant 1 : index
    %c0_7 = arith.constant 0 : index
    %c0_8 = arith.constant 0 : index
    %c0_9 = arith.constant 0 : index
    %4 = vector.load %arg2[%c1_6, %c0_7, %c0_8, %c0_9] : memref<2x2x64x64xbf16, #tpu.memory_space<vmem>>, vector<1x1x64x64xbf16>
    %5 = vector.shape_cast %4 : vector<1x1x64x64xbf16> to vector<64x64xbf16>
    %c1_10 = arith.constant 1 : index
    %c1_11 = arith.constant 1 : index
    %c0_12 = arith.constant 0 : index
    %c0_13 = arith.constant 0 : index
    %6 = vector.load %arg2[%c1_10, %c1_11, %c0_12, %c0_13] : memref<2x2x64x64xbf16, #tpu.memory_space<vmem>>, vector<1x1x64x64xbf16>
    %7 = vector.shape_cast %6 : vector<1x1x64x64xbf16> to vector<64x64xbf16>
    %c0_14 = arith.constant 0 : index
    %c0_15 = arith.constant 0 : index
    %8 = vector.load %arg3[%c0_14, %c0_15] : memref<1x64xf32, #tpu.memory_space<vmem>>, vector<1x64xf32>
    %c0_i32 = arith.constant 0 : i32
    %c5_i32 = arith.constant 5 : i32
    %9 = arith.addi %c0_i32, %c5_i32 : i32
    %c1_i32 = arith.constant 1 : i32
    scf.for %arg5 = %c0_i32 to %9 step %c1_i32  : i32 {
      %c0_17 = arith.constant 0 : index
      %10 = arith.index_cast %arg5 : i32 to index
      %c0_18 = arith.constant 0 : index
      %c0_19 = arith.constant 0 : index
      %11 = vector.load %arg1[%c0_17, %10, %c0_18, %c0_19] : memref<1x6x6x64xbf16, #tpu.memory_space<vmem>>, vector<1x2x6x64xbf16>
      %12 = vector.shape_cast %11 : vector<1x2x6x64xbf16> to vector<2x6x64xbf16>
      %13 = vector.extract_strided_slice %12 {offsets = [0, 0, 0], sizes = [1, 6, 64], strides = [1, 1, 1]} : vector<2x6x64xbf16> to vector<1x6x64xbf16>
      %14 = vector.shape_cast %13 : vector<1x6x64xbf16> to vector<6x64xbf16>
      %15 = vector.extract_strided_slice %12 {offsets = [1, 0, 0], sizes = [1, 6, 64], strides = [1, 1, 1]} : vector<2x6x64xbf16> to vector<1x6x64xbf16>
      %16 = vector.shape_cast %15 : vector<1x6x64xbf16> to vector<6x64xbf16>
      %cst = arith.constant dense<0.000000e+00> : vector<6x64xf32>
      %17 = tpu.matmul %14, %1, %cst {dimension_numbers = #tpu.dot_dimension_numbers<[1], [0], [0], [1], [0, 0, 1, 1], [], []>} : vector<6x64xbf16>, vector<64x64xbf16>, vector<6x64xf32> -> vector<6x64xf32>
      %cst_20 = arith.constant dense<0.000000e+00> : vector<6x64xf32>
      %18 = tpu.matmul %14, %3, %cst_20 {dimension_numbers = #tpu.dot_dimension_numbers<[1], [0], [0], [1], [0, 0, 1, 1], [], []>} : vector<6x64xbf16>, vector<64x64xbf16>, vector<6x64xf32> -> vector<6x64xf32>
      %cst_21 = arith.constant dense<0.000000e+00> : vector<6x64xf32>
      %19 = tpu.matmul %16, %5, %cst_21 {dimension_numbers = #tpu.dot_dimension_numbers<[1], [0], [0], [1], [0, 0, 1, 1], [], []>} : vector<6x64xbf16>, vector<64x64xbf16>, vector<6x64xf32> -> vector<6x64xf32>
      %cst_22 = arith.constant dense<0.000000e+00> : vector<6x64xf32>
      %20 = tpu.matmul %16, %7, %cst_22 {dimension_numbers = #tpu.dot_dimension_numbers<[1], [0], [0], [1], [0, 0, 1, 1], [], []>} : vector<6x64xbf16>, vector<64x64xbf16>, vector<6x64xf32> -> vector<6x64xf32>
      %21 = vector.extract_strided_slice %17 {offsets = [0, 0], sizes = [5, 64], strides = [1, 1]} : vector<6x64xf32> to vector<5x64xf32>
      %22 = vector.extract_strided_slice %19 {offsets = [0, 0], sizes = [5, 64], strides = [1, 1]} : vector<6x64xf32> to vector<5x64xf32>
      %23 = arith.addf %21, %22 : vector<5x64xf32>
      %24 = vector.extract_strided_slice %18 {offsets = [1, 0], sizes = [5, 64], strides = [1, 1]} : vector<6x64xf32> to vector<5x64xf32>
      %25 = arith.addf %23, %24 : vector<5x64xf32>
      %26 = vector.extract_strided_slice %20 {offsets = [1, 0], sizes = [5, 64], strides = [1, 1]} : vector<6x64xf32> to vector<5x64xf32>
      %27 = arith.addf %25, %26 : vector<5x64xf32>
      %28 = vector.broadcast %8 : vector<1x64xf32> to vector<5x64xf32>
      %29 = arith.addf %27, %28 : vector<5x64xf32>
      %cst_23 = arith.constant 0.000000e+00 : f32
      %30 = vector.broadcast %cst_23 : f32 to vector<5x64xf32>
      %31 = arith.maximumf %29, %30 : vector<5x64xf32>
      %32 = vector.shape_cast %31 : vector<5x64xf32> to vector<1x5x64xf32>
      %33 = arith.truncf %32 : vector<1x5x64xf32> to vector<1x5x64xbf16>
      %c0_24 = arith.constant 0 : index
      %34 = arith.index_cast %arg5 : i32 to index
      %c0_25 = arith.constant 0 : index
      %c0_26 = arith.constant 0 : index
      %35 = vector.load %arg4[%c0_24, %34, %c0_25, %c0_26] : memref<1x5x5x64xbf16, #tpu.memory_space<vmem>>, vector<1x1x5x64xbf16>
      %36 = vector.shape_cast %35 : vector<1x1x5x64xbf16> to vector<1x5x64xbf16>
      %37 = vector.shape_cast %33 : vector<1x5x64xbf16> to vector<1x1x5x64xbf16>
      tpu.vector_store %arg4[%c0_24, %34, %c0_25, %c0_26], %37 {strides = array<i32>} : memref<1x5x5x64xbf16, #tpu.memory_space<vmem>>, vector<1x1x5x64xbf16>,
    }
    %c5_i32_16 = arith.constant 5 : i32
    return
  }
  func.func @transform_0(%arg0: i32) -> (i32, i32, i32, i32) {
    %c0_i32 = arith.constant 0 : i32
    %c0_i32_0 = arith.constant 0 : i32
    %c0_i32_1 = arith.constant 0 : i32
    %c0_i32_2 = arith.constant 0 : i32
    return %arg0, %c0_i32, %c0_i32_0, %c0_i32_1 : i32, i32, i32, i32
  }
  func.func @transform_1(%arg0: i32) -> (i32, i32, i32, i32) {
    %c0_i32 = arith.constant 0 : i32
    %c0_i32_0 = arith.constant 0 : i32
    %c0_i32_1 = arith.constant 0 : i32
    %c0_i32_2 = arith.constant 0 : i32
    %c0_i32_3 = arith.constant 0 : i32
    return %c0_i32, %c0_i32_0, %c0_i32_1, %c0_i32_2 : i32, i32, i32, i32
  }
  func.func @transform_2(%arg0: i32) -> (i32, i32) {
    %c0_i32 = arith.constant 0 : i32
    %c0_i32_0 = arith.constant 0 : i32
    %c0_i32_1 = arith.constant 0 : i32
    return %c0_i32, %c0_i32_0 : i32, i32
  }
  func.func @transform_3(%arg0: i32) -> (i32, i32, i32, i32) {
    %c0_i32 = arith.constant 0 : i32
    %c0_i32_0 = arith.constant 0 : i32
    %c0_i32_1 = arith.constant 0 : i32
    %c0_i32_2 = arith.constant 0 : i32
    return %arg0, %c0_i32, %c0_i32_0, %c0_i32_1 : i32, i32, i32, i32
  }
}

module attributes {stable_mosaic.version = 11 : i64} {
  func.func @_conv2x2_kernel(%arg0: i32, %arg1: memref<1x10x10x32xbf16, #tpu.memory_space<vmem>>, %arg2: memref<2x2x32x32xbf16, #tpu.memory_space<vmem>>, %arg3: memref<1x32xf32, #tpu.memory_space<vmem>>, %arg4: memref<1x9x9x32xbf16, #tpu.memory_space<vmem>>) attributes {dimension_semantics = [#tpu.dimension_semantics<parallel>], iteration_bounds = array<i64: 2>, scalar_prefetch = 0 : i64, scratch_operands = 0 : i64, tpu.core_type = #tpu.core_type<tc>, window_params = [{transform_indices = @transform_0, window_bounds = array<i64: 1, 10, 10, 32>}, {pipeline_mode = #tpu.pipeline_mode<synchronous>, transform_indices = @transform_1, window_bounds = array<i64: 2, 2, 32, 32>}, {pipeline_mode = #tpu.pipeline_mode<synchronous>, transform_indices = @transform_2, window_bounds = array<i64: 1, 32>}, {transform_indices = @transform_3, window_bounds = array<i64: 1, 9, 9, 32>}]} {
    %c0 = arith.constant 0 : index
    %c0_0 = arith.constant 0 : index
    %c0_1 = arith.constant 0 : index
    %c0_2 = arith.constant 0 : index
    %0 = vector.load %arg2[%c0, %c0_0, %c0_1, %c0_2] : memref<2x2x32x32xbf16, #tpu.memory_space<vmem>>, vector<1x1x32x32xbf16>
    %1 = vector.shape_cast %0 : vector<1x1x32x32xbf16> to vector<32x32xbf16>
    %c0_3 = arith.constant 0 : index
    %c1 = arith.constant 1 : index
    %c0_4 = arith.constant 0 : index
    %c0_5 = arith.constant 0 : index
    %2 = vector.load %arg2[%c0_3, %c1, %c0_4, %c0_5] : memref<2x2x32x32xbf16, #tpu.memory_space<vmem>>, vector<1x1x32x32xbf16>
    %3 = vector.shape_cast %2 : vector<1x1x32x32xbf16> to vector<32x32xbf16>
    %c1_6 = arith.constant 1 : index
    %c0_7 = arith.constant 0 : index
    %c0_8 = arith.constant 0 : index
    %c0_9 = arith.constant 0 : index
    %4 = vector.load %arg2[%c1_6, %c0_7, %c0_8, %c0_9] : memref<2x2x32x32xbf16, #tpu.memory_space<vmem>>, vector<1x1x32x32xbf16>
    %5 = vector.shape_cast %4 : vector<1x1x32x32xbf16> to vector<32x32xbf16>
    %c1_10 = arith.constant 1 : index
    %c1_11 = arith.constant 1 : index
    %c0_12 = arith.constant 0 : index
    %c0_13 = arith.constant 0 : index
    %6 = vector.load %arg2[%c1_10, %c1_11, %c0_12, %c0_13] : memref<2x2x32x32xbf16, #tpu.memory_space<vmem>>, vector<1x1x32x32xbf16>
    %7 = vector.shape_cast %6 : vector<1x1x32x32xbf16> to vector<32x32xbf16>
    %c0_14 = arith.constant 0 : index
    %c0_15 = arith.constant 0 : index
    %8 = vector.load %arg3[%c0_14, %c0_15] : memref<1x32xf32, #tpu.memory_space<vmem>>, vector<1x32xf32>
    %c0_i32 = arith.constant 0 : i32
    %c9_i32 = arith.constant 9 : i32
    %9 = arith.addi %c0_i32, %c9_i32 : i32
    %c1_i32 = arith.constant 1 : i32
    scf.for %arg5 = %c0_i32 to %9 step %c1_i32  : i32 {
      %c0_17 = arith.constant 0 : index
      %10 = arith.index_cast %arg5 : i32 to index
      %c0_18 = arith.constant 0 : index
      %c0_19 = arith.constant 0 : index
      %11 = vector.load %arg1[%c0_17, %10, %c0_18, %c0_19] : memref<1x10x10x32xbf16, #tpu.memory_space<vmem>>, vector<1x2x10x32xbf16>
      %12 = vector.shape_cast %11 : vector<1x2x10x32xbf16> to vector<2x10x32xbf16>
      %13 = vector.extract_strided_slice %12 {offsets = [0, 0, 0], sizes = [1, 10, 32], strides = [1, 1, 1]} : vector<2x10x32xbf16> to vector<1x10x32xbf16>
      %14 = vector.shape_cast %13 : vector<1x10x32xbf16> to vector<10x32xbf16>
      %15 = vector.extract_strided_slice %12 {offsets = [1, 0, 0], sizes = [1, 10, 32], strides = [1, 1, 1]} : vector<2x10x32xbf16> to vector<1x10x32xbf16>
      %16 = vector.shape_cast %15 : vector<1x10x32xbf16> to vector<10x32xbf16>
      %cst = arith.constant dense<0.000000e+00> : vector<10x32xf32>
      %17 = tpu.matmul %14, %1, %cst {dimension_numbers = #tpu.dot_dimension_numbers<[1], [0], [0], [1], [0, 0, 1, 1], [], []>} : vector<10x32xbf16>, vector<32x32xbf16>, vector<10x32xf32> -> vector<10x32xf32>
      %cst_20 = arith.constant dense<0.000000e+00> : vector<10x32xf32>
      %18 = tpu.matmul %14, %3, %cst_20 {dimension_numbers = #tpu.dot_dimension_numbers<[1], [0], [0], [1], [0, 0, 1, 1], [], []>} : vector<10x32xbf16>, vector<32x32xbf16>, vector<10x32xf32> -> vector<10x32xf32>
      %cst_21 = arith.constant dense<0.000000e+00> : vector<10x32xf32>
      %19 = tpu.matmul %16, %5, %cst_21 {dimension_numbers = #tpu.dot_dimension_numbers<[1], [0], [0], [1], [0, 0, 1, 1], [], []>} : vector<10x32xbf16>, vector<32x32xbf16>, vector<10x32xf32> -> vector<10x32xf32>
      %cst_22 = arith.constant dense<0.000000e+00> : vector<10x32xf32>
      %20 = tpu.matmul %16, %7, %cst_22 {dimension_numbers = #tpu.dot_dimension_numbers<[1], [0], [0], [1], [0, 0, 1, 1], [], []>} : vector<10x32xbf16>, vector<32x32xbf16>, vector<10x32xf32> -> vector<10x32xf32>
      %21 = vector.extract_strided_slice %17 {offsets = [0, 0], sizes = [9, 32], strides = [1, 1]} : vector<10x32xf32> to vector<9x32xf32>
      %22 = vector.extract_strided_slice %19 {offsets = [0, 0], sizes = [9, 32], strides = [1, 1]} : vector<10x32xf32> to vector<9x32xf32>
      %23 = arith.addf %21, %22 : vector<9x32xf32>
      %24 = vector.extract_strided_slice %18 {offsets = [1, 0], sizes = [9, 32], strides = [1, 1]} : vector<10x32xf32> to vector<9x32xf32>
      %25 = arith.addf %23, %24 : vector<9x32xf32>
      %26 = vector.extract_strided_slice %20 {offsets = [1, 0], sizes = [9, 32], strides = [1, 1]} : vector<10x32xf32> to vector<9x32xf32>
      %27 = arith.addf %25, %26 : vector<9x32xf32>
      %28 = vector.broadcast %8 : vector<1x32xf32> to vector<9x32xf32>
      %29 = arith.addf %27, %28 : vector<9x32xf32>
      %cst_23 = arith.constant 0.000000e+00 : f32
      %30 = vector.broadcast %cst_23 : f32 to vector<9x32xf32>
      %31 = arith.maximumf %29, %30 : vector<9x32xf32>
      %32 = vector.shape_cast %31 : vector<9x32xf32> to vector<1x9x32xf32>
      %33 = arith.truncf %32 : vector<1x9x32xf32> to vector<1x9x32xbf16>
      %c0_24 = arith.constant 0 : index
      %34 = arith.index_cast %arg5 : i32 to index
      %c0_25 = arith.constant 0 : index
      %c0_26 = arith.constant 0 : index
      %35 = vector.load %arg4[%c0_24, %34, %c0_25, %c0_26] : memref<1x9x9x32xbf16, #tpu.memory_space<vmem>>, vector<1x1x9x32xbf16>
      %36 = vector.shape_cast %35 : vector<1x1x9x32xbf16> to vector<1x9x32xbf16>
      %37 = vector.shape_cast %33 : vector<1x9x32xbf16> to vector<1x1x9x32xbf16>
      tpu.vector_store %arg4[%c0_24, %34, %c0_25, %c0_26], %37 {strides = array<i32>} : memref<1x9x9x32xbf16, #tpu.memory_space<vmem>>, vector<1x1x9x32xbf16>,
    }
    %c9_i32_16 = arith.constant 9 : i32
    return
  }
  func.func @transform_0(%arg0: i32) -> (i32, i32, i32, i32) {
    %c0_i32 = arith.constant 0 : i32
    %c0_i32_0 = arith.constant 0 : i32
    %c0_i32_1 = arith.constant 0 : i32
    %c0_i32_2 = arith.constant 0 : i32
    return %arg0, %c0_i32, %c0_i32_0, %c0_i32_1 : i32, i32, i32, i32
  }
  func.func @transform_1(%arg0: i32) -> (i32, i32, i32, i32) {
    %c0_i32 = arith.constant 0 : i32
    %c0_i32_0 = arith.constant 0 : i32
    %c0_i32_1 = arith.constant 0 : i32
    %c0_i32_2 = arith.constant 0 : i32
    %c0_i32_3 = arith.constant 0 : i32
    return %c0_i32, %c0_i32_0, %c0_i32_1, %c0_i32_2 : i32, i32, i32, i32
  }
  func.func @transform_2(%arg0: i32) -> (i32, i32) {
    %c0_i32 = arith.constant 0 : i32
    %c0_i32_0 = arith.constant 0 : i32
    %c0_i32_1 = arith.constant 0 : i32
    return %c0_i32, %c0_i32_0 : i32, i32
  }
  func.func @transform_3(%arg0: i32) -> (i32, i32, i32, i32) {
    %c0_i32 = arith.constant 0 : i32
    %c0_i32_0 = arith.constant 0 : i32
    %c0_i32_1 = arith.constant 0 : i32
    %c0_i32_2 = arith.constant 0 : i32
    return %arg0, %c0_i32, %c0_i32_0, %c0_i32_1 : i32, i32, i32, i32
  }
}

module attributes {stable_mosaic.version = 11 : i64} {
  func.func @_conv2x2_kernel(%arg0: i32, %arg1: memref<1x18x18x16xbf16, #tpu.memory_space<vmem>>, %arg2: memref<2x2x16x4xbf16, #tpu.memory_space<vmem>>, %arg3: memref<1x4xf32, #tpu.memory_space<vmem>>, %arg4: memref<1x17x17x4xf32, #tpu.memory_space<vmem>>) attributes {dimension_semantics = [#tpu.dimension_semantics<parallel>], iteration_bounds = array<i64: 2>, scalar_prefetch = 0 : i64, scratch_operands = 0 : i64, tpu.core_type = #tpu.core_type<tc>, window_params = [{transform_indices = @transform_0, window_bounds = array<i64: 1, 18, 18, 16>}, {pipeline_mode = #tpu.pipeline_mode<synchronous>, transform_indices = @transform_1, window_bounds = array<i64: 2, 2, 16, 4>}, {pipeline_mode = #tpu.pipeline_mode<synchronous>, transform_indices = @transform_2, window_bounds = array<i64: 1, 4>}, {transform_indices = @transform_3, window_bounds = array<i64: 1, 17, 17, 4>}]} {
    %c0 = arith.constant 0 : index
    %c0_0 = arith.constant 0 : index
    %c0_1 = arith.constant 0 : index
    %c0_2 = arith.constant 0 : index
    %0 = vector.load %arg2[%c0, %c0_0, %c0_1, %c0_2] : memref<2x2x16x4xbf16, #tpu.memory_space<vmem>>, vector<1x1x16x4xbf16>
    %1 = vector.shape_cast %0 : vector<1x1x16x4xbf16> to vector<16x4xbf16>
    %c0_3 = arith.constant 0 : index
    %c1 = arith.constant 1 : index
    %c0_4 = arith.constant 0 : index
    %c0_5 = arith.constant 0 : index
    %2 = vector.load %arg2[%c0_3, %c1, %c0_4, %c0_5] : memref<2x2x16x4xbf16, #tpu.memory_space<vmem>>, vector<1x1x16x4xbf16>
    %3 = vector.shape_cast %2 : vector<1x1x16x4xbf16> to vector<16x4xbf16>
    %c1_6 = arith.constant 1 : index
    %c0_7 = arith.constant 0 : index
    %c0_8 = arith.constant 0 : index
    %c0_9 = arith.constant 0 : index
    %4 = vector.load %arg2[%c1_6, %c0_7, %c0_8, %c0_9] : memref<2x2x16x4xbf16, #tpu.memory_space<vmem>>, vector<1x1x16x4xbf16>
    %5 = vector.shape_cast %4 : vector<1x1x16x4xbf16> to vector<16x4xbf16>
    %c1_10 = arith.constant 1 : index
    %c1_11 = arith.constant 1 : index
    %c0_12 = arith.constant 0 : index
    %c0_13 = arith.constant 0 : index
    %6 = vector.load %arg2[%c1_10, %c1_11, %c0_12, %c0_13] : memref<2x2x16x4xbf16, #tpu.memory_space<vmem>>, vector<1x1x16x4xbf16>
    %7 = vector.shape_cast %6 : vector<1x1x16x4xbf16> to vector<16x4xbf16>
    %c0_14 = arith.constant 0 : index
    %c0_15 = arith.constant 0 : index
    %8 = vector.load %arg3[%c0_14, %c0_15] : memref<1x4xf32, #tpu.memory_space<vmem>>, vector<1x4xf32>
    %c0_i32 = arith.constant 0 : i32
    %c17_i32 = arith.constant 17 : i32
    %9 = arith.addi %c0_i32, %c17_i32 : i32
    %c1_i32 = arith.constant 1 : i32
    scf.for %arg5 = %c0_i32 to %9 step %c1_i32  : i32 {
      %c0_17 = arith.constant 0 : index
      %10 = arith.index_cast %arg5 : i32 to index
      %c0_18 = arith.constant 0 : index
      %c0_19 = arith.constant 0 : index
      %11 = vector.load %arg1[%c0_17, %10, %c0_18, %c0_19] : memref<1x18x18x16xbf16, #tpu.memory_space<vmem>>, vector<1x2x18x16xbf16>
      %12 = vector.shape_cast %11 : vector<1x2x18x16xbf16> to vector<2x18x16xbf16>
      %13 = vector.extract_strided_slice %12 {offsets = [0, 0, 0], sizes = [1, 18, 16], strides = [1, 1, 1]} : vector<2x18x16xbf16> to vector<1x18x16xbf16>
      %14 = vector.shape_cast %13 : vector<1x18x16xbf16> to vector<18x16xbf16>
      %15 = vector.extract_strided_slice %12 {offsets = [1, 0, 0], sizes = [1, 18, 16], strides = [1, 1, 1]} : vector<2x18x16xbf16> to vector<1x18x16xbf16>
      %16 = vector.shape_cast %15 : vector<1x18x16xbf16> to vector<18x16xbf16>
      %cst = arith.constant dense<0.000000e+00> : vector<18x4xf32>
      %17 = tpu.matmul %14, %1, %cst {dimension_numbers = #tpu.dot_dimension_numbers<[1], [0], [0], [1], [0, 0, 1, 1], [], []>} : vector<18x16xbf16>, vector<16x4xbf16>, vector<18x4xf32> -> vector<18x4xf32>
      %cst_20 = arith.constant dense<0.000000e+00> : vector<18x4xf32>
      %18 = tpu.matmul %14, %3, %cst_20 {dimension_numbers = #tpu.dot_dimension_numbers<[1], [0], [0], [1], [0, 0, 1, 1], [], []>} : vector<18x16xbf16>, vector<16x4xbf16>, vector<18x4xf32> -> vector<18x4xf32>
      %cst_21 = arith.constant dense<0.000000e+00> : vector<18x4xf32>
      %19 = tpu.matmul %16, %5, %cst_21 {dimension_numbers = #tpu.dot_dimension_numbers<[1], [0], [0], [1], [0, 0, 1, 1], [], []>} : vector<18x16xbf16>, vector<16x4xbf16>, vector<18x4xf32> -> vector<18x4xf32>
      %cst_22 = arith.constant dense<0.000000e+00> : vector<18x4xf32>
      %20 = tpu.matmul %16, %7, %cst_22 {dimension_numbers = #tpu.dot_dimension_numbers<[1], [0], [0], [1], [0, 0, 1, 1], [], []>} : vector<18x16xbf16>, vector<16x4xbf16>, vector<18x4xf32> -> vector<18x4xf32>
      %21 = vector.extract_strided_slice %17 {offsets = [0, 0], sizes = [17, 4], strides = [1, 1]} : vector<18x4xf32> to vector<17x4xf32>
      %22 = vector.extract_strided_slice %19 {offsets = [0, 0], sizes = [17, 4], strides = [1, 1]} : vector<18x4xf32> to vector<17x4xf32>
      %23 = arith.addf %21, %22 : vector<17x4xf32>
      %24 = vector.extract_strided_slice %18 {offsets = [1, 0], sizes = [17, 4], strides = [1, 1]} : vector<18x4xf32> to vector<17x4xf32>
      %25 = arith.addf %23, %24 : vector<17x4xf32>
      %26 = vector.extract_strided_slice %20 {offsets = [1, 0], sizes = [17, 4], strides = [1, 1]} : vector<18x4xf32> to vector<17x4xf32>
      %27 = arith.addf %25, %26 : vector<17x4xf32>
      %28 = vector.broadcast %8 : vector<1x4xf32> to vector<17x4xf32>
      %29 = arith.addf %27, %28 : vector<17x4xf32>
      %30 = arith.negf %29 : vector<17x4xf32>
      %31 = math.exp %30 : vector<17x4xf32>
      %cst_23 = arith.constant 1.000000e+00 : f32
      %32 = vector.broadcast %cst_23 : f32 to vector<17x4xf32>
      %33 = arith.addf %32, %31 : vector<17x4xf32>
      %34 = arith.divf %32, %33 : vector<17x4xf32>
      %35 = vector.shape_cast %34 : vector<17x4xf32> to vector<1x17x4xf32>
      %c0_24 = arith.constant 0 : index
      %36 = arith.index_cast %arg5 : i32 to index
      %c0_25 = arith.constant 0 : index
      %c0_26 = arith.constant 0 : index
      %37 = vector.load %arg4[%c0_24, %36, %c0_25, %c0_26] : memref<1x17x17x4xf32, #tpu.memory_space<vmem>>, vector<1x1x17x4xf32>
      %38 = vector.shape_cast %37 : vector<1x1x17x4xf32> to vector<1x17x4xf32>
      %39 = vector.shape_cast %35 : vector<1x17x4xf32> to vector<1x1x17x4xf32>
      tpu.vector_store %arg4[%c0_24, %36, %c0_25, %c0_26], %39 {strides = array<i32>} : memref<1x17x17x4xf32, #tpu.memory_space<vmem>>, vector<1x1x17x4xf32>,
    }
    %c17_i32_16 = arith.constant 17 : i32
    return
  }
  func.func @transform_0(%arg0: i32) -> (i32, i32, i32, i32) {
    %c0_i32 = arith.constant 0 : i32
    %c0_i32_0 = arith.constant 0 : i32
    %c0_i32_1 = arith.constant 0 : i32
    %c0_i32_2 = arith.constant 0 : i32
    return %arg0, %c0_i32, %c0_i32_0, %c0_i32_1 : i32, i32, i32, i32
  }
  func.func @transform_1(%arg0: i32) -> (i32, i32, i32, i32) {
    %c0_i32 = arith.constant 0 : i32
    %c0_i32_0 = arith.constant 0 : i32
    %c0_i32_1 = arith.constant 0 : i32
    %c0_i32_2 = arith.constant 0 : i32
    %c0_i32_3 = arith.constant 0 : i32
    return %c0_i32, %c0_i32_0, %c0_i32_1, %c0_i32_2 : i32, i32, i32, i32
  }
  func.func @transform_2(%arg0: i32) -> (i32, i32) {
    %c0_i32 = arith.constant 0 : i32
    %c0_i32_0 = arith.constant 0 : i32
    %c0_i32_1 = arith.constant 0 : i32
    return %c0_i32, %c0_i32_0 : i32, i32
  }
  func.func @transform_3(%arg0: i32) -> (i32, i32, i32, i32) {
    %c0_i32 = arith.constant 0 : i32
    %c0_i32_0 = arith.constant 0 : i32
    %c0_i32_1 = arith.constant 0 : i32
    %c0_i32_2 = arith.constant 0 : i32
    return %arg0, %c0_i32, %c0_i32_0, %c0_i32_1 : i32, i32, i32, i32
  }
}

</mosaic_0001>

<llo_original>
// kernel: conv_vae_forward.12
$region0: #{conv_vae_forward.12}
  #allocation0 [shape = 'u32[]', space=smem, size = 0x4, offset = 0x4, fixed_abs, tag = 'smem constant byte address 0x4 - core index']
  #allocation1 [shape = 'u32[144,128]{1,0:T(1,128)}', space=vmem, size = 0x12000, scoped, tag = 'internal scratch']
  %s0 = inlined_call_operand.vmem [shape: bf16[2,17,17,4], index: 0, kind: input, shape index: {}]
  %s1 = inlined_call_operand.vmem [shape: bf16[2,2,4,8], index: 1, kind: input, shape index: {}]
  %s2 = inlined_call_operand.vmem [shape: f32[1,8], index: 2, kind: input, shape index: {}]
  %s3 = inlined_call_operand.vmem [shape: bf16[2,16,16,8], index: 3, kind: output, shape index: {}]
  %s4 = sld [smem:[#allocation0]]
  $region52: #{conv_vae_forward.12} parent=0
    _
  %s6 = ssub.s32 1, %s4
  %s7 = scalar_select 0, %s6, %s4
  loop: start=0, step=1, limit=4
  $region2: #{conv_vae_forward.12} parent=0 // loop_pre_header
    _
  $region3: #{conv_vae_forward.12} parent=0 // loop_header
    %s9 = sphi 0, %s13
    %p10 = scmp.ge.s32.totalorder %s9, 4
    %s19 = sphi 0, %s21
    %s22 = sphi 0, %s19
    %s23 = sphi 0, %s22
    %s39 = sphi 0, %s23
    %s43 = sphi 0, %s43
    %s45 = sphi 0, %s43
    %s46 = sphi 0, %s45
    %s60 = sphi 0, %s46
    %s64 = sphi 0, %s64
    %s66 = sphi 0, %s64
    %s67 = sphi 0, %s66
    %s81 = sphi 0, %s67
    %s87 = sphi 0, %s89
    %s90 = sphi 0, %s87
    %s91 = sphi 0, %s90
    %s107 = sphi 0, %s91
  $region4: #{conv_vae_forward.12} parent=0 // loop_header_branch
    %12 = sbr.rel (%p10) target = $region8
  $region5: #{conv_vae_forward.12} parent=0 // loop_body
    %s14 = ssub.s32 %s9, 1
    %s15 = ssub.s32 %s9, 2
    %s16 = sadd.s32 %s9, 1
    %s17 = ssub.s32 %s9, %s16
    %p18 = scmp.eq.s32.totalorder %s17, 0
    %s20 = sadd.s32 %s19, 1
    %s21 = scalar_select %p18, %s19, %s20
    %p24 = pneg %p18
    %p25 = scmp.eq.s32.totalorder %s9, 1
    %p26 = por %p24, %p25
    %p27 = scmp.ne.s32.totalorder %s19, %s22
    %p28 = scmp.eq.s32.totalorder %s9, 0
    %p29 = por %p27, %p28
    %p30 = scmp.ne.s32.totalorder %s19, %s22
    %p31 = scmp.eq.s32.totalorder %s14, 1
    %p32 = por %p30, %p31
    %p33 = scmp.ne.s32.totalorder %s22, %s23
    %p34 = scmp.eq.s32.totalorder %s14, 0
    %p35 = por %p33, %p34
    %p36 = scmp.ne.s32.totalorder %s22, %s23
    %p37 = scmp.eq.s32.totalorder %s15, 1
    %p38 = por %p36, %p37
    %p40 = scmp.ne.s32.totalorder %s23, %s39
    %p41 = scmp.eq.s32.totalorder %s15, 0
    %p42 = por %p40, %p41
    %s44 = sadd.s32 %s43, 1
    %p47 = scmp.eq.s32.totalorder %s9, 1
    %p48 = scmp.ne.s32.totalorder %s43, %s45
    %p49 = scmp.eq.s32.totalorder %s9, 0
    %p50 = por %p48, %p49
    %p51 = scmp.ne.s32.totalorder %s43, %s45
    %p52 = scmp.eq.s32.totalorder %s14, 1
    %p53 = por %p51, %p52
    %p54 = scmp.ne.s32.totalorder %s45, %s46
    %p55 = scmp.eq.s32.totalorder %s14, 0
    %p56 = por %p54, %p55
    %p57 = scmp.ne.s32.totalorder %s45, %s46
    %p58 = scmp.eq.s32.totalorder %s15, 1
    %p59 = por %p57, %p58
    %p61 = scmp.ne.s32.totalorder %s46, %s60
    %p62 = scmp.eq.s32.totalorder %s15, 0
    %p63 = por %p61, %p62
    %s65 = sadd.s32 %s64, 1
    %p68 = scmp.eq.s32.totalorder %s9, 1
    %p69 = scmp.ne.s32.totalorder %s64, %s66
    %p70 = scmp.eq.s32.totalorder %s9, 0
    %p71 = por %p69, %p70
    %p72 = scmp.ne.s32.totalorder %s64, %s66
    %p73 = scmp.eq.s32.totalorder %s14, 1
    %p74 = por %p72, %p73
    %p75 = scmp.ne.s32.totalorder %s66, %s67
    %p76 = scmp.eq.s32.totalorder %s14, 0
    %p77 = por %p75, %p76
    %p78 = scmp.ne.s32.totalorder %s66, %s67
    %p79 = scmp.eq.s32.totalorder %s15, 1
    %p80 = por %p78, %p79
    %p82 = scmp.ne.s32.totalorder %s67, %s81
    %p83 = scmp.eq.s32.totalorder %s15, 0
    %p84 = por %p82, %p83
    %s85 = ssub.s32 %s9, %s16
    %p86 = scmp.eq.s32.totalorder %s85, 0
    %s88 = sadd.s32 %s87, 1
    %s89 = scalar_select %p86, %s87, %s88
    %p92 = pneg %p86
    %p93 = scmp.eq.s32.totalorder %s9, 1
    %p94 = por %p92, %p93
    %p95 = scmp.ne.s32.totalorder %s87, %s90
    %p96 = scmp.eq.s32.totalorder %s9, 0
    %p97 = por %p95, %p96
    %p98 = scmp.ne.s32.totalorder %s87, %s90
    %p99 = scmp.eq.s32.totalorder %s14, 1
    %p100 = por %p98, %p99
    %p101 = scmp.ne.s32.totalorder %s90, %s91
    %p102 = scmp.eq.s32.totalorder %s14, 0
    %p103 = por %p101, %p102
    %p104 = scmp.ne.s32.totalorder %s90, %s91
    %p105 = scmp.eq.s32.totalorder %s15, 1
    %p106 = por %p104, %p105
    %p108 = scmp.ne.s32.totalorder %s91, %s107
    %p109 = scmp.eq.s32.totalorder %s15, 0
    %p110 = por %p108, %p109
    %p111 = scmp.le.s32.totalorder 1, %s9
    %p112 = scmp.lt.s32.totalorder %s9, 3
    %p113 = pnand %p111, %p112
    %p114 = pneg %p113
    // Predicated region
    $region9: #{conv_vae_forward.12} parent=5 // pred_check
      _
    $region10: #{conv_vae_forward.12} parent=5 // pred_check_branch
      %116 = sbr.rel (%p113) target = $region12
    $region11: #{conv_vae_forward.12} parent=5 // pred_region
      %s117 = ssub.s32 %s9, 1
      // Predicated region
      $region13: #{conv_vae_forward.12} parent=11 // pred_check
        %p118 = pneg %p56
      $region14: #{conv_vae_forward.12} parent=11 // pred_check_branch
        %120 = sbr.rel (%p118) target = $region16
      $region15: #{conv_vae_forward.12} parent=11 // pred_region
        _
      $region16: #{conv_vae_forward.12} parent=11 // pred_fallthru
        _
      // Predicated region
      $region17: #{conv_vae_forward.12} parent=11 // pred_check
        %p121 = pneg %p77
      $region18: #{conv_vae_forward.12} parent=11 // pred_check_branch
        %123 = sbr.rel (%p121) target = $region20
      $region19: #{conv_vae_forward.12} parent=11 // pred_region
        _
      $region20: #{conv_vae_forward.12} parent=11 // pred_fallthru
        _
    $region12: #{conv_vae_forward.12} parent=5 // pred_fallthru
      _
    %p124 = scmp.lt.s32.totalorder %s9, 2
    // Predicated region
    $region21: #{conv_vae_forward.12} parent=5 // pred_check
      %p125 = pneg %p124
    $region22: #{conv_vae_forward.12} parent=5 // pred_check_branch
      %127 = sbr.rel (%p125) target = $region24
    $region23: #{conv_vae_forward.12} parent=5 // pred_region
      // Predicated region
      $region25: #{conv_vae_forward.12} parent=23 // pred_check
        %p128 = pneg %p29
      $region26: #{conv_vae_forward.12} parent=23 // pred_check_branch
        %130 = sbr.rel (%p128) target = $region28
      $region27: #{conv_vae_forward.12} parent=23 // pred_region
        %p131 = scmp.lt.s32.totalorder %s9, 1
        %s132 = scalar_select %p131, %s9, 1
        %s133 = smul.addr %s132, 51
        %s134 = smul.addr %s133, 4
        %s135 = scalar_lea.vmem %s0, %s134
      $region28: #{conv_vae_forward.12} parent=23 // pred_fallthru
        _
    $region24: #{conv_vae_forward.12} parent=5 // pred_fallthru
      _
    %p136 = scmp.le.s32.totalorder 1, %s9
    %p137 = scmp.lt.s32.totalorder %s9, 3
    %p138 = pnand %p136, %p137
    %p139 = pneg %p138
    // Predicated region
    $region29: #{conv_vae_forward.12} parent=5 // pred_check
      _
    $region30: #{conv_vae_forward.12} parent=5 // pred_check_branch
      %141 = sbr.rel (%p138) target = $region32
    $region31: #{conv_vae_forward.12} parent=5 // pred_region
      %s142 = ssub.s32 %s9, 1
      %p143 = scmp.lt.s32.totalorder %s14, 1
      %s144 = scalar_select %p143, %s14, 1
      %s145 = smul.addr %s144, 51
      %s146 = smul.addr %s145, 4
      %s147 = scalar_lea.vmem %s0, %s146
      %p148 = pneg %p35
      %p149 = pneg %p32
      %p150 = pneg %p56
      %p151 = pneg %p53
      %p152 = pneg %p77
      %p153 = pneg %p74
      %p154 = pneg %p103
      %p155 = pneg %p100
      %p156 = scmp.lt.s32.totalorder %s14, 1
      %s157 = scalar_select %p156, %s14, 1
      %s158 = smul.addr %s157, 32
      %s159 = smul.addr %s158, 4
      %s160 = scalar_lea.vmem %s3, %s159
      %p161 = scmp.lt.s32.totalorder %s14, 1
      %s162 = scalar_select %p161, %s14, 1
      %s163 = smul.addr %s162, 51
      %s164 = smul.addr %s163, 4
      %s165 = scalar_lea.vmem %s0, %s164
      %p166 = scmp.lt.s32.totalorder %s14, 1
      %s167 = scalar_select %p166, %s14, 1
      %s168 = smul.addr %s167, 32
      %s169 = smul.addr %s168, 4
      %s170 = scalar_lea.vmem %s3, %s169
      %v172 = vld [vmem:[%s1] sm:$0x3]
      %s173 = scalar_lea.vmem %s1, 2
      %v174 = vld [vmem:[%s173] sm:$0x3]
      %s175 = scalar_lea.vmem %s1, 4
      %v176 = vld [vmem:[%s175] sm:$0x3]
      %s177 = scalar_lea.vmem %s1, 6
      %v178 = vld [vmem:[%s177] sm:$0x3]
      %v179 = vld [vmem:[%s2] sm:$0x1]
      loop: start=0, step=1, limit=16
      $region33: #{conv_vae_forward.12} parent=31 // loop_pre_header
        _
      $region34: #{conv_vae_forward.12} parent=31 // loop_header
        %s181 = sphi 0, %s185
        %p182 = scmp.ge.s32.totalorder %s181, 16
      $region35: #{conv_vae_forward.12} parent=31 // loop_header_branch
        %184 = sbr.rel (%p182) target = $region39
      $region36: #{conv_vae_forward.12} parent=31 // loop_body
        %s186 = smul.u32 %s181, 3
        %s187 = smul.addr %s186, 4
        %s188 = scalar_lea.vmem %s165, %s187
        %v189 = vld [vmem:[%s188] sm:$0xf]
        %v190 = vld [vmem:[%s188 + $0x4] sm:$0xf]
        %v191 = vld [vmem:[%s188 + $0x8] sm:$0x1]
        %v192 = vld [vmem:[%s188 + $0xc] sm:$0xf]
        %v193 = vld [vmem:[%s188 + $0x10] sm:$0xf]
        %v194 = vld [vmem:[%s188 + $0x14] sm:$0x1]
        %v198 = vunpack.c.l.b16 %v189
        %v199 = vunpack.c.l.b16 %v190
        %v200 = vunpack.c.l.b16 %v191
        %v201 = vpack.c.b16 %v199, %v198
        %v202 = vpack.c.b16 %v200, %v200
        %vm203 = vcmask 31744
        %v205 = vsel %vm203, %v201, 0
        %v208 = vsel %vm203, %v202, 0
        %vm210 = vcmask 1041408
        %v212 = vsel %vm210, %v172, 0
        %214 = vmatprep.subr.bf16.mxu0 0
        %215 = vmatpush1.bf16.msra.mxu0 %v212
        %216 = vmatprep.subr.bf16.mxu0 0
        %217 = vmatpush1.bf16.msra.mxu0 0
        %218 = vmatprep.subr.bf16.mxu0 0
        %219 = vmatpush1.bf16.msra.mxu0 0
        %220 = vmatprep.subr.bf16.mxu0 0
        %221 = vmatpush1.bf16.msra.mxu0 0
        %222 = vmatprep.subr.bf16.mxu0 0
        %223 = vmatpush1.bf16.msra.mxu0 0
        %224 = vmatprep.subr.bf16.mxu0 0
        %225 = vmatpush1.bf16.msra.mxu0 0
        %226 = vmatprep.subr.bf16.mxu0 0
        %227 = vmatpush1.bf16.msra.mxu0 0
        %228 = vmatprep.subr.bf16.mxu0 0
        %229 = vmatpush1.bf16.msra.mxu0 0
        %230 = vmatprep.subr.bf16.mxu0 0
        %231 = vmatpush1.bf16.msra.mxu0 0
        %232 = vmatprep.subr.bf16.mxu0 0
        %233 = vmatpush1.bf16.msra.mxu0 0
        %234 = vmatprep.subr.bf16.mxu0 0
        %235 = vmatpush1.bf16.msra.mxu0 0
        %236 = vmatprep.subr.bf16.mxu0 0
        %237 = vmatpush1.bf16.msra.mxu0 0
        %238 = vmatprep.subr.bf16.mxu0 0
        %239 = vmatpush1.bf16.msra.mxu0 0
        %240 = vmatprep.subr.bf16.mxu0 0
        %241 = vmatpush1.bf16.msra.mxu0 0
        %242 = vmatprep.subr.bf16.mxu0 0
        %243 = vmatpush1.bf16.msra.mxu0 0
        %244 = vmatprep.subr.bf16.mxu0 0
        %245 = vmatpush1.bf16.msra.mxu0 0
        %246 = vmatprep.mubr.bf16.mxu0 0
        %247 = vmatmul.mubr.bf16.gmra.mrb[0].mxu0 %v205
        %v248 = vpop.f32.mrb[0].mxu0
        %v249 = vadd.f32 0.0, %v248
        %v250 = vpop.f32.mrb[0].mxu0
        %v251 = vpop.f32.mrb[0].mxu0
        %v252 = vadd.f32 0.0, %v251
        %v253 = vpop.f32.mrb[0].mxu0
        %254 = vmatprep.mubr.bf16.mxu0 0
        %255 = vmatmul.mubr.bf16.gmra.mrb[0].mxu0 %v208
        %v256 = vpop.f32.mrb[0].mxu0
        %v257 = vpop.f32.mrb[0].mxu0
        %v258 = vpop.f32.mrb[0].mxu0
        %v259 = vpop.f32.mrb[0].mxu0
        %260 = vdwg.mxu0
        %v262 = vsel %vm210, %v174, 0
        %264 = vmatprep.subr.bf16.mxu0 0
        %265 = vmatpush1.bf16.msra.mxu0 %v262
        %266 = vmatprep.subr.bf16.mxu0 0
        %267 = vmatpush1.bf16.msra.mxu0 0
        %268 = vmatprep.subr.bf16.mxu0 0
        %269 = vmatpush1.bf16.msra.mxu0 0
        %270 = vmatprep.subr.bf16.mxu0 0
        %271 = vmatpush1.bf16.msra.mxu0 0
        %272 = vmatprep.subr.bf16.mxu0 0
        %273 = vmatpush1.bf16.msra.mxu0 0
        %274 = vmatprep.subr.bf16.mxu0 0
        %275 = vmatpush1.bf16.msra.mxu0 0
        %276 = vmatprep.subr.bf16.mxu0 0
        %277 = vmatpush1.bf16.msra.mxu0 0
        %278 = vmatprep.subr.bf16.mxu0 0
        %279 = vmatpush1.bf16.msra.mxu0 0
        %280 = vmatprep.subr.bf16.mxu0 0
        %281 = vmatpush1.bf16.msra.mxu0 0
        %282 = vmatprep.subr.bf16.mxu0 0
        %283 = vmatpush1.bf16.msra.mxu0 0
        %284 = vmatprep.subr.bf16.mxu0 0
        %285 = vmatpush1.bf16.msra.mxu0 0
        %286 = vmatprep.subr.bf16.mxu0 0
        %287 = vmatpush1.bf16.msra.mxu0 0
        %288 = vmatprep.subr.bf16.mxu0 0
        %289 = vmatpush1.bf16.msra.mxu0 0
        %290 = vmatprep.subr.bf16.mxu0 0
        %291 = vmatpush1.bf16.msra.mxu0 0
        %292 = vmatprep.subr.bf16.mxu0 0
        %293 = vmatpush1.bf16.msra.mxu0 0
        %294 = vmatprep.subr.bf16.mxu0 0
        %295 = vmatpush1.bf16.msra.mxu0 0
        %296 = vmatprep.mubr.bf16.mxu0 0
        %297 = vmatmul.mubr.bf16.gmra.mrb[0].mxu0 %v205
        %v298 = vpop.f32.mrb[0].mxu0
        %v299 = vadd.f32 0.0, %v298
        %v300 = vpop.f32.mrb[0].mxu0
        %v301 = vpop.f32.mrb[0].mxu0
        %v302 = vadd.f32 0.0, %v301
        %v303 = vpop.f32.mrb[0].mxu0
        %304 = vmatprep.mubr.bf16.mxu0 0
        %305 = vmatmul.mubr.bf16.gmra.mrb[0].mxu0 %v208
        %v306 = vpop.f32.mrb[0].mxu0
        %v307 = vadd.f32 0.0, %v306
        %v308 = vpop.f32.mrb[0].mxu0
        %v309 = vpop.f32.mrb[0].mxu0
        %v310 = vpop.f32.mrb[0].mxu0
        %311 = vdwg.mxu0
        %v315 = vunpack.c.l.b16 %v192
        %v316 = vunpack.c.l.b16 %v193
        %v317 = vunpack.c.l.b16 %v194
        %v318 = vpack.c.b16 %v316, %v315
        %v319 = vpack.c.b16 %v317, %v317
        %v321 = vsel %vm203, %v318, 0
        %v324 = vsel %vm203, %v319, 0
        %v327 = vsel %vm210, %v176, 0
        %329 = vmatprep.subr.bf16.mxu0 0
        %330 = vmatpush1.bf16.msra.mxu0 %v327
        %331 = vmatprep.subr.bf16.mxu0 0
        %332 = vmatpush1.bf16.msra.mxu0 0
        %333 = vmatprep.subr.bf16.mxu0 0
        %334 = vmatpush1.bf16.msra.mxu0 0
        %335 = vmatprep.subr.bf16.mxu0 0
        %336 = vmatpush1.bf16.msra.mxu0 0
        %337 = vmatprep.subr.bf16.mxu0 0
        %338 = vmatpush1.bf16.msra.mxu0 0
        %339 = vmatprep.subr.bf16.mxu0 0
        %340 = vmatpush1.bf16.msra.mxu0 0
        %341 = vmatprep.subr.bf16.mxu0 0
        %342 = vmatpush1.bf16.msra.mxu0 0
        %343 = vmatprep.subr.bf16.mxu0 0
        %344 = vmatpush1.bf16.msra.mxu0 0
        %345 = vmatprep.subr.bf16.mxu0 0
        %346 = vmatpush1.bf16.msra.mxu0 0
        %347 = vmatprep.subr.bf16.mxu0 0
        %348 = vmatpush1.bf16.msra.mxu0 0
        %349 = vmatprep.subr.bf16.mxu0 0
        %350 = vmatpush1.bf16.msra.mxu0 0
        %351 = vmatprep.subr.bf16.mxu0 0
        %352 = vmatpush1.bf16.msra.mxu0 0
        %353 = vmatprep.subr.bf16.mxu0 0
        %354 = vmatpush1.bf16.msra.mxu0 0
        %355 = vmatprep.subr.bf16.mxu0 0
        %356 = vmatpush1.bf16.msra.mxu0 0
        %357 = vmatprep.subr.bf16.mxu0 0
        %358 = vmatpush1.bf16.msra.mxu0 0
        %359 = vmatprep.subr.bf16.mxu0 0
        %360 = vmatpush1.bf16.msra.mxu0 0
        %361 = vmatprep.mubr.bf16.mxu0 0
        %362 = vmatmul.mubr.bf16.gmra.mrb[0].mxu0 %v321
        %v363 = vpop.f32.mrb[0].mxu0
        %v364 = vadd.f32 0.0, %v363
        %v365 = vpop.f32.mrb[0].mxu0
        %v366 = vpop.f32.mrb[0].mxu0
        %v367 = vadd.f32 0.0, %v366
        %v368 = vpop.f32.mrb[0].mxu0
        %369 = vmatprep.mubr.bf16.mxu0 0
        %370 = vmatmul.mubr.bf16.gmra.mrb[0].mxu0 %v324
        %v371 = vpop.f32.mrb[0].mxu0
        %v372 = vpop.f32.mrb[0].mxu0
        %v373 = vpop.f32.mrb[0].mxu0
        %v374 = vpop.f32.mrb[0].mxu0
        %375 = vdwg.mxu0
        %v377 = vsel %vm210, %v178, 0
        %379 = vmatprep.subr.bf16.mxu0 0
        %380 = vmatpush1.bf16.msra.mxu0 %v377
        %381 = vmatprep.subr.bf16.mxu0 0
        %382 = vmatpush1.bf16.msra.mxu0 0
        %383 = vmatprep.subr.bf16.mxu0 0
        %384 = vmatpush1.bf16.msra.mxu0 0
        %385 = vmatprep.subr.bf16.mxu0 0
        %386 = vmatpush1.bf16.msra.mxu0 0
        %387 = vmatprep.subr.bf16.mxu0 0
        %388 = vmatpush1.bf16.msra.mxu0 0
        %389 = vmatprep.subr.bf16.mxu0 0
        %390 = vmatpush1.bf16.msra.mxu0 0
        %391 = vmatprep.subr.bf16.mxu0 0
        %392 = vmatpush1.bf16.msra.mxu0 0
        %393 = vmatprep.subr.bf16.mxu0 0
        %394 = vmatpush1.bf16.msra.mxu0 0
        %395 = vmatprep.subr.bf16.mxu0 0
        %396 = vmatpush1.bf16.msra.mxu0 0
        %397 = vmatprep.subr.bf16.mxu0 0
        %398 = vmatpush1.bf16.msra.mxu0 0
        %399 = vmatprep.subr.bf16.mxu0 0
        %400 = vmatpush1.bf16.msra.mxu0 0
        %401 = vmatprep.subr.bf16.mxu0 0
        %402 = vmatpush1.bf16.msra.mxu0 0
        %403 = vmatprep.subr.bf16.mxu0 0
        %404 = vmatpush1.bf16.msra.mxu0 0
        %405 = vmatprep.subr.bf16.mxu0 0
        %406 = vmatpush1.bf16.msra.mxu0 0
        %407 = vmatprep.subr.bf16.mxu0 0
        %408 = vmatpush1.bf16.msra.mxu0 0
        %409 = vmatprep.subr.bf16.mxu0 0
        %410 = vmatpush1.bf16.msra.mxu0 0
        %411 = vmatprep.mubr.bf16.mxu0 0
        %412 = vmatmul.mubr.bf16.gmra.mrb[0].mxu0 %v321
        %v413 = vpop.f32.mrb[0].mxu0
        %v414 = vadd.f32 0.0, %v413
        %v415 = vpop.f32.mrb[0].mxu0
        %v416 = vpop.f32.mrb[0].mxu0
        %v417 = vadd.f32 0.0, %v416
        %v418 = vpop.f32.mrb[0].mxu0
        %419 = vmatprep.mubr.bf16.mxu0 0
        %420 = vmatmul.mubr.bf16.gmra.mrb[0].mxu0 %v324
        %v421 = vpop.f32.mrb[0].mxu0
        %v422 = vadd.f32 0.0, %v421
        %v423 = vpop.f32.mrb[0].mxu0
        %v424 = vpop.f32.mrb[0].mxu0
        %v425 = vpop.f32.mrb[0].mxu0
        %426 = vdwg.mxu0
        %v427 = vadd.f32 %v249, %v364
        %v428 = vadd.f32 %v252, %v367
        %vm432 = vcmask 1046528
        %v433 = vrot.slane %v299, 1
        %v434 = vrot.slane %v302, 1
        %v435 = vsel %vm432, %v433, %v434
        %v436 = vrot.slane %v307, 1
        %v437 = vsel %vm432, %v434, %v436
        %v440 = vadd.f32 %v427, %v435
        %v441 = vadd.f32 %v428, %v437
        %v445 = vrot.slane %v414, 1
        %v446 = vrot.slane %v417, 1
        %v447 = vsel %vm432, %v445, %v446
        %v448 = vrot.slane %v422, 1
        %v449 = vsel %vm432, %v446, %v448
        %v452 = vadd.f32 %v440, %v447
        %v453 = vadd.f32 %v441, %v449
        %v455 = vlaneseq
        %v456 = vshrl.u32 %v455, 7
        %v457 = vsub.s32 0, %v456
        %v458 = vrot.slane %v179, %v457
        %v460 = vadd.f32 %v452, %v458
        %v461 = vadd.f32 %v453, %v458
        %v462 = vmax.f32 %v460, 0.0
        %v463 = vmax.f32 %v461, 0.0
        %v464 = vpack.c.bf16 %v463, %v462
        %v466 = vunpack.c.l.b16 %v464
        %v467 = vunpack.c.h.b16 %v464
        %v468 = vpack.c.b16 %v466, %v466
        %v469 = vpack.c.b16 %v467, %v467
        %s472 = smul.u32 %s181, 2
        %s473 = smul.addr %s472, 4
        %s474 = scalar_lea.vmem %s170, %s473
        %vm475 = vcmask 60416
        %476 = vst.msk [vmem:[%s474] sm:$0xf] %vm475, %v468
        %477 = vst.msk [vmem:[%s474 + $0x4] sm:$0xf] %vm475, %v469
      $region37: #{conv_vae_forward.12} parent=31 // loop_footer
        %s185 = sadd.s32 1, %s181
      $region38: #{conv_vae_forward.12} parent=31 // loop_footer_branch
        %180 = sbr.rel target = $region34
      $region39: #{conv_vae_forward.12} parent=31 // loop_exit
        _
      %p478 = scmp.lt.s32.totalorder %s14, 1
      %s479 = scalar_select %p478, %s14, 1
      %s480 = smul.addr %s479, 32
      %s481 = smul.addr %s480, 4
      %s482 = scalar_lea.vmem %s3, %s481
      // Predicated region
      $region40: #{conv_vae_forward.12} parent=31 // pred_check
        %p483 = pneg %p100
      $region41: #{conv_vae_forward.12} parent=31 // pred_check_branch
        %485 = sbr.rel (%p483) target = $region43
      $region42: #{conv_vae_forward.12} parent=31 // pred_region
        _
      $region43: #{conv_vae_forward.12} parent=31 // pred_fallthru
        _
    $region32: #{conv_vae_forward.12} parent=5 // pred_fallthru
      _
    %p486 = scmp.le.s32.totalorder 2, %s9
    // Predicated region
    $region44: #{conv_vae_forward.12} parent=5 // pred_check
      %p487 = pneg %p486
    $region45: #{conv_vae_forward.12} parent=5 // pred_check_branch
      %489 = sbr.rel (%p487) target = $region47
    $region46: #{conv_vae_forward.12} parent=5 // pred_region
      %s490 = ssub.s32 %s9, 2
      // Predicated region
      $region48: #{conv_vae_forward.12} parent=46 // pred_check
        %p491 = pneg %p106
      $region49: #{conv_vae_forward.12} parent=46 // pred_check_branch
        %493 = sbr.rel (%p491) target = $region51
      $region50: #{conv_vae_forward.12} parent=46 // pred_region
        %p494 = scmp.lt.s32.totalorder %s15, 1
        %s495 = scalar_select %p494, %s15, 1
        %s496 = smul.addr %s495, 32
        %s497 = smul.addr %s496, 4
        %s498 = scalar_lea.vmem %s3, %s497
      $region51: #{conv_vae_forward.12} parent=46 // pred_fallthru
        _
    $region47: #{conv_vae_forward.12} parent=5 // pred_fallthru
      _
  $region6: #{conv_vae_forward.12} parent=0 // loop_footer
    %s13 = sadd.s32 1, %s9
  $region7: #{conv_vae_forward.12} parent=0 // loop_footer_branch
    %8 = sbr.rel target = $region3
  $region8: #{conv_vae_forward.12} parent=0 // loop_exit
    _

// kernel: conv_vae_forward.13
$region0: #{conv_vae_forward.13}
  #allocation0 [shape = 'u32[]', space=smem, size = 0x4, offset = 0x4, fixed_abs, tag = 'smem constant byte address 0x4 - core index']
  #allocation1 [shape = 'u32[144,128]{1,0:T(1,128)}', space=vmem, size = 0x12000, scoped, tag = 'internal scratch']
  %s0 = inlined_call_operand.vmem [shape: bf16[2,9,9,32], index: 0, kind: input, shape index: {}]
  %s1 = inlined_call_operand.vmem [shape: bf16[2,2,32,16], index: 1, kind: input, shape index: {}]
  %s2 = inlined_call_operand.vmem [shape: f32[1,16], index: 2, kind: input, shape index: {}]
  %s3 = inlined_call_operand.vmem [shape: bf16[2,8,8,16], index: 3, kind: output, shape index: {}]
  %s4 = sld [smem:[#allocation0]]
  $region52: #{conv_vae_forward.13} parent=0
    _
  %s6 = ssub.s32 1, %s4
  %s7 = scalar_select 0, %s6, %s4
  loop: start=0, step=1, limit=4
  $region2: #{conv_vae_forward.13} parent=0 // loop_pre_header
    _
  $region3: #{conv_vae_forward.13} parent=0 // loop_header
    %s9 = sphi 0, %s13
    %p10 = scmp.ge.s32.totalorder %s9, 4
    %s19 = sphi 0, %s21
    %s22 = sphi 0, %s19
    %s23 = sphi 0, %s22
    %s39 = sphi 0, %s23
    %s43 = sphi 0, %s43
    %s45 = sphi 0, %s43
    %s46 = sphi 0, %s45
    %s60 = sphi 0, %s46
    %s64 = sphi 0, %s64
    %s66 = sphi 0, %s64
    %s67 = sphi 0, %s66
    %s81 = sphi 0, %s67
    %s87 = sphi 0, %s89
    %s90 = sphi 0, %s87
    %s91 = sphi 0, %s90
    %s107 = sphi 0, %s91
  $region4: #{conv_vae_forward.13} parent=0 // loop_header_branch
    %12 = sbr.rel (%p10) target = $region8
  $region5: #{conv_vae_forward.13} parent=0 // loop_body
    %s14 = ssub.s32 %s9, 1
    %s15 = ssub.s32 %s9, 2
    %s16 = sadd.s32 %s9, 1
    %s17 = ssub.s32 %s9, %s16
    %p18 = scmp.eq.s32.totalorder %s17, 0
    %s20 = sadd.s32 %s19, 1
    %s21 = scalar_select %p18, %s19, %s20
    %p24 = pneg %p18
    %p25 = scmp.eq.s32.totalorder %s9, 1
    %p26 = por %p24, %p25
    %p27 = scmp.ne.s32.totalorder %s19, %s22
    %p28 = scmp.eq.s32.totalorder %s9, 0
    %p29 = por %p27, %p28
    %p30 = scmp.ne.s32.totalorder %s19, %s22
    %p31 = scmp.eq.s32.totalorder %s14, 1
    %p32 = por %p30, %p31
    %p33 = scmp.ne.s32.totalorder %s22, %s23
    %p34 = scmp.eq.s32.totalorder %s14, 0
    %p35 = por %p33, %p34
    %p36 = scmp.ne.s32.totalorder %s22, %s23
    %p37 = scmp.eq.s32.totalorder %s15, 1
    %p38 = por %p36, %p37
    %p40 = scmp.ne.s32.totalorder %s23, %s39
    %p41 = scmp.eq.s32.totalorder %s15, 0
    %p42 = por %p40, %p41
    %s44 = sadd.s32 %s43, 1
    %p47 = scmp.eq.s32.totalorder %s9, 1
    %p48 = scmp.ne.s32.totalorder %s43, %s45
    %p49 = scmp.eq.s32.totalorder %s9, 0
    %p50 = por %p48, %p49
    %p51 = scmp.ne.s32.totalorder %s43, %s45
    %p52 = scmp.eq.s32.totalorder %s14, 1
    %p53 = por %p51, %p52
    %p54 = scmp.ne.s32.totalorder %s45, %s46
    %p55 = scmp.eq.s32.totalorder %s14, 0
    %p56 = por %p54, %p55
    %p57 = scmp.ne.s32.totalorder %s45, %s46
    %p58 = scmp.eq.s32.totalorder %s15, 1
    %p59 = por %p57, %p58
    %p61 = scmp.ne.s32.totalorder %s46, %s60
    %p62 = scmp.eq.s32.totalorder %s15, 0
    %p63 = por %p61, %p62
    %s65 = sadd.s32 %s64, 1
    %p68 = scmp.eq.s32.totalorder %s9, 1
    %p69 = scmp.ne.s32.totalorder %s64, %s66
    %p70 = scmp.eq.s32.totalorder %s9, 0
    %p71 = por %p69, %p70
    %p72 = scmp.ne.s32.totalorder %s64, %s66
    %p73 = scmp.eq.s32.totalorder %s14, 1
    %p74 = por %p72, %p73
    %p75 = scmp.ne.s32.totalorder %s66, %s67
    %p76 = scmp.eq.s32.totalorder %s14, 0
    %p77 = por %p75, %p76
    %p78 = scmp.ne.s32.totalorder %s66, %s67
    %p79 = scmp.eq.s32.totalorder %s15, 1
    %p80 = por %p78, %p79
    %p82 = scmp.ne.s32.totalorder %s67, %s81
    %p83 = scmp.eq.s32.totalorder %s15, 0
    %p84 = por %p82, %p83
    %s85 = ssub.s32 %s9, %s16
    %p86 = scmp.eq.s32.totalorder %s85, 0
    %s88 = sadd.s32 %s87, 1
    %s89 = scalar_select %p86, %s87, %s88
    %p92 = pneg %p86
    %p93 = scmp.eq.s32.totalorder %s9, 1
    %p94 = por %p92, %p93
    %p95 = scmp.ne.s32.totalorder %s87, %s90
    %p96 = scmp.eq.s32.totalorder %s9, 0
    %p97 = por %p95, %p96
    %p98 = scmp.ne.s32.totalorder %s87, %s90
    %p99 = scmp.eq.s32.totalorder %s14, 1
    %p100 = por %p98, %p99
    %p101 = scmp.ne.s32.totalorder %s90, %s91
    %p102 = scmp.eq.s32.totalorder %s14, 0
    %p103 = por %p101, %p102
    %p104 = scmp.ne.s32.totalorder %s90, %s91
    %p105 = scmp.eq.s32.totalorder %s15, 1
    %p106 = por %p104, %p105
    %p108 = scmp.ne.s32.totalorder %s91, %s107
    %p109 = scmp.eq.s32.totalorder %s15, 0
    %p110 = por %p108, %p109
    %p111 = scmp.le.s32.totalorder 1, %s9
    %p112 = scmp.lt.s32.totalorder %s9, 3
    %p113 = pnand %p111, %p112
    %p114 = pneg %p113
    // Predicated region
    $region9: #{conv_vae_forward.13} parent=5 // pred_check
      _
    $region10: #{conv_vae_forward.13} parent=5 // pred_check_branch
      %116 = sbr.rel (%p113) target = $region12
    $region11: #{conv_vae_forward.13} parent=5 // pred_region
      %s117 = ssub.s32 %s9, 1
      // Predicated region
      $region13: #{conv_vae_forward.13} parent=11 // pred_check
        %p118 = pneg %p56
      $region14: #{conv_vae_forward.13} parent=11 // pred_check_branch
        %120 = sbr.rel (%p118) target = $region16
      $region15: #{conv_vae_forward.13} parent=11 // pred_region
        _
      $region16: #{conv_vae_forward.13} parent=11 // pred_fallthru
        _
      // Predicated region
      $region17: #{conv_vae_forward.13} parent=11 // pred_check
        %p121 = pneg %p77
      $region18: #{conv_vae_forward.13} parent=11 // pred_check_branch
        %123 = sbr.rel (%p121) target = $region20
      $region19: #{conv_vae_forward.13} parent=11 // pred_region
        _
      $region20: #{conv_vae_forward.13} parent=11 // pred_fallthru
        _
    $region12: #{conv_vae_forward.13} parent=5 // pred_fallthru
      _
    %p124 = scmp.lt.s32.totalorder %s9, 2
    // Predicated region
    $region21: #{conv_vae_forward.13} parent=5 // pred_check
      %p125 = pneg %p124
    $region22: #{conv_vae_forward.13} parent=5 // pred_check_branch
      %127 = sbr.rel (%p125) target = $region24
    $region23: #{conv_vae_forward.13} parent=5 // pred_region
      // Predicated region
      $region25: #{conv_vae_forward.13} parent=23 // pred_check
        %p128 = pneg %p29
      $region26: #{conv_vae_forward.13} parent=23 // pred_check_branch
        %130 = sbr.rel (%p128) target = $region28
      $region27: #{conv_vae_forward.13} parent=23 // pred_region
        %p131 = scmp.lt.s32.totalorder %s9, 1
        %s132 = scalar_select %p131, %s9, 1
        %s133 = smul.addr %s132, 18
        %s134 = smul.addr %s133, 4
        %s135 = scalar_lea.vmem %s0, %s134
      $region28: #{conv_vae_forward.13} parent=23 // pred_fallthru
        _
    $region24: #{conv_vae_forward.13} parent=5 // pred_fallthru
      _
    %p136 = scmp.le.s32.totalorder 1, %s9
    %p137 = scmp.lt.s32.totalorder %s9, 3
    %p138 = pnand %p136, %p137
    %p139 = pneg %p138
    // Predicated region
    $region29: #{conv_vae_forward.13} parent=5 // pred_check
      _
    $region30: #{conv_vae_forward.13} parent=5 // pred_check_branch
      %141 = sbr.rel (%p138) target = $region32
    $region31: #{conv_vae_forward.13} parent=5 // pred_region
      %s142 = ssub.s32 %s9, 1
      %p143 = scmp.lt.s32.totalorder %s14, 1
      %s144 = scalar_select %p143, %s14, 1
      %s145 = smul.addr %s144, 18
      %s146 = smul.addr %s145, 4
      %s147 = scalar_lea.vmem %s0, %s146
      %p148 = pneg %p35
      %p149 = pneg %p32
      %p150 = pneg %p56
      %p151 = pneg %p53
      %p152 = pneg %p77
      %p153 = pneg %p74
      %p154 = pneg %p103
      %p155 = pneg %p100
      %p156 = scmp.lt.s32.totalorder %s14, 1
      %s157 = scalar_select %p156, %s14, 1
      %s158 = smul.addr %s157, 8
      %s159 = smul.addr %s158, 4
      %s160 = scalar_lea.vmem %s3, %s159
      %p161 = scmp.lt.s32.totalorder %s14, 1
      %s162 = scalar_select %p161, %s14, 1
      %s163 = smul.addr %s162, 18
      %s164 = smul.addr %s163, 4
      %s165 = scalar_lea.vmem %s0, %s164
      %p166 = scmp.lt.s32.totalorder %s14, 1
      %s167 = scalar_select %p166, %s14, 1
      %s168 = smul.addr %s167, 8
      %s169 = smul.addr %s168, 4
      %s170 = scalar_lea.vmem %s3, %s169
      %v172 = vld [vmem:[%s1] sm:$0xf]
      %v173 = vld [vmem:[%s1 + $0x4] sm:$0xf]
      %v174 = vld [vmem:[%s1 + $0x8] sm:$0xf]
      %v175 = vld [vmem:[%s1 + $0xc] sm:$0xf]
      %s176 = scalar_lea.vmem %s1, 16
      %v177 = vld [vmem:[%s176] sm:$0xf]
      %v178 = vld [vmem:[%s176 + $0x4] sm:$0xf]
      %v179 = vld [vmem:[%s176 + $0x8] sm:$0xf]
      %v180 = vld [vmem:[%s176 + $0xc] sm:$0xf]
      %s181 = scalar_lea.vmem %s1, 32
      %v182 = vld [vmem:[%s181] sm:$0xf]
      %v183 = vld [vmem:[%s181 + $0x4] sm:$0xf]
      %v184 = vld [vmem:[%s181 + $0x8] sm:$0xf]
      %v185 = vld [vmem:[%s181 + $0xc] sm:$0xf]
      %s186 = scalar_lea.vmem %s1, 48
      %v187 = vld [vmem:[%s186] sm:$0xf]
      %v188 = vld [vmem:[%s186 + $0x4] sm:$0xf]
      %v189 = vld [vmem:[%s186 + $0x8] sm:$0xf]
      %v190 = vld [vmem:[%s186 + $0xc] sm:$0xf]
      %v191 = vld [vmem:[%s2] sm:$0x1]
      loop: start=0, step=1, limit=8
      $region33: #{conv_vae_forward.13} parent=31 // loop_pre_header
        _
      $region34: #{conv_vae_forward.13} parent=31 // loop_header
        %s193 = sphi 0, %s197
        %p194 = scmp.ge.s32.totalorder %s193, 8
      $region35: #{conv_vae_forward.13} parent=31 // loop_header_branch
        %196 = sbr.rel (%p194) target = $region39
      $region36: #{conv_vae_forward.13} parent=31 // loop_body
        %s198 = smul.u32 %s193, 2
        %s199 = smul.addr %s198, 4
        %s200 = scalar_lea.vmem %s165, %s199
        %v201 = vld [vmem:[%s200] sm:$0xf]
        %v202 = vld [vmem:[%s200 + $0x4] sm:$0x1]
        %v203 = vld [vmem:[%s200 + $0x8] sm:$0xf]
        %v204 = vld [vmem:[%s200 + $0xc] sm:$0x1]
        %v207 = vunpack.c.l.b16 %v201
        %v208 = vunpack.c.l.b16 %v202
        %v209 = vpack.c.b16 %v208, %v207
        %v214 = vunpack.c.l.b16 %v172
        %v215 = vunpack.c.l.b16 %v173
        %v216 = vunpack.c.l.b16 %v174
        %v217 = vunpack.c.l.b16 %v175
        %v218 = vpack.c.b16 %v215, %v214
        %v219 = vpack.c.b16 %v217, %v216
        %vm222 = vcmask 261120
        %v224 = vsel %vm222, %v209, 0
        %226 = vmatprep.subr.bf16.mxu0 0
        %227 = vmatpush1.bf16.msra.mxu0 %v218
        %228 = vmatprep.subr.bf16.mxu0 0
        %229 = vmatpush1.bf16.msra.mxu0 %v219
        %230 = vmatprep.subr.bf16.mxu0 0
        %231 = vmatpush1.bf16.msra.mxu0 0
        %232 = vmatprep.subr.bf16.mxu0 0
        %233 = vmatpush1.bf16.msra.mxu0 0
        %234 = vmatprep.subr.bf16.mxu0 0
        %235 = vmatpush1.bf16.msra.mxu0 0
        %236 = vmatprep.subr.bf16.mxu0 0
        %237 = vmatpush1.bf16.msra.mxu0 0
        %238 = vmatprep.subr.bf16.mxu0 0
        %239 = vmatpush1.bf16.msra.mxu0 0
        %240 = vmatprep.subr.bf16.mxu0 0
        %241 = vmatpush1.bf16.msra.mxu0 0
        %242 = vmatprep.subr.bf16.mxu0 0
        %243 = vmatpush1.bf16.msra.mxu0 0
        %244 = vmatprep.subr.bf16.mxu0 0
        %245 = vmatpush1.bf16.msra.mxu0 0
        %246 = vmatprep.subr.bf16.mxu0 0
        %247 = vmatpush1.bf16.msra.mxu0 0
        %248 = vmatprep.subr.bf16.mxu0 0
        %249 = vmatpush1.bf16.msra.mxu0 0
        %250 = vmatprep.subr.bf16.mxu0 0
        %251 = vmatpush1.bf16.msra.mxu0 0
        %252 = vmatprep.subr.bf16.mxu0 0
        %253 = vmatpush1.bf16.msra.mxu0 0
        %254 = vmatprep.subr.bf16.mxu0 0
        %255 = vmatpush1.bf16.msra.mxu0 0
        %256 = vmatprep.subr.bf16.mxu0 0
        %257 = vmatpush1.bf16.msra.mxu0 0
        %258 = vmatprep.mubr.bf16.mxu0 0
        %259 = vmatmul.mubr.bf16.gmra.mrb[0].mxu0 %v224
        %v260 = vpop.f32.mrb[0].mxu0
        %v261 = vadd.f32 0.0, %v260
        %v262 = vpop.f32.mrb[0].mxu0
        %v263 = vpop.f32.mrb[0].mxu0
        %v264 = vpop.f32.mrb[0].mxu0
        %265 = vdwg.mxu0
        %v270 = vunpack.c.l.b16 %v177
        %v271 = vunpack.c.l.b16 %v178
        %v272 = vunpack.c.l.b16 %v179
        %v273 = vunpack.c.l.b16 %v180
        %v274 = vpack.c.b16 %v271, %v270
        %v275 = vpack.c.b16 %v273, %v272
        %278 = vmatprep.subr.bf16.mxu0 0
        %279 = vmatpush1.bf16.msra.mxu0 %v274
        %280 = vmatprep.subr.bf16.mxu0 0
        %281 = vmatpush1.bf16.msra.mxu0 %v275
        %282 = vmatprep.subr.bf16.mxu0 0
        %283 = vmatpush1.bf16.msra.mxu0 0
        %284 = vmatprep.subr.bf16.mxu0 0
        %285 = vmatpush1.bf16.msra.mxu0 0
        %286 = vmatprep.subr.bf16.mxu0 0
        %287 = vmatpush1.bf16.msra.mxu0 0
        %288 = vmatprep.subr.bf16.mxu0 0
        %289 = vmatpush1.bf16.msra.mxu0 0
        %290 = vmatprep.subr.bf16.mxu0 0
        %291 = vmatpush1.bf16.msra.mxu0 0
        %292 = vmatprep.subr.bf16.mxu0 0
        %293 = vmatpush1.bf16.msra.mxu0 0
        %294 = vmatprep.subr.bf16.mxu0 0
        %295 = vmatpush1.bf16.msra.mxu0 0
        %296 = vmatprep.subr.bf16.mxu0 0
        %297 = vmatpush1.bf16.msra.mxu0 0
        %298 = vmatprep.subr.bf16.mxu0 0
        %299 = vmatpush1.bf16.msra.mxu0 0
        %300 = vmatprep.subr.bf16.mxu0 0
        %301 = vmatpush1.bf16.msra.mxu0 0
        %302 = vmatprep.subr.bf16.mxu0 0
        %303 = vmatpush1.bf16.msra.mxu0 0
        %304 = vmatprep.subr.bf16.mxu0 0
        %305 = vmatpush1.bf16.msra.mxu0 0
        %306 = vmatprep.subr.bf16.mxu0 0
        %307 = vmatpush1.bf16.msra.mxu0 0
        %308 = vmatprep.subr.bf16.mxu0 0
        %309 = vmatpush1.bf16.msra.mxu0 0
        %310 = vmatprep.mubr.bf16.mxu0 0
        %311 = vmatmul.mubr.bf16.gmra.mrb[0].mxu0 %v224
        %v312 = vpop.f32.mrb[0].mxu0
        %v313 = vadd.f32 0.0, %v312
        %v314 = vpop.f32.mrb[0].mxu0
        %v315 = vpop.f32.mrb[0].mxu0
        %v316 = vadd.f32 0.0, %v315
        %v317 = vpop.f32.mrb[0].mxu0
        %318 = vdwg.mxu0
        %v321 = vunpack.c.l.b16 %v203
        %v322 = vunpack.c.l.b16 %v204
        %v323 = vpack.c.b16 %v322, %v321
        %v328 = vunpack.c.l.b16 %v182
        %v329 = vunpack.c.l.b16 %v183
        %v330 = vunpack.c.l.b16 %v184
        %v331 = vunpack.c.l.b16 %v185
        %v332 = vpack.c.b16 %v329, %v328
        %v333 = vpack.c.b16 %v331, %v330
        %v337 = vsel %vm222, %v323, 0
        %339 = vmatprep.subr.bf16.mxu0 0
        %340 = vmatpush1.bf16.msra.mxu0 %v332
        %341 = vmatprep.subr.bf16.mxu0 0
        %342 = vmatpush1.bf16.msra.mxu0 %v333
        %343 = vmatprep.subr.bf16.mxu0 0
        %344 = vmatpush1.bf16.msra.mxu0 0
        %345 = vmatprep.subr.bf16.mxu0 0
        %346 = vmatpush1.bf16.msra.mxu0 0
        %347 = vmatprep.subr.bf16.mxu0 0
        %348 = vmatpush1.bf16.msra.mxu0 0
        %349 = vmatprep.subr.bf16.mxu0 0
        %350 = vmatpush1.bf16.msra.mxu0 0
        %351 = vmatprep.subr.bf16.mxu0 0
        %352 = vmatpush1.bf16.msra.mxu0 0
        %353 = vmatprep.subr.bf16.mxu0 0
        %354 = vmatpush1.bf16.msra.mxu0 0
        %355 = vmatprep.subr.bf16.mxu0 0
        %356 = vmatpush1.bf16.msra.mxu0 0
        %357 = vmatprep.subr.bf16.mxu0 0
        %358 = vmatpush1.bf16.msra.mxu0 0
        %359 = vmatprep.subr.bf16.mxu0 0
        %360 = vmatpush1.bf16.msra.mxu0 0
        %361 = vmatprep.subr.bf16.mxu0 0
        %362 = vmatpush1.bf16.msra.mxu0 0
        %363 = vmatprep.subr.bf16.mxu0 0
        %364 = vmatpush1.bf16.msra.mxu0 0
        %365 = vmatprep.subr.bf16.mxu0 0
        %366 = vmatpush1.bf16.msra.mxu0 0
        %367 = vmatprep.subr.bf16.mxu0 0
        %368 = vmatpush1.bf16.msra.mxu0 0
        %369 = vmatprep.subr.bf16.mxu0 0
        %370 = vmatpush1.bf16.msra.mxu0 0
        %371 = vmatprep.mubr.bf16.mxu0 0
        %372 = vmatmul.mubr.bf16.gmra.mrb[0].mxu0 %v337
        %v373 = vpop.f32.mrb[0].mxu0
        %v374 = vadd.f32 0.0, %v373
        %v375 = vpop.f32.mrb[0].mxu0
        %v376 = vpop.f32.mrb[0].mxu0
        %v377 = vpop.f32.mrb[0].mxu0
        %378 = vdwg.mxu0
        %v383 = vunpack.c.l.b16 %v187
        %v384 = vunpack.c.l.b16 %v188
        %v385 = vunpack.c.l.b16 %v189
        %v386 = vunpack.c.l.b16 %v190
        %v387 = vpack.c.b16 %v384, %v383
        %v388 = vpack.c.b16 %v386, %v385
        %391 = vmatprep.subr.bf16.mxu0 0
        %392 = vmatpush1.bf16.msra.mxu0 %v387
        %393 = vmatprep.subr.bf16.mxu0 0
        %394 = vmatpush1.bf16.msra.mxu0 %v388
        %395 = vmatprep.subr.bf16.mxu0 0
        %396 = vmatpush1.bf16.msra.mxu0 0
        %397 = vmatprep.subr.bf16.mxu0 0
        %398 = vmatpush1.bf16.msra.mxu0 0
        %399 = vmatprep.subr.bf16.mxu0 0
        %400 = vmatpush1.bf16.msra.mxu0 0
        %401 = vmatprep.subr.bf16.mxu0 0
        %402 = vmatpush1.bf16.msra.mxu0 0
        %403 = vmatprep.subr.bf16.mxu0 0
        %404 = vmatpush1.bf16.msra.mxu0 0
        %405 = vmatprep.subr.bf16.mxu0 0
        %406 = vmatpush1.bf16.msra.mxu0 0
        %407 = vmatprep.subr.bf16.mxu0 0
        %408 = vmatpush1.bf16.msra.mxu0 0
        %409 = vmatprep.subr.bf16.mxu0 0
        %410 = vmatpush1.bf16.msra.mxu0 0
        %411 = vmatprep.subr.bf16.mxu0 0
        %412 = vmatpush1.bf16.msra.mxu0 0
        %413 = vmatprep.subr.bf16.mxu0 0
        %414 = vmatpush1.bf16.msra.mxu0 0
        %415 = vmatprep.subr.bf16.mxu0 0
        %416 = vmatpush1.bf16.msra.mxu0 0
        %417 = vmatprep.subr.bf16.mxu0 0
        %418 = vmatpush1.bf16.msra.mxu0 0
        %419 = vmatprep.subr.bf16.mxu0 0
        %420 = vmatpush1.bf16.msra.mxu0 0
        %421 = vmatprep.subr.bf16.mxu0 0
        %422 = vmatpush1.bf16.msra.mxu0 0
        %423 = vmatprep.mubr.bf16.mxu0 0
        %424 = vmatmul.mubr.bf16.gmra.mrb[0].mxu0 %v337
        %v425 = vpop.f32.mrb[0].mxu0
        %v426 = vadd.f32 0.0, %v425
        %v427 = vpop.f32.mrb[0].mxu0
        %v428 = vpop.f32.mrb[0].mxu0
        %v429 = vadd.f32 0.0, %v428
        %v430 = vpop.f32.mrb[0].mxu0
        %431 = vdwg.mxu0
        %v432 = vadd.f32 %v261, %v374
        %vm435 = vcmask 1046528
        %v436 = vrot.slane %v313, 1
        %v437 = vrot.slane %v316, 1
        %v438 = vsel %vm435, %v436, %v437
        %v440 = vadd.f32 %v432, %v438
        %v443 = vrot.slane %v426, 1
        %v444 = vrot.slane %v429, 1
        %v445 = vsel %vm435, %v443, %v444
        %v447 = vadd.f32 %v440, %v445
        %v449 = vlaneseq
        %v450 = vshrl.u32 %v449, 7
        %v451 = vsub.s32 0, %v450
        %v452 = vrot.slane %v191, %v451
        %v454 = vadd.f32 %v447, %v452
        %v455 = vmax.f32 %v454, 0.0
        %v456 = vpack.c.bf16 %v455, %v455
        %s457 = smul.addr %s193, 4
        %s458 = scalar_lea.vmem %s170, %s457
        %vm459 = vcmask 125952
        %460 = vst.msk [vmem:[%s458] sm:$0xf] %vm459, %v456
      $region37: #{conv_vae_forward.13} parent=31 // loop_footer
        %s197 = sadd.s32 1, %s193
      $region38: #{conv_vae_forward.13} parent=31 // loop_footer_branch
        %192 = sbr.rel target = $region34
      $region39: #{conv_vae_forward.13} parent=31 // loop_exit
        _
      %p461 = scmp.lt.s32.totalorder %s14, 1
      %s462 = scalar_select %p461, %s14, 1
      %s463 = smul.addr %s462, 8
      %s464 = smul.addr %s463, 4
      %s465 = scalar_lea.vmem %s3, %s464
      // Predicated region
      $region40: #{conv_vae_forward.13} parent=31 // pred_check
        %p466 = pneg %p100
      $region41: #{conv_vae_forward.13} parent=31 // pred_check_branch
        %468 = sbr.rel (%p466) target = $region43
      $region42: #{conv_vae_forward.13} parent=31 // pred_region
        _
      $region43: #{conv_vae_forward.13} parent=31 // pred_fallthru
        _
    $region32: #{conv_vae_forward.13} parent=5 // pred_fallthru
      _
    %p469 = scmp.le.s32.totalorder 2, %s9
    // Predicated region
    $region44: #{conv_vae_forward.13} parent=5 // pred_check
      %p470 = pneg %p469
    $region45: #{conv_vae_forward.13} parent=5 // pred_check_branch
      %472 = sbr.rel (%p470) target = $region47
    $region46: #{conv_vae_forward.13} parent=5 // pred_region
      %s473 = ssub.s32 %s9, 2
      // Predicated region
      $region48: #{conv_vae_forward.13} parent=46 // pred_check
        %p474 = pneg %p106
      $region49: #{conv_vae_forward.13} parent=46 // pred_check_branch
        %476 = sbr.rel (%p474) target = $region51
      $region50: #{conv_vae_forward.13} parent=46 // pred_region
        %p477 = scmp.lt.s32.totalorder %s15, 1
        %s478 = scalar_select %p477, %s15, 1
        %s479 = smul.addr %s478, 8
        %s480 = smul.addr %s479, 4
        %s481 = scalar_lea.vmem %s3, %s480
      $region51: #{conv_vae_forward.13} parent=46 // pred_fallthru
        _
    $region47: #{conv_vae_forward.13} parent=5 // pred_fallthru
      _
  $region6: #{conv_vae_forward.13} parent=0 // loop_footer
    %s13 = sadd.s32 1, %s9
  $region7: #{conv_vae_forward.13} parent=0 // loop_footer_branch
    %8 = sbr.rel target = $region3
  $region8: #{conv_vae_forward.13} parent=0 // loop_exit
    _

// kernel: conv_vae_forward.14
$region0: #{conv_vae_forward.14}
  #allocation0 [shape = 'u32[]', space=smem, size = 0x4, offset = 0x4, fixed_abs, tag = 'smem constant byte address 0x4 - core index']
  #allocation1 [shape = 'u32[144,128]{1,0:T(1,128)}', space=vmem, size = 0x12000, scoped, tag = 'internal scratch']
  %s0 = inlined_call_operand.vmem [shape: bf16[2,5,5,64], index: 0, kind: input, shape index: {}]
  %s1 = inlined_call_operand.vmem [shape: bf16[2,2,64,32], index: 1, kind: input, shape index: {}]
  %s2 = inlined_call_operand.vmem [shape: f32[1,32], index: 2, kind: input, shape index: {}]
  %s3 = inlined_call_operand.vmem [shape: bf16[2,4,4,32], index: 3, kind: output, shape index: {}]
  %s4 = sld [smem:[#allocation0]]
  $region52: #{conv_vae_forward.14} parent=0
    _
  %s6 = ssub.s32 1, %s4
  %s7 = scalar_select 0, %s6, %s4
  loop: start=0, step=1, limit=4
  $region2: #{conv_vae_forward.14} parent=0 // loop_pre_header
    _
  $region3: #{conv_vae_forward.14} parent=0 // loop_header
    %s9 = sphi 0, %s13
    %p10 = scmp.ge.s32.totalorder %s9, 4
    %s19 = sphi 0, %s21
    %s22 = sphi 0, %s19
    %s23 = sphi 0, %s22
    %s39 = sphi 0, %s23
    %s43 = sphi 0, %s43
    %s45 = sphi 0, %s43
    %s46 = sphi 0, %s45
    %s60 = sphi 0, %s46
    %s64 = sphi 0, %s64
    %s66 = sphi 0, %s64
    %s67 = sphi 0, %s66
    %s81 = sphi 0, %s67
    %s87 = sphi 0, %s89
    %s90 = sphi 0, %s87
    %s91 = sphi 0, %s90
    %s107 = sphi 0, %s91
  $region4: #{conv_vae_forward.14} parent=0 // loop_header_branch
    %12 = sbr.rel (%p10) target = $region8
  $region5: #{conv_vae_forward.14} parent=0 // loop_body
    %s14 = ssub.s32 %s9, 1
    %s15 = ssub.s32 %s9, 2
    %s16 = sadd.s32 %s9, 1
    %s17 = ssub.s32 %s9, %s16
    %p18 = scmp.eq.s32.totalorder %s17, 0
    %s20 = sadd.s32 %s19, 1
    %s21 = scalar_select %p18, %s19, %s20
    %p24 = pneg %p18
    %p25 = scmp.eq.s32.totalorder %s9, 1
    %p26 = por %p24, %p25
    %p27 = scmp.ne.s32.totalorder %s19, %s22
    %p28 = scmp.eq.s32.totalorder %s9, 0
    %p29 = por %p27, %p28
    %p30 = scmp.ne.s32.totalorder %s19, %s22
    %p31 = scmp.eq.s32.totalorder %s14, 1
    %p32 = por %p30, %p31
    %p33 = scmp.ne.s32.totalorder %s22, %s23
    %p34 = scmp.eq.s32.totalorder %s14, 0
    %p35 = por %p33, %p34
    %p36 = scmp.ne.s32.totalorder %s22, %s23
    %p37 = scmp.eq.s32.totalorder %s15, 1
    %p38 = por %p36, %p37
    %p40 = scmp.ne.s32.totalorder %s23, %s39
    %p41 = scmp.eq.s32.totalorder %s15, 0
    %p42 = por %p40, %p41
    %s44 = sadd.s32 %s43, 1
    %p47 = scmp.eq.s32.totalorder %s9, 1
    %p48 = scmp.ne.s32.totalorder %s43, %s45
    %p49 = scmp.eq.s32.totalorder %s9, 0
    %p50 = por %p48, %p49
    %p51 = scmp.ne.s32.totalorder %s43, %s45
    %p52 = scmp.eq.s32.totalorder %s14, 1
    %p53 = por %p51, %p52
    %p54 = scmp.ne.s32.totalorder %s45, %s46
    %p55 = scmp.eq.s32.totalorder %s14, 0
    %p56 = por %p54, %p55
    %p57 = scmp.ne.s32.totalorder %s45, %s46
    %p58 = scmp.eq.s32.totalorder %s15, 1
    %p59 = por %p57, %p58
    %p61 = scmp.ne.s32.totalorder %s46, %s60
    %p62 = scmp.eq.s32.totalorder %s15, 0
    %p63 = por %p61, %p62
    %s65 = sadd.s32 %s64, 1
    %p68 = scmp.eq.s32.totalorder %s9, 1
    %p69 = scmp.ne.s32.totalorder %s64, %s66
    %p70 = scmp.eq.s32.totalorder %s9, 0
    %p71 = por %p69, %p70
    %p72 = scmp.ne.s32.totalorder %s64, %s66
    %p73 = scmp.eq.s32.totalorder %s14, 1
    %p74 = por %p72, %p73
    %p75 = scmp.ne.s32.totalorder %s66, %s67
    %p76 = scmp.eq.s32.totalorder %s14, 0
    %p77 = por %p75, %p76
    %p78 = scmp.ne.s32.totalorder %s66, %s67
    %p79 = scmp.eq.s32.totalorder %s15, 1
    %p80 = por %p78, %p79
    %p82 = scmp.ne.s32.totalorder %s67, %s81
    %p83 = scmp.eq.s32.totalorder %s15, 0
    %p84 = por %p82, %p83
    %s85 = ssub.s32 %s9, %s16
    %p86 = scmp.eq.s32.totalorder %s85, 0
    %s88 = sadd.s32 %s87, 1
    %s89 = scalar_select %p86, %s87, %s88
    %p92 = pneg %p86
    %p93 = scmp.eq.s32.totalorder %s9, 1
    %p94 = por %p92, %p93
    %p95 = scmp.ne.s32.totalorder %s87, %s90
    %p96 = scmp.eq.s32.totalorder %s9, 0
    %p97 = por %p95, %p96
    %p98 = scmp.ne.s32.totalorder %s87, %s90
    %p99 = scmp.eq.s32.totalorder %s14, 1
    %p100 = por %p98, %p99
    %p101 = scmp.ne.s32.totalorder %s90, %s91
    %p102 = scmp.eq.s32.totalorder %s14, 0
    %p103 = por %p101, %p102
    %p104 = scmp.ne.s32.totalorder %s90, %s91
    %p105 = scmp.eq.s32.totalorder %s15, 1
    %p106 = por %p104, %p105
    %p108 = scmp.ne.s32.totalorder %s91, %s107
    %p109 = scmp.eq.s32.totalorder %s15, 0
    %p110 = por %p108, %p109
    %p111 = scmp.le.s32.totalorder 1, %s9
    %p112 = scmp.lt.s32.totalorder %s9, 3
    %p113 = pnand %p111, %p112
    %p114 = pneg %p113
    // Predicated region
    $region9: #{conv_vae_forward.14} parent=5 // pred_check
      _
    $region10: #{conv_vae_forward.14} parent=5 // pred_check_branch
      %116 = sbr.rel (%p113) target = $region12
    $region11: #{conv_vae_forward.14} parent=5 // pred_region
      %s117 = ssub.s32 %s9, 1
      // Predicated region
      $region13: #{conv_vae_forward.14} parent=11 // pred_check
        %p118 = pneg %p56
      $region14: #{conv_vae_forward.14} parent=11 // pred_check_branch
        %120 = sbr.rel (%p118) target = $region16
      $region15: #{conv_vae_forward.14} parent=11 // pred_region
        _
      $region16: #{conv_vae_forward.14} parent=11 // pred_fallthru
        _
      // Predicated region
      $region17: #{conv_vae_forward.14} parent=11 // pred_check
        %p121 = pneg %p77
      $region18: #{conv_vae_forward.14} parent=11 // pred_check_branch
        %123 = sbr.rel (%p121) target = $region20
      $region19: #{conv_vae_forward.14} parent=11 // pred_region
        _
      $region20: #{conv_vae_forward.14} parent=11 // pred_fallthru
        _
    $region12: #{conv_vae_forward.14} parent=5 // pred_fallthru
      _
    %p124 = scmp.lt.s32.totalorder %s9, 2
    // Predicated region
    $region21: #{conv_vae_forward.14} parent=5 // pred_check
      %p125 = pneg %p124
    $region22: #{conv_vae_forward.14} parent=5 // pred_check_branch
      %127 = sbr.rel (%p125) target = $region24
    $region23: #{conv_vae_forward.14} parent=5 // pred_region
      // Predicated region
      $region25: #{conv_vae_forward.14} parent=23 // pred_check
        %p128 = pneg %p29
      $region26: #{conv_vae_forward.14} parent=23 // pred_check_branch
        %130 = sbr.rel (%p128) target = $region28
      $region27: #{conv_vae_forward.14} parent=23 // pred_region
        %p131 = scmp.lt.s32.totalorder %s9, 1
        %s132 = scalar_select %p131, %s9, 1
        %s133 = smul.addr %s132, 5
        %s134 = smul.addr %s133, 4
        %s135 = scalar_lea.vmem %s0, %s134
      $region28: #{conv_vae_forward.14} parent=23 // pred_fallthru
        _
    $region24: #{conv_vae_forward.14} parent=5 // pred_fallthru
      _
    %p136 = scmp.le.s32.totalorder 1, %s9
    %p137 = scmp.lt.s32.totalorder %s9, 3
    %p138 = pnand %p136, %p137
    %p139 = pneg %p138
    // Predicated region
    $region29: #{conv_vae_forward.14} parent=5 // pred_check
      _
    $region30: #{conv_vae_forward.14} parent=5 // pred_check_branch
      %141 = sbr.rel (%p138) target = $region32
    $region31: #{conv_vae_forward.14} parent=5 // pred_region
      %s142 = ssub.s32 %s9, 1
      %p143 = scmp.lt.s32.totalorder %s14, 1
      %s144 = scalar_select %p143, %s14, 1
      %s145 = smul.addr %s144, 5
      %s146 = smul.addr %s145, 4
      %s147 = scalar_lea.vmem %s0, %s146
      %p148 = pneg %p35
      %p149 = pneg %p32
      %p150 = pneg %p56
      %p151 = pneg %p53
      %p152 = pneg %p77
      %p153 = pneg %p74
      %p154 = pneg %p103
      %p155 = pneg %p100
      %p156 = scmp.lt.s32.totalorder %s14, 1
      %s157 = scalar_select %p156, %s14, 1
      %s158 = smul.addr %s157, 4
      %s159 = smul.addr %s158, 2
      %s160 = scalar_lea.vmem %s3, %s159
      %p161 = scmp.lt.s32.totalorder %s14, 1
      %s162 = scalar_select %p161, %s14, 1
      %s163 = smul.addr %s162, 5
      %s164 = smul.addr %s163, 4
      %s165 = scalar_lea.vmem %s0, %s164
      %p166 = scmp.lt.s32.totalorder %s14, 1
      %s167 = scalar_select %p166, %s14, 1
      %s168 = smul.addr %s167, 4
      %s169 = smul.addr %s168, 2
      %s170 = scalar_lea.vmem %s3, %s169
      %v172 = vld [vmem:[%s1] sm:$0xf]
      %v173 = vld [vmem:[%s1 + $0x4] sm:$0xf]
      %v174 = vld [vmem:[%s1 + $0x8] sm:$0xf]
      %v175 = vld [vmem:[%s1 + $0xc] sm:$0xf]
      %v176 = vld [vmem:[%s1 + $0x10] sm:$0xf]
      %v177 = vld [vmem:[%s1 + $0x14] sm:$0xf]
      %v178 = vld [vmem:[%s1 + $0x18] sm:$0xf]
      %v179 = vld [vmem:[%s1 + $0x1c] sm:$0xf]
      %s180 = scalar_lea.vmem %s1, 32
      %v181 = vld [vmem:[%s180] sm:$0xf]
      %v182 = vld [vmem:[%s180 + $0x4] sm:$0xf]
      %v183 = vld [vmem:[%s180 + $0x8] sm:$0xf]
      %v184 = vld [vmem:[%s180 + $0xc] sm:$0xf]
      %v185 = vld [vmem:[%s180 + $0x10] sm:$0xf]
      %v186 = vld [vmem:[%s180 + $0x14] sm:$0xf]
      %v187 = vld [vmem:[%s180 + $0x18] sm:$0xf]
      %v188 = vld [vmem:[%s180 + $0x1c] sm:$0xf]
      %s189 = scalar_lea.vmem %s1, 64
      %v190 = vld [vmem:[%s189] sm:$0xf]
      %v191 = vld [vmem:[%s189 + $0x4] sm:$0xf]
      %v192 = vld [vmem:[%s189 + $0x8] sm:$0xf]
      %v193 = vld [vmem:[%s189 + $0xc] sm:$0xf]
      %v194 = vld [vmem:[%s189 + $0x10] sm:$0xf]
      %v195 = vld [vmem:[%s189 + $0x14] sm:$0xf]
      %v196 = vld [vmem:[%s189 + $0x18] sm:$0xf]
      %v197 = vld [vmem:[%s189 + $0x1c] sm:$0xf]
      %s198 = scalar_lea.vmem %s1, 96
      %v199 = vld [vmem:[%s198] sm:$0xf]
      %v200 = vld [vmem:[%s198 + $0x4] sm:$0xf]
      %v201 = vld [vmem:[%s198 + $0x8] sm:$0xf]
      %v202 = vld [vmem:[%s198 + $0xc] sm:$0xf]
      %v203 = vld [vmem:[%s198 + $0x10] sm:$0xf]
      %v204 = vld [vmem:[%s198 + $0x14] sm:$0xf]
      %v205 = vld [vmem:[%s198 + $0x18] sm:$0xf]
      %v206 = vld [vmem:[%s198 + $0x1c] sm:$0xf]
      %v207 = vld [vmem:[%s2] sm:$0x1]
      loop: start=0, step=1, limit=4
      $region33: #{conv_vae_forward.14} parent=31 // loop_pre_header
        _
      $region34: #{conv_vae_forward.14} parent=31 // loop_header
        %s209 = sphi 0, %s213
        %p210 = scmp.ge.s32.totalorder %s209, 4
      $region35: #{conv_vae_forward.14} parent=31 // loop_header_branch
        %212 = sbr.rel (%p210) target = $region39
      $region36: #{conv_vae_forward.14} parent=31 // loop_body
        %s214 = smul.addr %s209, 4
        %s215 = scalar_lea.vmem %s165, %s214
        %v216 = vld [vmem:[%s215] sm:$0x7]
        %v217 = vld [vmem:[%s215 + $0x4] sm:$0x7]
        %v226 = vunpack.c.l.b16 %v172
        %v227 = vunpack.c.l.b16 %v173
        %v228 = vunpack.c.l.b16 %v174
        %v229 = vunpack.c.l.b16 %v175
        %v230 = vunpack.c.l.b16 %v176
        %v231 = vunpack.c.l.b16 %v177
        %v232 = vunpack.c.l.b16 %v178
        %v233 = vunpack.c.l.b16 %v179
        %v234 = vpack.c.b16 %v227, %v226
        %v235 = vpack.c.b16 %v229, %v228
        %v236 = vpack.c.b16 %v231, %v230
        %v237 = vpack.c.b16 %v233, %v232
        %vm242 = vcmask 523264
        %v244 = vsel %vm242, %v216, 0
        %246 = vmatprep.subr.bf16.mxu0 0
        %247 = vmatpush1.bf16.msra.mxu0 %v234
        %248 = vmatprep.subr.bf16.mxu0 0
        %249 = vmatpush1.bf16.msra.mxu0 %v235
        %250 = vmatprep.subr.bf16.mxu0 0
        %251 = vmatpush1.bf16.msra.mxu0 %v236
        %252 = vmatprep.subr.bf16.mxu0 0
        %253 = vmatpush1.bf16.msra.mxu0 %v237
        %254 = vmatprep.subr.bf16.mxu0 0
        %255 = vmatpush1.bf16.msra.mxu0 0
        %256 = vmatprep.subr.bf16.mxu0 0
        %257 = vmatpush1.bf16.msra.mxu0 0
        %258 = vmatprep.subr.bf16.mxu0 0
        %259 = vmatpush1.bf16.msra.mxu0 0
        %260 = vmatprep.subr.bf16.mxu0 0
        %261 = vmatpush1.bf16.msra.mxu0 0
        %262 = vmatprep.subr.bf16.mxu0 0
        %263 = vmatpush1.bf16.msra.mxu0 0
        %264 = vmatprep.subr.bf16.mxu0 0
        %265 = vmatpush1.bf16.msra.mxu0 0
        %266 = vmatprep.subr.bf16.mxu0 0
        %267 = vmatpush1.bf16.msra.mxu0 0
        %268 = vmatprep.subr.bf16.mxu0 0
        %269 = vmatpush1.bf16.msra.mxu0 0
        %270 = vmatprep.subr.bf16.mxu0 0
        %271 = vmatpush1.bf16.msra.mxu0 0
        %272 = vmatprep.subr.bf16.mxu0 0
        %273 = vmatpush1.bf16.msra.mxu0 0
        %274 = vmatprep.subr.bf16.mxu0 0
        %275 = vmatpush1.bf16.msra.mxu0 0
        %276 = vmatprep.subr.bf16.mxu0 0
        %277 = vmatpush1.bf16.msra.mxu0 0
        %278 = vmatprep.mubr.bf16.mxu0 0
        %279 = vmatmul.mubr.bf16.gmra.mrb[0].mxu0 %v244
        %v280 = vpop.f32.mrb[0].mxu0
        %v281 = vadd.f32 0.0, %v280
        %v282 = vpop.f32.mrb[0].mxu0
        %v283 = vpop.f32.mrb[0].mxu0
        %v284 = vpop.f32.mrb[0].mxu0
        %285 = vdwg.mxu0
        %v294 = vunpack.c.l.b16 %v181
        %v295 = vunpack.c.l.b16 %v182
        %v296 = vunpack.c.l.b16 %v183
        %v297 = vunpack.c.l.b16 %v184
        %v298 = vunpack.c.l.b16 %v185
        %v299 = vunpack.c.l.b16 %v186
        %v300 = vunpack.c.l.b16 %v187
        %v301 = vunpack.c.l.b16 %v188
        %v302 = vpack.c.b16 %v295, %v294
        %v303 = vpack.c.b16 %v297, %v296
        %v304 = vpack.c.b16 %v299, %v298
        %v305 = vpack.c.b16 %v301, %v300
        %310 = vmatprep.subr.bf16.mxu0 0
        %311 = vmatpush1.bf16.msra.mxu0 %v302
        %312 = vmatprep.subr.bf16.mxu0 0
        %313 = vmatpush1.bf16.msra.mxu0 %v303
        %314 = vmatprep.subr.bf16.mxu0 0
        %315 = vmatpush1.bf16.msra.mxu0 %v304
        %316 = vmatprep.subr.bf16.mxu0 0
        %317 = vmatpush1.bf16.msra.mxu0 %v305
        %318 = vmatprep.subr.bf16.mxu0 0
        %319 = vmatpush1.bf16.msra.mxu0 0
        %320 = vmatprep.subr.bf16.mxu0 0
        %321 = vmatpush1.bf16.msra.mxu0 0
        %322 = vmatprep.subr.bf16.mxu0 0
        %323 = vmatpush1.bf16.msra.mxu0 0
        %324 = vmatprep.subr.bf16.mxu0 0
        %325 = vmatpush1.bf16.msra.mxu0 0
        %326 = vmatprep.subr.bf16.mxu0 0
        %327 = vmatpush1.bf16.msra.mxu0 0
        %328 = vmatprep.subr.bf16.mxu0 0
        %329 = vmatpush1.bf16.msra.mxu0 0
        %330 = vmatprep.subr.bf16.mxu0 0
        %331 = vmatpush1.bf16.msra.mxu0 0
        %332 = vmatprep.subr.bf16.mxu0 0
        %333 = vmatpush1.bf16.msra.mxu0 0
        %334 = vmatprep.subr.bf16.mxu0 0
        %335 = vmatpush1.bf16.msra.mxu0 0
        %336 = vmatprep.subr.bf16.mxu0 0
        %337 = vmatpush1.bf16.msra.mxu0 0
        %338 = vmatprep.subr.bf16.mxu0 0
        %339 = vmatpush1.bf16.msra.mxu0 0
        %340 = vmatprep.subr.bf16.mxu0 0
        %341 = vmatpush1.bf16.msra.mxu0 0
        %342 = vmatprep.mubr.bf16.mxu0 0
        %343 = vmatmul.mubr.bf16.gmra.mrb[0].mxu0 %v244
        %v344 = vpop.f32.mrb[0].mxu0
        %v345 = vadd.f32 0.0, %v344
        %v346 = vpop.f32.mrb[0].mxu0
        %v347 = vpop.f32.mrb[0].mxu0
        %v348 = vpop.f32.mrb[0].mxu0
        %349 = vdwg.mxu0
        %v358 = vunpack.c.l.b16 %v190
        %v359 = vunpack.c.l.b16 %v191
        %v360 = vunpack.c.l.b16 %v192
        %v361 = vunpack.c.l.b16 %v193
        %v362 = vunpack.c.l.b16 %v194
        %v363 = vunpack.c.l.b16 %v195
        %v364 = vunpack.c.l.b16 %v196
        %v365 = vunpack.c.l.b16 %v197
        %v366 = vpack.c.b16 %v359, %v358
        %v367 = vpack.c.b16 %v361, %v360
        %v368 = vpack.c.b16 %v363, %v362
        %v369 = vpack.c.b16 %v365, %v364
        %v375 = vsel %vm242, %v217, 0
        %377 = vmatprep.subr.bf16.mxu0 0
        %378 = vmatpush1.bf16.msra.mxu0 %v366
        %379 = vmatprep.subr.bf16.mxu0 0
        %380 = vmatpush1.bf16.msra.mxu0 %v367
        %381 = vmatprep.subr.bf16.mxu0 0
        %382 = vmatpush1.bf16.msra.mxu0 %v368
        %383 = vmatprep.subr.bf16.mxu0 0
        %384 = vmatpush1.bf16.msra.mxu0 %v369
        %385 = vmatprep.subr.bf16.mxu0 0
        %386 = vmatpush1.bf16.msra.mxu0 0
        %387 = vmatprep.subr.bf16.mxu0 0
        %388 = vmatpush1.bf16.msra.mxu0 0
        %389 = vmatprep.subr.bf16.mxu0 0
        %390 = vmatpush1.bf16.msra.mxu0 0
        %391 = vmatprep.subr.bf16.mxu0 0
        %392 = vmatpush1.bf16.msra.mxu0 0
        %393 = vmatprep.subr.bf16.mxu0 0
        %394 = vmatpush1.bf16.msra.mxu0 0
        %395 = vmatprep.subr.bf16.mxu0 0
        %396 = vmatpush1.bf16.msra.mxu0 0
        %397 = vmatprep.subr.bf16.mxu0 0
        %398 = vmatpush1.bf16.msra.mxu0 0
        %399 = vmatprep.subr.bf16.mxu0 0
        %400 = vmatpush1.bf16.msra.mxu0 0
        %401 = vmatprep.subr.bf16.mxu0 0
        %402 = vmatpush1.bf16.msra.mxu0 0
        %403 = vmatprep.subr.bf16.mxu0 0
        %404 = vmatpush1.bf16.msra.mxu0 0
        %405 = vmatprep.subr.bf16.mxu0 0
        %406 = vmatpush1.bf16.msra.mxu0 0
        %407 = vmatprep.subr.bf16.mxu0 0
        %408 = vmatpush1.bf16.msra.mxu0 0
        %409 = vmatprep.mubr.bf16.mxu0 0
        %410 = vmatmul.mubr.bf16.gmra.mrb[0].mxu0 %v375
        %v411 = vpop.f32.mrb[0].mxu0
        %v412 = vadd.f32 0.0, %v411
        %v413 = vpop.f32.mrb[0].mxu0
        %v414 = vpop.f32.mrb[0].mxu0
        %v415 = vpop.f32.mrb[0].mxu0
        %416 = vdwg.mxu0
        %v425 = vunpack.c.l.b16 %v199
        %v426 = vunpack.c.l.b16 %v200
        %v427 = vunpack.c.l.b16 %v201
        %v428 = vunpack.c.l.b16 %v202
        %v429 = vunpack.c.l.b16 %v203
        %v430 = vunpack.c.l.b16 %v204
        %v431 = vunpack.c.l.b16 %v205
        %v432 = vunpack.c.l.b16 %v206
        %v433 = vpack.c.b16 %v426, %v425
        %v434 = vpack.c.b16 %v428, %v427
        %v435 = vpack.c.b16 %v430, %v429
        %v436 = vpack.c.b16 %v432, %v431
        %441 = vmatprep.subr.bf16.mxu0 0
        %442 = vmatpush1.bf16.msra.mxu0 %v433
        %443 = vmatprep.subr.bf16.mxu0 0
        %444 = vmatpush1.bf16.msra.mxu0 %v434
        %445 = vmatprep.subr.bf16.mxu0 0
        %446 = vmatpush1.bf16.msra.mxu0 %v435
        %447 = vmatprep.subr.bf16.mxu0 0
        %448 = vmatpush1.bf16.msra.mxu0 %v436
        %449 = vmatprep.subr.bf16.mxu0 0
        %450 = vmatpush1.bf16.msra.mxu0 0
        %451 = vmatprep.subr.bf16.mxu0 0
        %452 = vmatpush1.bf16.msra.mxu0 0
        %453 = vmatprep.subr.bf16.mxu0 0
        %454 = vmatpush1.bf16.msra.mxu0 0
        %455 = vmatprep.subr.bf16.mxu0 0
        %456 = vmatpush1.bf16.msra.mxu0 0
        %457 = vmatprep.subr.bf16.mxu0 0
        %458 = vmatpush1.bf16.msra.mxu0 0
        %459 = vmatprep.subr.bf16.mxu0 0
        %460 = vmatpush1.bf16.msra.mxu0 0
        %461 = vmatprep.subr.bf16.mxu0 0
        %462 = vmatpush1.bf16.msra.mxu0 0
        %463 = vmatprep.subr.bf16.mxu0 0
        %464 = vmatpush1.bf16.msra.mxu0 0
        %465 = vmatprep.subr.bf16.mxu0 0
        %466 = vmatpush1.bf16.msra.mxu0 0
        %467 = vmatprep.subr.bf16.mxu0 0
        %468 = vmatpush1.bf16.msra.mxu0 0
        %469 = vmatprep.subr.bf16.mxu0 0
        %470 = vmatpush1.bf16.msra.mxu0 0
        %471 = vmatprep.subr.bf16.mxu0 0
        %472 = vmatpush1.bf16.msra.mxu0 0
        %473 = vmatprep.mubr.bf16.mxu0 0
        %474 = vmatmul.mubr.bf16.gmra.mrb[0].mxu0 %v375
        %v475 = vpop.f32.mrb[0].mxu0
        %v476 = vadd.f32 0.0, %v475
        %v477 = vpop.f32.mrb[0].mxu0
        %v478 = vpop.f32.mrb[0].mxu0
        %v479 = vpop.f32.mrb[0].mxu0
        %480 = vdwg.mxu0
        %v481 = vadd.f32 %v281, %v412
        %v483 = vrot.slane %v345, 1
        %v485 = vadd.f32 %v481, %v483
        %v487 = vrot.slane %v476, 1
        %v489 = vadd.f32 %v485, %v487
        %v491 = vlaneseq
        %v492 = vshrl.u32 %v491, 7
        %v493 = vsub.s32 0, %v492
        %v494 = vrot.slane %v207, %v493
        %v496 = vadd.f32 %v489, %v494
        %v497 = vmax.f32 %v496, 0.0
        %v498 = vpack.c.bf16 %v497, %v497
        %s499 = smul.addr %s209, 2
        %s500 = scalar_lea.vmem %s170, %s499
        %vm501 = vcmask 254976
        %502 = vst.msk [vmem:[%s500] sm:$0x3] %vm501, %v498
      $region37: #{conv_vae_forward.14} parent=31 // loop_footer
        %s213 = sadd.s32 1, %s209
      $region38: #{conv_vae_forward.14} parent=31 // loop_footer_branch
        %208 = sbr.rel target = $region34
      $region39: #{conv_vae_forward.14} parent=31 // loop_exit
        _
      %p503 = scmp.lt.s32.totalorder %s14, 1
      %s504 = scalar_select %p503, %s14, 1
      %s505 = smul.addr %s504, 4
      %s506 = smul.addr %s505, 2
      %s507 = scalar_lea.vmem %s3, %s506
      // Predicated region
      $region40: #{conv_vae_forward.14} parent=31 // pred_check
        %p508 = pneg %p100
      $region41: #{conv_vae_forward.14} parent=31 // pred_check_branch
        %510 = sbr.rel (%p508) target = $region43
      $region42: #{conv_vae_forward.14} parent=31 // pred_region
        _
      $region43: #{conv_vae_forward.14} parent=31 // pred_fallthru
        _
    $region32: #{conv_vae_forward.14} parent=5 // pred_fallthru
      _
    %p511 = scmp.le.s32.totalorder 2, %s9
    // Predicated region
    $region44: #{conv_vae_forward.14} parent=5 // pred_check
      %p512 = pneg %p511
    $region45: #{conv_vae_forward.14} parent=5 // pred_check_branch
      %514 = sbr.rel (%p512) target = $region47
    $region46: #{conv_vae_forward.14} parent=5 // pred_region
      %s515 = ssub.s32 %s9, 2
      // Predicated region
      $region48: #{conv_vae_forward.14} parent=46 // pred_check
        %p516 = pneg %p106
      $region49: #{conv_vae_forward.14} parent=46 // pred_check_branch
        %518 = sbr.rel (%p516) target = $region51
      $region50: #{conv_vae_forward.14} parent=46 // pred_region
        %p519 = scmp.lt.s32.totalorder %s15, 1
        %s520 = scalar_select %p519, %s15, 1
        %s521 = smul.addr %s520, 4
        %s522 = smul.addr %s521, 2
        %s523 = scalar_lea.vmem %s3, %s522
      $region51: #{conv_vae_forward.14} parent=46 // pred_fallthru
        _
    $region47: #{conv_vae_forward.14} parent=5 // pred_fallthru
      _
  $region6: #{conv_vae_forward.14} parent=0 // loop_footer
    %s13 = sadd.s32 1, %s9
  $region7: #{conv_vae_forward.14} parent=0 // loop_footer_branch
    %8 = sbr.rel target = $region3
  $region8: #{conv_vae_forward.14} parent=0 // loop_exit
    _

// kernel: conv_vae_forward.15
$region0: #{conv_vae_forward.15}
  #allocation0 [shape = 'u32[]', space=smem, size = 0x4, offset = 0x4, fixed_abs, tag = 'smem constant byte address 0x4 - core index']
  #allocation1 [shape = 'u32[144,128]{1,0:T(1,128)}', space=vmem, size = 0x12000, scoped, tag = 'internal scratch']
  %s0 = inlined_call_operand.vmem [shape: bf16[2,3,3,128], index: 0, kind: input, shape index: {}]
  %s1 = inlined_call_operand.vmem [shape: bf16[2,2,128,64], index: 1, kind: input, shape index: {}]
  %s2 = inlined_call_operand.vmem [shape: f32[1,64], index: 2, kind: input, shape index: {}]
  %s3 = inlined_call_operand.vmem [shape: bf16[2,2,2,64], index: 3, kind: output, shape index: {}]
  %s4 = sld [smem:[#allocation0]]
  $region52: #{conv_vae_forward.15} parent=0
    _
  %s6 = ssub.s32 1, %s4
  %s7 = scalar_select 0, %s6, %s4
  loop: start=0, step=1, limit=4
  $region2: #{conv_vae_forward.15} parent=0 // loop_pre_header
    _
  $region3: #{conv_vae_forward.15} parent=0 // loop_header
    %s9 = sphi 0, %s13
    %p10 = scmp.ge.s32.totalorder %s9, 4
    %s19 = sphi 0, %s21
    %s22 = sphi 0, %s19
    %s23 = sphi 0, %s22
    %s39 = sphi 0, %s23
    %s43 = sphi 0, %s43
    %s45 = sphi 0, %s43
    %s46 = sphi 0, %s45
    %s60 = sphi 0, %s46
    %s64 = sphi 0, %s64
    %s66 = sphi 0, %s64
    %s67 = sphi 0, %s66
    %s81 = sphi 0, %s67
    %s87 = sphi 0, %s89
    %s90 = sphi 0, %s87
    %s91 = sphi 0, %s90
    %s107 = sphi 0, %s91
  $region4: #{conv_vae_forward.15} parent=0 // loop_header_branch
    %12 = sbr.rel (%p10) target = $region8
  $region5: #{conv_vae_forward.15} parent=0 // loop_body
    %s14 = ssub.s32 %s9, 1
    %s15 = ssub.s32 %s9, 2
    %s16 = sadd.s32 %s9, 1
    %s17 = ssub.s32 %s9, %s16
    %p18 = scmp.eq.s32.totalorder %s17, 0
    %s20 = sadd.s32 %s19, 1
    %s21 = scalar_select %p18, %s19, %s20
    %p24 = pneg %p18
    %p25 = scmp.eq.s32.totalorder %s9, 1
    %p26 = por %p24, %p25
    %p27 = scmp.ne.s32.totalorder %s19, %s22
    %p28 = scmp.eq.s32.totalorder %s9, 0
    %p29 = por %p27, %p28
    %p30 = scmp.ne.s32.totalorder %s19, %s22
    %p31 = scmp.eq.s32.totalorder %s14, 1
    %p32 = por %p30, %p31
    %p33 = scmp.ne.s32.totalorder %s22, %s23
    %p34 = scmp.eq.s32.totalorder %s14, 0
    %p35 = por %p33, %p34
    %p36 = scmp.ne.s32.totalorder %s22, %s23
    %p37 = scmp.eq.s32.totalorder %s15, 1
    %p38 = por %p36, %p37
    %p40 = scmp.ne.s32.totalorder %s23, %s39
    %p41 = scmp.eq.s32.totalorder %s15, 0
    %p42 = por %p40, %p41
    %s44 = sadd.s32 %s43, 1
    %p47 = scmp.eq.s32.totalorder %s9, 1
    %p48 = scmp.ne.s32.totalorder %s43, %s45
    %p49 = scmp.eq.s32.totalorder %s9, 0
    %p50 = por %p48, %p49
    %p51 = scmp.ne.s32.totalorder %s43, %s45
    %p52 = scmp.eq.s32.totalorder %s14, 1
    %p53 = por %p51, %p52
    %p54 = scmp.ne.s32.totalorder %s45, %s46
    %p55 = scmp.eq.s32.totalorder %s14, 0
    %p56 = por %p54, %p55
    %p57 = scmp.ne.s32.totalorder %s45, %s46
    %p58 = scmp.eq.s32.totalorder %s15, 1
    %p59 = por %p57, %p58
    %p61 = scmp.ne.s32.totalorder %s46, %s60
    %p62 = scmp.eq.s32.totalorder %s15, 0
    %p63 = por %p61, %p62
    %s65 = sadd.s32 %s64, 1
    %p68 = scmp.eq.s32.totalorder %s9, 1
    %p69 = scmp.ne.s32.totalorder %s64, %s66
    %p70 = scmp.eq.s32.totalorder %s9, 0
    %p71 = por %p69, %p70
    %p72 = scmp.ne.s32.totalorder %s64, %s66
    %p73 = scmp.eq.s32.totalorder %s14, 1
    %p74 = por %p72, %p73
    %p75 = scmp.ne.s32.totalorder %s66, %s67
    %p76 = scmp.eq.s32.totalorder %s14, 0
    %p77 = por %p75, %p76
    %p78 = scmp.ne.s32.totalorder %s66, %s67
    %p79 = scmp.eq.s32.totalorder %s15, 1
    %p80 = por %p78, %p79
    %p82 = scmp.ne.s32.totalorder %s67, %s81
    %p83 = scmp.eq.s32.totalorder %s15, 0
    %p84 = por %p82, %p83
    %s85 = ssub.s32 %s9, %s16
    %p86 = scmp.eq.s32.totalorder %s85, 0
    %s88 = sadd.s32 %s87, 1
    %s89 = scalar_select %p86, %s87, %s88
    %p92 = pneg %p86
    %p93 = scmp.eq.s32.totalorder %s9, 1
    %p94 = por %p92, %p93
    %p95 = scmp.ne.s32.totalorder %s87, %s90
    %p96 = scmp.eq.s32.totalorder %s9, 0
    %p97 = por %p95, %p96
    %p98 = scmp.ne.s32.totalorder %s87, %s90
    %p99 = scmp.eq.s32.totalorder %s14, 1
    %p100 = por %p98, %p99
    %p101 = scmp.ne.s32.totalorder %s90, %s91
    %p102 = scmp.eq.s32.totalorder %s14, 0
    %p103 = por %p101, %p102
    %p104 = scmp.ne.s32.totalorder %s90, %s91
    %p105 = scmp.eq.s32.totalorder %s15, 1
    %p106 = por %p104, %p105
    %p108 = scmp.ne.s32.totalorder %s91, %s107
    %p109 = scmp.eq.s32.totalorder %s15, 0
    %p110 = por %p108, %p109
    %p111 = scmp.le.s32.totalorder 1, %s9
    %p112 = scmp.lt.s32.totalorder %s9, 3
    %p113 = pnand %p111, %p112
    %p114 = pneg %p113
    // Predicated region
    $region9: #{conv_vae_forward.15} parent=5 // pred_check
      _
    $region10: #{conv_vae_forward.15} parent=5 // pred_check_branch
      %116 = sbr.rel (%p113) target = $region12
    $region11: #{conv_vae_forward.15} parent=5 // pred_region
      %s117 = ssub.s32 %s9, 1
      // Predicated region
      $region13: #{conv_vae_forward.15} parent=11 // pred_check
        %p118 = pneg %p56
      $region14: #{conv_vae_forward.15} parent=11 // pred_check_branch
        %120 = sbr.rel (%p118) target = $region16
      $region15: #{conv_vae_forward.15} parent=11 // pred_region
        _
      $region16: #{conv_vae_forward.15} parent=11 // pred_fallthru
        _
      // Predicated region
      $region17: #{conv_vae_forward.15} parent=11 // pred_check
        %p121 = pneg %p77
      $region18: #{conv_vae_forward.15} parent=11 // pred_check_branch
        %123 = sbr.rel (%p121) target = $region20
      $region19: #{conv_vae_forward.15} parent=11 // pred_region
        _
      $region20: #{conv_vae_forward.15} parent=11 // pred_fallthru
        _
    $region12: #{conv_vae_forward.15} parent=5 // pred_fallthru
      _
    %p124 = scmp.lt.s32.totalorder %s9, 2
    // Predicated region
    $region21: #{conv_vae_forward.15} parent=5 // pred_check
      %p125 = pneg %p124
    $region22: #{conv_vae_forward.15} parent=5 // pred_check_branch
      %127 = sbr.rel (%p125) target = $region24
    $region23: #{conv_vae_forward.15} parent=5 // pred_region
      // Predicated region
      $region25: #{conv_vae_forward.15} parent=23 // pred_check
        %p128 = pneg %p29
      $region26: #{conv_vae_forward.15} parent=23 // pred_check_branch
        %130 = sbr.rel (%p128) target = $region28
      $region27: #{conv_vae_forward.15} parent=23 // pred_region
        %p131 = scmp.lt.s32.totalorder %s9, 1
        %s132 = scalar_select %p131, %s9, 1
        %s133 = smul.addr %s132, 3
        %s134 = smul.addr %s133, 2
        %s135 = scalar_lea.vmem %s0, %s134
      $region28: #{conv_vae_forward.15} parent=23 // pred_fallthru
        _
    $region24: #{conv_vae_forward.15} parent=5 // pred_fallthru
      _
    %p136 = scmp.le.s32.totalorder 1, %s9
    %p137 = scmp.lt.s32.totalorder %s9, 3
    %p138 = pnand %p136, %p137
    %p139 = pneg %p138
    // Predicated region
    $region29: #{conv_vae_forward.15} parent=5 // pred_check
      _
    $region30: #{conv_vae_forward.15} parent=5 // pred_check_branch
      %141 = sbr.rel (%p138) target = $region32
    $region31: #{conv_vae_forward.15} parent=5 // pred_region
      %s142 = ssub.s32 %s9, 1
      %p143 = scmp.lt.s32.totalorder %s14, 1
      %s144 = scalar_select %p143, %s14, 1
      %s145 = smul.addr %s144, 3
      %s146 = smul.addr %s145, 2
      %s147 = scalar_lea.vmem %s0, %s146
      %p148 = pneg %p35
      %p149 = pneg %p32
      %p150 = pneg %p56
      %p151 = pneg %p53
      %p152 = pneg %p77
      %p153 = pneg %p74
      %p154 = pneg %p103
      %p155 = pneg %p100
      %p156 = scmp.lt.s32.totalorder %s14, 1
      %s157 = scalar_select %p156, %s14, 1
      %s158 = smul.addr %s157, 2
      %s159 = scalar_lea.vmem %s3, %s158
      %p160 = scmp.lt.s32.totalorder %s14, 1
      %s161 = scalar_select %p160, %s14, 1
      %s162 = smul.addr %s161, 3
      %s163 = smul.addr %s162, 2
      %s164 = scalar_lea.vmem %s0, %s163
      %p165 = scmp.lt.s32.totalorder %s14, 1
      %s166 = scalar_select %p165, %s14, 1
      %s167 = smul.addr %s166, 2
      %s168 = scalar_lea.vmem %s3, %s167
      %v170 = vld [vmem:[%s1] sm:$0xf]
      %v171 = vld [vmem:[%s1 + $0x4] sm:$0xf]
      %v172 = vld [vmem:[%s1 + $0x8] sm:$0xf]
      %v173 = vld [vmem:[%s1 + $0xc] sm:$0xf]
      %v174 = vld [vmem:[%s1 + $0x10] sm:$0xf]
      %v175 = vld [vmem:[%s1 + $0x14] sm:$0xf]
      %v176 = vld [vmem:[%s1 + $0x18] sm:$0xf]
      %v177 = vld [vmem:[%s1 + $0x1c] sm:$0xf]
      %v178 = vld [vmem:[%s1 + $0x20] sm:$0xf]
      %v179 = vld [vmem:[%s1 + $0x24] sm:$0xf]
      %v180 = vld [vmem:[%s1 + $0x28] sm:$0xf]
      %v181 = vld [vmem:[%s1 + $0x2c] sm:$0xf]
      %v182 = vld [vmem:[%s1 + $0x30] sm:$0xf]
      %v183 = vld [vmem:[%s1 + $0x34] sm:$0xf]
      %v184 = vld [vmem:[%s1 + $0x38] sm:$0xf]
      %v185 = vld [vmem:[%s1 + $0x3c] sm:$0xf]
      %s186 = scalar_lea.vmem %s1, 64
      %v187 = vld [vmem:[%s186] sm:$0xf]
      %v188 = vld [vmem:[%s186 + $0x4] sm:$0xf]
      %v189 = vld [vmem:[%s186 + $0x8] sm:$0xf]
      %v190 = vld [vmem:[%s186 + $0xc] sm:$0xf]
      %v191 = vld [vmem:[%s186 + $0x10] sm:$0xf]
      %v192 = vld [vmem:[%s186 + $0x14] sm:$0xf]
      %v193 = vld [vmem:[%s186 + $0x18] sm:$0xf]
      %v194 = vld [vmem:[%s186 + $0x1c] sm:$0xf]
      %v195 = vld [vmem:[%s186 + $0x20] sm:$0xf]
      %v196 = vld [vmem:[%s186 + $0x24] sm:$0xf]
      %v197 = vld [vmem:[%s186 + $0x28] sm:$0xf]
      %v198 = vld [vmem:[%s186 + $0x2c] sm:$0xf]
      %v199 = vld [vmem:[%s186 + $0x30] sm:$0xf]
      %v200 = vld [vmem:[%s186 + $0x34] sm:$0xf]
      %v201 = vld [vmem:[%s186 + $0x38] sm:$0xf]
      %v202 = vld [vmem:[%s186 + $0x3c] sm:$0xf]
      %s203 = scalar_lea.vmem %s1, 128
      %v204 = vld [vmem:[%s203] sm:$0xf]
      %v205 = vld [vmem:[%s203 + $0x4] sm:$0xf]
      %v206 = vld [vmem:[%s203 + $0x8] sm:$0xf]
      %v207 = vld [vmem:[%s203 + $0xc] sm:$0xf]
      %v208 = vld [vmem:[%s203 + $0x10] sm:$0xf]
      %v209 = vld [vmem:[%s203 + $0x14] sm:$0xf]
      %v210 = vld [vmem:[%s203 + $0x18] sm:$0xf]
      %v211 = vld [vmem:[%s203 + $0x1c] sm:$0xf]
      %v212 = vld [vmem:[%s203 + $0x20] sm:$0xf]
      %v213 = vld [vmem:[%s203 + $0x24] sm:$0xf]
      %v214 = vld [vmem:[%s203 + $0x28] sm:$0xf]
      %v215 = vld [vmem:[%s203 + $0x2c] sm:$0xf]
      %v216 = vld [vmem:[%s203 + $0x30] sm:$0xf]
      %v217 = vld [vmem:[%s203 + $0x34] sm:$0xf]
      %v218 = vld [vmem:[%s203 + $0x38] sm:$0xf]
      %v219 = vld [vmem:[%s203 + $0x3c] sm:$0xf]
      %s220 = scalar_lea.vmem %s1, 192
      %v221 = vld [vmem:[%s220] sm:$0xf]
      %v222 = vld [vmem:[%s220 + $0x4] sm:$0xf]
      %v223 = vld [vmem:[%s220 + $0x8] sm:$0xf]
      %v224 = vld [vmem:[%s220 + $0xc] sm:$0xf]
      %v225 = vld [vmem:[%s220 + $0x10] sm:$0xf]
      %v226 = vld [vmem:[%s220 + $0x14] sm:$0xf]
      %v227 = vld [vmem:[%s220 + $0x18] sm:$0xf]
      %v228 = vld [vmem:[%s220 + $0x1c] sm:$0xf]
      %v229 = vld [vmem:[%s220 + $0x20] sm:$0xf]
      %v230 = vld [vmem:[%s220 + $0x24] sm:$0xf]
      %v231 = vld [vmem:[%s220 + $0x28] sm:$0xf]
      %v232 = vld [vmem:[%s220 + $0x2c] sm:$0xf]
      %v233 = vld [vmem:[%s220 + $0x30] sm:$0xf]
      %v234 = vld [vmem:[%s220 + $0x34] sm:$0xf]
      %v235 = vld [vmem:[%s220 + $0x38] sm:$0xf]
      %v236 = vld [vmem:[%s220 + $0x3c] sm:$0xf]
      %v237 = vld [vmem:[%s2] sm:$0x1]
      loop: start=0, step=1, limit=2
      $region33: #{conv_vae_forward.15} parent=31 // loop_pre_header
        _
      $region34: #{conv_vae_forward.15} parent=31 // loop_header
        %s239 = sphi 0, %s243
        %p240 = scmp.ge.s32.totalorder %s239, 2
      $region35: #{conv_vae_forward.15} parent=31 // loop_header_branch
        %242 = sbr.rel (%p240) target = $region39
      $region36: #{conv_vae_forward.15} parent=31 // loop_body
        %s244 = smul.addr %s239, 2
        %s245 = scalar_lea.vmem %s164, %s244
        %v246 = vld [vmem:[%s245] sm:$0x3]
        %v247 = vld [vmem:[%s245 + $0x2] sm:$0x3]
        %v264 = vunpack.c.l.b16 %v170
        %v265 = vunpack.c.l.b16 %v171
        %v266 = vunpack.c.l.b16 %v172
        %v267 = vunpack.c.l.b16 %v173
        %v268 = vunpack.c.l.b16 %v174
        %v269 = vunpack.c.l.b16 %v175
        %v270 = vunpack.c.l.b16 %v176
        %v271 = vunpack.c.l.b16 %v177
        %v272 = vunpack.c.l.b16 %v178
        %v273 = vunpack.c.l.b16 %v179
        %v274 = vunpack.c.l.b16 %v180
        %v275 = vunpack.c.l.b16 %v181
        %v276 = vunpack.c.l.b16 %v182
        %v277 = vunpack.c.l.b16 %v183
        %v278 = vunpack.c.l.b16 %v184
        %v279 = vunpack.c.l.b16 %v185
        %v280 = vpack.c.b16 %v265, %v264
        %v281 = vpack.c.b16 %v267, %v266
        %v282 = vpack.c.b16 %v269, %v268
        %v283 = vpack.c.b16 %v271, %v270
        %v284 = vpack.c.b16 %v273, %v272
        %v285 = vpack.c.b16 %v275, %v274
        %v286 = vpack.c.b16 %v277, %v276
        %v287 = vpack.c.b16 %v279, %v278
        %296 = vmatprep.subr.bf16.mxu0 0
        %297 = vmatpush1.bf16.msra.mxu0 %v280
        %298 = vmatprep.subr.bf16.mxu0 0
        %299 = vmatpush1.bf16.msra.mxu0 %v281
        %300 = vmatprep.subr.bf16.mxu0 0
        %301 = vmatpush1.bf16.msra.mxu0 %v282
        %302 = vmatprep.subr.bf16.mxu0 0
        %303 = vmatpush1.bf16.msra.mxu0 %v283
        %304 = vmatprep.subr.bf16.mxu0 0
        %305 = vmatpush1.bf16.msra.mxu0 %v284
        %306 = vmatprep.subr.bf16.mxu0 0
        %307 = vmatpush1.bf16.msra.mxu0 %v285
        %308 = vmatprep.subr.bf16.mxu0 0
        %309 = vmatpush1.bf16.msra.mxu0 %v286
        %310 = vmatprep.subr.bf16.mxu0 0
        %311 = vmatpush1.bf16.msra.mxu0 %v287
        %312 = vmatprep.subr.bf16.mxu0 0
        %313 = vmatpush1.bf16.msra.mxu0 0
        %314 = vmatprep.subr.bf16.mxu0 0
        %315 = vmatpush1.bf16.msra.mxu0 0
        %316 = vmatprep.subr.bf16.mxu0 0
        %317 = vmatpush1.bf16.msra.mxu0 0
        %318 = vmatprep.subr.bf16.mxu0 0
        %319 = vmatpush1.bf16.msra.mxu0 0
        %320 = vmatprep.subr.bf16.mxu0 0
        %321 = vmatpush1.bf16.msra.mxu0 0
        %322 = vmatprep.subr.bf16.mxu0 0
        %323 = vmatpush1.bf16.msra.mxu0 0
        %324 = vmatprep.subr.bf16.mxu0 0
        %325 = vmatpush1.bf16.msra.mxu0 0
        %326 = vmatprep.subr.bf16.mxu0 0
        %327 = vmatpush1.bf16.msra.mxu0 0
        %328 = vmatprep.mubr.bf16.mxu0 0
        %329 = vmatmul.mubr.bf16.gmra.mrb[0].mxu0 %v246
        %v330 = vpop.f32.mrb[0].mxu0
        %v331 = vadd.f32 0.0, %v330
        %v332 = vpop.f32.mrb[0].mxu0
        %v333 = vpop.f32.mrb[0].mxu0
        %v334 = vpop.f32.mrb[0].mxu0
        %335 = vdwg.mxu0
        %v352 = vunpack.c.l.b16 %v187
        %v353 = vunpack.c.l.b16 %v188
        %v354 = vunpack.c.l.b16 %v189
        %v355 = vunpack.c.l.b16 %v190
        %v356 = vunpack.c.l.b16 %v191
        %v357 = vunpack.c.l.b16 %v192
        %v358 = vunpack.c.l.b16 %v193
        %v359 = vunpack.c.l.b16 %v194
        %v360 = vunpack.c.l.b16 %v195
        %v361 = vunpack.c.l.b16 %v196
        %v362 = vunpack.c.l.b16 %v197
        %v363 = vunpack.c.l.b16 %v198
        %v364 = vunpack.c.l.b16 %v199
        %v365 = vunpack.c.l.b16 %v200
        %v366 = vunpack.c.l.b16 %v201
        %v367 = vunpack.c.l.b16 %v202
        %v368 = vpack.c.b16 %v353, %v352
        %v369 = vpack.c.b16 %v355, %v354
        %v370 = vpack.c.b16 %v357, %v356
        %v371 = vpack.c.b16 %v359, %v358
        %v372 = vpack.c.b16 %v361, %v360
        %v373 = vpack.c.b16 %v363, %v362
        %v374 = vpack.c.b16 %v365, %v364
        %v375 = vpack.c.b16 %v367, %v366
        %384 = vmatprep.subr.bf16.mxu0 0
        %385 = vmatpush1.bf16.msra.mxu0 %v368
        %386 = vmatprep.subr.bf16.mxu0 0
        %387 = vmatpush1.bf16.msra.mxu0 %v369
        %388 = vmatprep.subr.bf16.mxu0 0
        %389 = vmatpush1.bf16.msra.mxu0 %v370
        %390 = vmatprep.subr.bf16.mxu0 0
        %391 = vmatpush1.bf16.msra.mxu0 %v371
        %392 = vmatprep.subr.bf16.mxu0 0
        %393 = vmatpush1.bf16.msra.mxu0 %v372
        %394 = vmatprep.subr.bf16.mxu0 0
        %395 = vmatpush1.bf16.msra.mxu0 %v373
        %396 = vmatprep.subr.bf16.mxu0 0
        %397 = vmatpush1.bf16.msra.mxu0 %v374
        %398 = vmatprep.subr.bf16.mxu0 0
        %399 = vmatpush1.bf16.msra.mxu0 %v375
        %400 = vmatprep.subr.bf16.mxu0 0
        %401 = vmatpush1.bf16.msra.mxu0 0
        %402 = vmatprep.subr.bf16.mxu0 0
        %403 = vmatpush1.bf16.msra.mxu0 0
        %404 = vmatprep.subr.bf16.mxu0 0
        %405 = vmatpush1.bf16.msra.mxu0 0
        %406 = vmatprep.subr.bf16.mxu0 0
        %407 = vmatpush1.bf16.msra.mxu0 0
        %408 = vmatprep.subr.bf16.mxu0 0
        %409 = vmatpush1.bf16.msra.mxu0 0
        %410 = vmatprep.subr.bf16.mxu0 0
        %411 = vmatpush1.bf16.msra.mxu0 0
        %412 = vmatprep.subr.bf16.mxu0 0
        %413 = vmatpush1.bf16.msra.mxu0 0
        %414 = vmatprep.subr.bf16.mxu0 0
        %415 = vmatpush1.bf16.msra.mxu0 0
        %416 = vmatprep.mubr.bf16.mxu0 0
        %417 = vmatmul.mubr.bf16.gmra.mrb[0].mxu0 %v246
        %v418 = vpop.f32.mrb[0].mxu0
        %v419 = vadd.f32 0.0, %v418
        %v420 = vpop.f32.mrb[0].mxu0
        %v421 = vpop.f32.mrb[0].mxu0
        %v422 = vpop.f32.mrb[0].mxu0
        %423 = vdwg.mxu0
        %v440 = vunpack.c.l.b16 %v204
        %v441 = vunpack.c.l.b16 %v205
        %v442 = vunpack.c.l.b16 %v206
        %v443 = vunpack.c.l.b16 %v207
        %v444 = vunpack.c.l.b16 %v208
        %v445 = vunpack.c.l.b16 %v209
        %v446 = vunpack.c.l.b16 %v210
        %v447 = vunpack.c.l.b16 %v211
        %v448 = vunpack.c.l.b16 %v212
        %v449 = vunpack.c.l.b16 %v213
        %v450 = vunpack.c.l.b16 %v214
        %v451 = vunpack.c.l.b16 %v215
        %v452 = vunpack.c.l.b16 %v216
        %v453 = vunpack.c.l.b16 %v217
        %v454 = vunpack.c.l.b16 %v218
        %v455 = vunpack.c.l.b16 %v219
        %v456 = vpack.c.b16 %v441, %v440
        %v457 = vpack.c.b16 %v443, %v442
        %v458 = vpack.c.b16 %v445, %v444
        %v459 = vpack.c.b16 %v447, %v446
        %v460 = vpack.c.b16 %v449, %v448
        %v461 = vpack.c.b16 %v451, %v450
        %v462 = vpack.c.b16 %v453, %v452
        %v463 = vpack.c.b16 %v455, %v454
        %472 = vmatprep.subr.bf16.mxu0 0
        %473 = vmatpush1.bf16.msra.mxu0 %v456
        %474 = vmatprep.subr.bf16.mxu0 0
        %475 = vmatpush1.bf16.msra.mxu0 %v457
        %476 = vmatprep.subr.bf16.mxu0 0
        %477 = vmatpush1.bf16.msra.mxu0 %v458
        %478 = vmatprep.subr.bf16.mxu0 0
        %479 = vmatpush1.bf16.msra.mxu0 %v459
        %480 = vmatprep.subr.bf16.mxu0 0
        %481 = vmatpush1.bf16.msra.mxu0 %v460
        %482 = vmatprep.subr.bf16.mxu0 0
        %483 = vmatpush1.bf16.msra.mxu0 %v461
        %484 = vmatprep.subr.bf16.mxu0 0
        %485 = vmatpush1.bf16.msra.mxu0 %v462
        %486 = vmatprep.subr.bf16.mxu0 0
        %487 = vmatpush1.bf16.msra.mxu0 %v463
        %488 = vmatprep.subr.bf16.mxu0 0
        %489 = vmatpush1.bf16.msra.mxu0 0
        %490 = vmatprep.subr.bf16.mxu0 0
        %491 = vmatpush1.bf16.msra.mxu0 0
        %492 = vmatprep.subr.bf16.mxu0 0
        %493 = vmatpush1.bf16.msra.mxu0 0
        %494 = vmatprep.subr.bf16.mxu0 0
        %495 = vmatpush1.bf16.msra.mxu0 0
        %496 = vmatprep.subr.bf16.mxu0 0
        %497 = vmatpush1.bf16.msra.mxu0 0
        %498 = vmatprep.subr.bf16.mxu0 0
        %499 = vmatpush1.bf16.msra.mxu0 0
        %500 = vmatprep.subr.bf16.mxu0 0
        %501 = vmatpush1.bf16.msra.mxu0 0
        %502 = vmatprep.subr.bf16.mxu0 0
        %503 = vmatpush1.bf16.msra.mxu0 0
        %504 = vmatprep.mubr.bf16.mxu0 0
        %505 = vmatmul.mubr.bf16.gmra.mrb[0].mxu0 %v247
        %v506 = vpop.f32.mrb[0].mxu0
        %v507 = vadd.f32 0.0, %v506
        %v508 = vpop.f32.mrb[0].mxu0
        %v509 = vpop.f32.mrb[0].mxu0
        %v510 = vpop.f32.mrb[0].mxu0
        %511 = vdwg.mxu0
        %v528 = vunpack.c.l.b16 %v221
        %v529 = vunpack.c.l.b16 %v222
        %v530 = vunpack.c.l.b16 %v223
        %v531 = vunpack.c.l.b16 %v224
        %v532 = vunpack.c.l.b16 %v225
        %v533 = vunpack.c.l.b16 %v226
        %v534 = vunpack.c.l.b16 %v227
        %v535 = vunpack.c.l.b16 %v228
        %v536 = vunpack.c.l.b16 %v229
        %v537 = vunpack.c.l.b16 %v230
        %v538 = vunpack.c.l.b16 %v231
        %v539 = vunpack.c.l.b16 %v232
        %v540 = vunpack.c.l.b16 %v233
        %v541 = vunpack.c.l.b16 %v234
        %v542 = vunpack.c.l.b16 %v235
        %v543 = vunpack.c.l.b16 %v236
        %v544 = vpack.c.b16 %v529, %v528
        %v545 = vpack.c.b16 %v531, %v530
        %v546 = vpack.c.b16 %v533, %v532
        %v547 = vpack.c.b16 %v535, %v534
        %v548 = vpack.c.b16 %v537, %v536
        %v549 = vpack.c.b16 %v539, %v538
        %v550 = vpack.c.b16 %v541, %v540
        %v551 = vpack.c.b16 %v543, %v542
        %560 = vmatprep.subr.bf16.mxu0 0
        %561 = vmatpush1.bf16.msra.mxu0 %v544
        %562 = vmatprep.subr.bf16.mxu0 0
        %563 = vmatpush1.bf16.msra.mxu0 %v545
        %564 = vmatprep.subr.bf16.mxu0 0
        %565 = vmatpush1.bf16.msra.mxu0 %v546
        %566 = vmatprep.subr.bf16.mxu0 0
        %567 = vmatpush1.bf16.msra.mxu0 %v547
        %568 = vmatprep.subr.bf16.mxu0 0
        %569 = vmatpush1.bf16.msra.mxu0 %v548
        %570 = vmatprep.subr.bf16.mxu0 0
        %571 = vmatpush1.bf16.msra.mxu0 %v549
        %572 = vmatprep.subr.bf16.mxu0 0
        %573 = vmatpush1.bf16.msra.mxu0 %v550
        %574 = vmatprep.subr.bf16.mxu0 0
        %575 = vmatpush1.bf16.msra.mxu0 %v551
        %576 = vmatprep.subr.bf16.mxu0 0
        %577 = vmatpush1.bf16.msra.mxu0 0
        %578 = vmatprep.subr.bf16.mxu0 0
        %579 = vmatpush1.bf16.msra.mxu0 0
        %580 = vmatprep.subr.bf16.mxu0 0
        %581 = vmatpush1.bf16.msra.mxu0 0
        %582 = vmatprep.subr.bf16.mxu0 0
        %583 = vmatpush1.bf16.msra.mxu0 0
        %584 = vmatprep.subr.bf16.mxu0 0
        %585 = vmatpush1.bf16.msra.mxu0 0
        %586 = vmatprep.subr.bf16.mxu0 0
        %587 = vmatpush1.bf16.msra.mxu0 0
        %588 = vmatprep.subr.bf16.mxu0 0
        %589 = vmatpush1.bf16.msra.mxu0 0
        %590 = vmatprep.subr.bf16.mxu0 0
        %591 = vmatpush1.bf16.msra.mxu0 0
        %592 = vmatprep.mubr.bf16.mxu0 0
        %593 = vmatmul.mubr.bf16.gmra.mrb[0].mxu0 %v247
        %v594 = vpop.f32.mrb[0].mxu0
        %v595 = vadd.f32 0.0, %v594
        %v596 = vpop.f32.mrb[0].mxu0
        %v597 = vpop.f32.mrb[0].mxu0
        %v598 = vpop.f32.mrb[0].mxu0
        %599 = vdwg.mxu0
        %v600 = vadd.f32 %v331, %v507
        %v602 = vrot.slane %v419, 1
        %v604 = vadd.f32 %v600, %v602
        %v606 = vrot.slane %v595, 1
        %v608 = vadd.f32 %v604, %v606
        %v610 = vlaneseq
        %v611 = vshrl.u32 %v610, 7
        %v612 = vsub.s32 0, %v611
        %v613 = vrot.slane %v237, %v612
        %v615 = vadd.f32 %v608, %v613
        %v616 = vmax.f32 %v615, 0.0
        %v617 = vpack.c.bf16 %v616, %v616
        %s618 = scalar_lea.vmem %s168, %s239
        %vm619 = vcmask 516096
        %620 = vst.msk [vmem:[%s618] sm:$0x1] %vm619, %v617
      $region37: #{conv_vae_forward.15} parent=31 // loop_footer
        %s243 = sadd.s32 1, %s239
      $region38: #{conv_vae_forward.15} parent=31 // loop_footer_branch
        %238 = sbr.rel target = $region34
      $region39: #{conv_vae_forward.15} parent=31 // loop_exit
        _
      %p621 = scmp.lt.s32.totalorder %s14, 1
      %s622 = scalar_select %p621, %s14, 1
      %s623 = smul.addr %s622, 2
      %s624 = scalar_lea.vmem %s3, %s623
      // Predicated region
      $region40: #{conv_vae_forward.15} parent=31 // pred_check
        %p625 = pneg %p100
      $region41: #{conv_vae_forward.15} parent=31 // pred_check_branch
        %627 = sbr.rel (%p625) target = $region43
      $region42: #{conv_vae_forward.15} parent=31 // pred_region
        _
      $region43: #{conv_vae_forward.15} parent=31 // pred_fallthru
        _
    $region32: #{conv_vae_forward.15} parent=5 // pred_fallthru
      _
    %p628 = scmp.le.s32.totalorder 2, %s9
    // Predicated region
    $region44: #{conv_vae_forward.15} parent=5 // pred_check
      %p629 = pneg %p628
    $region45: #{conv_vae_forward.15} parent=5 // pred_check_branch
      %631 = sbr.rel (%p629) target = $region47
    $region46: #{conv_vae_forward.15} parent=5 // pred_region
      %s632 = ssub.s32 %s9, 2
      // Predicated region
      $region48: #{conv_vae_forward.15} parent=46 // pred_check
        %p633 = pneg %p106
      $region49: #{conv_vae_forward.15} parent=46 // pred_check_branch
        %635 = sbr.rel (%p633) target = $region51
      $region50: #{conv_vae_forward.15} parent=46 // pred_region
        %p636 = scmp.lt.s32.totalorder %s15, 1
        %s637 = scalar_select %p636, %s15, 1
        %s638 = smul.addr %s637, 2
        %s639 = scalar_lea.vmem %s3, %s638
      $region51: #{conv_vae_forward.15} parent=46 // pred_fallthru
        _
    $region47: #{conv_vae_forward.15} parent=5 // pred_fallthru
      _
  $region6: #{conv_vae_forward.15} parent=0 // loop_footer
    %s13 = sadd.s32 1, %s9
  $region7: #{conv_vae_forward.15} parent=0 // loop_footer_branch
    %8 = sbr.rel target = $region3
  $region8: #{conv_vae_forward.15} parent=0 // loop_exit
    _

// kernel: conv_vae_forward.18
$region0: #{conv_vae_forward.18}
  #allocation0 [shape = 'u32[]', space=smem, size = 0x4, offset = 0x4, fixed_abs, tag = 'smem constant byte address 0x4 - core index']
  #allocation1 [shape = 'u32[144,128]{1,0:T(1,128)}', space=vmem, size = 0x12000, scoped, tag = 'internal scratch']
  %s0 = inlined_call_operand.vmem [shape: bf16[2,16], index: 0, kind: input, shape index: {}]
  %s1 = inlined_call_operand.vmem [shape: bf16[16,64], index: 1, kind: input, shape index: {}]
  %s2 = inlined_call_operand.vmem [shape: f32[1,64], index: 2, kind: input, shape index: {}]
  %s3 = inlined_call_operand.vmem [shape: bf16[2,64], index: 3, kind: output, shape index: {}]
  %s4 = sld [smem:[#allocation0]]
  $region22: #{conv_vae_forward.18} parent=0
    _
  %s6 = ssub.s32 1, %s4
  %s7 = scalar_select 0, %s6, %s4
  // Predicated region
  $region2: #{conv_vae_forward.18} parent=0 // pred_check
    _
  $region3: #{conv_vae_forward.18} parent=0 // pred_check_branch
    %9 = sbr.rel (0) target = $region5
  $region4: #{conv_vae_forward.18} parent=0 // pred_region
    _
  $region5: #{conv_vae_forward.18} parent=0 // pred_fallthru
    _
  // Predicated region
  $region6: #{conv_vae_forward.18} parent=0 // pred_check
    _
  $region7: #{conv_vae_forward.18} parent=0 // pred_check_branch
    %11 = sbr.rel (0) target = $region9
  $region8: #{conv_vae_forward.18} parent=0 // pred_region
    _
  $region9: #{conv_vae_forward.18} parent=0 // pred_fallthru
    _
  // Predicated region
  $region10: #{conv_vae_forward.18} parent=0 // pred_check
    _
  $region11: #{conv_vae_forward.18} parent=0 // pred_check_branch
    %13 = sbr.rel (0) target = $region13
  $region12: #{conv_vae_forward.18} parent=0 // pred_region
    _
  $region13: #{conv_vae_forward.18} parent=0 // pred_fallthru
    _
  %v15 = vld [vmem:[%s0] sm:$0x1]
  %v16 = vld [vmem:[%s1] sm:$0xf]
  %v17 = vld [vmem:[%s1 + $0x4] sm:$0xf]
  %v18 = vld [vmem:[%s2] sm:$0x1]
  %v20 = vlaneseq
  %v21 = vshrl.u32 %v20, 7
  %v22 = vsub.s32 0, %v21
  %v23 = vrot.slane %v18, %v22
  %v27 = vunpack.c.l.b16 %v16
  %v28 = vunpack.c.l.b16 %v17
  %v29 = vpack.c.b16 %v28, %v27
  %vm31 = vcmask 130048
  %v33 = vsel %vm31, %v15, 0
  %35 = vmatprep.subr.bf16.mxu0 0
  %36 = vmatpush1.bf16.msra.mxu0 %v29
  %37 = vmatprep.subr.bf16.mxu0 0
  %38 = vmatpush1.bf16.msra.mxu0 0
  %39 = vmatprep.subr.bf16.mxu0 0
  %40 = vmatpush1.bf16.msra.mxu0 0
  %41 = vmatprep.subr.bf16.mxu0 0
  %42 = vmatpush1.bf16.msra.mxu0 0
  %43 = vmatprep.subr.bf16.mxu0 0
  %44 = vmatpush1.bf16.msra.mxu0 0
  %45 = vmatprep.subr.bf16.mxu0 0
  %46 = vmatpush1.bf16.msra.mxu0 0
  %47 = vmatprep.subr.bf16.mxu0 0
  %48 = vmatpush1.bf16.msra.mxu0 0
  %49 = vmatprep.subr.bf16.mxu0 0
  %50 = vmatpush1.bf16.msra.mxu0 0
  %51 = vmatprep.subr.bf16.mxu0 0
  %52 = vmatpush1.bf16.msra.mxu0 0
  %53 = vmatprep.subr.bf16.mxu0 0
  %54 = vmatpush1.bf16.msra.mxu0 0
  %55 = vmatprep.subr.bf16.mxu0 0
  %56 = vmatpush1.bf16.msra.mxu0 0
  %57 = vmatprep.subr.bf16.mxu0 0
  %58 = vmatpush1.bf16.msra.mxu0 0
  %59 = vmatprep.subr.bf16.mxu0 0
  %60 = vmatpush1.bf16.msra.mxu0 0
  %61 = vmatprep.subr.bf16.mxu0 0
  %62 = vmatpush1.bf16.msra.mxu0 0
  %63 = vmatprep.subr.bf16.mxu0 0
  %64 = vmatpush1.bf16.msra.mxu0 0
  %65 = vmatprep.subr.bf16.mxu0 0
  %66 = vmatpush1.bf16.msra.mxu0 0
  %67 = vmatprep.mubr.bf16.mxu0 0
  %68 = vmatmul.mubr.bf16.gmra.mrb[0].mxu0 %v33
  %v69 = vpop.f32.mrb[0].mxu0
  %v70 = vadd.f32 %v23, %v69
  %v71 = vpop.f32.mrb[0].mxu0
  %v72 = vpop.f32.mrb[0].mxu0
  %v73 = vpop.f32.mrb[0].mxu0
  %74 = vdwg.mxu0
  %v75 = vpack.c.bf16 %v70, %v70
  %vm76 = vcmask 516096
  %77 = vst.msk [vmem:[%s3] sm:$0x1] %vm76, %v75
  // Predicated region
  $region14: #{conv_vae_forward.18} parent=0 // pred_check
    _
  $region15: #{conv_vae_forward.18} parent=0 // pred_check_branch
    %79 = sbr.rel (0) target = $region17
  $region16: #{conv_vae_forward.18} parent=0 // pred_region
    _
  $region17: #{conv_vae_forward.18} parent=0 // pred_fallthru
    _
  // Predicated region
  $region18: #{conv_vae_forward.18} parent=0 // pred_check
    _
  $region19: #{conv_vae_forward.18} parent=0 // pred_check_branch
    %81 = sbr.rel (0) target = $region21
  $region20: #{conv_vae_forward.18} parent=0 // pred_region
    _
  $region21: #{conv_vae_forward.18} parent=0 // pred_fallthru
    _

// kernel: conv_vae_forward.17
$region0: #{conv_vae_forward.17}
  #allocation0 [shape = 'u32[]', space=smem, size = 0x4, offset = 0x4, fixed_abs, tag = 'smem constant byte address 0x4 - core index']
  #allocation1 [shape = 'u32[144,128]{1,0:T(1,128)}', space=vmem, size = 0x12000, scoped, tag = 'internal scratch']
  %s0 = inlined_call_operand.vmem [shape: bf16[2,64], index: 0, kind: input, shape index: {}]
  %s1 = inlined_call_operand.vmem [shape: bf16[64,32], index: 1, kind: input, shape index: {}]
  %s2 = inlined_call_operand.vmem [shape: f32[1,32], index: 2, kind: input, shape index: {}]
  %s3 = inlined_call_operand.vmem [shape: f32[2,16], index: 3, kind: input, shape index: {}]
  %s4 = inlined_call_operand.hbm [shape: f32[2,16], index: 4, kind: output, shape index: {0}]
  %s5 = inlined_call_operand.hbm [shape: f32[2,16], index: 5, kind: output, shape index: {1}]
  %s6 = inlined_call_operand.vmem [shape: f32[2,16], index: 6, kind: output, shape index: {2}]
  %7 = xla_tuple %s4, %s5, %s6
  %s8 = sld [smem:[#allocation0]]
  $region42: #{conv_vae_forward.17} parent=0
    _
  %s10 = ssub.s32 1, %s8
  %s11 = scalar_select 0, %s10, %s8
  $region1: #{conv_vae_forward.17} parent=0
    #allocation2 [shape = 'u8[1024]{0}', space=vmem, size = 0x400, scoped, tag = 'output window, operand 0, single buffered']
    #allocation3 [shape = 's32[1]{0}', space=sflag, size = 0x4, scoped, tag = 'scoped memory for conv_vae_forward.17']
    #allocation4 [shape = 'u8[1024]{0}', space=vmem, size = 0x400, scoped, tag = 'output window, operand 1, single buffered']
    #allocation5 [shape = 's32[1]{0}', space=sflag, size = 0x4, scoped, tag = 'scoped memory for conv_vae_forward.17']
    %12 = vsyncpa [#allocation3], 0
    %13 = vsyncpa [#allocation5], 0
    // Predicated region
    $region2: #{conv_vae_forward.17} parent=1 // pred_check
      _
    $region3: #{conv_vae_forward.17} parent=1 // pred_check_branch
      %15 = sbr.rel (0) target = $region5
    $region4: #{conv_vae_forward.17} parent=1 // pred_region
      _
    $region5: #{conv_vae_forward.17} parent=1 // pred_fallthru
      _
    // Predicated region
    $region6: #{conv_vae_forward.17} parent=1 // pred_check
      _
    $region7: #{conv_vae_forward.17} parent=1 // pred_check_branch
      %17 = sbr.rel (0) target = $region9
    $region8: #{conv_vae_forward.17} parent=1 // pred_region
      _
    $region9: #{conv_vae_forward.17} parent=1 // pred_fallthru
      _
    // Predicated region
    $region10: #{conv_vae_forward.17} parent=1 // pred_check
      _
    $region11: #{conv_vae_forward.17} parent=1 // pred_check_branch
      %19 = sbr.rel (0) target = $region13
    $region12: #{conv_vae_forward.17} parent=1 // pred_region
      _
    $region13: #{conv_vae_forward.17} parent=1 // pred_fallthru
      _
    // Predicated region
    $region14: #{conv_vae_forward.17} parent=1 // pred_check
      _
    $region15: #{conv_vae_forward.17} parent=1 // pred_check_branch
      %21 = sbr.rel (0) target = $region17
    $region16: #{conv_vae_forward.17} parent=1 // pred_region
      _
    $region17: #{conv_vae_forward.17} parent=1 // pred_fallthru
      _
    %v23 = vld [vmem:[%s0] sm:$0x1]
    %v24 = vld [vmem:[%s1] sm:$0xf]
    %v25 = vld [vmem:[%s1 + $0x4] sm:$0xf]
    %v26 = vld [vmem:[%s1 + $0x8] sm:$0xf]
    %v27 = vld [vmem:[%s1 + $0xc] sm:$0xf]
    %v28 = vld [vmem:[%s1 + $0x10] sm:$0xf]
    %v29 = vld [vmem:[%s1 + $0x14] sm:$0xf]
    %v30 = vld [vmem:[%s1 + $0x18] sm:$0xf]
    %v31 = vld [vmem:[%s1 + $0x1c] sm:$0xf]
    %v32 = vld [vmem:[%s2] sm:$0x1]
    %v34 = vlaneseq
    %v35 = vshrl.u32 %v34, 7
    %v36 = vsub.s32 0, %v35
    %v37 = vrot.slane %v32, %v36
    %v47 = vunpack.c.l.b16 %v24
    %v48 = vunpack.c.l.b16 %v25
    %v49 = vunpack.c.l.b16 %v26
    %v50 = vunpack.c.l.b16 %v27
    %v51 = vunpack.c.l.b16 %v28
    %v52 = vunpack.c.l.b16 %v29
    %v53 = vunpack.c.l.b16 %v30
    %v54 = vunpack.c.l.b16 %v31
    %v55 = vpack.c.b16 %v48, %v47
    %v56 = vpack.c.b16 %v50, %v49
    %v57 = vpack.c.b16 %v52, %v51
    %v58 = vpack.c.b16 %v54, %v53
    %vm63 = vcmask 523264
    %v65 = vsel %vm63, %v23, 0
    %67 = vmatprep.subr.bf16.mxu0 0
    %68 = vmatpush1.bf16.msra.mxu0 %v55
    %69 = vmatprep.subr.bf16.mxu0 0
    %70 = vmatpush1.bf16.msra.mxu0 %v56
    %71 = vmatprep.subr.bf16.mxu0 0
    %72 = vmatpush1.bf16.msra.mxu0 %v57
    %73 = vmatprep.subr.bf16.mxu0 0
    %74 = vmatpush1.bf16.msra.mxu0 %v58
    %75 = vmatprep.subr.bf16.mxu0 0
    %76 = vmatpush1.bf16.msra.mxu0 0
    %77 = vmatprep.subr.bf16.mxu0 0
    %78 = vmatpush1.bf16.msra.mxu0 0
    %79 = vmatprep.subr.bf16.mxu0 0
    %80 = vmatpush1.bf16.msra.mxu0 0
    %81 = vmatprep.subr.bf16.mxu0 0
    %82 = vmatpush1.bf16.msra.mxu0 0
    %83 = vmatprep.subr.bf16.mxu0 0
    %84 = vmatpush1.bf16.msra.mxu0 0
    %85 = vmatprep.subr.bf16.mxu0 0
    %86 = vmatpush1.bf16.msra.mxu0 0
    %87 = vmatprep.subr.bf16.mxu0 0
    %88 = vmatpush1.bf16.msra.mxu0 0
    %89 = vmatprep.subr.bf16.mxu0 0
    %90 = vmatpush1.bf16.msra.mxu0 0
    %91 = vmatprep.subr.bf16.mxu0 0
    %92 = vmatpush1.bf16.msra.mxu0 0
    %93 = vmatprep.subr.bf16.mxu0 0
    %94 = vmatpush1.bf16.msra.mxu0 0
    %95 = vmatprep.subr.bf16.mxu0 0
    %96 = vmatpush1.bf16.msra.mxu0 0
    %97 = vmatprep.subr.bf16.mxu0 0
    %98 = vmatpush1.bf16.msra.mxu0 0
    %99 = vmatprep.mubr.bf16.mxu0 0
    %100 = vmatmul.mubr.bf16.gmra.mrb[0].mxu0 %v65
    %v101 = vpop.f32.mrb[0].mxu0
    %v102 = vadd.f32 %v37, %v101
    %v103 = vpop.f32.mrb[0].mxu0
    %v104 = vpop.f32.mrb[0].mxu0
    %v105 = vpop.f32.mrb[0].mxu0
    %106 = vdwg.mxu0
    %vm107 = vcmask 123904
    %108 = vst.msk [vmem:[#allocation2] sm:$0x3] %vm107, %v102
    %110 = vrot.lane.b32.xlu0 %v102, 112
    %v111 = vpop.permute.xlu0 %110
    %113 = vst.msk [vmem:[#allocation4] sm:$0x3] %vm107, %v111
    %v114 = vld [vmem:[%s3] sm:$0x3]
    %v115 = vmul.f32 %v102, 0.5
    %v116 = vmul.f32 %v115, 1.442695
    %v117 = vpow.pop %v116
    %119 = vrot.lane.b32.xlu0 %v117, 112
    %v120 = vpop.permute.xlu0 %119
    %v122 = vmul.f32 %v114, %v120
    %v123 = vadd.f32 %v102, %v122
    %124 = vst.msk [vmem:[%s6] sm:$0x3] %vm107, %v123
    // Predicated region
    $region18: #{conv_vae_forward.17} parent=1 // pred_check
      _
    $region19: #{conv_vae_forward.17} parent=1 // pred_check_branch
      %126 = sbr.rel (0) target = $region21
    $region20: #{conv_vae_forward.17} parent=1 // pred_region
      %s128 = ssub.s32 32, 32
      %129 = vsyncadd [#allocation3], %s128
      %s131 = sshll.u32 [#allocation2], 4
      %s132 = int_to_ptr.vmem [resolvable:$true] %s131
      %134 = dma.vmem_to_hbm [thread:$0]  %s132, 32, %s4, [#allocation3]
    $region21: #{conv_vae_forward.17} parent=1 // pred_fallthru
      _
    // Predicated region
    $region22: #{conv_vae_forward.17} parent=1 // pred_check
      _
    $region23: #{conv_vae_forward.17} parent=1 // pred_check_branch
      %136 = sbr.rel (0) target = $region25
    $region24: #{conv_vae_forward.17} parent=1 // pred_region
      %s138 = ssub.s32 32, 32
      %139 = vsyncadd [#allocation5], %s138
      %s141 = sshll.u32 [#allocation4], 4
      %s142 = int_to_ptr.vmem [resolvable:$true] %s141
      %144 = dma.vmem_to_hbm [thread:$0]  %s142, 32, %s5, [#allocation5]
    $region25: #{conv_vae_forward.17} parent=1 // pred_fallthru
      _
    // Predicated region
    $region26: #{conv_vae_forward.17} parent=1 // pred_check
      _
    $region27: #{conv_vae_forward.17} parent=1 // pred_check_branch
      %146 = sbr.rel (0) target = $region29
    $region28: #{conv_vae_forward.17} parent=1 // pred_region
      _
    $region29: #{conv_vae_forward.17} parent=1 // pred_fallthru
      _
    // Predicated region
    $region30: #{conv_vae_forward.17} parent=1 // pred_check
      _
    $region31: #{conv_vae_forward.17} parent=1 // pred_check_branch
      %148 = sbr.rel (0) target = $region33
    $region32: #{conv_vae_forward.17} parent=1 // pred_region
      %149 = dma.done [#allocation3], 32
    $region33: #{conv_vae_forward.17} parent=1 // pred_fallthru
      _
    // Predicated region
    $region34: #{conv_vae_forward.17} parent=1 // pred_check
      _
    $region35: #{conv_vae_forward.17} parent=1 // pred_check_branch
      %151 = sbr.rel (0) target = $region37
    $region36: #{conv_vae_forward.17} parent=1 // pred_region
      %152 = dma.done [#allocation5], 32
    $region37: #{conv_vae_forward.17} parent=1 // pred_fallthru
      _
    // Predicated region
    $region38: #{conv_vae_forward.17} parent=1 // pred_check
      _
    $region39: #{conv_vae_forward.17} parent=1 // pred_check_branch
      %154 = sbr.rel (0) target = $region41
    $region40: #{conv_vae_forward.17} parent=1 // pred_region
      _
    $region41: #{conv_vae_forward.17} parent=1 // pred_fallthru
      _
    %155 = vsyncpa [#allocation3], 1
    %156 = vsyncpa [#allocation5], 1

// kernel: conv_vae_forward.16
$region0: #{conv_vae_forward.16}
  #allocation0 [shape = 'u32[]', space=smem, size = 0x4, offset = 0x4, fixed_abs, tag = 'smem constant byte address 0x4 - core index']
  #allocation1 [shape = 'u32[144,128]{1,0:T(1,128)}', space=vmem, size = 0x12000, scoped, tag = 'internal scratch']
  %s0 = inlined_call_operand.vmem [shape: bf16[2,2,2,256], index: 0, kind: input, shape index: {}]
  %s1 = inlined_call_operand.vmem [shape: bf16[2,2,256,64], index: 1, kind: input, shape index: {}]
  %s2 = inlined_call_operand.vmem [shape: f32[1,64], index: 2, kind: input, shape index: {}]
  %s3 = inlined_call_operand.vmem [shape: bf16[2,1,1,64], index: 3, kind: output, shape index: {}]
  %s4 = sld [smem:[#allocation0]]
  $region45: #{conv_vae_forward.16} parent=0
    _
  %s6 = ssub.s32 1, %s4
  %s7 = scalar_select 0, %s6, %s4
  loop: start=0, step=1, limit=4
  $region2: #{conv_vae_forward.16} parent=0 // loop_pre_header
    _
  $region3: #{conv_vae_forward.16} parent=0 // loop_header
    %s9 = sphi 0, %s13
    %p10 = scmp.ge.s32.totalorder %s9, 4
    %s19 = sphi 0, %s21
    %s22 = sphi 0, %s19
    %s23 = sphi 0, %s22
    %s39 = sphi 0, %s23
    %s43 = sphi 0, %s43
    %s45 = sphi 0, %s43
    %s46 = sphi 0, %s45
    %s60 = sphi 0, %s46
    %s64 = sphi 0, %s64
    %s66 = sphi 0, %s64
    %s67 = sphi 0, %s66
    %s81 = sphi 0, %s67
    %s87 = sphi 0, %s89
    %s90 = sphi 0, %s87
    %s91 = sphi 0, %s90
    %s107 = sphi 0, %s91
  $region4: #{conv_vae_forward.16} parent=0 // loop_header_branch
    %12 = sbr.rel (%p10) target = $region8
  $region5: #{conv_vae_forward.16} parent=0 // loop_body
    %s14 = ssub.s32 %s9, 1
    %s15 = ssub.s32 %s9, 2
    %s16 = sadd.s32 %s9, 1
    %s17 = ssub.s32 %s9, %s16
    %p18 = scmp.eq.s32.totalorder %s17, 0
    %s20 = sadd.s32 %s19, 1
    %s21 = scalar_select %p18, %s19, %s20
    %p24 = pneg %p18
    %p25 = scmp.eq.s32.totalorder %s9, 1
    %p26 = por %p24, %p25
    %p27 = scmp.ne.s32.totalorder %s19, %s22
    %p28 = scmp.eq.s32.totalorder %s9, 0
    %p29 = por %p27, %p28
    %p30 = scmp.ne.s32.totalorder %s19, %s22
    %p31 = scmp.eq.s32.totalorder %s14, 1
    %p32 = por %p30, %p31
    %p33 = scmp.ne.s32.totalorder %s22, %s23
    %p34 = scmp.eq.s32.totalorder %s14, 0
    %p35 = por %p33, %p34
    %p36 = scmp.ne.s32.totalorder %s22, %s23
    %p37 = scmp.eq.s32.totalorder %s15, 1
    %p38 = por %p36, %p37
    %p40 = scmp.ne.s32.totalorder %s23, %s39
    %p41 = scmp.eq.s32.totalorder %s15, 0
    %p42 = por %p40, %p41
    %s44 = sadd.s32 %s43, 1
    %p47 = scmp.eq.s32.totalorder %s9, 1
    %p48 = scmp.ne.s32.totalorder %s43, %s45
    %p49 = scmp.eq.s32.totalorder %s9, 0
    %p50 = por %p48, %p49
    %p51 = scmp.ne.s32.totalorder %s43, %s45
    %p52 = scmp.eq.s32.totalorder %s14, 1
    %p53 = por %p51, %p52
    %p54 = scmp.ne.s32.totalorder %s45, %s46
    %p55 = scmp.eq.s32.totalorder %s14, 0
    %p56 = por %p54, %p55
    %p57 = scmp.ne.s32.totalorder %s45, %s46
    %p58 = scmp.eq.s32.totalorder %s15, 1
    %p59 = por %p57, %p58
    %p61 = scmp.ne.s32.totalorder %s46, %s60
    %p62 = scmp.eq.s32.totalorder %s15, 0
    %p63 = por %p61, %p62
    %s65 = sadd.s32 %s64, 1
    %p68 = scmp.eq.s32.totalorder %s9, 1
    %p69 = scmp.ne.s32.totalorder %s64, %s66
    %p70 = scmp.eq.s32.totalorder %s9, 0
    %p71 = por %p69, %p70
    %p72 = scmp.ne.s32.totalorder %s64, %s66
    %p73 = scmp.eq.s32.totalorder %s14, 1
    %p74 = por %p72, %p73
    %p75 = scmp.ne.s32.totalorder %s66, %s67
    %p76 = scmp.eq.s32.totalorder %s14, 0
    %p77 = por %p75, %p76
    %p78 = scmp.ne.s32.totalorder %s66, %s67
    %p79 = scmp.eq.s32.totalorder %s15, 1
    %p80 = por %p78, %p79
    %p82 = scmp.ne.s32.totalorder %s67, %s81
    %p83 = scmp.eq.s32.totalorder %s15, 0
    %p84 = por %p82, %p83
    %s85 = ssub.s32 %s9, %s16
    %p86 = scmp.eq.s32.totalorder %s85, 0
    %s88 = sadd.s32 %s87, 1
    %s89 = scalar_select %p86, %s87, %s88
    %p92 = pneg %p86
    %p93 = scmp.eq.s32.totalorder %s9, 1
    %p94 = por %p92, %p93
    %p95 = scmp.ne.s32.totalorder %s87, %s90
    %p96 = scmp.eq.s32.totalorder %s9, 0
    %p97 = por %p95, %p96
    %p98 = scmp.ne.s32.totalorder %s87, %s90
    %p99 = scmp.eq.s32.totalorder %s14, 1
    %p100 = por %p98, %p99
    %p101 = scmp.ne.s32.totalorder %s90, %s91
    %p102 = scmp.eq.s32.totalorder %s14, 0
    %p103 = por %p101, %p102
    %p104 = scmp.ne.s32.totalorder %s90, %s91
    %p105 = scmp.eq.s32.totalorder %s15, 1
    %p106 = por %p104, %p105
    %p108 = scmp.ne.s32.totalorder %s91, %s107
    %p109 = scmp.eq.s32.totalorder %s15, 0
    %p110 = por %p108, %p109
    %p111 = scmp.le.s32.totalorder 1, %s9
    %p112 = scmp.lt.s32.totalorder %s9, 3
    %p113 = pnand %p111, %p112
    %p114 = pneg %p113
    // Predicated region
    $region9: #{conv_vae_forward.16} parent=5 // pred_check
      _
    $region10: #{conv_vae_forward.16} parent=5 // pred_check_branch
      %116 = sbr.rel (%p113) target = $region12
    $region11: #{conv_vae_forward.16} parent=5 // pred_region
      %s117 = ssub.s32 %s9, 1
      // Predicated region
      $region13: #{conv_vae_forward.16} parent=11 // pred_check
        %p118 = pneg %p56
      $region14: #{conv_vae_forward.16} parent=11 // pred_check_branch
        %120 = sbr.rel (%p118) target = $region16
      $region15: #{conv_vae_forward.16} parent=11 // pred_region
        _
      $region16: #{conv_vae_forward.16} parent=11 // pred_fallthru
        _
      // Predicated region
      $region17: #{conv_vae_forward.16} parent=11 // pred_check
        %p121 = pneg %p77
      $region18: #{conv_vae_forward.16} parent=11 // pred_check_branch
        %123 = sbr.rel (%p121) target = $region20
      $region19: #{conv_vae_forward.16} parent=11 // pred_region
        _
      $region20: #{conv_vae_forward.16} parent=11 // pred_fallthru
        _
    $region12: #{conv_vae_forward.16} parent=5 // pred_fallthru
      _
    %p124 = scmp.lt.s32.totalorder %s9, 2
    // Predicated region
    $region21: #{conv_vae_forward.16} parent=5 // pred_check
      %p125 = pneg %p124
    $region22: #{conv_vae_forward.16} parent=5 // pred_check_branch
      %127 = sbr.rel (%p125) target = $region24
    $region23: #{conv_vae_forward.16} parent=5 // pred_region
      // Predicated region
      $region25: #{conv_vae_forward.16} parent=23 // pred_check
        %p128 = pneg %p29
      $region26: #{conv_vae_forward.16} parent=23 // pred_check_branch
        %130 = sbr.rel (%p128) target = $region28
      $region27: #{conv_vae_forward.16} parent=23 // pred_region
        %p131 = scmp.lt.s32.totalorder %s9, 1
        %s132 = scalar_select %p131, %s9, 1
        %s133 = smul.addr %s132, 4
        %s134 = scalar_lea.vmem %s0, %s133
      $region28: #{conv_vae_forward.16} parent=23 // pred_fallthru
        _
    $region24: #{conv_vae_forward.16} parent=5 // pred_fallthru
      _
    %p135 = scmp.le.s32.totalorder 1, %s9
    %p136 = scmp.lt.s32.totalorder %s9, 3
    %p137 = pnand %p135, %p136
    %p138 = pneg %p137
    // Predicated region
    $region29: #{conv_vae_forward.16} parent=5 // pred_check
      _
    $region30: #{conv_vae_forward.16} parent=5 // pred_check_branch
      %140 = sbr.rel (%p137) target = $region32
    $region31: #{conv_vae_forward.16} parent=5 // pred_region
      %s141 = ssub.s32 %s9, 1
      %p142 = scmp.lt.s32.totalorder %s14, 1
      %s143 = scalar_select %p142, %s14, 1
      %s144 = smul.addr %s143, 4
      %s145 = scalar_lea.vmem %s0, %s144
      %p146 = pneg %p35
      %p147 = pneg %p32
      %p148 = pneg %p56
      %p149 = pneg %p53
      %p150 = pneg %p77
      %p151 = pneg %p74
      %p152 = pneg %p103
      %p153 = pneg %p100
      %p154 = scmp.lt.s32.totalorder %s14, 1
      %s155 = scalar_select %p154, %s14, 1
      %s156 = scalar_lea.vmem %s3, %s155
      %p157 = scmp.lt.s32.totalorder %s14, 1
      %s158 = scalar_select %p157, %s14, 1
      %s159 = smul.addr %s158, 4
      %s160 = scalar_lea.vmem %s0, %s159
      %p161 = scmp.lt.s32.totalorder %s14, 1
      %s162 = scalar_select %p161, %s14, 1
      %s163 = scalar_lea.vmem %s3, %s162
      %v165 = vld [vmem:[%s1] sm:$0xf]
      %v166 = vld [vmem:[%s1 + $0x4] sm:$0xf]
      %v167 = vld [vmem:[%s1 + $0x8] sm:$0xf]
      %v168 = vld [vmem:[%s1 + $0xc] sm:$0xf]
      %v169 = vld [vmem:[%s1 + $0x10] sm:$0xf]
      %v170 = vld [vmem:[%s1 + $0x14] sm:$0xf]
      %v171 = vld [vmem:[%s1 + $0x18] sm:$0xf]
      %v172 = vld [vmem:[%s1 + $0x1c] sm:$0xf]
      %v173 = vld [vmem:[%s1 + $0x20] sm:$0xf]
      %v174 = vld [vmem:[%s1 + $0x24] sm:$0xf]
      %v175 = vld [vmem:[%s1 + $0x28] sm:$0xf]
      %v176 = vld [vmem:[%s1 + $0x2c] sm:$0xf]
      %v177 = vld [vmem:[%s1 + $0x30] sm:$0xf]
      %v178 = vld [vmem:[%s1 + $0x34] sm:$0xf]
      %v179 = vld [vmem:[%s1 + $0x38] sm:$0xf]
      %v180 = vld [vmem:[%s1 + $0x3c] sm:$0xf]
      %v181 = vld [vmem:[%s1 + $0x40] sm:$0xf]
      %v182 = vld [vmem:[%s1 + $0x44] sm:$0xf]
      %v183 = vld [vmem:[%s1 + $0x48] sm:$0xf]
      %v184 = vld [vmem:[%s1 + $0x4c] sm:$0xf]
      %v185 = vld [vmem:[%s1 + $0x50] sm:$0xf]
      %v186 = vld [vmem:[%s1 + $0x54] sm:$0xf]
      %v187 = vld [vmem:[%s1 + $0x58] sm:$0xf]
      %v188 = vld [vmem:[%s1 + $0x5c] sm:$0xf]
      %v189 = vld [vmem:[%s1 + $0x60] sm:$0xf]
      %v190 = vld [vmem:[%s1 + $0x64] sm:$0xf]
      %v191 = vld [vmem:[%s1 + $0x68] sm:$0xf]
      %v192 = vld [vmem:[%s1 + $0x6c] sm:$0xf]
      %v193 = vld [vmem:[%s1 + $0x70] sm:$0xf]
      %v194 = vld [vmem:[%s1 + $0x74] sm:$0xf]
      %v195 = vld [vmem:[%s1 + $0x78] sm:$0xf]
      %v196 = vld [vmem:[%s1 + $0x7c] sm:$0xf]
      %s197 = scalar_lea.vmem %s1, 128
      %v198 = vld [vmem:[%s197] sm:$0xf]
      %v199 = vld [vmem:[%s197 + $0x4] sm:$0xf]
      %v200 = vld [vmem:[%s197 + $0x8] sm:$0xf]
      %v201 = vld [vmem:[%s197 + $0xc] sm:$0xf]
      %v202 = vld [vmem:[%s197 + $0x10] sm:$0xf]
      %v203 = vld [vmem:[%s197 + $0x14] sm:$0xf]
      %v204 = vld [vmem:[%s197 + $0x18] sm:$0xf]
      %v205 = vld [vmem:[%s197 + $0x1c] sm:$0xf]
      %v206 = vld [vmem:[%s197 + $0x20] sm:$0xf]
      %v207 = vld [vmem:[%s197 + $0x24] sm:$0xf]
      %v208 = vld [vmem:[%s197 + $0x28] sm:$0xf]
      %v209 = vld [vmem:[%s197 + $0x2c] sm:$0xf]
      %v210 = vld [vmem:[%s197 + $0x30] sm:$0xf]
      %v211 = vld [vmem:[%s197 + $0x34] sm:$0xf]
      %v212 = vld [vmem:[%s197 + $0x38] sm:$0xf]
      %v213 = vld [vmem:[%s197 + $0x3c] sm:$0xf]
      %v214 = vld [vmem:[%s197 + $0x40] sm:$0xf]
      %v215 = vld [vmem:[%s197 + $0x44] sm:$0xf]
      %v216 = vld [vmem:[%s197 + $0x48] sm:$0xf]
      %v217 = vld [vmem:[%s197 + $0x4c] sm:$0xf]
      %v218 = vld [vmem:[%s197 + $0x50] sm:$0xf]
      %v219 = vld [vmem:[%s197 + $0x54] sm:$0xf]
      %v220 = vld [vmem:[%s197 + $0x58] sm:$0xf]
      %v221 = vld [vmem:[%s197 + $0x5c] sm:$0xf]
      %v222 = vld [vmem:[%s197 + $0x60] sm:$0xf]
      %v223 = vld [vmem:[%s197 + $0x64] sm:$0xf]
      %v224 = vld [vmem:[%s197 + $0x68] sm:$0xf]
      %v225 = vld [vmem:[%s197 + $0x6c] sm:$0xf]
      %v226 = vld [vmem:[%s197 + $0x70] sm:$0xf]
      %v227 = vld [vmem:[%s197 + $0x74] sm:$0xf]
      %v228 = vld [vmem:[%s197 + $0x78] sm:$0xf]
      %v229 = vld [vmem:[%s197 + $0x7c] sm:$0xf]
      %s230 = scalar_lea.vmem %s1, 256
      %v231 = vld [vmem:[%s230] sm:$0xf]
      %v232 = vld [vmem:[%s230 + $0x4] sm:$0xf]
      %v233 = vld [vmem:[%s230 + $0x8] sm:$0xf]
      %v234 = vld [vmem:[%s230 + $0xc] sm:$0xf]
      %v235 = vld [vmem:[%s230 + $0x10] sm:$0xf]
      %v236 = vld [vmem:[%s230 + $0x14] sm:$0xf]
      %v237 = vld [vmem:[%s230 + $0x18] sm:$0xf]
      %v238 = vld [vmem:[%s230 + $0x1c] sm:$0xf]
      %v239 = vld [vmem:[%s230 + $0x20] sm:$0xf]
      %v240 = vld [vmem:[%s230 + $0x24] sm:$0xf]
      %v241 = vld [vmem:[%s230 + $0x28] sm:$0xf]
      %v242 = vld [vmem:[%s230 + $0x2c] sm:$0xf]
      %v243 = vld [vmem:[%s230 + $0x30] sm:$0xf]
      %v244 = vld [vmem:[%s230 + $0x34] sm:$0xf]
      %v245 = vld [vmem:[%s230 + $0x38] sm:$0xf]
      %v246 = vld [vmem:[%s230 + $0x3c] sm:$0xf]
      %v247 = vld [vmem:[%s230 + $0x40] sm:$0xf]
      %v248 = vld [vmem:[%s230 + $0x44] sm:$0xf]
      %v249 = vld [vmem:[%s230 + $0x48] sm:$0xf]
      %v250 = vld [vmem:[%s230 + $0x4c] sm:$0xf]
      %v251 = vld [vmem:[%s230 + $0x50] sm:$0xf]
      %v252 = vld [vmem:[%s230 + $0x54] sm:$0xf]
      %v253 = vld [vmem:[%s230 + $0x58] sm:$0xf]
      %v254 = vld [vmem:[%s230 + $0x5c] sm:$0xf]
      %v255 = vld [vmem:[%s230 + $0x60] sm:$0xf]
      %v256 = vld [vmem:[%s230 + $0x64] sm:$0xf]
      %v257 = vld [vmem:[%s230 + $0x68] sm:$0xf]
      %v258 = vld [vmem:[%s230 + $0x6c] sm:$0xf]
      %v259 = vld [vmem:[%s230 + $0x70] sm:$0xf]
      %v260 = vld [vmem:[%s230 + $0x74] sm:$0xf]
      %v261 = vld [vmem:[%s230 + $0x78] sm:$0xf]
      %v262 = vld [vmem:[%s230 + $0x7c] sm:$0xf]
      %s263 = scalar_lea.vmem %s1, 384
      %v264 = vld [vmem:[%s263] sm:$0xf]
      %v265 = vld [vmem:[%s263 + $0x4] sm:$0xf]
      %v266 = vld [vmem:[%s263 + $0x8] sm:$0xf]
      %v267 = vld [vmem:[%s263 + $0xc] sm:$0xf]
      %v268 = vld [vmem:[%s263 + $0x10] sm:$0xf]
      %v269 = vld [vmem:[%s263 + $0x14] sm:$0xf]
      %v270 = vld [vmem:[%s263 + $0x18] sm:$0xf]
      %v271 = vld [vmem:[%s263 + $0x1c] sm:$0xf]
      %v272 = vld [vmem:[%s263 + $0x20] sm:$0xf]
      %v273 = vld [vmem:[%s263 + $0x24] sm:$0xf]
      %v274 = vld [vmem:[%s263 + $0x28] sm:$0xf]
      %v275 = vld [vmem:[%s263 + $0x2c] sm:$0xf]
      %v276 = vld [vmem:[%s263 + $0x30] sm:$0xf]
      %v277 = vld [vmem:[%s263 + $0x34] sm:$0xf]
      %v278 = vld [vmem:[%s263 + $0x38] sm:$0xf]
      %v279 = vld [vmem:[%s263 + $0x3c] sm:$0xf]
      %v280 = vld [vmem:[%s263 + $0x40] sm:$0xf]
      %v281 = vld [vmem:[%s263 + $0x44] sm:$0xf]
      %v282 = vld [vmem:[%s263 + $0x48] sm:$0xf]
      %v283 = vld [vmem:[%s263 + $0x4c] sm:$0xf]
      %v284 = vld [vmem:[%s263 + $0x50] sm:$0xf]
      %v285 = vld [vmem:[%s263 + $0x54] sm:$0xf]
      %v286 = vld [vmem:[%s263 + $0x58] sm:$0xf]
      %v287 = vld [vmem:[%s263 + $0x5c] sm:$0xf]
      %v288 = vld [vmem:[%s263 + $0x60] sm:$0xf]
      %v289 = vld [vmem:[%s263 + $0x64] sm:$0xf]
      %v290 = vld [vmem:[%s263 + $0x68] sm:$0xf]
      %v291 = vld [vmem:[%s263 + $0x6c] sm:$0xf]
      %v292 = vld [vmem:[%s263 + $0x70] sm:$0xf]
      %v293 = vld [vmem:[%s263 + $0x74] sm:$0xf]
      %v294 = vld [vmem:[%s263 + $0x78] sm:$0xf]
      %v295 = vld [vmem:[%s263 + $0x7c] sm:$0xf]
      %v296 = vld [vmem:[%s2] sm:$0x1]
      %v297 = vld [vmem:[%s160] sm:$0x3]
      %v298 = vld [vmem:[%s160 + $0x2] sm:$0x3]
      %v301 = vunpack.c.l.s4 1966171168
      %v302 = vunpack.c.0.s8 %v301
      %v303 = vlaneseq
      %v304 = vshrl.u32 %v303, 7
      %v305 = vsub.s32 %v302, %v304
      %v306 = vrot.slane %v297, %v305
      %v307 = vcombine.high %v306, %v306
      %v309 = vunpack.c.l.s4 1966171168
      %v310 = vunpack.c.0.s8 %v309
      %v311 = vlaneseq
      %v312 = vshrl.u32 %v311, 7
      %v313 = vsub.s32 %v310, %v312
      %v314 = vrot.slane %v306, %v313
      %v316 = vunpack.c.l.s4 1966171168
      %v317 = vunpack.c.0.s8 %v316
      %v318 = vlaneseq
      %v319 = vshrl.u32 %v318, 7
      %v320 = vsub.s32 %v317, %v319
      %v321 = vrot.slane %v307, %v320
      %v356 = vunpack.c.l.b16 %v165
      %v357 = vunpack.c.l.b16 %v166
      %v358 = vunpack.c.l.b16 %v167
      %v359 = vunpack.c.l.b16 %v168
      %v360 = vunpack.c.l.b16 %v169
      %v361 = vunpack.c.l.b16 %v170
      %v362 = vunpack.c.l.b16 %v171
      %v363 = vunpack.c.l.b16 %v172
      %v364 = vunpack.c.l.b16 %v173
      %v365 = vunpack.c.l.b16 %v174
      %v366 = vunpack.c.l.b16 %v175
      %v367 = vunpack.c.l.b16 %v176
      %v368 = vunpack.c.l.b16 %v177
      %v369 = vunpack.c.l.b16 %v178
      %v370 = vunpack.c.l.b16 %v179
      %v371 = vunpack.c.l.b16 %v180
      %v372 = vunpack.c.l.b16 %v181
      %v373 = vunpack.c.l.b16 %v182
      %v374 = vunpack.c.l.b16 %v183
      %v375 = vunpack.c.l.b16 %v184
      %v376 = vunpack.c.l.b16 %v185
      %v377 = vunpack.c.l.b16 %v186
      %v378 = vunpack.c.l.b16 %v187
      %v379 = vunpack.c.l.b16 %v188
      %v380 = vunpack.c.l.b16 %v189
      %v381 = vunpack.c.l.b16 %v190
      %v382 = vunpack.c.l.b16 %v191
      %v383 = vunpack.c.l.b16 %v192
      %v384 = vunpack.c.l.b16 %v193
      %v385 = vunpack.c.l.b16 %v194
      %v386 = vunpack.c.l.b16 %v195
      %v387 = vunpack.c.l.b16 %v196
      %v388 = vpack.c.b16 %v357, %v356
      %v389 = vpack.c.b16 %v359, %v358
      %v390 = vpack.c.b16 %v361, %v360
      %v391 = vpack.c.b16 %v363, %v362
      %v392 = vpack.c.b16 %v365, %v364
      %v393 = vpack.c.b16 %v367, %v366
      %v394 = vpack.c.b16 %v369, %v368
      %v395 = vpack.c.b16 %v371, %v370
      %v396 = vpack.c.b16 %v373, %v372
      %v397 = vpack.c.b16 %v375, %v374
      %v398 = vpack.c.b16 %v377, %v376
      %v399 = vpack.c.b16 %v379, %v378
      %v400 = vpack.c.b16 %v381, %v380
      %v401 = vpack.c.b16 %v383, %v382
      %v402 = vpack.c.b16 %v385, %v384
      %v403 = vpack.c.b16 %v387, %v386
      %420 = vmatprep.subr.bf16.mxu0 0
      %421 = vmatpush1.bf16.msra.mxu0 %v388
      %422 = vmatprep.subr.bf16.mxu0 0
      %423 = vmatpush1.bf16.msra.mxu0 %v389
      %424 = vmatprep.subr.bf16.mxu0 0
      %425 = vmatpush1.bf16.msra.mxu0 %v390
      %426 = vmatprep.subr.bf16.mxu0 0
      %427 = vmatpush1.bf16.msra.mxu0 %v391
      %428 = vmatprep.subr.bf16.mxu0 0
      %429 = vmatpush1.bf16.msra.mxu0 %v392
      %430 = vmatprep.subr.bf16.mxu0 0
      %431 = vmatpush1.bf16.msra.mxu0 %v393
      %432 = vmatprep.subr.bf16.mxu0 0
      %433 = vmatpush1.bf16.msra.mxu0 %v394
      %434 = vmatprep.subr.bf16.mxu0 0
      %435 = vmatpush1.bf16.msra.mxu0 %v395
      %436 = vmatprep.subr.bf16.mxu0 0
      %437 = vmatpush1.bf16.msra.mxu0 %v396
      %438 = vmatprep.subr.bf16.mxu0 0
      %439 = vmatpush1.bf16.msra.mxu0 %v397
      %440 = vmatprep.subr.bf16.mxu0 0
      %441 = vmatpush1.bf16.msra.mxu0 %v398
      %442 = vmatprep.subr.bf16.mxu0 0
      %443 = vmatpush1.bf16.msra.mxu0 %v399
      %444 = vmatprep.subr.bf16.mxu0 0
      %445 = vmatpush1.bf16.msra.mxu0 %v400
      %446 = vmatprep.subr.bf16.mxu0 0
      %447 = vmatpush1.bf16.msra.mxu0 %v401
      %448 = vmatprep.subr.bf16.mxu0 0
      %449 = vmatpush1.bf16.msra.mxu0 %v402
      %450 = vmatprep.subr.bf16.mxu0 0
      %451 = vmatpush1.bf16.msra.mxu0 %v403
      %452 = vmatprep.mubr.bf16.mxu0 %v321
      %453 = vmatmul.mubr.bf16.gmra.mrb[0].mxu0 %v314
      %v454 = vpop.f32.mrb[0].mxu0
      %v455 = vadd.f32 0.0, %v454
      %v456 = vpop.f32.mrb[0].mxu0
      %v457 = vpop.f32.mrb[0].mxu0
      %v458 = vpop.f32.mrb[0].mxu0
      %459 = vdwg.mxu0
      %v492 = vunpack.c.l.b16 %v198
      %v493 = vunpack.c.l.b16 %v199
      %v494 = vunpack.c.l.b16 %v200
      %v495 = vunpack.c.l.b16 %v201
      %v496 = vunpack.c.l.b16 %v202
      %v497 = vunpack.c.l.b16 %v203
      %v498 = vunpack.c.l.b16 %v204
      %v499 = vunpack.c.l.b16 %v205
      %v500 = vunpack.c.l.b16 %v206
      %v501 = vunpack.c.l.b16 %v207
      %v502 = vunpack.c.l.b16 %v208
      %v503 = vunpack.c.l.b16 %v209
      %v504 = vunpack.c.l.b16 %v210
      %v505 = vunpack.c.l.b16 %v211
      %v506 = vunpack.c.l.b16 %v212
      %v507 = vunpack.c.l.b16 %v213
      %v508 = vunpack.c.l.b16 %v214
      %v509 = vunpack.c.l.b16 %v215
      %v510 = vunpack.c.l.b16 %v216
      %v511 = vunpack.c.l.b16 %v217
      %v512 = vunpack.c.l.b16 %v218
      %v513 = vunpack.c.l.b16 %v219
      %v514 = vunpack.c.l.b16 %v220
      %v515 = vunpack.c.l.b16 %v221
      %v516 = vunpack.c.l.b16 %v222
      %v517 = vunpack.c.l.b16 %v223
      %v518 = vunpack.c.l.b16 %v224
      %v519 = vunpack.c.l.b16 %v225
      %v520 = vunpack.c.l.b16 %v226
      %v521 = vunpack.c.l.b16 %v227
      %v522 = vunpack.c.l.b16 %v228
      %v523 = vunpack.c.l.b16 %v229
      %v524 = vpack.c.b16 %v493, %v492
      %v525 = vpack.c.b16 %v495, %v494
      %v526 = vpack.c.b16 %v497, %v496
      %v527 = vpack.c.b16 %v499, %v498
      %v528 = vpack.c.b16 %v501, %v500
      %v529 = vpack.c.b16 %v503, %v502
      %v530 = vpack.c.b16 %v505, %v504
      %v531 = vpack.c.b16 %v507, %v506
      %v532 = vpack.c.b16 %v509, %v508
      %v533 = vpack.c.b16 %v511, %v510
      %v534 = vpack.c.b16 %v513, %v512
      %v535 = vpack.c.b16 %v515, %v514
      %v536 = vpack.c.b16 %v517, %v516
      %v537 = vpack.c.b16 %v519, %v518
      %v538 = vpack.c.b16 %v521, %v520
      %v539 = vpack.c.b16 %v523, %v522
      %556 = vmatprep.subr.bf16.mxu0 0
      %557 = vmatpush1.bf16.msra.mxu0 %v524
      %558 = vmatprep.subr.bf16.mxu0 0
      %559 = vmatpush1.bf16.msra.mxu0 %v525
      %560 = vmatprep.subr.bf16.mxu0 0
      %561 = vmatpush1.bf16.msra.mxu0 %v526
      %562 = vmatprep.subr.bf16.mxu0 0
      %563 = vmatpush1.bf16.msra.mxu0 %v527
      %564 = vmatprep.subr.bf16.mxu0 0
      %565 = vmatpush1.bf16.msra.mxu0 %v528
      %566 = vmatprep.subr.bf16.mxu0 0
      %567 = vmatpush1.bf16.msra.mxu0 %v529
      %568 = vmatprep.subr.bf16.mxu0 0
      %569 = vmatpush1.bf16.msra.mxu0 %v530
      %570 = vmatprep.subr.bf16.mxu0 0
      %571 = vmatpush1.bf16.msra.mxu0 %v531
      %572 = vmatprep.subr.bf16.mxu0 0
      %573 = vmatpush1.bf16.msra.mxu0 %v532
      %574 = vmatprep.subr.bf16.mxu0 0
      %575 = vmatpush1.bf16.msra.mxu0 %v533
      %576 = vmatprep.subr.bf16.mxu0 0
      %577 = vmatpush1.bf16.msra.mxu0 %v534
      %578 = vmatprep.subr.bf16.mxu0 0
      %579 = vmatpush1.bf16.msra.mxu0 %v535
      %580 = vmatprep.subr.bf16.mxu0 0
      %581 = vmatpush1.bf16.msra.mxu0 %v536
      %582 = vmatprep.subr.bf16.mxu0 0
      %583 = vmatpush1.bf16.msra.mxu0 %v537
      %584 = vmatprep.subr.bf16.mxu0 0
      %585 = vmatpush1.bf16.msra.mxu0 %v538
      %586 = vmatprep.subr.bf16.mxu0 0
      %587 = vmatpush1.bf16.msra.mxu0 %v539
      %588 = vmatprep.mubr.bf16.mxu0 %v321
      %589 = vmatmul.mubr.bf16.gmra.mrb[0].mxu0 %v314
      %v590 = vpop.f32.mrb[0].mxu0
      %v591 = vadd.f32 0.0, %v590
      %v592 = vpop.f32.mrb[0].mxu0
      %v593 = vpop.f32.mrb[0].mxu0
      %v594 = vpop.f32.mrb[0].mxu0
      %595 = vdwg.mxu0
      %v598 = vunpack.c.l.s4 1966171168
      %v599 = vunpack.c.0.s8 %v598
      %v600 = vlaneseq
      %v601 = vshrl.u32 %v600, 7
      %v602 = vsub.s32 %v599, %v601
      %v603 = vrot.slane %v298, %v602
      %v604 = vcombine.high %v603, %v603
      %v606 = vunpack.c.l.s4 1966171168
      %v607 = vunpack.c.0.s8 %v606
      %v608 = vlaneseq
      %v609 = vshrl.u32 %v608, 7
      %v610 = vsub.s32 %v607, %v609
      %v611 = vrot.slane %v603, %v610
      %v613 = vunpack.c.l.s4 1966171168
      %v614 = vunpack.c.0.s8 %v613
      %v615 = vlaneseq
      %v616 = vshrl.u32 %v615, 7
      %v617 = vsub.s32 %v614, %v616
      %v618 = vrot.slane %v604, %v617
      %v653 = vunpack.c.l.b16 %v231
      %v654 = vunpack.c.l.b16 %v232
      %v655 = vunpack.c.l.b16 %v233
      %v656 = vunpack.c.l.b16 %v234
      %v657 = vunpack.c.l.b16 %v235
      %v658 = vunpack.c.l.b16 %v236
      %v659 = vunpack.c.l.b16 %v237
      %v660 = vunpack.c.l.b16 %v238
      %v661 = vunpack.c.l.b16 %v239
      %v662 = vunpack.c.l.b16 %v240
      %v663 = vunpack.c.l.b16 %v241
      %v664 = vunpack.c.l.b16 %v242
      %v665 = vunpack.c.l.b16 %v243
      %v666 = vunpack.c.l.b16 %v244
      %v667 = vunpack.c.l.b16 %v245
      %v668 = vunpack.c.l.b16 %v246
      %v669 = vunpack.c.l.b16 %v247
      %v670 = vunpack.c.l.b16 %v248
      %v671 = vunpack.c.l.b16 %v249
      %v672 = vunpack.c.l.b16 %v250
      %v673 = vunpack.c.l.b16 %v251
      %v674 = vunpack.c.l.b16 %v252
      %v675 = vunpack.c.l.b16 %v253
      %v676 = vunpack.c.l.b16 %v254
      %v677 = vunpack.c.l.b16 %v255
      %v678 = vunpack.c.l.b16 %v256
      %v679 = vunpack.c.l.b16 %v257
      %v680 = vunpack.c.l.b16 %v258
      %v681 = vunpack.c.l.b16 %v259
      %v682 = vunpack.c.l.b16 %v260
      %v683 = vunpack.c.l.b16 %v261
      %v684 = vunpack.c.l.b16 %v262
      %v685 = vpack.c.b16 %v654, %v653
      %v686 = vpack.c.b16 %v656, %v655
      %v687 = vpack.c.b16 %v658, %v657
      %v688 = vpack.c.b16 %v660, %v659
      %v689 = vpack.c.b16 %v662, %v661
      %v690 = vpack.c.b16 %v664, %v663
      %v691 = vpack.c.b16 %v666, %v665
      %v692 = vpack.c.b16 %v668, %v667
      %v693 = vpack.c.b16 %v670, %v669
      %v694 = vpack.c.b16 %v672, %v671
      %v695 = vpack.c.b16 %v674, %v673
      %v696 = vpack.c.b16 %v676, %v675
      %v697 = vpack.c.b16 %v678, %v677
      %v698 = vpack.c.b16 %v680, %v679
      %v699 = vpack.c.b16 %v682, %v681
      %v700 = vpack.c.b16 %v684, %v683
      %717 = vmatprep.subr.bf16.mxu0 0
      %718 = vmatpush1.bf16.msra.mxu0 %v685
      %719 = vmatprep.subr.bf16.mxu0 0
      %720 = vmatpush1.bf16.msra.mxu0 %v686
      %721 = vmatprep.subr.bf16.mxu0 0
      %722 = vmatpush1.bf16.msra.mxu0 %v687
      %723 = vmatprep.subr.bf16.mxu0 0
      %724 = vmatpush1.bf16.msra.mxu0 %v688
      %725 = vmatprep.subr.bf16.mxu0 0
      %726 = vmatpush1.bf16.msra.mxu0 %v689
      %727 = vmatprep.subr.bf16.mxu0 0
      %728 = vmatpush1.bf16.msra.mxu0 %v690
      %729 = vmatprep.subr.bf16.mxu0 0
      %730 = vmatpush1.bf16.msra.mxu0 %v691
      %731 = vmatprep.subr.bf16.mxu0 0
      %732 = vmatpush1.bf16.msra.mxu0 %v692
      %733 = vmatprep.subr.bf16.mxu0 0
      %734 = vmatpush1.bf16.msra.mxu0 %v693
      %735 = vmatprep.subr.bf16.mxu0 0
      %736 = vmatpush1.bf16.msra.mxu0 %v694
      %737 = vmatprep.subr.bf16.mxu0 0
      %738 = vmatpush1.bf16.msra.mxu0 %v695
      %739 = vmatprep.subr.bf16.mxu0 0
      %740 = vmatpush1.bf16.msra.mxu0 %v696
      %741 = vmatprep.subr.bf16.mxu0 0
      %742 = vmatpush1.bf16.msra.mxu0 %v697
      %743 = vmatprep.subr.bf16.mxu0 0
      %744 = vmatpush1.bf16.msra.mxu0 %v698
      %745 = vmatprep.subr.bf16.mxu0 0
      %746 = vmatpush1.bf16.msra.mxu0 %v699
      %747 = vmatprep.subr.bf16.mxu0 0
      %748 = vmatpush1.bf16.msra.mxu0 %v700
      %749 = vmatprep.mubr.bf16.mxu0 %v618
      %750 = vmatmul.mubr.bf16.gmra.mrb[0].mxu0 %v611
      %v751 = vpop.f32.mrb[0].mxu0
      %v752 = vadd.f32 0.0, %v751
      %v753 = vpop.f32.mrb[0].mxu0
      %v754 = vpop.f32.mrb[0].mxu0
      %v755 = vpop.f32.mrb[0].mxu0
      %756 = vdwg.mxu0
      %v789 = vunpack.c.l.b16 %v264
      %v790 = vunpack.c.l.b16 %v265
      %v791 = vunpack.c.l.b16 %v266
      %v792 = vunpack.c.l.b16 %v267
      %v793 = vunpack.c.l.b16 %v268
      %v794 = vunpack.c.l.b16 %v269
      %v795 = vunpack.c.l.b16 %v270
      %v796 = vunpack.c.l.b16 %v271
      %v797 = vunpack.c.l.b16 %v272
      %v798 = vunpack.c.l.b16 %v273
      %v799 = vunpack.c.l.b16 %v274
      %v800 = vunpack.c.l.b16 %v275
      %v801 = vunpack.c.l.b16 %v276
      %v802 = vunpack.c.l.b16 %v277
      %v803 = vunpack.c.l.b16 %v278
      %v804 = vunpack.c.l.b16 %v279
      %v805 = vunpack.c.l.b16 %v280
      %v806 = vunpack.c.l.b16 %v281
      %v807 = vunpack.c.l.b16 %v282
      %v808 = vunpack.c.l.b16 %v283
      %v809 = vunpack.c.l.b16 %v284
      %v810 = vunpack.c.l.b16 %v285
      %v811 = vunpack.c.l.b16 %v286
      %v812 = vunpack.c.l.b16 %v287
      %v813 = vunpack.c.l.b16 %v288
      %v814 = vunpack.c.l.b16 %v289
      %v815 = vunpack.c.l.b16 %v290
      %v816 = vunpack.c.l.b16 %v291
      %v817 = vunpack.c.l.b16 %v292
      %v818 = vunpack.c.l.b16 %v293
      %v819 = vunpack.c.l.b16 %v294
      %v820 = vunpack.c.l.b16 %v295
      %v821 = vpack.c.b16 %v790, %v789
      %v822 = vpack.c.b16 %v792, %v791
      %v823 = vpack.c.b16 %v794, %v793
      %v824 = vpack.c.b16 %v796, %v795
      %v825 = vpack.c.b16 %v798, %v797
      %v826 = vpack.c.b16 %v800, %v799
      %v827 = vpack.c.b16 %v802, %v801
      %v828 = vpack.c.b16 %v804, %v803
      %v829 = vpack.c.b16 %v806, %v805
      %v830 = vpack.c.b16 %v808, %v807
      %v831 = vpack.c.b16 %v810, %v809
      %v832 = vpack.c.b16 %v812, %v811
      %v833 = vpack.c.b16 %v814, %v813
      %v834 = vpack.c.b16 %v816, %v815
      %v835 = vpack.c.b16 %v818, %v817
      %v836 = vpack.c.b16 %v820, %v819
      %853 = vmatprep.subr.bf16.mxu0 0
      %854 = vmatpush1.bf16.msra.mxu0 %v821
      %855 = vmatprep.subr.bf16.mxu0 0
      %856 = vmatpush1.bf16.msra.mxu0 %v822
      %857 = vmatprep.subr.bf16.mxu0 0
      %858 = vmatpush1.bf16.msra.mxu0 %v823
      %859 = vmatprep.subr.bf16.mxu0 0
      %860 = vmatpush1.bf16.msra.mxu0 %v824
      %861 = vmatprep.subr.bf16.mxu0 0
      %862 = vmatpush1.bf16.msra.mxu0 %v825
      %863 = vmatprep.subr.bf16.mxu0 0
      %864 = vmatpush1.bf16.msra.mxu0 %v826
      %865 = vmatprep.subr.bf16.mxu0 0
      %866 = vmatpush1.bf16.msra.mxu0 %v827
      %867 = vmatprep.subr.bf16.mxu0 0
      %868 = vmatpush1.bf16.msra.mxu0 %v828
      %869 = vmatprep.subr.bf16.mxu0 0
      %870 = vmatpush1.bf16.msra.mxu0 %v829
      %871 = vmatprep.subr.bf16.mxu0 0
      %872 = vmatpush1.bf16.msra.mxu0 %v830
      %873 = vmatprep.subr.bf16.mxu0 0
      %874 = vmatpush1.bf16.msra.mxu0 %v831
      %875 = vmatprep.subr.bf16.mxu0 0
      %876 = vmatpush1.bf16.msra.mxu0 %v832
      %877 = vmatprep.subr.bf16.mxu0 0
      %878 = vmatpush1.bf16.msra.mxu0 %v833
      %879 = vmatprep.subr.bf16.mxu0 0
      %880 = vmatpush1.bf16.msra.mxu0 %v834
      %881 = vmatprep.subr.bf16.mxu0 0
      %882 = vmatpush1.bf16.msra.mxu0 %v835
      %883 = vmatprep.subr.bf16.mxu0 0
      %884 = vmatpush1.bf16.msra.mxu0 %v836
      %885 = vmatprep.mubr.bf16.mxu0 %v618
      %886 = vmatmul.mubr.bf16.gmra.mrb[0].mxu0 %v611
      %v887 = vpop.f32.mrb[0].mxu0
      %v888 = vadd.f32 0.0, %v887
      %v889 = vpop.f32.mrb[0].mxu0
      %v890 = vpop.f32.mrb[0].mxu0
      %v891 = vpop.f32.mrb[0].mxu0
      %892 = vdwg.mxu0
      %v893 = vadd.f32 %v455, %v752
      %v895 = vrot.slane %v591, 1
      %v897 = vadd.f32 %v893, %v895
      %v899 = vrot.slane %v888, 1
      %v901 = vadd.f32 %v897, %v899
      %v902 = vadd.f32 %v901, %v296
      %v903 = vmax.f32 %v902, 0.0
      %v904 = vpack.c.bf16 %v903, %v903
      %vm905 = vcmask 516096
      %vm906 = vsmask.f32 256
      %vm907 = vmand %vm905, %vm906
      %v908 = vld [vmem:[%s163] sm:$0x1]
      %v909 = vsel %vm907, %v904, %v908
      %910 = vst [vmem:[%s163] sm:$0x1] %v909
      %p911 = scmp.lt.s32.totalorder %s14, 1
      %s912 = scalar_select %p911, %s14, 1
      %s913 = scalar_lea.vmem %s3, %s912
      // Predicated region
      $region33: #{conv_vae_forward.16} parent=31 // pred_check
        %p914 = pneg %p100
      $region34: #{conv_vae_forward.16} parent=31 // pred_check_branch
        %916 = sbr.rel (%p914) target = $region36
      $region35: #{conv_vae_forward.16} parent=31 // pred_region
        _
      $region36: #{conv_vae_forward.16} parent=31 // pred_fallthru
        _
    $region32: #{conv_vae_forward.16} parent=5 // pred_fallthru
      _
    %p917 = scmp.le.s32.totalorder 2, %s9
    // Predicated region
    $region37: #{conv_vae_forward.16} parent=5 // pred_check
      %p918 = pneg %p917
    $region38: #{conv_vae_forward.16} parent=5 // pred_check_branch
      %920 = sbr.rel (%p918) target = $region40
    $region39: #{conv_vae_forward.16} parent=5 // pred_region
      %s921 = ssub.s32 %s9, 2
      // Predicated region
      $region41: #{conv_vae_forward.16} parent=39 // pred_check
        %p922 = pneg %p106
      $region42: #{conv_vae_forward.16} parent=39 // pred_check_branch
        %924 = sbr.rel (%p922) target = $region44
      $region43: #{conv_vae_forward.16} parent=39 // pred_region
        %p925 = scmp.lt.s32.totalorder %s15, 1
        %s926 = scalar_select %p925, %s15, 1
        %s927 = scalar_lea.vmem %s3, %s926
      $region44: #{conv_vae_forward.16} parent=39 // pred_fallthru
        _
    $region40: #{conv_vae_forward.16} parent=5 // pred_fallthru
      _
  $region6: #{conv_vae_forward.16} parent=0 // loop_footer
    %s13 = sadd.s32 1, %s9
  $region7: #{conv_vae_forward.16} parent=0 // loop_footer_branch
    %8 = sbr.rel target = $region3
  $region8: #{conv_vae_forward.16} parent=0 // loop_exit
    _

// kernel: conv_vae_forward.19
$region0: #{conv_vae_forward.19}
  #allocation0 [shape = 'u32[]', space=smem, size = 0x4, offset = 0x4, fixed_abs, tag = 'smem constant byte address 0x4 - core index']
  #allocation1 [shape = 'u32[144,128]{1,0:T(1,128)}', space=vmem, size = 0x12000, scoped, tag = 'internal scratch']
  %s0 = inlined_call_operand.vmem [shape: bf16[2,3,3,64], index: 0, kind: input, shape index: {}]
  %s1 = inlined_call_operand.vmem [shape: bf16[2,2,64,256], index: 1, kind: input, shape index: {}]
  %s2 = inlined_call_operand.vmem [shape: f32[1,256], index: 2, kind: input, shape index: {}]
  %s3 = inlined_call_operand.vmem [shape: bf16[2,2,2,256], index: 3, kind: output, shape index: {}]
  %s4 = sld [smem:[#allocation0]]
  $region52: #{conv_vae_forward.19} parent=0
    _
  %s6 = ssub.s32 1, %s4
  %s7 = scalar_select 0, %s6, %s4
  loop: start=0, step=1, limit=4
  $region2: #{conv_vae_forward.19} parent=0 // loop_pre_header
    _
  $region3: #{conv_vae_forward.19} parent=0 // loop_header
    %s9 = sphi 0, %s13
    %p10 = scmp.ge.s32.totalorder %s9, 4
    %s19 = sphi 0, %s21
    %s22 = sphi 0, %s19
    %s23 = sphi 0, %s22
    %s39 = sphi 0, %s23
    %s43 = sphi 0, %s43
    %s45 = sphi 0, %s43
    %s46 = sphi 0, %s45
    %s60 = sphi 0, %s46
    %s64 = sphi 0, %s64
    %s66 = sphi 0, %s64
    %s67 = sphi 0, %s66
    %s81 = sphi 0, %s67
    %s87 = sphi 0, %s89
    %s90 = sphi 0, %s87
    %s91 = sphi 0, %s90
    %s107 = sphi 0, %s91
  $region4: #{conv_vae_forward.19} parent=0 // loop_header_branch
    %12 = sbr.rel (%p10) target = $region8
  $region5: #{conv_vae_forward.19} parent=0 // loop_body
    %s14 = ssub.s32 %s9, 1
    %s15 = ssub.s32 %s9, 2
    %s16 = sadd.s32 %s9, 1
    %s17 = ssub.s32 %s9, %s16
    %p18 = scmp.eq.s32.totalorder %s17, 0
    %s20 = sadd.s32 %s19, 1
    %s21 = scalar_select %p18, %s19, %s20
    %p24 = pneg %p18
    %p25 = scmp.eq.s32.totalorder %s9, 1
    %p26 = por %p24, %p25
    %p27 = scmp.ne.s32.totalorder %s19, %s22
    %p28 = scmp.eq.s32.totalorder %s9, 0
    %p29 = por %p27, %p28
    %p30 = scmp.ne.s32.totalorder %s19, %s22
    %p31 = scmp.eq.s32.totalorder %s14, 1
    %p32 = por %p30, %p31
    %p33 = scmp.ne.s32.totalorder %s22, %s23
    %p34 = scmp.eq.s32.totalorder %s14, 0
    %p35 = por %p33, %p34
    %p36 = scmp.ne.s32.totalorder %s22, %s23
    %p37 = scmp.eq.s32.totalorder %s15, 1
    %p38 = por %p36, %p37
    %p40 = scmp.ne.s32.totalorder %s23, %s39
    %p41 = scmp.eq.s32.totalorder %s15, 0
    %p42 = por %p40, %p41
    %s44 = sadd.s32 %s43, 1
    %p47 = scmp.eq.s32.totalorder %s9, 1
    %p48 = scmp.ne.s32.totalorder %s43, %s45
    %p49 = scmp.eq.s32.totalorder %s9, 0
    %p50 = por %p48, %p49
    %p51 = scmp.ne.s32.totalorder %s43, %s45
    %p52 = scmp.eq.s32.totalorder %s14, 1
    %p53 = por %p51, %p52
    %p54 = scmp.ne.s32.totalorder %s45, %s46
    %p55 = scmp.eq.s32.totalorder %s14, 0
    %p56 = por %p54, %p55
    %p57 = scmp.ne.s32.totalorder %s45, %s46
    %p58 = scmp.eq.s32.totalorder %s15, 1
    %p59 = por %p57, %p58
    %p61 = scmp.ne.s32.totalorder %s46, %s60
    %p62 = scmp.eq.s32.totalorder %s15, 0
    %p63 = por %p61, %p62
    %s65 = sadd.s32 %s64, 1
    %p68 = scmp.eq.s32.totalorder %s9, 1
    %p69 = scmp.ne.s32.totalorder %s64, %s66
    %p70 = scmp.eq.s32.totalorder %s9, 0
    %p71 = por %p69, %p70
    %p72 = scmp.ne.s32.totalorder %s64, %s66
    %p73 = scmp.eq.s32.totalorder %s14, 1
    %p74 = por %p72, %p73
    %p75 = scmp.ne.s32.totalorder %s66, %s67
    %p76 = scmp.eq.s32.totalorder %s14, 0
    %p77 = por %p75, %p76
    %p78 = scmp.ne.s32.totalorder %s66, %s67
    %p79 = scmp.eq.s32.totalorder %s15, 1
    %p80 = por %p78, %p79
    %p82 = scmp.ne.s32.totalorder %s67, %s81
    %p83 = scmp.eq.s32.totalorder %s15, 0
    %p84 = por %p82, %p83
    %s85 = ssub.s32 %s9, %s16
    %p86 = scmp.eq.s32.totalorder %s85, 0
    %s88 = sadd.s32 %s87, 1
    %s89 = scalar_select %p86, %s87, %s88
    %p92 = pneg %p86
    %p93 = scmp.eq.s32.totalorder %s9, 1
    %p94 = por %p92, %p93
    %p95 = scmp.ne.s32.totalorder %s87, %s90
    %p96 = scmp.eq.s32.totalorder %s9, 0
    %p97 = por %p95, %p96
    %p98 = scmp.ne.s32.totalorder %s87, %s90
    %p99 = scmp.eq.s32.totalorder %s14, 1
    %p100 = por %p98, %p99
    %p101 = scmp.ne.s32.totalorder %s90, %s91
    %p102 = scmp.eq.s32.totalorder %s14, 0
    %p103 = por %p101, %p102
    %p104 = scmp.ne.s32.totalorder %s90, %s91
    %p105 = scmp.eq.s32.totalorder %s15, 1
    %p106 = por %p104, %p105
    %p108 = scmp.ne.s32.totalorder %s91, %s107
    %p109 = scmp.eq.s32.totalorder %s15, 0
    %p110 = por %p108, %p109
    %p111 = scmp.le.s32.totalorder 1, %s9
    %p112 = scmp.lt.s32.totalorder %s9, 3
    %p113 = pnand %p111, %p112
    %p114 = pneg %p113
    // Predicated region
    $region9: #{conv_vae_forward.19} parent=5 // pred_check
      _
    $region10: #{conv_vae_forward.19} parent=5 // pred_check_branch
      %116 = sbr.rel (%p113) target = $region12
    $region11: #{conv_vae_forward.19} parent=5 // pred_region
      %s117 = ssub.s32 %s9, 1
      // Predicated region
      $region13: #{conv_vae_forward.19} parent=11 // pred_check
        %p118 = pneg %p56
      $region14: #{conv_vae_forward.19} parent=11 // pred_check_branch
        %120 = sbr.rel (%p118) target = $region16
      $region15: #{conv_vae_forward.19} parent=11 // pred_region
        _
      $region16: #{conv_vae_forward.19} parent=11 // pred_fallthru
        _
      // Predicated region
      $region17: #{conv_vae_forward.19} parent=11 // pred_check
        %p121 = pneg %p77
      $region18: #{conv_vae_forward.19} parent=11 // pred_check_branch
        %123 = sbr.rel (%p121) target = $region20
      $region19: #{conv_vae_forward.19} parent=11 // pred_region
        _
      $region20: #{conv_vae_forward.19} parent=11 // pred_fallthru
        _
    $region12: #{conv_vae_forward.19} parent=5 // pred_fallthru
      _
    %p124 = scmp.lt.s32.totalorder %s9, 2
    // Predicated region
    $region21: #{conv_vae_forward.19} parent=5 // pred_check
      %p125 = pneg %p124
    $region22: #{conv_vae_forward.19} parent=5 // pred_check_branch
      %127 = sbr.rel (%p125) target = $region24
    $region23: #{conv_vae_forward.19} parent=5 // pred_region
      // Predicated region
      $region25: #{conv_vae_forward.19} parent=23 // pred_check
        %p128 = pneg %p29
      $region26: #{conv_vae_forward.19} parent=23 // pred_check_branch
        %130 = sbr.rel (%p128) target = $region28
      $region27: #{conv_vae_forward.19} parent=23 // pred_region
        %p131 = scmp.lt.s32.totalorder %s9, 1
        %s132 = scalar_select %p131, %s9, 1
        %s133 = smul.addr %s132, 3
        %s134 = smul.addr %s133, 2
        %s135 = scalar_lea.vmem %s0, %s134
      $region28: #{conv_vae_forward.19} parent=23 // pred_fallthru
        _
    $region24: #{conv_vae_forward.19} parent=5 // pred_fallthru
      _
    %p136 = scmp.le.s32.totalorder 1, %s9
    %p137 = scmp.lt.s32.totalorder %s9, 3
    %p138 = pnand %p136, %p137
    %p139 = pneg %p138
    // Predicated region
    $region29: #{conv_vae_forward.19} parent=5 // pred_check
      _
    $region30: #{conv_vae_forward.19} parent=5 // pred_check_branch
      %141 = sbr.rel (%p138) target = $region32
    $region31: #{conv_vae_forward.19} parent=5 // pred_region
      %s142 = ssub.s32 %s9, 1
      %p143 = scmp.lt.s32.totalorder %s14, 1
      %s144 = scalar_select %p143, %s14, 1
      %s145 = smul.addr %s144, 3
      %s146 = smul.addr %s145, 2
      %s147 = scalar_lea.vmem %s0, %s146
      %p148 = pneg %p35
      %p149 = pneg %p32
      %p150 = pneg %p56
      %p151 = pneg %p53
      %p152 = pneg %p77
      %p153 = pneg %p74
      %p154 = pneg %p103
      %p155 = pneg %p100
      %p156 = scmp.lt.s32.totalorder %s14, 1
      %s157 = scalar_select %p156, %s14, 1
      %s158 = smul.addr %s157, 4
      %s159 = scalar_lea.vmem %s3, %s158
      %p160 = scmp.lt.s32.totalorder %s14, 1
      %s161 = scalar_select %p160, %s14, 1
      %s162 = smul.addr %s161, 3
      %s163 = smul.addr %s162, 2
      %s164 = scalar_lea.vmem %s0, %s163
      %p165 = scmp.lt.s32.totalorder %s14, 1
      %s166 = scalar_select %p165, %s14, 1
      %s167 = smul.addr %s166, 4
      %s168 = scalar_lea.vmem %s3, %s167
      %v170 = vld [vmem:[%s1] sm:$0xff]
      %v171 = vld [vmem:[%s1 + $0x8] sm:$0xff]
      %v172 = vld [vmem:[%s1 + $0x10] sm:$0xff]
      %v173 = vld [vmem:[%s1 + $0x18] sm:$0xff]
      %v174 = vld [vmem:[%s1 + $0x20] sm:$0xff]
      %v175 = vld [vmem:[%s1 + $0x28] sm:$0xff]
      %v176 = vld [vmem:[%s1 + $0x30] sm:$0xff]
      %v177 = vld [vmem:[%s1 + $0x38] sm:$0xff]
      %s178 = scalar_lea.vmem %s1, 64
      %v179 = vld [vmem:[%s178] sm:$0xff]
      %v180 = vld [vmem:[%s178 + $0x8] sm:$0xff]
      %v181 = vld [vmem:[%s178 + $0x10] sm:$0xff]
      %v182 = vld [vmem:[%s178 + $0x18] sm:$0xff]
      %v183 = vld [vmem:[%s178 + $0x20] sm:$0xff]
      %v184 = vld [vmem:[%s178 + $0x28] sm:$0xff]
      %v185 = vld [vmem:[%s178 + $0x30] sm:$0xff]
      %v186 = vld [vmem:[%s178 + $0x38] sm:$0xff]
      %s187 = scalar_lea.vmem %s1, 128
      %v188 = vld [vmem:[%s187] sm:$0xff]
      %v189 = vld [vmem:[%s187 + $0x8] sm:$0xff]
      %v190 = vld [vmem:[%s187 + $0x10] sm:$0xff]
      %v191 = vld [vmem:[%s187 + $0x18] sm:$0xff]
      %v192 = vld [vmem:[%s187 + $0x20] sm:$0xff]
      %v193 = vld [vmem:[%s187 + $0x28] sm:$0xff]
      %v194 = vld [vmem:[%s187 + $0x30] sm:$0xff]
      %v195 = vld [vmem:[%s187 + $0x38] sm:$0xff]
      %s196 = scalar_lea.vmem %s1, 192
      %v197 = vld [vmem:[%s196] sm:$0xff]
      %v198 = vld [vmem:[%s196 + $0x8] sm:$0xff]
      %v199 = vld [vmem:[%s196 + $0x10] sm:$0xff]
      %v200 = vld [vmem:[%s196 + $0x18] sm:$0xff]
      %v201 = vld [vmem:[%s196 + $0x20] sm:$0xff]
      %v202 = vld [vmem:[%s196 + $0x28] sm:$0xff]
      %v203 = vld [vmem:[%s196 + $0x30] sm:$0xff]
      %v204 = vld [vmem:[%s196 + $0x38] sm:$0xff]
      %v205 = vld [vmem:[%s2] sm:$0x3]
      loop: start=0, step=1, limit=2
      $region33: #{conv_vae_forward.19} parent=31 // loop_pre_header
        _
      $region34: #{conv_vae_forward.19} parent=31 // loop_header
        %s207 = sphi 0, %s211
        %p208 = scmp.ge.s32.totalorder %s207, 2
      $region35: #{conv_vae_forward.19} parent=31 // loop_header_branch
        %210 = sbr.rel (%p208) target = $region39
      $region36: #{conv_vae_forward.19} parent=31 // loop_body
        %s212 = smul.addr %s207, 2
        %s213 = scalar_lea.vmem %s164, %s212
        %v214 = vld [vmem:[%s213] sm:$0x3]
        %v215 = vld [vmem:[%s213 + $0x2] sm:$0x3]
        %v224 = vunpack.c.l.b16 %v170
        %v225 = vunpack.c.h.b16 %v170
        %v226 = vunpack.c.l.b16 %v171
        %v227 = vunpack.c.h.b16 %v171
        %v228 = vunpack.c.l.b16 %v172
        %v229 = vunpack.c.h.b16 %v172
        %v230 = vunpack.c.l.b16 %v173
        %v231 = vunpack.c.h.b16 %v173
        %v232 = vunpack.c.l.b16 %v174
        %v233 = vunpack.c.h.b16 %v174
        %v234 = vunpack.c.l.b16 %v175
        %v235 = vunpack.c.h.b16 %v175
        %v236 = vunpack.c.l.b16 %v176
        %v237 = vunpack.c.h.b16 %v176
        %v238 = vunpack.c.l.b16 %v177
        %v239 = vunpack.c.h.b16 %v177
        %v240 = vpack.c.b16 %v226, %v224
        %v241 = vpack.c.b16 %v227, %v225
        %v242 = vpack.c.b16 %v230, %v228
        %v243 = vpack.c.b16 %v231, %v229
        %v244 = vpack.c.b16 %v234, %v232
        %v245 = vpack.c.b16 %v235, %v233
        %v246 = vpack.c.b16 %v238, %v236
        %v247 = vpack.c.b16 %v239, %v237
        %vm256 = vcmask 523264
        %v258 = vsel %vm256, %v214, 0
        %260 = vmatprep.subr.bf16.mxu0 %v241
        %261 = vmatpush1.bf16.msra.mxu0 %v240
        %262 = vmatprep.subr.bf16.mxu0 %v243
        %263 = vmatpush1.bf16.msra.mxu0 %v242
        %264 = vmatprep.subr.bf16.mxu0 %v245
        %265 = vmatpush1.bf16.msra.mxu0 %v244
        %266 = vmatprep.subr.bf16.mxu0 %v247
        %267 = vmatpush1.bf16.msra.mxu0 %v246
        %268 = vmatprep.subr.bf16.mxu0 0
        %269 = vmatpush1.bf16.msra.mxu0 0
        %270 = vmatprep.subr.bf16.mxu0 0
        %271 = vmatpush1.bf16.msra.mxu0 0
        %272 = vmatprep.subr.bf16.mxu0 0
        %273 = vmatpush1.bf16.msra.mxu0 0
        %274 = vmatprep.subr.bf16.mxu0 0
        %275 = vmatpush1.bf16.msra.mxu0 0
        %276 = vmatprep.subr.bf16.mxu0 0
        %277 = vmatpush1.bf16.msra.mxu0 0
        %278 = vmatprep.subr.bf16.mxu0 0
        %279 = vmatpush1.bf16.msra.mxu0 0
        %280 = vmatprep.subr.bf16.mxu0 0
        %281 = vmatpush1.bf16.msra.mxu0 0
        %282 = vmatprep.subr.bf16.mxu0 0
        %283 = vmatpush1.bf16.msra.mxu0 0
        %284 = vmatprep.subr.bf16.mxu0 0
        %285 = vmatpush1.bf16.msra.mxu0 0
        %286 = vmatprep.subr.bf16.mxu0 0
        %287 = vmatpush1.bf16.msra.mxu0 0
        %288 = vmatprep.subr.bf16.mxu0 0
        %289 = vmatpush1.bf16.msra.mxu0 0
        %290 = vmatprep.subr.bf16.mxu0 0
        %291 = vmatpush1.bf16.msra.mxu0 0
        %292 = vmatprep.mubr.bf16.mxu0 0
        %293 = vmatmul.mubr.bf16.gmra.mrb[0].mxu0 %v258
        %v294 = vpop.f32.mrb[0].mxu0
        %v295 = vadd.f32 0.0, %v294
        %v296 = vpop.f32.mrb[0].mxu0
        %v297 = vadd.f32 0.0, %v296
        %v298 = vpop.f32.mrb[0].mxu0
        %v299 = vpop.f32.mrb[0].mxu0
        %300 = vdwg.mxu0
        %v309 = vunpack.c.l.b16 %v179
        %v310 = vunpack.c.h.b16 %v179
        %v311 = vunpack.c.l.b16 %v180
        %v312 = vunpack.c.h.b16 %v180
        %v313 = vunpack.c.l.b16 %v181
        %v314 = vunpack.c.h.b16 %v181
        %v315 = vunpack.c.l.b16 %v182
        %v316 = vunpack.c.h.b16 %v182
        %v317 = vunpack.c.l.b16 %v183
        %v318 = vunpack.c.h.b16 %v183
        %v319 = vunpack.c.l.b16 %v184
        %v320 = vunpack.c.h.b16 %v184
        %v321 = vunpack.c.l.b16 %v185
        %v322 = vunpack.c.h.b16 %v185
        %v323 = vunpack.c.l.b16 %v186
        %v324 = vunpack.c.h.b16 %v186
        %v325 = vpack.c.b16 %v311, %v309
        %v326 = vpack.c.b16 %v312, %v310
        %v327 = vpack.c.b16 %v315, %v313
        %v328 = vpack.c.b16 %v316, %v314
        %v329 = vpack.c.b16 %v319, %v317
        %v330 = vpack.c.b16 %v320, %v318
        %v331 = vpack.c.b16 %v323, %v321
        %v332 = vpack.c.b16 %v324, %v322
        %341 = vmatprep.subr.bf16.mxu0 %v326
        %342 = vmatpush1.bf16.msra.mxu0 %v325
        %343 = vmatprep.subr.bf16.mxu0 %v328
        %344 = vmatpush1.bf16.msra.mxu0 %v327
        %345 = vmatprep.subr.bf16.mxu0 %v330
        %346 = vmatpush1.bf16.msra.mxu0 %v329
        %347 = vmatprep.subr.bf16.mxu0 %v332
        %348 = vmatpush1.bf16.msra.mxu0 %v331
        %349 = vmatprep.subr.bf16.mxu0 0
        %350 = vmatpush1.bf16.msra.mxu0 0
        %351 = vmatprep.subr.bf16.mxu0 0
        %352 = vmatpush1.bf16.msra.mxu0 0
        %353 = vmatprep.subr.bf16.mxu0 0
        %354 = vmatpush1.bf16.msra.mxu0 0
        %355 = vmatprep.subr.bf16.mxu0 0
        %356 = vmatpush1.bf16.msra.mxu0 0
        %357 = vmatprep.subr.bf16.mxu0 0
        %358 = vmatpush1.bf16.msra.mxu0 0
        %359 = vmatprep.subr.bf16.mxu0 0
        %360 = vmatpush1.bf16.msra.mxu0 0
        %361 = vmatprep.subr.bf16.mxu0 0
        %362 = vmatpush1.bf16.msra.mxu0 0
        %363 = vmatprep.subr.bf16.mxu0 0
        %364 = vmatpush1.bf16.msra.mxu0 0
        %365 = vmatprep.subr.bf16.mxu0 0
        %366 = vmatpush1.bf16.msra.mxu0 0
        %367 = vmatprep.subr.bf16.mxu0 0
        %368 = vmatpush1.bf16.msra.mxu0 0
        %369 = vmatprep.subr.bf16.mxu0 0
        %370 = vmatpush1.bf16.msra.mxu0 0
        %371 = vmatprep.subr.bf16.mxu0 0
        %372 = vmatpush1.bf16.msra.mxu0 0
        %373 = vmatprep.mubr.bf16.mxu0 0
        %374 = vmatmul.mubr.bf16.gmra.mrb[0].mxu0 %v258
        %v375 = vpop.f32.mrb[0].mxu0
        %v376 = vadd.f32 0.0, %v375
        %v377 = vpop.f32.mrb[0].mxu0
        %v378 = vadd.f32 0.0, %v377
        %v379 = vpop.f32.mrb[0].mxu0
        %v380 = vpop.f32.mrb[0].mxu0
        %381 = vdwg.mxu0
        %v390 = vunpack.c.l.b16 %v188
        %v391 = vunpack.c.h.b16 %v188
        %v392 = vunpack.c.l.b16 %v189
        %v393 = vunpack.c.h.b16 %v189
        %v394 = vunpack.c.l.b16 %v190
        %v395 = vunpack.c.h.b16 %v190
        %v396 = vunpack.c.l.b16 %v191
        %v397 = vunpack.c.h.b16 %v191
        %v398 = vunpack.c.l.b16 %v192
        %v399 = vunpack.c.h.b16 %v192
        %v400 = vunpack.c.l.b16 %v193
        %v401 = vunpack.c.h.b16 %v193
        %v402 = vunpack.c.l.b16 %v194
        %v403 = vunpack.c.h.b16 %v194
        %v404 = vunpack.c.l.b16 %v195
        %v405 = vunpack.c.h.b16 %v195
        %v406 = vpack.c.b16 %v392, %v390
        %v407 = vpack.c.b16 %v393, %v391
        %v408 = vpack.c.b16 %v396, %v394
        %v409 = vpack.c.b16 %v397, %v395
        %v410 = vpack.c.b16 %v400, %v398
        %v411 = vpack.c.b16 %v401, %v399
        %v412 = vpack.c.b16 %v404, %v402
        %v413 = vpack.c.b16 %v405, %v403
        %v423 = vsel %vm256, %v215, 0
        %425 = vmatprep.subr.bf16.mxu0 %v407
        %426 = vmatpush1.bf16.msra.mxu0 %v406
        %427 = vmatprep.subr.bf16.mxu0 %v409
        %428 = vmatpush1.bf16.msra.mxu0 %v408
        %429 = vmatprep.subr.bf16.mxu0 %v411
        %430 = vmatpush1.bf16.msra.mxu0 %v410
        %431 = vmatprep.subr.bf16.mxu0 %v413
        %432 = vmatpush1.bf16.msra.mxu0 %v412
        %433 = vmatprep.subr.bf16.mxu0 0
        %434 = vmatpush1.bf16.msra.mxu0 0
        %435 = vmatprep.subr.bf16.mxu0 0
        %436 = vmatpush1.bf16.msra.mxu0 0
        %437 = vmatprep.subr.bf16.mxu0 0
        %438 = vmatpush1.bf16.msra.mxu0 0
        %439 = vmatprep.subr.bf16.mxu0 0
        %440 = vmatpush1.bf16.msra.mxu0 0
        %441 = vmatprep.subr.bf16.mxu0 0
        %442 = vmatpush1.bf16.msra.mxu0 0
        %443 = vmatprep.subr.bf16.mxu0 0
        %444 = vmatpush1.bf16.msra.mxu0 0
        %445 = vmatprep.subr.bf16.mxu0 0
        %446 = vmatpush1.bf16.msra.mxu0 0
        %447 = vmatprep.subr.bf16.mxu0 0
        %448 = vmatpush1.bf16.msra.mxu0 0
        %449 = vmatprep.subr.bf16.mxu0 0
        %450 = vmatpush1.bf16.msra.mxu0 0
        %451 = vmatprep.subr.bf16.mxu0 0
        %452 = vmatpush1.bf16.msra.mxu0 0
        %453 = vmatprep.subr.bf16.mxu0 0
        %454 = vmatpush1.bf16.msra.mxu0 0
        %455 = vmatprep.subr.bf16.mxu0 0
        %456 = vmatpush1.bf16.msra.mxu0 0
        %457 = vmatprep.mubr.bf16.mxu0 0
        %458 = vmatmul.mubr.bf16.gmra.mrb[0].mxu0 %v423
        %v459 = vpop.f32.mrb[0].mxu0
        %v460 = vadd.f32 0.0, %v459
        %v461 = vpop.f32.mrb[0].mxu0
        %v462 = vadd.f32 0.0, %v461
        %v463 = vpop.f32.mrb[0].mxu0
        %v464 = vpop.f32.mrb[0].mxu0
        %465 = vdwg.mxu0
        %v474 = vunpack.c.l.b16 %v197
        %v475 = vunpack.c.h.b16 %v197
        %v476 = vunpack.c.l.b16 %v198
        %v477 = vunpack.c.h.b16 %v198
        %v478 = vunpack.c.l.b16 %v199
        %v479 = vunpack.c.h.b16 %v199
        %v480 = vunpack.c.l.b16 %v200
        %v481 = vunpack.c.h.b16 %v200
        %v482 = vunpack.c.l.b16 %v201
        %v483 = vunpack.c.h.b16 %v201
        %v484 = vunpack.c.l.b16 %v202
        %v485 = vunpack.c.h.b16 %v202
        %v486 = vunpack.c.l.b16 %v203
        %v487 = vunpack.c.h.b16 %v203
        %v488 = vunpack.c.l.b16 %v204
        %v489 = vunpack.c.h.b16 %v204
        %v490 = vpack.c.b16 %v476, %v474
        %v491 = vpack.c.b16 %v477, %v475
        %v492 = vpack.c.b16 %v480, %v478
        %v493 = vpack.c.b16 %v481, %v479
        %v494 = vpack.c.b16 %v484, %v482
        %v495 = vpack.c.b16 %v485, %v483
        %v496 = vpack.c.b16 %v488, %v486
        %v497 = vpack.c.b16 %v489, %v487
        %506 = vmatprep.subr.bf16.mxu0 %v491
        %507 = vmatpush1.bf16.msra.mxu0 %v490
        %508 = vmatprep.subr.bf16.mxu0 %v493
        %509 = vmatpush1.bf16.msra.mxu0 %v492
        %510 = vmatprep.subr.bf16.mxu0 %v495
        %511 = vmatpush1.bf16.msra.mxu0 %v494
        %512 = vmatprep.subr.bf16.mxu0 %v497
        %513 = vmatpush1.bf16.msra.mxu0 %v496
        %514 = vmatprep.subr.bf16.mxu0 0
        %515 = vmatpush1.bf16.msra.mxu0 0
        %516 = vmatprep.subr.bf16.mxu0 0
        %517 = vmatpush1.bf16.msra.mxu0 0
        %518 = vmatprep.subr.bf16.mxu0 0
        %519 = vmatpush1.bf16.msra.mxu0 0
        %520 = vmatprep.subr.bf16.mxu0 0
        %521 = vmatpush1.bf16.msra.mxu0 0
        %522 = vmatprep.subr.bf16.mxu0 0
        %523 = vmatpush1.bf16.msra.mxu0 0
        %524 = vmatprep.subr.bf16.mxu0 0
        %525 = vmatpush1.bf16.msra.mxu0 0
        %526 = vmatprep.subr.bf16.mxu0 0
        %527 = vmatpush1.bf16.msra.mxu0 0
        %528 = vmatprep.subr.bf16.mxu0 0
        %529 = vmatpush1.bf16.msra.mxu0 0
        %530 = vmatprep.subr.bf16.mxu0 0
        %531 = vmatpush1.bf16.msra.mxu0 0
        %532 = vmatprep.subr.bf16.mxu0 0
        %533 = vmatpush1.bf16.msra.mxu0 0
        %534 = vmatprep.subr.bf16.mxu0 0
        %535 = vmatpush1.bf16.msra.mxu0 0
        %536 = vmatprep.subr.bf16.mxu0 0
        %537 = vmatpush1.bf16.msra.mxu0 0
        %538 = vmatprep.mubr.bf16.mxu0 0
        %539 = vmatmul.mubr.bf16.gmra.mrb[0].mxu0 %v423
        %v540 = vpop.f32.mrb[0].mxu0
        %v541 = vadd.f32 0.0, %v540
        %v542 = vpop.f32.mrb[0].mxu0
        %v543 = vadd.f32 0.0, %v542
        %v544 = vpop.f32.mrb[0].mxu0
        %v545 = vpop.f32.mrb[0].mxu0
        %546 = vdwg.mxu0
        %v547 = vadd.f32 %v295, %v460
        %v548 = vadd.f32 %v297, %v462
        %v551 = vrot.slane %v376, 1
        %v552 = vrot.slane %v378, 1
        %v555 = vadd.f32 %v547, %v551
        %v556 = vadd.f32 %v548, %v552
        %v559 = vrot.slane %v541, 1
        %v560 = vrot.slane %v543, 1
        %v563 = vadd.f32 %v555, %v559
        %v564 = vadd.f32 %v556, %v560
        %v566 = vlaneseq
        %v567 = vshrl.u32 %v566, 7
        %v568 = vsub.s32 0, %v567
        %v569 = vrot.slane %v205, %v568
        %v570 = vlaneseq
        %v571 = vshrl.u32 %v570, 7
        %v572 = vsub.s32 1, %v571
        %v573 = vrot.slane %v205, %v572
        %v576 = vadd.f32 %v563, %v569
        %v577 = vadd.f32 %v564, %v573
        %v578 = vmax.f32 %v576, 0.0
        %v579 = vmax.f32 %v577, 0.0
        %v580 = vpack.c.bf16 %v578, %v578
        %v581 = vpack.c.bf16 %v579, %v579
        %v584 = vcombine.low %v580, %v581
        %v586 = vunpack.c.l.s4 1966171168
        %v587 = vunpack.c.0.s8 %v586
        %v588 = vlaneseq
        %v589 = vshrl.u32 %v588, 7
        %v590 = vsub.s32 %v587, %v589
        %v591 = vrot.slane %v584, %v590
        %v593 = vunpack.c.l.s4 1966171168
        %v594 = vunpack.c.0.s8 %v593
        %v595 = vlaneseq
        %v596 = vshrl.u32 %v595, 7
        %v597 = vsub.s32 %v594, %v596
        %v598 = vrot.slane %v591, %v597
        %s600 = smul.u32 %s207, 2
        %s601 = scalar_lea.vmem %s168, %s600
        %602 = vst [vmem:[%s601] sm:$0x3] %v598
      $region37: #{conv_vae_forward.19} parent=31 // loop_footer
        %s211 = sadd.s32 1, %s207
      $region38: #{conv_vae_forward.19} parent=31 // loop_footer_branch
        %206 = sbr.rel target = $region34
      $region39: #{conv_vae_forward.19} parent=31 // loop_exit
        _
      %p603 = scmp.lt.s32.totalorder %s14, 1
      %s604 = scalar_select %p603, %s14, 1
      %s605 = smul.addr %s604, 4
      %s606 = scalar_lea.vmem %s3, %s605
      // Predicated region
      $region40: #{conv_vae_forward.19} parent=31 // pred_check
        %p607 = pneg %p100
      $region41: #{conv_vae_forward.19} parent=31 // pred_check_branch
        %609 = sbr.rel (%p607) target = $region43
      $region42: #{conv_vae_forward.19} parent=31 // pred_region
        _
      $region43: #{conv_vae_forward.19} parent=31 // pred_fallthru
        _
    $region32: #{conv_vae_forward.19} parent=5 // pred_fallthru
      _
    %p610 = scmp.le.s32.totalorder 2, %s9
    // Predicated region
    $region44: #{conv_vae_forward.19} parent=5 // pred_check
      %p611 = pneg %p610
    $region45: #{conv_vae_forward.19} parent=5 // pred_check_branch
      %613 = sbr.rel (%p611) target = $region47
    $region46: #{conv_vae_forward.19} parent=5 // pred_region
      %s614 = ssub.s32 %s9, 2
      // Predicated region
      $region48: #{conv_vae_forward.19} parent=46 // pred_check
        %p615 = pneg %p106
      $region49: #{conv_vae_forward.19} parent=46 // pred_check_branch
        %617 = sbr.rel (%p615) target = $region51
      $region50: #{conv_vae_forward.19} parent=46 // pred_region
        %p618 = scmp.lt.s32.totalorder %s15, 1
        %s619 = scalar_select %p618, %s15, 1
        %s620 = smul.addr %s619, 4
        %s621 = scalar_lea.vmem %s3, %s620
      $region51: #{conv_vae_forward.19} parent=46 // pred_fallthru
        _
    $region47: #{conv_vae_forward.19} parent=5 // pred_fallthru
      _
  $region6: #{conv_vae_forward.19} parent=0 // loop_footer
    %s13 = sadd.s32 1, %s9
  $region7: #{conv_vae_forward.19} parent=0 // loop_footer_branch
    %8 = sbr.rel target = $region3
  $region8: #{conv_vae_forward.19} parent=0 // loop_exit
    _

// kernel: conv_vae_forward.20
$region0: #{conv_vae_forward.20}
  #allocation0 [shape = 'u32[]', space=smem, size = 0x4, offset = 0x4, fixed_abs, tag = 'smem constant byte address 0x4 - core index']
  #allocation1 [shape = 'u32[144,128]{1,0:T(1,128)}', space=vmem, size = 0x12000, scoped, tag = 'internal scratch']
  %s0 = inlined_call_operand.vmem [shape: bf16[2,4,4,128], index: 0, kind: input, shape index: {}]
  %s1 = inlined_call_operand.vmem [shape: bf16[2,2,128,128], index: 1, kind: input, shape index: {}]
  %s2 = inlined_call_operand.vmem [shape: f32[1,128], index: 2, kind: input, shape index: {}]
  %s3 = inlined_call_operand.vmem [shape: bf16[2,3,3,128], index: 3, kind: output, shape index: {}]
  %s4 = sld [smem:[#allocation0]]
  $region52: #{conv_vae_forward.20} parent=0
    _
  %s6 = ssub.s32 1, %s4
  %s7 = scalar_select 0, %s6, %s4
  loop: start=0, step=1, limit=4
  $region2: #{conv_vae_forward.20} parent=0 // loop_pre_header
    _
  $region3: #{conv_vae_forward.20} parent=0 // loop_header
    %s9 = sphi 0, %s13
    %p10 = scmp.ge.s32.totalorder %s9, 4
    %s19 = sphi 0, %s21
    %s22 = sphi 0, %s19
    %s23 = sphi 0, %s22
    %s39 = sphi 0, %s23
    %s43 = sphi 0, %s43
    %s45 = sphi 0, %s43
    %s46 = sphi 0, %s45
    %s60 = sphi 0, %s46
    %s64 = sphi 0, %s64
    %s66 = sphi 0, %s64
    %s67 = sphi 0, %s66
    %s81 = sphi 0, %s67
    %s87 = sphi 0, %s89
    %s90 = sphi 0, %s87
    %s91 = sphi 0, %s90
    %s107 = sphi 0, %s91
  $region4: #{conv_vae_forward.20} parent=0 // loop_header_branch
    %12 = sbr.rel (%p10) target = $region8
  $region5: #{conv_vae_forward.20} parent=0 // loop_body
    %s14 = ssub.s32 %s9, 1
    %s15 = ssub.s32 %s9, 2
    %s16 = sadd.s32 %s9, 1
    %s17 = ssub.s32 %s9, %s16
    %p18 = scmp.eq.s32.totalorder %s17, 0
    %s20 = sadd.s32 %s19, 1
    %s21 = scalar_select %p18, %s19, %s20
    %p24 = pneg %p18
    %p25 = scmp.eq.s32.totalorder %s9, 1
    %p26 = por %p24, %p25
    %p27 = scmp.ne.s32.totalorder %s19, %s22
    %p28 = scmp.eq.s32.totalorder %s9, 0
    %p29 = por %p27, %p28
    %p30 = scmp.ne.s32.totalorder %s19, %s22
    %p31 = scmp.eq.s32.totalorder %s14, 1
    %p32 = por %p30, %p31
    %p33 = scmp.ne.s32.totalorder %s22, %s23
    %p34 = scmp.eq.s32.totalorder %s14, 0
    %p35 = por %p33, %p34
    %p36 = scmp.ne.s32.totalorder %s22, %s23
    %p37 = scmp.eq.s32.totalorder %s15, 1
    %p38 = por %p36, %p37
    %p40 = scmp.ne.s32.totalorder %s23, %s39
    %p41 = scmp.eq.s32.totalorder %s15, 0
    %p42 = por %p40, %p41
    %s44 = sadd.s32 %s43, 1
    %p47 = scmp.eq.s32.totalorder %s9, 1
    %p48 = scmp.ne.s32.totalorder %s43, %s45
    %p49 = scmp.eq.s32.totalorder %s9, 0
    %p50 = por %p48, %p49
    %p51 = scmp.ne.s32.totalorder %s43, %s45
    %p52 = scmp.eq.s32.totalorder %s14, 1
    %p53 = por %p51, %p52
    %p54 = scmp.ne.s32.totalorder %s45, %s46
    %p55 = scmp.eq.s32.totalorder %s14, 0
    %p56 = por %p54, %p55
    %p57 = scmp.ne.s32.totalorder %s45, %s46
    %p58 = scmp.eq.s32.totalorder %s15, 1
    %p59 = por %p57, %p58
    %p61 = scmp.ne.s32.totalorder %s46, %s60
    %p62 = scmp.eq.s32.totalorder %s15, 0
    %p63 = por %p61, %p62
    %s65 = sadd.s32 %s64, 1
    %p68 = scmp.eq.s32.totalorder %s9, 1
    %p69 = scmp.ne.s32.totalorder %s64, %s66
    %p70 = scmp.eq.s32.totalorder %s9, 0
    %p71 = por %p69, %p70
    %p72 = scmp.ne.s32.totalorder %s64, %s66
    %p73 = scmp.eq.s32.totalorder %s14, 1
    %p74 = por %p72, %p73
    %p75 = scmp.ne.s32.totalorder %s66, %s67
    %p76 = scmp.eq.s32.totalorder %s14, 0
    %p77 = por %p75, %p76
    %p78 = scmp.ne.s32.totalorder %s66, %s67
    %p79 = scmp.eq.s32.totalorder %s15, 1
    %p80 = por %p78, %p79
    %p82 = scmp.ne.s32.totalorder %s67, %s81
    %p83 = scmp.eq.s32.totalorder %s15, 0
    %p84 = por %p82, %p83
    %s85 = ssub.s32 %s9, %s16
    %p86 = scmp.eq.s32.totalorder %s85, 0
    %s88 = sadd.s32 %s87, 1
    %s89 = scalar_select %p86, %s87, %s88
    %p92 = pneg %p86
    %p93 = scmp.eq.s32.totalorder %s9, 1
    %p94 = por %p92, %p93
    %p95 = scmp.ne.s32.totalorder %s87, %s90
    %p96 = scmp.eq.s32.totalorder %s9, 0
    %p97 = por %p95, %p96
    %p98 = scmp.ne.s32.totalorder %s87, %s90
    %p99 = scmp.eq.s32.totalorder %s14, 1
    %p100 = por %p98, %p99
    %p101 = scmp.ne.s32.totalorder %s90, %s91
    %p102 = scmp.eq.s32.totalorder %s14, 0
    %p103 = por %p101, %p102
    %p104 = scmp.ne.s32.totalorder %s90, %s91
    %p105 = scmp.eq.s32.totalorder %s15, 1
    %p106 = por %p104, %p105
    %p108 = scmp.ne.s32.totalorder %s91, %s107
    %p109 = scmp.eq.s32.totalorder %s15, 0
    %p110 = por %p108, %p109
    %p111 = scmp.le.s32.totalorder 1, %s9
    %p112 = scmp.lt.s32.totalorder %s9, 3
    %p113 = pnand %p111, %p112
    %p114 = pneg %p113
    // Predicated region
    $region9: #{conv_vae_forward.20} parent=5 // pred_check
      _
    $region10: #{conv_vae_forward.20} parent=5 // pred_check_branch
      %116 = sbr.rel (%p113) target = $region12
    $region11: #{conv_vae_forward.20} parent=5 // pred_region
      %s117 = ssub.s32 %s9, 1
      // Predicated region
      $region13: #{conv_vae_forward.20} parent=11 // pred_check
        %p118 = pneg %p56
      $region14: #{conv_vae_forward.20} parent=11 // pred_check_branch
        %120 = sbr.rel (%p118) target = $region16
      $region15: #{conv_vae_forward.20} parent=11 // pred_region
        _
      $region16: #{conv_vae_forward.20} parent=11 // pred_fallthru
        _
      // Predicated region
      $region17: #{conv_vae_forward.20} parent=11 // pred_check
        %p121 = pneg %p77
      $region18: #{conv_vae_forward.20} parent=11 // pred_check_branch
        %123 = sbr.rel (%p121) target = $region20
      $region19: #{conv_vae_forward.20} parent=11 // pred_region
        _
      $region20: #{conv_vae_forward.20} parent=11 // pred_fallthru
        _
    $region12: #{conv_vae_forward.20} parent=5 // pred_fallthru
      _
    %p124 = scmp.lt.s32.totalorder %s9, 2
    // Predicated region
    $region21: #{conv_vae_forward.20} parent=5 // pred_check
      %p125 = pneg %p124
    $region22: #{conv_vae_forward.20} parent=5 // pred_check_branch
      %127 = sbr.rel (%p125) target = $region24
    $region23: #{conv_vae_forward.20} parent=5 // pred_region
      // Predicated region
      $region25: #{conv_vae_forward.20} parent=23 // pred_check
        %p128 = pneg %p29
      $region26: #{conv_vae_forward.20} parent=23 // pred_check_branch
        %130 = sbr.rel (%p128) target = $region28
      $region27: #{conv_vae_forward.20} parent=23 // pred_region
        %p131 = scmp.lt.s32.totalorder %s9, 1
        %s132 = scalar_select %p131, %s9, 1
        %s133 = smul.addr %s132, 4
        %s134 = smul.addr %s133, 2
        %s135 = scalar_lea.vmem %s0, %s134
      $region28: #{conv_vae_forward.20} parent=23 // pred_fallthru
        _
    $region24: #{conv_vae_forward.20} parent=5 // pred_fallthru
      _
    %p136 = scmp.le.s32.totalorder 1, %s9
    %p137 = scmp.lt.s32.totalorder %s9, 3
    %p138 = pnand %p136, %p137
    %p139 = pneg %p138
    // Predicated region
    $region29: #{conv_vae_forward.20} parent=5 // pred_check
      _
    $region30: #{conv_vae_forward.20} parent=5 // pred_check_branch
      %141 = sbr.rel (%p138) target = $region32
    $region31: #{conv_vae_forward.20} parent=5 // pred_region
      %s142 = ssub.s32 %s9, 1
      %p143 = scmp.lt.s32.totalorder %s14, 1
      %s144 = scalar_select %p143, %s14, 1
      %s145 = smul.addr %s144, 4
      %s146 = smul.addr %s145, 2
      %s147 = scalar_lea.vmem %s0, %s146
      %p148 = pneg %p35
      %p149 = pneg %p32
      %p150 = pneg %p56
      %p151 = pneg %p53
      %p152 = pneg %p77
      %p153 = pneg %p74
      %p154 = pneg %p103
      %p155 = pneg %p100
      %p156 = scmp.lt.s32.totalorder %s14, 1
      %s157 = scalar_select %p156, %s14, 1
      %s158 = smul.addr %s157, 3
      %s159 = smul.addr %s158, 2
      %s160 = scalar_lea.vmem %s3, %s159
      %p161 = scmp.lt.s32.totalorder %s14, 1
      %s162 = scalar_select %p161, %s14, 1
      %s163 = smul.addr %s162, 4
      %s164 = smul.addr %s163, 2
      %s165 = scalar_lea.vmem %s0, %s164
      %p166 = scmp.lt.s32.totalorder %s14, 1
      %s167 = scalar_select %p166, %s14, 1
      %s168 = smul.addr %s167, 3
      %s169 = smul.addr %s168, 2
      %s170 = scalar_lea.vmem %s3, %s169
      %v172 = vld [vmem:[%s1] sm:$0xf]
      %v173 = vld [vmem:[%s1 + $0x4] sm:$0xf]
      %v174 = vld [vmem:[%s1 + $0x8] sm:$0xf]
      %v175 = vld [vmem:[%s1 + $0xc] sm:$0xf]
      %v176 = vld [vmem:[%s1 + $0x10] sm:$0xf]
      %v177 = vld [vmem:[%s1 + $0x14] sm:$0xf]
      %v178 = vld [vmem:[%s1 + $0x18] sm:$0xf]
      %v179 = vld [vmem:[%s1 + $0x1c] sm:$0xf]
      %v180 = vld [vmem:[%s1 + $0x20] sm:$0xf]
      %v181 = vld [vmem:[%s1 + $0x24] sm:$0xf]
      %v182 = vld [vmem:[%s1 + $0x28] sm:$0xf]
      %v183 = vld [vmem:[%s1 + $0x2c] sm:$0xf]
      %v184 = vld [vmem:[%s1 + $0x30] sm:$0xf]
      %v185 = vld [vmem:[%s1 + $0x34] sm:$0xf]
      %v186 = vld [vmem:[%s1 + $0x38] sm:$0xf]
      %v187 = vld [vmem:[%s1 + $0x3c] sm:$0xf]
      %s188 = scalar_lea.vmem %s1, 64
      %v189 = vld [vmem:[%s188] sm:$0xf]
      %v190 = vld [vmem:[%s188 + $0x4] sm:$0xf]
      %v191 = vld [vmem:[%s188 + $0x8] sm:$0xf]
      %v192 = vld [vmem:[%s188 + $0xc] sm:$0xf]
      %v193 = vld [vmem:[%s188 + $0x10] sm:$0xf]
      %v194 = vld [vmem:[%s188 + $0x14] sm:$0xf]
      %v195 = vld [vmem:[%s188 + $0x18] sm:$0xf]
      %v196 = vld [vmem:[%s188 + $0x1c] sm:$0xf]
      %v197 = vld [vmem:[%s188 + $0x20] sm:$0xf]
      %v198 = vld [vmem:[%s188 + $0x24] sm:$0xf]
      %v199 = vld [vmem:[%s188 + $0x28] sm:$0xf]
      %v200 = vld [vmem:[%s188 + $0x2c] sm:$0xf]
      %v201 = vld [vmem:[%s188 + $0x30] sm:$0xf]
      %v202 = vld [vmem:[%s188 + $0x34] sm:$0xf]
      %v203 = vld [vmem:[%s188 + $0x38] sm:$0xf]
      %v204 = vld [vmem:[%s188 + $0x3c] sm:$0xf]
      %s205 = scalar_lea.vmem %s1, 128
      %v206 = vld [vmem:[%s205] sm:$0xf]
      %v207 = vld [vmem:[%s205 + $0x4] sm:$0xf]
      %v208 = vld [vmem:[%s205 + $0x8] sm:$0xf]
      %v209 = vld [vmem:[%s205 + $0xc] sm:$0xf]
      %v210 = vld [vmem:[%s205 + $0x10] sm:$0xf]
      %v211 = vld [vmem:[%s205 + $0x14] sm:$0xf]
      %v212 = vld [vmem:[%s205 + $0x18] sm:$0xf]
      %v213 = vld [vmem:[%s205 + $0x1c] sm:$0xf]
      %v214 = vld [vmem:[%s205 + $0x20] sm:$0xf]
      %v215 = vld [vmem:[%s205 + $0x24] sm:$0xf]
      %v216 = vld [vmem:[%s205 + $0x28] sm:$0xf]
      %v217 = vld [vmem:[%s205 + $0x2c] sm:$0xf]
      %v218 = vld [vmem:[%s205 + $0x30] sm:$0xf]
      %v219 = vld [vmem:[%s205 + $0x34] sm:$0xf]
      %v220 = vld [vmem:[%s205 + $0x38] sm:$0xf]
      %v221 = vld [vmem:[%s205 + $0x3c] sm:$0xf]
      %s222 = scalar_lea.vmem %s1, 192
      %v223 = vld [vmem:[%s222] sm:$0xf]
      %v224 = vld [vmem:[%s222 + $0x4] sm:$0xf]
      %v225 = vld [vmem:[%s222 + $0x8] sm:$0xf]
      %v226 = vld [vmem:[%s222 + $0xc] sm:$0xf]
      %v227 = vld [vmem:[%s222 + $0x10] sm:$0xf]
      %v228 = vld [vmem:[%s222 + $0x14] sm:$0xf]
      %v229 = vld [vmem:[%s222 + $0x18] sm:$0xf]
      %v230 = vld [vmem:[%s222 + $0x1c] sm:$0xf]
      %v231 = vld [vmem:[%s222 + $0x20] sm:$0xf]
      %v232 = vld [vmem:[%s222 + $0x24] sm:$0xf]
      %v233 = vld [vmem:[%s222 + $0x28] sm:$0xf]
      %v234 = vld [vmem:[%s222 + $0x2c] sm:$0xf]
      %v235 = vld [vmem:[%s222 + $0x30] sm:$0xf]
      %v236 = vld [vmem:[%s222 + $0x34] sm:$0xf]
      %v237 = vld [vmem:[%s222 + $0x38] sm:$0xf]
      %v238 = vld [vmem:[%s222 + $0x3c] sm:$0xf]
      %v239 = vld [vmem:[%s2] sm:$0x1]
      loop: start=0, step=1, limit=3
      $region33: #{conv_vae_forward.20} parent=31 // loop_pre_header
        _
      $region34: #{conv_vae_forward.20} parent=31 // loop_header
        %s241 = sphi 0, %s245
        %p242 = scmp.ge.s32.totalorder %s241, 3
      $region35: #{conv_vae_forward.20} parent=31 // loop_header_branch
        %244 = sbr.rel (%p242) target = $region39
      $region36: #{conv_vae_forward.20} parent=31 // loop_body
        %s246 = smul.addr %s241, 2
        %s247 = scalar_lea.vmem %s165, %s246
        %v248 = vld [vmem:[%s247] sm:$0x3]
        %v249 = vld [vmem:[%s247 + $0x2] sm:$0x3]
        %v266 = vunpack.c.l.b16 %v172
        %v267 = vunpack.c.l.b16 %v173
        %v268 = vunpack.c.l.b16 %v174
        %v269 = vunpack.c.l.b16 %v175
        %v270 = vunpack.c.l.b16 %v176
        %v271 = vunpack.c.l.b16 %v177
        %v272 = vunpack.c.l.b16 %v178
        %v273 = vunpack.c.l.b16 %v179
        %v274 = vunpack.c.l.b16 %v180
        %v275 = vunpack.c.l.b16 %v181
        %v276 = vunpack.c.l.b16 %v182
        %v277 = vunpack.c.l.b16 %v183
        %v278 = vunpack.c.l.b16 %v184
        %v279 = vunpack.c.l.b16 %v185
        %v280 = vunpack.c.l.b16 %v186
        %v281 = vunpack.c.l.b16 %v187
        %v282 = vpack.c.b16 %v267, %v266
        %v283 = vpack.c.b16 %v269, %v268
        %v284 = vpack.c.b16 %v271, %v270
        %v285 = vpack.c.b16 %v273, %v272
        %v286 = vpack.c.b16 %v275, %v274
        %v287 = vpack.c.b16 %v277, %v276
        %v288 = vpack.c.b16 %v279, %v278
        %v289 = vpack.c.b16 %v281, %v280
        %298 = vmatprep.subr.bf16.mxu0 0
        %299 = vmatpush1.bf16.msra.mxu0 %v282
        %300 = vmatprep.subr.bf16.mxu0 0
        %301 = vmatpush1.bf16.msra.mxu0 %v283
        %302 = vmatprep.subr.bf16.mxu0 0
        %303 = vmatpush1.bf16.msra.mxu0 %v284
        %304 = vmatprep.subr.bf16.mxu0 0
        %305 = vmatpush1.bf16.msra.mxu0 %v285
        %306 = vmatprep.subr.bf16.mxu0 0
        %307 = vmatpush1.bf16.msra.mxu0 %v286
        %308 = vmatprep.subr.bf16.mxu0 0
        %309 = vmatpush1.bf16.msra.mxu0 %v287
        %310 = vmatprep.subr.bf16.mxu0 0
        %311 = vmatpush1.bf16.msra.mxu0 %v288
        %312 = vmatprep.subr.bf16.mxu0 0
        %313 = vmatpush1.bf16.msra.mxu0 %v289
        %314 = vmatprep.subr.bf16.mxu0 0
        %315 = vmatpush1.bf16.msra.mxu0 0
        %316 = vmatprep.subr.bf16.mxu0 0
        %317 = vmatpush1.bf16.msra.mxu0 0
        %318 = vmatprep.subr.bf16.mxu0 0
        %319 = vmatpush1.bf16.msra.mxu0 0
        %320 = vmatprep.subr.bf16.mxu0 0
        %321 = vmatpush1.bf16.msra.mxu0 0
        %322 = vmatprep.subr.bf16.mxu0 0
        %323 = vmatpush1.bf16.msra.mxu0 0
        %324 = vmatprep.subr.bf16.mxu0 0
        %325 = vmatpush1.bf16.msra.mxu0 0
        %326 = vmatprep.subr.bf16.mxu0 0
        %327 = vmatpush1.bf16.msra.mxu0 0
        %328 = vmatprep.subr.bf16.mxu0 0
        %329 = vmatpush1.bf16.msra.mxu0 0
        %330 = vmatprep.mubr.bf16.mxu0 0
        %331 = vmatmul.mubr.bf16.gmra.mrb[0].mxu0 %v248
        %v332 = vpop.f32.mrb[0].mxu0
        %v333 = vadd.f32 0.0, %v332
        %v334 = vpop.f32.mrb[0].mxu0
        %v335 = vpop.f32.mrb[0].mxu0
        %v336 = vpop.f32.mrb[0].mxu0
        %337 = vdwg.mxu0
        %v354 = vunpack.c.l.b16 %v189
        %v355 = vunpack.c.l.b16 %v190
        %v356 = vunpack.c.l.b16 %v191
        %v357 = vunpack.c.l.b16 %v192
        %v358 = vunpack.c.l.b16 %v193
        %v359 = vunpack.c.l.b16 %v194
        %v360 = vunpack.c.l.b16 %v195
        %v361 = vunpack.c.l.b16 %v196
        %v362 = vunpack.c.l.b16 %v197
        %v363 = vunpack.c.l.b16 %v198
        %v364 = vunpack.c.l.b16 %v199
        %v365 = vunpack.c.l.b16 %v200
        %v366 = vunpack.c.l.b16 %v201
        %v367 = vunpack.c.l.b16 %v202
        %v368 = vunpack.c.l.b16 %v203
        %v369 = vunpack.c.l.b16 %v204
        %v370 = vpack.c.b16 %v355, %v354
        %v371 = vpack.c.b16 %v357, %v356
        %v372 = vpack.c.b16 %v359, %v358
        %v373 = vpack.c.b16 %v361, %v360
        %v374 = vpack.c.b16 %v363, %v362
        %v375 = vpack.c.b16 %v365, %v364
        %v376 = vpack.c.b16 %v367, %v366
        %v377 = vpack.c.b16 %v369, %v368
        %386 = vmatprep.subr.bf16.mxu0 0
        %387 = vmatpush1.bf16.msra.mxu0 %v370
        %388 = vmatprep.subr.bf16.mxu0 0
        %389 = vmatpush1.bf16.msra.mxu0 %v371
        %390 = vmatprep.subr.bf16.mxu0 0
        %391 = vmatpush1.bf16.msra.mxu0 %v372
        %392 = vmatprep.subr.bf16.mxu0 0
        %393 = vmatpush1.bf16.msra.mxu0 %v373
        %394 = vmatprep.subr.bf16.mxu0 0
        %395 = vmatpush1.bf16.msra.mxu0 %v374
        %396 = vmatprep.subr.bf16.mxu0 0
        %397 = vmatpush1.bf16.msra.mxu0 %v375
        %398 = vmatprep.subr.bf16.mxu0 0
        %399 = vmatpush1.bf16.msra.mxu0 %v376
        %400 = vmatprep.subr.bf16.mxu0 0
        %401 = vmatpush1.bf16.msra.mxu0 %v377
        %402 = vmatprep.subr.bf16.mxu0 0
        %403 = vmatpush1.bf16.msra.mxu0 0
        %404 = vmatprep.subr.bf16.mxu0 0
        %405 = vmatpush1.bf16.msra.mxu0 0
        %406 = vmatprep.subr.bf16.mxu0 0
        %407 = vmatpush1.bf16.msra.mxu0 0
        %408 = vmatprep.subr.bf16.mxu0 0
        %409 = vmatpush1.bf16.msra.mxu0 0
        %410 = vmatprep.subr.bf16.mxu0 0
        %411 = vmatpush1.bf16.msra.mxu0 0
        %412 = vmatprep.subr.bf16.mxu0 0
        %413 = vmatpush1.bf16.msra.mxu0 0
        %414 = vmatprep.subr.bf16.mxu0 0
        %415 = vmatpush1.bf16.msra.mxu0 0
        %416 = vmatprep.subr.bf16.mxu0 0
        %417 = vmatpush1.bf16.msra.mxu0 0
        %418 = vmatprep.mubr.bf16.mxu0 0
        %419 = vmatmul.mubr.bf16.gmra.mrb[0].mxu0 %v248
        %v420 = vpop.f32.mrb[0].mxu0
        %v421 = vadd.f32 0.0, %v420
        %v422 = vpop.f32.mrb[0].mxu0
        %v423 = vpop.f32.mrb[0].mxu0
        %v424 = vpop.f32.mrb[0].mxu0
        %425 = vdwg.mxu0
        %v442 = vunpack.c.l.b16 %v206
        %v443 = vunpack.c.l.b16 %v207
        %v444 = vunpack.c.l.b16 %v208
        %v445 = vunpack.c.l.b16 %v209
        %v446 = vunpack.c.l.b16 %v210
        %v447 = vunpack.c.l.b16 %v211
        %v448 = vunpack.c.l.b16 %v212
        %v449 = vunpack.c.l.b16 %v213
        %v450 = vunpack.c.l.b16 %v214
        %v451 = vunpack.c.l.b16 %v215
        %v452 = vunpack.c.l.b16 %v216
        %v453 = vunpack.c.l.b16 %v217
        %v454 = vunpack.c.l.b16 %v218
        %v455 = vunpack.c.l.b16 %v219
        %v456 = vunpack.c.l.b16 %v220
        %v457 = vunpack.c.l.b16 %v221
        %v458 = vpack.c.b16 %v443, %v442
        %v459 = vpack.c.b16 %v445, %v444
        %v460 = vpack.c.b16 %v447, %v446
        %v461 = vpack.c.b16 %v449, %v448
        %v462 = vpack.c.b16 %v451, %v450
        %v463 = vpack.c.b16 %v453, %v452
        %v464 = vpack.c.b16 %v455, %v454
        %v465 = vpack.c.b16 %v457, %v456
        %474 = vmatprep.subr.bf16.mxu0 0
        %475 = vmatpush1.bf16.msra.mxu0 %v458
        %476 = vmatprep.subr.bf16.mxu0 0
        %477 = vmatpush1.bf16.msra.mxu0 %v459
        %478 = vmatprep.subr.bf16.mxu0 0
        %479 = vmatpush1.bf16.msra.mxu0 %v460
        %480 = vmatprep.subr.bf16.mxu0 0
        %481 = vmatpush1.bf16.msra.mxu0 %v461
        %482 = vmatprep.subr.bf16.mxu0 0
        %483 = vmatpush1.bf16.msra.mxu0 %v462
        %484 = vmatprep.subr.bf16.mxu0 0
        %485 = vmatpush1.bf16.msra.mxu0 %v463
        %486 = vmatprep.subr.bf16.mxu0 0
        %487 = vmatpush1.bf16.msra.mxu0 %v464
        %488 = vmatprep.subr.bf16.mxu0 0
        %489 = vmatpush1.bf16.msra.mxu0 %v465
        %490 = vmatprep.subr.bf16.mxu0 0
        %491 = vmatpush1.bf16.msra.mxu0 0
        %492 = vmatprep.subr.bf16.mxu0 0
        %493 = vmatpush1.bf16.msra.mxu0 0
        %494 = vmatprep.subr.bf16.mxu0 0
        %495 = vmatpush1.bf16.msra.mxu0 0
        %496 = vmatprep.subr.bf16.mxu0 0
        %497 = vmatpush1.bf16.msra.mxu0 0
        %498 = vmatprep.subr.bf16.mxu0 0
        %499 = vmatpush1.bf16.msra.mxu0 0
        %500 = vmatprep.subr.bf16.mxu0 0
        %501 = vmatpush1.bf16.msra.mxu0 0
        %502 = vmatprep.subr.bf16.mxu0 0
        %503 = vmatpush1.bf16.msra.mxu0 0
        %504 = vmatprep.subr.bf16.mxu0 0
        %505 = vmatpush1.bf16.msra.mxu0 0
        %506 = vmatprep.mubr.bf16.mxu0 0
        %507 = vmatmul.mubr.bf16.gmra.mrb[0].mxu0 %v249
        %v508 = vpop.f32.mrb[0].mxu0
        %v509 = vadd.f32 0.0, %v508
        %v510 = vpop.f32.mrb[0].mxu0
        %v511 = vpop.f32.mrb[0].mxu0
        %v512 = vpop.f32.mrb[0].mxu0
        %513 = vdwg.mxu0
        %v530 = vunpack.c.l.b16 %v223
        %v531 = vunpack.c.l.b16 %v224
        %v532 = vunpack.c.l.b16 %v225
        %v533 = vunpack.c.l.b16 %v226
        %v534 = vunpack.c.l.b16 %v227
        %v535 = vunpack.c.l.b16 %v228
        %v536 = vunpack.c.l.b16 %v229
        %v537 = vunpack.c.l.b16 %v230
        %v538 = vunpack.c.l.b16 %v231
        %v539 = vunpack.c.l.b16 %v232
        %v540 = vunpack.c.l.b16 %v233
        %v541 = vunpack.c.l.b16 %v234
        %v542 = vunpack.c.l.b16 %v235
        %v543 = vunpack.c.l.b16 %v236
        %v544 = vunpack.c.l.b16 %v237
        %v545 = vunpack.c.l.b16 %v238
        %v546 = vpack.c.b16 %v531, %v530
        %v547 = vpack.c.b16 %v533, %v532
        %v548 = vpack.c.b16 %v535, %v534
        %v549 = vpack.c.b16 %v537, %v536
        %v550 = vpack.c.b16 %v539, %v538
        %v551 = vpack.c.b16 %v541, %v540
        %v552 = vpack.c.b16 %v543, %v542
        %v553 = vpack.c.b16 %v545, %v544
        %562 = vmatprep.subr.bf16.mxu0 0
        %563 = vmatpush1.bf16.msra.mxu0 %v546
        %564 = vmatprep.subr.bf16.mxu0 0
        %565 = vmatpush1.bf16.msra.mxu0 %v547
        %566 = vmatprep.subr.bf16.mxu0 0
        %567 = vmatpush1.bf16.msra.mxu0 %v548
        %568 = vmatprep.subr.bf16.mxu0 0
        %569 = vmatpush1.bf16.msra.mxu0 %v549
        %570 = vmatprep.subr.bf16.mxu0 0
        %571 = vmatpush1.bf16.msra.mxu0 %v550
        %572 = vmatprep.subr.bf16.mxu0 0
        %573 = vmatpush1.bf16.msra.mxu0 %v551
        %574 = vmatprep.subr.bf16.mxu0 0
        %575 = vmatpush1.bf16.msra.mxu0 %v552
        %576 = vmatprep.subr.bf16.mxu0 0
        %577 = vmatpush1.bf16.msra.mxu0 %v553
        %578 = vmatprep.subr.bf16.mxu0 0
        %579 = vmatpush1.bf16.msra.mxu0 0
        %580 = vmatprep.subr.bf16.mxu0 0
        %581 = vmatpush1.bf16.msra.mxu0 0
        %582 = vmatprep.subr.bf16.mxu0 0
        %583 = vmatpush1.bf16.msra.mxu0 0
        %584 = vmatprep.subr.bf16.mxu0 0
        %585 = vmatpush1.bf16.msra.mxu0 0
        %586 = vmatprep.subr.bf16.mxu0 0
        %587 = vmatpush1.bf16.msra.mxu0 0
        %588 = vmatprep.subr.bf16.mxu0 0
        %589 = vmatpush1.bf16.msra.mxu0 0
        %590 = vmatprep.subr.bf16.mxu0 0
        %591 = vmatpush1.bf16.msra.mxu0 0
        %592 = vmatprep.subr.bf16.mxu0 0
        %593 = vmatpush1.bf16.msra.mxu0 0
        %594 = vmatprep.mubr.bf16.mxu0 0
        %595 = vmatmul.mubr.bf16.gmra.mrb[0].mxu0 %v249
        %v596 = vpop.f32.mrb[0].mxu0
        %v597 = vadd.f32 0.0, %v596
        %v598 = vpop.f32.mrb[0].mxu0
        %v599 = vpop.f32.mrb[0].mxu0
        %v600 = vpop.f32.mrb[0].mxu0
        %601 = vdwg.mxu0
        %v602 = vadd.f32 %v333, %v509
        %v604 = vrot.slane %v421, 1
        %v606 = vadd.f32 %v602, %v604
        %v608 = vrot.slane %v597, 1
        %v610 = vadd.f32 %v606, %v608
        %v612 = vlaneseq
        %v613 = vshrl.u32 %v612, 7
        %v614 = vsub.s32 0, %v613
        %v615 = vrot.slane %v239, %v614
        %v617 = vadd.f32 %v610, %v615
        %v618 = vmax.f32 %v617, 0.0
        %v619 = vpack.c.bf16 %v618, %v618
        %s620 = smul.addr %s241, 2
        %s621 = scalar_lea.vmem %s170, %s620
        %vm622 = vcmask 1041408
        %vm623 = vsmask.f32 1280
        %vm624 = vmand %vm622, %vm623
        %v625 = vld [vmem:[%s621] sm:$0x3]
        %v626 = vsel %vm624, %v619, %v625
        %627 = vst [vmem:[%s621] sm:$0x3] %v626
      $region37: #{conv_vae_forward.20} parent=31 // loop_footer
        %s245 = sadd.s32 1, %s241
      $region38: #{conv_vae_forward.20} parent=31 // loop_footer_branch
        %240 = sbr.rel target = $region34
      $region39: #{conv_vae_forward.20} parent=31 // loop_exit
        _
      %p628 = scmp.lt.s32.totalorder %s14, 1
      %s629 = scalar_select %p628, %s14, 1
      %s630 = smul.addr %s629, 3
      %s631 = smul.addr %s630, 2
      %s632 = scalar_lea.vmem %s3, %s631
      // Predicated region
      $region40: #{conv_vae_forward.20} parent=31 // pred_check
        %p633 = pneg %p100
      $region41: #{conv_vae_forward.20} parent=31 // pred_check_branch
        %635 = sbr.rel (%p633) target = $region43
      $region42: #{conv_vae_forward.20} parent=31 // pred_region
        _
      $region43: #{conv_vae_forward.20} parent=31 // pred_fallthru
        _
    $region32: #{conv_vae_forward.20} parent=5 // pred_fallthru
      _
    %p636 = scmp.le.s32.totalorder 2, %s9
    // Predicated region
    $region44: #{conv_vae_forward.20} parent=5 // pred_check
      %p637 = pneg %p636
    $region45: #{conv_vae_forward.20} parent=5 // pred_check_branch
      %639 = sbr.rel (%p637) target = $region47
    $region46: #{conv_vae_forward.20} parent=5 // pred_region
      %s640 = ssub.s32 %s9, 2
      // Predicated region
      $region48: #{conv_vae_forward.20} parent=46 // pred_check
        %p641 = pneg %p106
      $region49: #{conv_vae_forward.20} parent=46 // pred_check_branch
        %643 = sbr.rel (%p641) target = $region51
      $region50: #{conv_vae_forward.20} parent=46 // pred_region
        %p644 = scmp.lt.s32.totalorder %s15, 1
        %s645 = scalar_select %p644, %s15, 1
        %s646 = smul.addr %s645, 3
        %s647 = smul.addr %s646, 2
        %s648 = scalar_lea.vmem %s3, %s647
      $region51: #{conv_vae_forward.20} parent=46 // pred_fallthru
        _
    $region47: #{conv_vae_forward.20} parent=5 // pred_fallthru
      _
  $region6: #{conv_vae_forward.20} parent=0 // loop_footer
    %s13 = sadd.s32 1, %s9
  $region7: #{conv_vae_forward.20} parent=0 // loop_footer_branch
    %8 = sbr.rel target = $region3
  $region8: #{conv_vae_forward.20} parent=0 // loop_exit
    _

// kernel: conv_vae_forward.21
$region0: #{conv_vae_forward.21}
  #allocation0 [shape = 'u32[]', space=smem, size = 0x4, offset = 0x4, fixed_abs, tag = 'smem constant byte address 0x4 - core index']
  #allocation1 [shape = 'u32[144,128]{1,0:T(1,128)}', space=vmem, size = 0x12000, scoped, tag = 'internal scratch']
  %s0 = inlined_call_operand.vmem [shape: bf16[2,6,6,64], index: 0, kind: input, shape index: {}]
  %s1 = inlined_call_operand.vmem [shape: bf16[2,2,64,64], index: 1, kind: input, shape index: {}]
  %s2 = inlined_call_operand.vmem [shape: f32[1,64], index: 2, kind: input, shape index: {}]
  %s3 = inlined_call_operand.vmem [shape: bf16[2,5,5,64], index: 3, kind: output, shape index: {}]
  %s4 = sld [smem:[#allocation0]]
  $region52: #{conv_vae_forward.21} parent=0
    _
  %s6 = ssub.s32 1, %s4
  %s7 = scalar_select 0, %s6, %s4
  loop: start=0, step=1, limit=4
  $region2: #{conv_vae_forward.21} parent=0 // loop_pre_header
    _
  $region3: #{conv_vae_forward.21} parent=0 // loop_header
    %s9 = sphi 0, %s13
    %p10 = scmp.ge.s32.totalorder %s9, 4
    %s19 = sphi 0, %s21
    %s22 = sphi 0, %s19
    %s23 = sphi 0, %s22
    %s39 = sphi 0, %s23
    %s43 = sphi 0, %s43
    %s45 = sphi 0, %s43
    %s46 = sphi 0, %s45
    %s60 = sphi 0, %s46
    %s64 = sphi 0, %s64
    %s66 = sphi 0, %s64
    %s67 = sphi 0, %s66
    %s81 = sphi 0, %s67
    %s87 = sphi 0, %s89
    %s90 = sphi 0, %s87
    %s91 = sphi 0, %s90
    %s107 = sphi 0, %s91
  $region4: #{conv_vae_forward.21} parent=0 // loop_header_branch
    %12 = sbr.rel (%p10) target = $region8
  $region5: #{conv_vae_forward.21} parent=0 // loop_body
    %s14 = ssub.s32 %s9, 1
    %s15 = ssub.s32 %s9, 2
    %s16 = sadd.s32 %s9, 1
    %s17 = ssub.s32 %s9, %s16
    %p18 = scmp.eq.s32.totalorder %s17, 0
    %s20 = sadd.s32 %s19, 1
    %s21 = scalar_select %p18, %s19, %s20
    %p24 = pneg %p18
    %p25 = scmp.eq.s32.totalorder %s9, 1
    %p26 = por %p24, %p25
    %p27 = scmp.ne.s32.totalorder %s19, %s22
    %p28 = scmp.eq.s32.totalorder %s9, 0
    %p29 = por %p27, %p28
    %p30 = scmp.ne.s32.totalorder %s19, %s22
    %p31 = scmp.eq.s32.totalorder %s14, 1
    %p32 = por %p30, %p31
    %p33 = scmp.ne.s32.totalorder %s22, %s23
    %p34 = scmp.eq.s32.totalorder %s14, 0
    %p35 = por %p33, %p34
    %p36 = scmp.ne.s32.totalorder %s22, %s23
    %p37 = scmp.eq.s32.totalorder %s15, 1
    %p38 = por %p36, %p37
    %p40 = scmp.ne.s32.totalorder %s23, %s39
    %p41 = scmp.eq.s32.totalorder %s15, 0
    %p42 = por %p40, %p41
    %s44 = sadd.s32 %s43, 1
    %p47 = scmp.eq.s32.totalorder %s9, 1
    %p48 = scmp.ne.s32.totalorder %s43, %s45
    %p49 = scmp.eq.s32.totalorder %s9, 0
    %p50 = por %p48, %p49
    %p51 = scmp.ne.s32.totalorder %s43, %s45
    %p52 = scmp.eq.s32.totalorder %s14, 1
    %p53 = por %p51, %p52
    %p54 = scmp.ne.s32.totalorder %s45, %s46
    %p55 = scmp.eq.s32.totalorder %s14, 0
    %p56 = por %p54, %p55
    %p57 = scmp.ne.s32.totalorder %s45, %s46
    %p58 = scmp.eq.s32.totalorder %s15, 1
    %p59 = por %p57, %p58
    %p61 = scmp.ne.s32.totalorder %s46, %s60
    %p62 = scmp.eq.s32.totalorder %s15, 0
    %p63 = por %p61, %p62
    %s65 = sadd.s32 %s64, 1
    %p68 = scmp.eq.s32.totalorder %s9, 1
    %p69 = scmp.ne.s32.totalorder %s64, %s66
    %p70 = scmp.eq.s32.totalorder %s9, 0
    %p71 = por %p69, %p70
    %p72 = scmp.ne.s32.totalorder %s64, %s66
    %p73 = scmp.eq.s32.totalorder %s14, 1
    %p74 = por %p72, %p73
    %p75 = scmp.ne.s32.totalorder %s66, %s67
    %p76 = scmp.eq.s32.totalorder %s14, 0
    %p77 = por %p75, %p76
    %p78 = scmp.ne.s32.totalorder %s66, %s67
    %p79 = scmp.eq.s32.totalorder %s15, 1
    %p80 = por %p78, %p79
    %p82 = scmp.ne.s32.totalorder %s67, %s81
    %p83 = scmp.eq.s32.totalorder %s15, 0
    %p84 = por %p82, %p83
    %s85 = ssub.s32 %s9, %s16
    %p86 = scmp.eq.s32.totalorder %s85, 0
    %s88 = sadd.s32 %s87, 1
    %s89 = scalar_select %p86, %s87, %s88
    %p92 = pneg %p86
    %p93 = scmp.eq.s32.totalorder %s9, 1
    %p94 = por %p92, %p93
    %p95 = scmp.ne.s32.totalorder %s87, %s90
    %p96 = scmp.eq.s32.totalorder %s9, 0
    %p97 = por %p95, %p96
    %p98 = scmp.ne.s32.totalorder %s87, %s90
    %p99 = scmp.eq.s32.totalorder %s14, 1
    %p100 = por %p98, %p99
    %p101 = scmp.ne.s32.totalorder %s90, %s91
    %p102 = scmp.eq.s32.totalorder %s14, 0
    %p103 = por %p101, %p102
    %p104 = scmp.ne.s32.totalorder %s90, %s91
    %p105 = scmp.eq.s32.totalorder %s15, 1
    %p106 = por %p104, %p105
    %p108 = scmp.ne.s32.totalorder %s91, %s107
    %p109 = scmp.eq.s32.totalorder %s15, 0
    %p110 = por %p108, %p109
    %p111 = scmp.le.s32.totalorder 1, %s9
    %p112 = scmp.lt.s32.totalorder %s9, 3
    %p113 = pnand %p111, %p112
    %p114 = pneg %p113
    // Predicated region
    $region9: #{conv_vae_forward.21} parent=5 // pred_check
      _
    $region10: #{conv_vae_forward.21} parent=5 // pred_check_branch
      %116 = sbr.rel (%p113) target = $region12
    $region11: #{conv_vae_forward.21} parent=5 // pred_region
      %s117 = ssub.s32 %s9, 1
      // Predicated region
      $region13: #{conv_vae_forward.21} parent=11 // pred_check
        %p118 = pneg %p56
      $region14: #{conv_vae_forward.21} parent=11 // pred_check_branch
        %120 = sbr.rel (%p118) target = $region16
      $region15: #{conv_vae_forward.21} parent=11 // pred_region
        _
      $region16: #{conv_vae_forward.21} parent=11 // pred_fallthru
        _
      // Predicated region
      $region17: #{conv_vae_forward.21} parent=11 // pred_check
        %p121 = pneg %p77
      $region18: #{conv_vae_forward.21} parent=11 // pred_check_branch
        %123 = sbr.rel (%p121) target = $region20
      $region19: #{conv_vae_forward.21} parent=11 // pred_region
        _
      $region20: #{conv_vae_forward.21} parent=11 // pred_fallthru
        _
    $region12: #{conv_vae_forward.21} parent=5 // pred_fallthru
      _
    %p124 = scmp.lt.s32.totalorder %s9, 2
    // Predicated region
    $region21: #{conv_vae_forward.21} parent=5 // pred_check
      %p125 = pneg %p124
    $region22: #{conv_vae_forward.21} parent=5 // pred_check_branch
      %127 = sbr.rel (%p125) target = $region24
    $region23: #{conv_vae_forward.21} parent=5 // pred_region
      // Predicated region
      $region25: #{conv_vae_forward.21} parent=23 // pred_check
        %p128 = pneg %p29
      $region26: #{conv_vae_forward.21} parent=23 // pred_check_branch
        %130 = sbr.rel (%p128) target = $region28
      $region27: #{conv_vae_forward.21} parent=23 // pred_region
        %p131 = scmp.lt.s32.totalorder %s9, 1
        %s132 = scalar_select %p131, %s9, 1
        %s133 = smul.addr %s132, 6
        %s134 = smul.addr %s133, 4
        %s135 = scalar_lea.vmem %s0, %s134
      $region28: #{conv_vae_forward.21} parent=23 // pred_fallthru
        _
    $region24: #{conv_vae_forward.21} parent=5 // pred_fallthru
      _
    %p136 = scmp.le.s32.totalorder 1, %s9
    %p137 = scmp.lt.s32.totalorder %s9, 3
    %p138 = pnand %p136, %p137
    %p139 = pneg %p138
    // Predicated region
    $region29: #{conv_vae_forward.21} parent=5 // pred_check
      _
    $region30: #{conv_vae_forward.21} parent=5 // pred_check_branch
      %141 = sbr.rel (%p138) target = $region32
    $region31: #{conv_vae_forward.21} parent=5 // pred_region
      %s142 = ssub.s32 %s9, 1
      %p143 = scmp.lt.s32.totalorder %s14, 1
      %s144 = scalar_select %p143, %s14, 1
      %s145 = smul.addr %s144, 6
      %s146 = smul.addr %s145, 4
      %s147 = scalar_lea.vmem %s0, %s146
      %p148 = pneg %p35
      %p149 = pneg %p32
      %p150 = pneg %p56
      %p151 = pneg %p53
      %p152 = pneg %p77
      %p153 = pneg %p74
      %p154 = pneg %p103
      %p155 = pneg %p100
      %p156 = scmp.lt.s32.totalorder %s14, 1
      %s157 = scalar_select %p156, %s14, 1
      %s158 = smul.addr %s157, 5
      %s159 = smul.addr %s158, 4
      %s160 = scalar_lea.vmem %s3, %s159
      %p161 = scmp.lt.s32.totalorder %s14, 1
      %s162 = scalar_select %p161, %s14, 1
      %s163 = smul.addr %s162, 6
      %s164 = smul.addr %s163, 4
      %s165 = scalar_lea.vmem %s0, %s164
      %p166 = scmp.lt.s32.totalorder %s14, 1
      %s167 = scalar_select %p166, %s14, 1
      %s168 = smul.addr %s167, 5
      %s169 = smul.addr %s168, 4
      %s170 = scalar_lea.vmem %s3, %s169
      %v172 = vld [vmem:[%s1] sm:$0xf]
      %v173 = vld [vmem:[%s1 + $0x4] sm:$0xf]
      %v174 = vld [vmem:[%s1 + $0x8] sm:$0xf]
      %v175 = vld [vmem:[%s1 + $0xc] sm:$0xf]
      %v176 = vld [vmem:[%s1 + $0x10] sm:$0xf]
      %v177 = vld [vmem:[%s1 + $0x14] sm:$0xf]
      %v178 = vld [vmem:[%s1 + $0x18] sm:$0xf]
      %v179 = vld [vmem:[%s1 + $0x1c] sm:$0xf]
      %s180 = scalar_lea.vmem %s1, 32
      %v181 = vld [vmem:[%s180] sm:$0xf]
      %v182 = vld [vmem:[%s180 + $0x4] sm:$0xf]
      %v183 = vld [vmem:[%s180 + $0x8] sm:$0xf]
      %v184 = vld [vmem:[%s180 + $0xc] sm:$0xf]
      %v185 = vld [vmem:[%s180 + $0x10] sm:$0xf]
      %v186 = vld [vmem:[%s180 + $0x14] sm:$0xf]
      %v187 = vld [vmem:[%s180 + $0x18] sm:$0xf]
      %v188 = vld [vmem:[%s180 + $0x1c] sm:$0xf]
      %s189 = scalar_lea.vmem %s1, 64
      %v190 = vld [vmem:[%s189] sm:$0xf]
      %v191 = vld [vmem:[%s189 + $0x4] sm:$0xf]
      %v192 = vld [vmem:[%s189 + $0x8] sm:$0xf]
      %v193 = vld [vmem:[%s189 + $0xc] sm:$0xf]
      %v194 = vld [vmem:[%s189 + $0x10] sm:$0xf]
      %v195 = vld [vmem:[%s189 + $0x14] sm:$0xf]
      %v196 = vld [vmem:[%s189 + $0x18] sm:$0xf]
      %v197 = vld [vmem:[%s189 + $0x1c] sm:$0xf]
      %s198 = scalar_lea.vmem %s1, 96
      %v199 = vld [vmem:[%s198] sm:$0xf]
      %v200 = vld [vmem:[%s198 + $0x4] sm:$0xf]
      %v201 = vld [vmem:[%s198 + $0x8] sm:$0xf]
      %v202 = vld [vmem:[%s198 + $0xc] sm:$0xf]
      %v203 = vld [vmem:[%s198 + $0x10] sm:$0xf]
      %v204 = vld [vmem:[%s198 + $0x14] sm:$0xf]
      %v205 = vld [vmem:[%s198 + $0x18] sm:$0xf]
      %v206 = vld [vmem:[%s198 + $0x1c] sm:$0xf]
      %v207 = vld [vmem:[%s2] sm:$0x1]
      loop: start=0, step=1, limit=5
      $region33: #{conv_vae_forward.21} parent=31 // loop_pre_header
        _
      $region34: #{conv_vae_forward.21} parent=31 // loop_header
        %s209 = sphi 0, %s213
        %p210 = scmp.ge.s32.totalorder %s209, 5
      $region35: #{conv_vae_forward.21} parent=31 // loop_header_branch
        %212 = sbr.rel (%p210) target = $region39
      $region36: #{conv_vae_forward.21} parent=31 // loop_body
        %s214 = smul.addr %s209, 4
        %s215 = scalar_lea.vmem %s165, %s214
        %v216 = vld [vmem:[%s215] sm:$0x7]
        %v217 = vld [vmem:[%s215 + $0x4] sm:$0x7]
        %v226 = vunpack.c.l.b16 %v172
        %v227 = vunpack.c.l.b16 %v173
        %v228 = vunpack.c.l.b16 %v174
        %v229 = vunpack.c.l.b16 %v175
        %v230 = vunpack.c.l.b16 %v176
        %v231 = vunpack.c.l.b16 %v177
        %v232 = vunpack.c.l.b16 %v178
        %v233 = vunpack.c.l.b16 %v179
        %v234 = vpack.c.b16 %v227, %v226
        %v235 = vpack.c.b16 %v229, %v228
        %v236 = vpack.c.b16 %v231, %v230
        %v237 = vpack.c.b16 %v233, %v232
        %vm242 = vcmask 523264
        %v244 = vsel %vm242, %v216, 0
        %246 = vmatprep.subr.bf16.mxu0 0
        %247 = vmatpush1.bf16.msra.mxu0 %v234
        %248 = vmatprep.subr.bf16.mxu0 0
        %249 = vmatpush1.bf16.msra.mxu0 %v235
        %250 = vmatprep.subr.bf16.mxu0 0
        %251 = vmatpush1.bf16.msra.mxu0 %v236
        %252 = vmatprep.subr.bf16.mxu0 0
        %253 = vmatpush1.bf16.msra.mxu0 %v237
        %254 = vmatprep.subr.bf16.mxu0 0
        %255 = vmatpush1.bf16.msra.mxu0 0
        %256 = vmatprep.subr.bf16.mxu0 0
        %257 = vmatpush1.bf16.msra.mxu0 0
        %258 = vmatprep.subr.bf16.mxu0 0
        %259 = vmatpush1.bf16.msra.mxu0 0
        %260 = vmatprep.subr.bf16.mxu0 0
        %261 = vmatpush1.bf16.msra.mxu0 0
        %262 = vmatprep.subr.bf16.mxu0 0
        %263 = vmatpush1.bf16.msra.mxu0 0
        %264 = vmatprep.subr.bf16.mxu0 0
        %265 = vmatpush1.bf16.msra.mxu0 0
        %266 = vmatprep.subr.bf16.mxu0 0
        %267 = vmatpush1.bf16.msra.mxu0 0
        %268 = vmatprep.subr.bf16.mxu0 0
        %269 = vmatpush1.bf16.msra.mxu0 0
        %270 = vmatprep.subr.bf16.mxu0 0
        %271 = vmatpush1.bf16.msra.mxu0 0
        %272 = vmatprep.subr.bf16.mxu0 0
        %273 = vmatpush1.bf16.msra.mxu0 0
        %274 = vmatprep.subr.bf16.mxu0 0
        %275 = vmatpush1.bf16.msra.mxu0 0
        %276 = vmatprep.subr.bf16.mxu0 0
        %277 = vmatpush1.bf16.msra.mxu0 0
        %278 = vmatprep.mubr.bf16.mxu0 0
        %279 = vmatmul.mubr.bf16.gmra.mrb[0].mxu0 %v244
        %v280 = vpop.f32.mrb[0].mxu0
        %v281 = vadd.f32 0.0, %v280
        %v282 = vpop.f32.mrb[0].mxu0
        %v283 = vpop.f32.mrb[0].mxu0
        %v284 = vpop.f32.mrb[0].mxu0
        %285 = vdwg.mxu0
        %v294 = vunpack.c.l.b16 %v181
        %v295 = vunpack.c.l.b16 %v182
        %v296 = vunpack.c.l.b16 %v183
        %v297 = vunpack.c.l.b16 %v184
        %v298 = vunpack.c.l.b16 %v185
        %v299 = vunpack.c.l.b16 %v186
        %v300 = vunpack.c.l.b16 %v187
        %v301 = vunpack.c.l.b16 %v188
        %v302 = vpack.c.b16 %v295, %v294
        %v303 = vpack.c.b16 %v297, %v296
        %v304 = vpack.c.b16 %v299, %v298
        %v305 = vpack.c.b16 %v301, %v300
        %310 = vmatprep.subr.bf16.mxu0 0
        %311 = vmatpush1.bf16.msra.mxu0 %v302
        %312 = vmatprep.subr.bf16.mxu0 0
        %313 = vmatpush1.bf16.msra.mxu0 %v303
        %314 = vmatprep.subr.bf16.mxu0 0
        %315 = vmatpush1.bf16.msra.mxu0 %v304
        %316 = vmatprep.subr.bf16.mxu0 0
        %317 = vmatpush1.bf16.msra.mxu0 %v305
        %318 = vmatprep.subr.bf16.mxu0 0
        %319 = vmatpush1.bf16.msra.mxu0 0
        %320 = vmatprep.subr.bf16.mxu0 0
        %321 = vmatpush1.bf16.msra.mxu0 0
        %322 = vmatprep.subr.bf16.mxu0 0
        %323 = vmatpush1.bf16.msra.mxu0 0
        %324 = vmatprep.subr.bf16.mxu0 0
        %325 = vmatpush1.bf16.msra.mxu0 0
        %326 = vmatprep.subr.bf16.mxu0 0
        %327 = vmatpush1.bf16.msra.mxu0 0
        %328 = vmatprep.subr.bf16.mxu0 0
        %329 = vmatpush1.bf16.msra.mxu0 0
        %330 = vmatprep.subr.bf16.mxu0 0
        %331 = vmatpush1.bf16.msra.mxu0 0
        %332 = vmatprep.subr.bf16.mxu0 0
        %333 = vmatpush1.bf16.msra.mxu0 0
        %334 = vmatprep.subr.bf16.mxu0 0
        %335 = vmatpush1.bf16.msra.mxu0 0
        %336 = vmatprep.subr.bf16.mxu0 0
        %337 = vmatpush1.bf16.msra.mxu0 0
        %338 = vmatprep.subr.bf16.mxu0 0
        %339 = vmatpush1.bf16.msra.mxu0 0
        %340 = vmatprep.subr.bf16.mxu0 0
        %341 = vmatpush1.bf16.msra.mxu0 0
        %342 = vmatprep.mubr.bf16.mxu0 0
        %343 = vmatmul.mubr.bf16.gmra.mrb[0].mxu0 %v244
        %v344 = vpop.f32.mrb[0].mxu0
        %v345 = vadd.f32 0.0, %v344
        %v346 = vpop.f32.mrb[0].mxu0
        %v347 = vpop.f32.mrb[0].mxu0
        %v348 = vpop.f32.mrb[0].mxu0
        %349 = vdwg.mxu0
        %v358 = vunpack.c.l.b16 %v190
        %v359 = vunpack.c.l.b16 %v191
        %v360 = vunpack.c.l.b16 %v192
        %v361 = vunpack.c.l.b16 %v193
        %v362 = vunpack.c.l.b16 %v194
        %v363 = vunpack.c.l.b16 %v195
        %v364 = vunpack.c.l.b16 %v196
        %v365 = vunpack.c.l.b16 %v197
        %v366 = vpack.c.b16 %v359, %v358
        %v367 = vpack.c.b16 %v361, %v360
        %v368 = vpack.c.b16 %v363, %v362
        %v369 = vpack.c.b16 %v365, %v364
        %v375 = vsel %vm242, %v217, 0
        %377 = vmatprep.subr.bf16.mxu0 0
        %378 = vmatpush1.bf16.msra.mxu0 %v366
        %379 = vmatprep.subr.bf16.mxu0 0
        %380 = vmatpush1.bf16.msra.mxu0 %v367
        %381 = vmatprep.subr.bf16.mxu0 0
        %382 = vmatpush1.bf16.msra.mxu0 %v368
        %383 = vmatprep.subr.bf16.mxu0 0
        %384 = vmatpush1.bf16.msra.mxu0 %v369
        %385 = vmatprep.subr.bf16.mxu0 0
        %386 = vmatpush1.bf16.msra.mxu0 0
        %387 = vmatprep.subr.bf16.mxu0 0
        %388 = vmatpush1.bf16.msra.mxu0 0
        %389 = vmatprep.subr.bf16.mxu0 0
        %390 = vmatpush1.bf16.msra.mxu0 0
        %391 = vmatprep.subr.bf16.mxu0 0
        %392 = vmatpush1.bf16.msra.mxu0 0
        %393 = vmatprep.subr.bf16.mxu0 0
        %394 = vmatpush1.bf16.msra.mxu0 0
        %395 = vmatprep.subr.bf16.mxu0 0
        %396 = vmatpush1.bf16.msra.mxu0 0
        %397 = vmatprep.subr.bf16.mxu0 0
        %398 = vmatpush1.bf16.msra.mxu0 0
        %399 = vmatprep.subr.bf16.mxu0 0
        %400 = vmatpush1.bf16.msra.mxu0 0
        %401 = vmatprep.subr.bf16.mxu0 0
        %402 = vmatpush1.bf16.msra.mxu0 0
        %403 = vmatprep.subr.bf16.mxu0 0
        %404 = vmatpush1.bf16.msra.mxu0 0
        %405 = vmatprep.subr.bf16.mxu0 0
        %406 = vmatpush1.bf16.msra.mxu0 0
        %407 = vmatprep.subr.bf16.mxu0 0
        %408 = vmatpush1.bf16.msra.mxu0 0
        %409 = vmatprep.mubr.bf16.mxu0 0
        %410 = vmatmul.mubr.bf16.gmra.mrb[0].mxu0 %v375
        %v411 = vpop.f32.mrb[0].mxu0
        %v412 = vadd.f32 0.0, %v411
        %v413 = vpop.f32.mrb[0].mxu0
        %v414 = vpop.f32.mrb[0].mxu0
        %v415 = vpop.f32.mrb[0].mxu0
        %416 = vdwg.mxu0
        %v425 = vunpack.c.l.b16 %v199
        %v426 = vunpack.c.l.b16 %v200
        %v427 = vunpack.c.l.b16 %v201
        %v428 = vunpack.c.l.b16 %v202
        %v429 = vunpack.c.l.b16 %v203
        %v430 = vunpack.c.l.b16 %v204
        %v431 = vunpack.c.l.b16 %v205
        %v432 = vunpack.c.l.b16 %v206
        %v433 = vpack.c.b16 %v426, %v425
        %v434 = vpack.c.b16 %v428, %v427
        %v435 = vpack.c.b16 %v430, %v429
        %v436 = vpack.c.b16 %v432, %v431
        %441 = vmatprep.subr.bf16.mxu0 0
        %442 = vmatpush1.bf16.msra.mxu0 %v433
        %443 = vmatprep.subr.bf16.mxu0 0
        %444 = vmatpush1.bf16.msra.mxu0 %v434
        %445 = vmatprep.subr.bf16.mxu0 0
        %446 = vmatpush1.bf16.msra.mxu0 %v435
        %447 = vmatprep.subr.bf16.mxu0 0
        %448 = vmatpush1.bf16.msra.mxu0 %v436
        %449 = vmatprep.subr.bf16.mxu0 0
        %450 = vmatpush1.bf16.msra.mxu0 0
        %451 = vmatprep.subr.bf16.mxu0 0
        %452 = vmatpush1.bf16.msra.mxu0 0
        %453 = vmatprep.subr.bf16.mxu0 0
        %454 = vmatpush1.bf16.msra.mxu0 0
        %455 = vmatprep.subr.bf16.mxu0 0
        %456 = vmatpush1.bf16.msra.mxu0 0
        %457 = vmatprep.subr.bf16.mxu0 0
        %458 = vmatpush1.bf16.msra.mxu0 0
        %459 = vmatprep.subr.bf16.mxu0 0
        %460 = vmatpush1.bf16.msra.mxu0 0
        %461 = vmatprep.subr.bf16.mxu0 0
        %462 = vmatpush1.bf16.msra.mxu0 0
        %463 = vmatprep.subr.bf16.mxu0 0
        %464 = vmatpush1.bf16.msra.mxu0 0
        %465 = vmatprep.subr.bf16.mxu0 0
        %466 = vmatpush1.bf16.msra.mxu0 0
        %467 = vmatprep.subr.bf16.mxu0 0
        %468 = vmatpush1.bf16.msra.mxu0 0
        %469 = vmatprep.subr.bf16.mxu0 0
        %470 = vmatpush1.bf16.msra.mxu0 0
        %471 = vmatprep.subr.bf16.mxu0 0
        %472 = vmatpush1.bf16.msra.mxu0 0
        %473 = vmatprep.mubr.bf16.mxu0 0
        %474 = vmatmul.mubr.bf16.gmra.mrb[0].mxu0 %v375
        %v475 = vpop.f32.mrb[0].mxu0
        %v476 = vadd.f32 0.0, %v475
        %v477 = vpop.f32.mrb[0].mxu0
        %v478 = vpop.f32.mrb[0].mxu0
        %v479 = vpop.f32.mrb[0].mxu0
        %480 = vdwg.mxu0
        %v481 = vadd.f32 %v281, %v412
        %v483 = vrot.slane %v345, 1
        %v485 = vadd.f32 %v481, %v483
        %v487 = vrot.slane %v476, 1
        %v489 = vadd.f32 %v485, %v487
        %v491 = vlaneseq
        %v492 = vshrl.u32 %v491, 7
        %v493 = vsub.s32 0, %v492
        %v494 = vrot.slane %v207, %v493
        %v496 = vadd.f32 %v489, %v494
        %v497 = vmax.f32 %v496, 0.0
        %v498 = vpack.c.bf16 %v497, %v497
        %s499 = smul.addr %s209, 4
        %s500 = scalar_lea.vmem %s170, %s499
        %vm501 = vcmask 518144
        %vm502 = vsmask.f32 2304
        %vm503 = vmand %vm501, %vm502
        %v504 = vld [vmem:[%s500] sm:$0x7]
        %v505 = vsel %vm503, %v498, %v504
        %506 = vst [vmem:[%s500] sm:$0x7] %v505
      $region37: #{conv_vae_forward.21} parent=31 // loop_footer
        %s213 = sadd.s32 1, %s209
      $region38: #{conv_vae_forward.21} parent=31 // loop_footer_branch
        %208 = sbr.rel target = $region34
      $region39: #{conv_vae_forward.21} parent=31 // loop_exit
        _
      %p507 = scmp.lt.s32.totalorder %s14, 1
      %s508 = scalar_select %p507, %s14, 1
      %s509 = smul.addr %s508, 5
      %s510 = smul.addr %s509, 4
      %s511 = scalar_lea.vmem %s3, %s510
      // Predicated region
      $region40: #{conv_vae_forward.21} parent=31 // pred_check
        %p512 = pneg %p100
      $region41: #{conv_vae_forward.21} parent=31 // pred_check_branch
        %514 = sbr.rel (%p512) target = $region43
      $region42: #{conv_vae_forward.21} parent=31 // pred_region
        _
      $region43: #{conv_vae_forward.21} parent=31 // pred_fallthru
        _
    $region32: #{conv_vae_forward.21} parent=5 // pred_fallthru
      _
    %p515 = scmp.le.s32.totalorder 2, %s9
    // Predicated region
    $region44: #{conv_vae_forward.21} parent=5 // pred_check
      %p516 = pneg %p515
    $region45: #{conv_vae_forward.21} parent=5 // pred_check_branch
      %518 = sbr.rel (%p516) target = $region47
    $region46: #{conv_vae_forward.21} parent=5 // pred_region
      %s519 = ssub.s32 %s9, 2
      // Predicated region
      $region48: #{conv_vae_forward.21} parent=46 // pred_check
        %p520 = pneg %p106
      $region49: #{conv_vae_forward.21} parent=46 // pred_check_branch
        %522 = sbr.rel (%p520) target = $region51
      $region50: #{conv_vae_forward.21} parent=46 // pred_region
        %p523 = scmp.lt.s32.totalorder %s15, 1
        %s524 = scalar_select %p523, %s15, 1
        %s525 = smul.addr %s524, 5
        %s526 = smul.addr %s525, 4
        %s527 = scalar_lea.vmem %s3, %s526
      $region51: #{conv_vae_forward.21} parent=46 // pred_fallthru
        _
    $region47: #{conv_vae_forward.21} parent=5 // pred_fallthru
      _
  $region6: #{conv_vae_forward.21} parent=0 // loop_footer
    %s13 = sadd.s32 1, %s9
  $region7: #{conv_vae_forward.21} parent=0 // loop_footer_branch
    %8 = sbr.rel target = $region3
  $region8: #{conv_vae_forward.21} parent=0 // loop_exit
    _

// kernel: conv_vae_forward.22
$region0: #{conv_vae_forward.22}
  #allocation0 [shape = 'u32[]', space=smem, size = 0x4, offset = 0x4, fixed_abs, tag = 'smem constant byte address 0x4 - core index']
  #allocation1 [shape = 'u32[144,128]{1,0:T(1,128)}', space=vmem, size = 0x12000, scoped, tag = 'internal scratch']
  %s0 = inlined_call_operand.vmem [shape: bf16[2,10,10,32], index: 0, kind: input, shape index: {}]
  %s1 = inlined_call_operand.vmem [shape: bf16[2,2,32,32], index: 1, kind: input, shape index: {}]
  %s2 = inlined_call_operand.vmem [shape: f32[1,32], index: 2, kind: input, shape index: {}]
  %s3 = inlined_call_operand.vmem [shape: bf16[2,9,9,32], index: 3, kind: output, shape index: {}]
  %s4 = sld [smem:[#allocation0]]
  $region52: #{conv_vae_forward.22} parent=0
    _
  %s6 = ssub.s32 1, %s4
  %s7 = scalar_select 0, %s6, %s4
  loop: start=0, step=1, limit=4
  $region2: #{conv_vae_forward.22} parent=0 // loop_pre_header
    _
  $region3: #{conv_vae_forward.22} parent=0 // loop_header
    %s9 = sphi 0, %s13
    %p10 = scmp.ge.s32.totalorder %s9, 4
    %s19 = sphi 0, %s21
    %s22 = sphi 0, %s19
    %s23 = sphi 0, %s22
    %s39 = sphi 0, %s23
    %s43 = sphi 0, %s43
    %s45 = sphi 0, %s43
    %s46 = sphi 0, %s45
    %s60 = sphi 0, %s46
    %s64 = sphi 0, %s64
    %s66 = sphi 0, %s64
    %s67 = sphi 0, %s66
    %s81 = sphi 0, %s67
    %s87 = sphi 0, %s89
    %s90 = sphi 0, %s87
    %s91 = sphi 0, %s90
    %s107 = sphi 0, %s91
  $region4: #{conv_vae_forward.22} parent=0 // loop_header_branch
    %12 = sbr.rel (%p10) target = $region8
  $region5: #{conv_vae_forward.22} parent=0 // loop_body
    %s14 = ssub.s32 %s9, 1
    %s15 = ssub.s32 %s9, 2
    %s16 = sadd.s32 %s9, 1
    %s17 = ssub.s32 %s9, %s16
    %p18 = scmp.eq.s32.totalorder %s17, 0
    %s20 = sadd.s32 %s19, 1
    %s21 = scalar_select %p18, %s19, %s20
    %p24 = pneg %p18
    %p25 = scmp.eq.s32.totalorder %s9, 1
    %p26 = por %p24, %p25
    %p27 = scmp.ne.s32.totalorder %s19, %s22
    %p28 = scmp.eq.s32.totalorder %s9, 0
    %p29 = por %p27, %p28
    %p30 = scmp.ne.s32.totalorder %s19, %s22
    %p31 = scmp.eq.s32.totalorder %s14, 1
    %p32 = por %p30, %p31
    %p33 = scmp.ne.s32.totalorder %s22, %s23
    %p34 = scmp.eq.s32.totalorder %s14, 0
    %p35 = por %p33, %p34
    %p36 = scmp.ne.s32.totalorder %s22, %s23
    %p37 = scmp.eq.s32.totalorder %s15, 1
    %p38 = por %p36, %p37
    %p40 = scmp.ne.s32.totalorder %s23, %s39
    %p41 = scmp.eq.s32.totalorder %s15, 0
    %p42 = por %p40, %p41
    %s44 = sadd.s32 %s43, 1
    %p47 = scmp.eq.s32.totalorder %s9, 1
    %p48 = scmp.ne.s32.totalorder %s43, %s45
    %p49 = scmp.eq.s32.totalorder %s9, 0
    %p50 = por %p48, %p49
    %p51 = scmp.ne.s32.totalorder %s43, %s45
    %p52 = scmp.eq.s32.totalorder %s14, 1
    %p53 = por %p51, %p52
    %p54 = scmp.ne.s32.totalorder %s45, %s46
    %p55 = scmp.eq.s32.totalorder %s14, 0
    %p56 = por %p54, %p55
    %p57 = scmp.ne.s32.totalorder %s45, %s46
    %p58 = scmp.eq.s32.totalorder %s15, 1
    %p59 = por %p57, %p58
    %p61 = scmp.ne.s32.totalorder %s46, %s60
    %p62 = scmp.eq.s32.totalorder %s15, 0
    %p63 = por %p61, %p62
    %s65 = sadd.s32 %s64, 1
    %p68 = scmp.eq.s32.totalorder %s9, 1
    %p69 = scmp.ne.s32.totalorder %s64, %s66
    %p70 = scmp.eq.s32.totalorder %s9, 0
    %p71 = por %p69, %p70
    %p72 = scmp.ne.s32.totalorder %s64, %s66
    %p73 = scmp.eq.s32.totalorder %s14, 1
    %p74 = por %p72, %p73
    %p75 = scmp.ne.s32.totalorder %s66, %s67
    %p76 = scmp.eq.s32.totalorder %s14, 0
    %p77 = por %p75, %p76
    %p78 = scmp.ne.s32.totalorder %s66, %s67
    %p79 = scmp.eq.s32.totalorder %s15, 1
    %p80 = por %p78, %p79
    %p82 = scmp.ne.s32.totalorder %s67, %s81
    %p83 = scmp.eq.s32.totalorder %s15, 0
    %p84 = por %p82, %p83
    %s85 = ssub.s32 %s9, %s16
    %p86 = scmp.eq.s32.totalorder %s85, 0
    %s88 = sadd.s32 %s87, 1
    %s89 = scalar_select %p86, %s87, %s88
    %p92 = pneg %p86
    %p93 = scmp.eq.s32.totalorder %s9, 1
    %p94 = por %p92, %p93
    %p95 = scmp.ne.s32.totalorder %s87, %s90
    %p96 = scmp.eq.s32.totalorder %s9, 0
    %p97 = por %p95, %p96
    %p98 = scmp.ne.s32.totalorder %s87, %s90
    %p99 = scmp.eq.s32.totalorder %s14, 1
    %p100 = por %p98, %p99
    %p101 = scmp.ne.s32.totalorder %s90, %s91
    %p102 = scmp.eq.s32.totalorder %s14, 0
    %p103 = por %p101, %p102
    %p104 = scmp.ne.s32.totalorder %s90, %s91
    %p105 = scmp.eq.s32.totalorder %s15, 1
    %p106 = por %p104, %p105
    %p108 = scmp.ne.s32.totalorder %s91, %s107
    %p109 = scmp.eq.s32.totalorder %s15, 0
    %p110 = por %p108, %p109
    %p111 = scmp.le.s32.totalorder 1, %s9
    %p112 = scmp.lt.s32.totalorder %s9, 3
    %p113 = pnand %p111, %p112
    %p114 = pneg %p113
    // Predicated region
    $region9: #{conv_vae_forward.22} parent=5 // pred_check
      _
    $region10: #{conv_vae_forward.22} parent=5 // pred_check_branch
      %116 = sbr.rel (%p113) target = $region12
    $region11: #{conv_vae_forward.22} parent=5 // pred_region
      %s117 = ssub.s32 %s9, 1
      // Predicated region
      $region13: #{conv_vae_forward.22} parent=11 // pred_check
        %p118 = pneg %p56
      $region14: #{conv_vae_forward.22} parent=11 // pred_check_branch
        %120 = sbr.rel (%p118) target = $region16
      $region15: #{conv_vae_forward.22} parent=11 // pred_region
        _
      $region16: #{conv_vae_forward.22} parent=11 // pred_fallthru
        _
      // Predicated region
      $region17: #{conv_vae_forward.22} parent=11 // pred_check
        %p121 = pneg %p77
      $region18: #{conv_vae_forward.22} parent=11 // pred_check_branch
        %123 = sbr.rel (%p121) target = $region20
      $region19: #{conv_vae_forward.22} parent=11 // pred_region
        _
      $region20: #{conv_vae_forward.22} parent=11 // pred_fallthru
        _
    $region12: #{conv_vae_forward.22} parent=5 // pred_fallthru
      _
    %p124 = scmp.lt.s32.totalorder %s9, 2
    // Predicated region
    $region21: #{conv_vae_forward.22} parent=5 // pred_check
      %p125 = pneg %p124
    $region22: #{conv_vae_forward.22} parent=5 // pred_check_branch
      %127 = sbr.rel (%p125) target = $region24
    $region23: #{conv_vae_forward.22} parent=5 // pred_region
      // Predicated region
      $region25: #{conv_vae_forward.22} parent=23 // pred_check
        %p128 = pneg %p29
      $region26: #{conv_vae_forward.22} parent=23 // pred_check_branch
        %130 = sbr.rel (%p128) target = $region28
      $region27: #{conv_vae_forward.22} parent=23 // pred_region
        %p131 = scmp.lt.s32.totalorder %s9, 1
        %s132 = scalar_select %p131, %s9, 1
        %s133 = smul.addr %s132, 20
        %s134 = smul.addr %s133, 4
        %s135 = scalar_lea.vmem %s0, %s134
      $region28: #{conv_vae_forward.22} parent=23 // pred_fallthru
        _
    $region24: #{conv_vae_forward.22} parent=5 // pred_fallthru
      _
    %p136 = scmp.le.s32.totalorder 1, %s9
    %p137 = scmp.lt.s32.totalorder %s9, 3
    %p138 = pnand %p136, %p137
    %p139 = pneg %p138
    // Predicated region
    $region29: #{conv_vae_forward.22} parent=5 // pred_check
      _
    $region30: #{conv_vae_forward.22} parent=5 // pred_check_branch
      %141 = sbr.rel (%p138) target = $region32
    $region31: #{conv_vae_forward.22} parent=5 // pred_region
      %s142 = ssub.s32 %s9, 1
      %p143 = scmp.lt.s32.totalorder %s14, 1
      %s144 = scalar_select %p143, %s14, 1
      %s145 = smul.addr %s144, 20
      %s146 = smul.addr %s145, 4
      %s147 = scalar_lea.vmem %s0, %s146
      %p148 = pneg %p35
      %p149 = pneg %p32
      %p150 = pneg %p56
      %p151 = pneg %p53
      %p152 = pneg %p77
      %p153 = pneg %p74
      %p154 = pneg %p103
      %p155 = pneg %p100
      %p156 = scmp.lt.s32.totalorder %s14, 1
      %s157 = scalar_select %p156, %s14, 1
      %s158 = smul.addr %s157, 18
      %s159 = smul.addr %s158, 4
      %s160 = scalar_lea.vmem %s3, %s159
      %p161 = scmp.lt.s32.totalorder %s14, 1
      %s162 = scalar_select %p161, %s14, 1
      %s163 = smul.addr %s162, 20
      %s164 = smul.addr %s163, 4
      %s165 = scalar_lea.vmem %s0, %s164
      %p166 = scmp.lt.s32.totalorder %s14, 1
      %s167 = scalar_select %p166, %s14, 1
      %s168 = smul.addr %s167, 18
      %s169 = smul.addr %s168, 4
      %s170 = scalar_lea.vmem %s3, %s169
      %v172 = vld [vmem:[%s1] sm:$0xf]
      %v173 = vld [vmem:[%s1 + $0x4] sm:$0xf]
      %v174 = vld [vmem:[%s1 + $0x8] sm:$0xf]
      %v175 = vld [vmem:[%s1 + $0xc] sm:$0xf]
      %s176 = scalar_lea.vmem %s1, 16
      %v177 = vld [vmem:[%s176] sm:$0xf]
      %v178 = vld [vmem:[%s176 + $0x4] sm:$0xf]
      %v179 = vld [vmem:[%s176 + $0x8] sm:$0xf]
      %v180 = vld [vmem:[%s176 + $0xc] sm:$0xf]
      %s181 = scalar_lea.vmem %s1, 32
      %v182 = vld [vmem:[%s181] sm:$0xf]
      %v183 = vld [vmem:[%s181 + $0x4] sm:$0xf]
      %v184 = vld [vmem:[%s181 + $0x8] sm:$0xf]
      %v185 = vld [vmem:[%s181 + $0xc] sm:$0xf]
      %s186 = scalar_lea.vmem %s1, 48
      %v187 = vld [vmem:[%s186] sm:$0xf]
      %v188 = vld [vmem:[%s186 + $0x4] sm:$0xf]
      %v189 = vld [vmem:[%s186 + $0x8] sm:$0xf]
      %v190 = vld [vmem:[%s186 + $0xc] sm:$0xf]
      %v191 = vld [vmem:[%s2] sm:$0x1]
      loop: start=0, step=1, limit=9
      $region33: #{conv_vae_forward.22} parent=31 // loop_pre_header
        _
      $region34: #{conv_vae_forward.22} parent=31 // loop_header
        %s193 = sphi 0, %s197
        %p194 = scmp.ge.s32.totalorder %s193, 9
      $region35: #{conv_vae_forward.22} parent=31 // loop_header_branch
        %196 = sbr.rel (%p194) target = $region39
      $region36: #{conv_vae_forward.22} parent=31 // loop_body
        %s198 = smul.u32 %s193, 2
        %s199 = smul.addr %s198, 4
        %s200 = scalar_lea.vmem %s165, %s199
        %v201 = vld [vmem:[%s200] sm:$0xf]
        %v202 = vld [vmem:[%s200 + $0x4] sm:$0x1]
        %v203 = vld [vmem:[%s200 + $0x8] sm:$0xf]
        %v204 = vld [vmem:[%s200 + $0xc] sm:$0x1]
        %v207 = vunpack.c.l.b16 %v201
        %v208 = vunpack.c.l.b16 %v202
        %v209 = vpack.c.b16 %v208, %v207
        %v214 = vunpack.c.l.b16 %v172
        %v215 = vunpack.c.l.b16 %v173
        %v216 = vunpack.c.l.b16 %v174
        %v217 = vunpack.c.l.b16 %v175
        %v218 = vpack.c.b16 %v215, %v214
        %v219 = vpack.c.b16 %v217, %v216
        %vm222 = vcmask 261120
        %v224 = vsel %vm222, %v209, 0
        %226 = vmatprep.subr.bf16.mxu0 0
        %227 = vmatpush1.bf16.msra.mxu0 %v218
        %228 = vmatprep.subr.bf16.mxu0 0
        %229 = vmatpush1.bf16.msra.mxu0 %v219
        %230 = vmatprep.subr.bf16.mxu0 0
        %231 = vmatpush1.bf16.msra.mxu0 0
        %232 = vmatprep.subr.bf16.mxu0 0
        %233 = vmatpush1.bf16.msra.mxu0 0
        %234 = vmatprep.subr.bf16.mxu0 0
        %235 = vmatpush1.bf16.msra.mxu0 0
        %236 = vmatprep.subr.bf16.mxu0 0
        %237 = vmatpush1.bf16.msra.mxu0 0
        %238 = vmatprep.subr.bf16.mxu0 0
        %239 = vmatpush1.bf16.msra.mxu0 0
        %240 = vmatprep.subr.bf16.mxu0 0
        %241 = vmatpush1.bf16.msra.mxu0 0
        %242 = vmatprep.subr.bf16.mxu0 0
        %243 = vmatpush1.bf16.msra.mxu0 0
        %244 = vmatprep.subr.bf16.mxu0 0
        %245 = vmatpush1.bf16.msra.mxu0 0
        %246 = vmatprep.subr.bf16.mxu0 0
        %247 = vmatpush1.bf16.msra.mxu0 0
        %248 = vmatprep.subr.bf16.mxu0 0
        %249 = vmatpush1.bf16.msra.mxu0 0
        %250 = vmatprep.subr.bf16.mxu0 0
        %251 = vmatpush1.bf16.msra.mxu0 0
        %252 = vmatprep.subr.bf16.mxu0 0
        %253 = vmatpush1.bf16.msra.mxu0 0
        %254 = vmatprep.subr.bf16.mxu0 0
        %255 = vmatpush1.bf16.msra.mxu0 0
        %256 = vmatprep.subr.bf16.mxu0 0
        %257 = vmatpush1.bf16.msra.mxu0 0
        %258 = vmatprep.mubr.bf16.mxu0 0
        %259 = vmatmul.mubr.bf16.gmra.mrb[0].mxu0 %v224
        %v260 = vpop.f32.mrb[0].mxu0
        %v261 = vadd.f32 0.0, %v260
        %v262 = vpop.f32.mrb[0].mxu0
        %v263 = vpop.f32.mrb[0].mxu0
        %v264 = vadd.f32 0.0, %v263
        %v265 = vpop.f32.mrb[0].mxu0
        %266 = vdwg.mxu0
        %v271 = vunpack.c.l.b16 %v177
        %v272 = vunpack.c.l.b16 %v178
        %v273 = vunpack.c.l.b16 %v179
        %v274 = vunpack.c.l.b16 %v180
        %v275 = vpack.c.b16 %v272, %v271
        %v276 = vpack.c.b16 %v274, %v273
        %279 = vmatprep.subr.bf16.mxu0 0
        %280 = vmatpush1.bf16.msra.mxu0 %v275
        %281 = vmatprep.subr.bf16.mxu0 0
        %282 = vmatpush1.bf16.msra.mxu0 %v276
        %283 = vmatprep.subr.bf16.mxu0 0
        %284 = vmatpush1.bf16.msra.mxu0 0
        %285 = vmatprep.subr.bf16.mxu0 0
        %286 = vmatpush1.bf16.msra.mxu0 0
        %287 = vmatprep.subr.bf16.mxu0 0
        %288 = vmatpush1.bf16.msra.mxu0 0
        %289 = vmatprep.subr.bf16.mxu0 0
        %290 = vmatpush1.bf16.msra.mxu0 0
        %291 = vmatprep.subr.bf16.mxu0 0
        %292 = vmatpush1.bf16.msra.mxu0 0
        %293 = vmatprep.subr.bf16.mxu0 0
        %294 = vmatpush1.bf16.msra.mxu0 0
        %295 = vmatprep.subr.bf16.mxu0 0
        %296 = vmatpush1.bf16.msra.mxu0 0
        %297 = vmatprep.subr.bf16.mxu0 0
        %298 = vmatpush1.bf16.msra.mxu0 0
        %299 = vmatprep.subr.bf16.mxu0 0
        %300 = vmatpush1.bf16.msra.mxu0 0
        %301 = vmatprep.subr.bf16.mxu0 0
        %302 = vmatpush1.bf16.msra.mxu0 0
        %303 = vmatprep.subr.bf16.mxu0 0
        %304 = vmatpush1.bf16.msra.mxu0 0
        %305 = vmatprep.subr.bf16.mxu0 0
        %306 = vmatpush1.bf16.msra.mxu0 0
        %307 = vmatprep.subr.bf16.mxu0 0
        %308 = vmatpush1.bf16.msra.mxu0 0
        %309 = vmatprep.subr.bf16.mxu0 0
        %310 = vmatpush1.bf16.msra.mxu0 0
        %311 = vmatprep.mubr.bf16.mxu0 0
        %312 = vmatmul.mubr.bf16.gmra.mrb[0].mxu0 %v224
        %v313 = vpop.f32.mrb[0].mxu0
        %v314 = vadd.f32 0.0, %v313
        %v315 = vpop.f32.mrb[0].mxu0
        %v316 = vpop.f32.mrb[0].mxu0
        %v317 = vadd.f32 0.0, %v316
        %v318 = vpop.f32.mrb[0].mxu0
        %319 = vdwg.mxu0
        %v322 = vunpack.c.l.b16 %v203
        %v323 = vunpack.c.l.b16 %v204
        %v324 = vpack.c.b16 %v323, %v322
        %v329 = vunpack.c.l.b16 %v182
        %v330 = vunpack.c.l.b16 %v183
        %v331 = vunpack.c.l.b16 %v184
        %v332 = vunpack.c.l.b16 %v185
        %v333 = vpack.c.b16 %v330, %v329
        %v334 = vpack.c.b16 %v332, %v331
        %v338 = vsel %vm222, %v324, 0
        %340 = vmatprep.subr.bf16.mxu0 0
        %341 = vmatpush1.bf16.msra.mxu0 %v333
        %342 = vmatprep.subr.bf16.mxu0 0
        %343 = vmatpush1.bf16.msra.mxu0 %v334
        %344 = vmatprep.subr.bf16.mxu0 0
        %345 = vmatpush1.bf16.msra.mxu0 0
        %346 = vmatprep.subr.bf16.mxu0 0
        %347 = vmatpush1.bf16.msra.mxu0 0
        %348 = vmatprep.subr.bf16.mxu0 0
        %349 = vmatpush1.bf16.msra.mxu0 0
        %350 = vmatprep.subr.bf16.mxu0 0
        %351 = vmatpush1.bf16.msra.mxu0 0
        %352 = vmatprep.subr.bf16.mxu0 0
        %353 = vmatpush1.bf16.msra.mxu0 0
        %354 = vmatprep.subr.bf16.mxu0 0
        %355 = vmatpush1.bf16.msra.mxu0 0
        %356 = vmatprep.subr.bf16.mxu0 0
        %357 = vmatpush1.bf16.msra.mxu0 0
        %358 = vmatprep.subr.bf16.mxu0 0
        %359 = vmatpush1.bf16.msra.mxu0 0
        %360 = vmatprep.subr.bf16.mxu0 0
        %361 = vmatpush1.bf16.msra.mxu0 0
        %362 = vmatprep.subr.bf16.mxu0 0
        %363 = vmatpush1.bf16.msra.mxu0 0
        %364 = vmatprep.subr.bf16.mxu0 0
        %365 = vmatpush1.bf16.msra.mxu0 0
        %366 = vmatprep.subr.bf16.mxu0 0
        %367 = vmatpush1.bf16.msra.mxu0 0
        %368 = vmatprep.subr.bf16.mxu0 0
        %369 = vmatpush1.bf16.msra.mxu0 0
        %370 = vmatprep.subr.bf16.mxu0 0
        %371 = vmatpush1.bf16.msra.mxu0 0
        %372 = vmatprep.mubr.bf16.mxu0 0
        %373 = vmatmul.mubr.bf16.gmra.mrb[0].mxu0 %v338
        %v374 = vpop.f32.mrb[0].mxu0
        %v375 = vadd.f32 0.0, %v374
        %v376 = vpop.f32.mrb[0].mxu0
        %v377 = vpop.f32.mrb[0].mxu0
        %v378 = vadd.f32 0.0, %v377
        %v379 = vpop.f32.mrb[0].mxu0
        %380 = vdwg.mxu0
        %v385 = vunpack.c.l.b16 %v187
        %v386 = vunpack.c.l.b16 %v188
        %v387 = vunpack.c.l.b16 %v189
        %v388 = vunpack.c.l.b16 %v190
        %v389 = vpack.c.b16 %v386, %v385
        %v390 = vpack.c.b16 %v388, %v387
        %393 = vmatprep.subr.bf16.mxu0 0
        %394 = vmatpush1.bf16.msra.mxu0 %v389
        %395 = vmatprep.subr.bf16.mxu0 0
        %396 = vmatpush1.bf16.msra.mxu0 %v390
        %397 = vmatprep.subr.bf16.mxu0 0
        %398 = vmatpush1.bf16.msra.mxu0 0
        %399 = vmatprep.subr.bf16.mxu0 0
        %400 = vmatpush1.bf16.msra.mxu0 0
        %401 = vmatprep.subr.bf16.mxu0 0
        %402 = vmatpush1.bf16.msra.mxu0 0
        %403 = vmatprep.subr.bf16.mxu0 0
        %404 = vmatpush1.bf16.msra.mxu0 0
        %405 = vmatprep.subr.bf16.mxu0 0
        %406 = vmatpush1.bf16.msra.mxu0 0
        %407 = vmatprep.subr.bf16.mxu0 0
        %408 = vmatpush1.bf16.msra.mxu0 0
        %409 = vmatprep.subr.bf16.mxu0 0
        %410 = vmatpush1.bf16.msra.mxu0 0
        %411 = vmatprep.subr.bf16.mxu0 0
        %412 = vmatpush1.bf16.msra.mxu0 0
        %413 = vmatprep.subr.bf16.mxu0 0
        %414 = vmatpush1.bf16.msra.mxu0 0
        %415 = vmatprep.subr.bf16.mxu0 0
        %416 = vmatpush1.bf16.msra.mxu0 0
        %417 = vmatprep.subr.bf16.mxu0 0
        %418 = vmatpush1.bf16.msra.mxu0 0
        %419 = vmatprep.subr.bf16.mxu0 0
        %420 = vmatpush1.bf16.msra.mxu0 0
        %421 = vmatprep.subr.bf16.mxu0 0
        %422 = vmatpush1.bf16.msra.mxu0 0
        %423 = vmatprep.subr.bf16.mxu0 0
        %424 = vmatpush1.bf16.msra.mxu0 0
        %425 = vmatprep.mubr.bf16.mxu0 0
        %426 = vmatmul.mubr.bf16.gmra.mrb[0].mxu0 %v338
        %v427 = vpop.f32.mrb[0].mxu0
        %v428 = vadd.f32 0.0, %v427
        %v429 = vpop.f32.mrb[0].mxu0
        %v430 = vpop.f32.mrb[0].mxu0
        %v431 = vadd.f32 0.0, %v430
        %v432 = vpop.f32.mrb[0].mxu0
        %433 = vdwg.mxu0
        %v434 = vadd.f32 %v261, %v375
        %v435 = vadd.f32 %v264, %v378
        %vm438 = vcmask 1046528
        %v439 = vrot.slane %v314, 1
        %v440 = vrot.slane %v317, 1
        %v441 = vsel %vm438, %v439, %v440
        %v444 = vadd.f32 %v434, %v441
        %v445 = vadd.f32 %v435, %v440
        %v448 = vrot.slane %v428, 1
        %v449 = vrot.slane %v431, 1
        %v450 = vsel %vm438, %v448, %v449
        %v453 = vadd.f32 %v444, %v450
        %v454 = vadd.f32 %v445, %v449
        %v456 = vlaneseq
        %v457 = vshrl.u32 %v456, 7
        %v458 = vsub.s32 0, %v457
        %v459 = vrot.slane %v191, %v458
        %v461 = vadd.f32 %v453, %v459
        %v462 = vadd.f32 %v454, %v459
        %v463 = vmax.f32 %v461, 0.0
        %v464 = vmax.f32 %v462, 0.0
        %v465 = vpack.c.bf16 %v464, %v463
        %v467 = vunpack.c.l.b16 %v465
        %v468 = vunpack.c.h.b16 %v465
        %v469 = vpack.c.b16 %v467, %v467
        %v470 = vpack.c.b16 %v468, %v468
        %s473 = smul.addr %s198, 4
        %s474 = scalar_lea.vmem %s170, %s473
        %vm475 = vcmask 257024
        %476 = vst.msk [vmem:[%s474] sm:$0xf] %vm475, %v469
        %vm477 = vcmask 253952
        %vm478 = vsmask.f32 256
        %vm479 = vmand %vm477, %vm478
        %v480 = vld [vmem:[%s474 + $0x4] sm:$0x1]
        %v481 = vsel %vm479, %v470, %v480
        %482 = vst [vmem:[%s474 + $0x4] sm:$0x1] %v481
      $region37: #{conv_vae_forward.22} parent=31 // loop_footer
        %s197 = sadd.s32 1, %s193
      $region38: #{conv_vae_forward.22} parent=31 // loop_footer_branch
        %192 = sbr.rel target = $region34
      $region39: #{conv_vae_forward.22} parent=31 // loop_exit
        _
      %p483 = scmp.lt.s32.totalorder %s14, 1
      %s484 = scalar_select %p483, %s14, 1
      %s485 = smul.addr %s484, 18
      %s486 = smul.addr %s485, 4
      %s487 = scalar_lea.vmem %s3, %s486
      // Predicated region
      $region40: #{conv_vae_forward.22} parent=31 // pred_check
        %p488 = pneg %p100
      $region41: #{conv_vae_forward.22} parent=31 // pred_check_branch
        %490 = sbr.rel (%p488) target = $region43
      $region42: #{conv_vae_forward.22} parent=31 // pred_region
        _
      $region43: #{conv_vae_forward.22} parent=31 // pred_fallthru
        _
    $region32: #{conv_vae_forward.22} parent=5 // pred_fallthru
      _
    %p491 = scmp.le.s32.totalorder 2, %s9
    // Predicated region
    $region44: #{conv_vae_forward.22} parent=5 // pred_check
      %p492 = pneg %p491
    $region45: #{conv_vae_forward.22} parent=5 // pred_check_branch
      %494 = sbr.rel (%p492) target = $region47
    $region46: #{conv_vae_forward.22} parent=5 // pred_region
      %s495 = ssub.s32 %s9, 2
      // Predicated region
      $region48: #{conv_vae_forward.22} parent=46 // pred_check
        %p496 = pneg %p106
      $region49: #{conv_vae_forward.22} parent=46 // pred_check_branch
        %498 = sbr.rel (%p496) target = $region51
      $region50: #{conv_vae_forward.22} parent=46 // pred_region
        %p499 = scmp.lt.s32.totalorder %s15, 1
        %s500 = scalar_select %p499, %s15, 1
        %s501 = smul.addr %s500, 18
        %s502 = smul.addr %s501, 4
        %s503 = scalar_lea.vmem %s3, %s502
      $region51: #{conv_vae_forward.22} parent=46 // pred_fallthru
        _
    $region47: #{conv_vae_forward.22} parent=5 // pred_fallthru
      _
  $region6: #{conv_vae_forward.22} parent=0 // loop_footer
    %s13 = sadd.s32 1, %s9
  $region7: #{conv_vae_forward.22} parent=0 // loop_footer_branch
    %8 = sbr.rel target = $region3
  $region8: #{conv_vae_forward.22} parent=0 // loop_exit
    _

// kernel: conv_vae_forward.23
$region0: #{conv_vae_forward.23}
  #allocation0 [shape = 'u32[]', space=smem, size = 0x4, offset = 0x4, fixed_abs, tag = 'smem constant byte address 0x4 - core index']
  #allocation1 [shape = 'u32[144,128]{1,0:T(1,128)}', space=vmem, size = 0x12000, scoped, tag = 'internal scratch']
  %s0 = inlined_call_operand.vmem [shape: bf16[2,18,18,16], index: 0, kind: input, shape index: {}]
  %s1 = inlined_call_operand.vmem [shape: bf16[2,2,16,4], index: 1, kind: input, shape index: {}]
  %s2 = inlined_call_operand.vmem [shape: f32[1,4], index: 2, kind: input, shape index: {}]
  %s3 = inlined_call_operand.vmem [shape: f32[2,17,17,4], index: 3, kind: output, shape index: {}]
  %s4 = sld [smem:[#allocation0]]
  $region52: #{conv_vae_forward.23} parent=0
    _
  %s6 = ssub.s32 1, %s4
  %s7 = scalar_select 0, %s6, %s4
  loop: start=0, step=1, limit=4
  $region2: #{conv_vae_forward.23} parent=0 // loop_pre_header
    _
  $region3: #{conv_vae_forward.23} parent=0 // loop_header
    %s9 = sphi 0, %s13
    %p10 = scmp.ge.s32.totalorder %s9, 4
    %s19 = sphi 0, %s21
    %s22 = sphi 0, %s19
    %s23 = sphi 0, %s22
    %s39 = sphi 0, %s23
    %s43 = sphi 0, %s43
    %s45 = sphi 0, %s43
    %s46 = sphi 0, %s45
    %s60 = sphi 0, %s46
    %s64 = sphi 0, %s64
    %s66 = sphi 0, %s64
    %s67 = sphi 0, %s66
    %s81 = sphi 0, %s67
    %s87 = sphi 0, %s89
    %s90 = sphi 0, %s87
    %s91 = sphi 0, %s90
    %s107 = sphi 0, %s91
  $region4: #{conv_vae_forward.23} parent=0 // loop_header_branch
    %12 = sbr.rel (%p10) target = $region8
  $region5: #{conv_vae_forward.23} parent=0 // loop_body
    %s14 = ssub.s32 %s9, 1
    %s15 = ssub.s32 %s9, 2
    %s16 = sadd.s32 %s9, 1
    %s17 = ssub.s32 %s9, %s16
    %p18 = scmp.eq.s32.totalorder %s17, 0
    %s20 = sadd.s32 %s19, 1
    %s21 = scalar_select %p18, %s19, %s20
    %p24 = pneg %p18
    %p25 = scmp.eq.s32.totalorder %s9, 1
    %p26 = por %p24, %p25
    %p27 = scmp.ne.s32.totalorder %s19, %s22
    %p28 = scmp.eq.s32.totalorder %s9, 0
    %p29 = por %p27, %p28
    %p30 = scmp.ne.s32.totalorder %s19, %s22
    %p31 = scmp.eq.s32.totalorder %s14, 1
    %p32 = por %p30, %p31
    %p33 = scmp.ne.s32.totalorder %s22, %s23
    %p34 = scmp.eq.s32.totalorder %s14, 0
    %p35 = por %p33, %p34
    %p36 = scmp.ne.s32.totalorder %s22, %s23
    %p37 = scmp.eq.s32.totalorder %s15, 1
    %p38 = por %p36, %p37
    %p40 = scmp.ne.s32.totalorder %s23, %s39
    %p41 = scmp.eq.s32.totalorder %s15, 0
    %p42 = por %p40, %p41
    %s44 = sadd.s32 %s43, 1
    %p47 = scmp.eq.s32.totalorder %s9, 1
    %p48 = scmp.ne.s32.totalorder %s43, %s45
    %p49 = scmp.eq.s32.totalorder %s9, 0
    %p50 = por %p48, %p49
    %p51 = scmp.ne.s32.totalorder %s43, %s45
    %p52 = scmp.eq.s32.totalorder %s14, 1
    %p53 = por %p51, %p52
    %p54 = scmp.ne.s32.totalorder %s45, %s46
    %p55 = scmp.eq.s32.totalorder %s14, 0
    %p56 = por %p54, %p55
    %p57 = scmp.ne.s32.totalorder %s45, %s46
    %p58 = scmp.eq.s32.totalorder %s15, 1
    %p59 = por %p57, %p58
    %p61 = scmp.ne.s32.totalorder %s46, %s60
    %p62 = scmp.eq.s32.totalorder %s15, 0
    %p63 = por %p61, %p62
    %s65 = sadd.s32 %s64, 1
    %p68 = scmp.eq.s32.totalorder %s9, 1
    %p69 = scmp.ne.s32.totalorder %s64, %s66
    %p70 = scmp.eq.s32.totalorder %s9, 0
    %p71 = por %p69, %p70
    %p72 = scmp.ne.s32.totalorder %s64, %s66
    %p73 = scmp.eq.s32.totalorder %s14, 1
    %p74 = por %p72, %p73
    %p75 = scmp.ne.s32.totalorder %s66, %s67
    %p76 = scmp.eq.s32.totalorder %s14, 0
    %p77 = por %p75, %p76
    %p78 = scmp.ne.s32.totalorder %s66, %s67
    %p79 = scmp.eq.s32.totalorder %s15, 1
    %p80 = por %p78, %p79
    %p82 = scmp.ne.s32.totalorder %s67, %s81
    %p83 = scmp.eq.s32.totalorder %s15, 0
    %p84 = por %p82, %p83
    %s85 = ssub.s32 %s9, %s16
    %p86 = scmp.eq.s32.totalorder %s85, 0
    %s88 = sadd.s32 %s87, 1
    %s89 = scalar_select %p86, %s87, %s88
    %p92 = pneg %p86
    %p93 = scmp.eq.s32.totalorder %s9, 1
    %p94 = por %p92, %p93
    %p95 = scmp.ne.s32.totalorder %s87, %s90
    %p96 = scmp.eq.s32.totalorder %s9, 0
    %p97 = por %p95, %p96
    %p98 = scmp.ne.s32.totalorder %s87, %s90
    %p99 = scmp.eq.s32.totalorder %s14, 1
    %p100 = por %p98, %p99
    %p101 = scmp.ne.s32.totalorder %s90, %s91
    %p102 = scmp.eq.s32.totalorder %s14, 0
    %p103 = por %p101, %p102
    %p104 = scmp.ne.s32.totalorder %s90, %s91
    %p105 = scmp.eq.s32.totalorder %s15, 1
    %p106 = por %p104, %p105
    %p108 = scmp.ne.s32.totalorder %s91, %s107
    %p109 = scmp.eq.s32.totalorder %s15, 0
    %p110 = por %p108, %p109
    %p111 = scmp.le.s32.totalorder 1, %s9
    %p112 = scmp.lt.s32.totalorder %s9, 3
    %p113 = pnand %p111, %p112
    %p114 = pneg %p113
    // Predicated region
    $region9: #{conv_vae_forward.23} parent=5 // pred_check
      _
    $region10: #{conv_vae_forward.23} parent=5 // pred_check_branch
      %116 = sbr.rel (%p113) target = $region12
    $region11: #{conv_vae_forward.23} parent=5 // pred_region
      %s117 = ssub.s32 %s9, 1
      // Predicated region
      $region13: #{conv_vae_forward.23} parent=11 // pred_check
        %p118 = pneg %p56
      $region14: #{conv_vae_forward.23} parent=11 // pred_check_branch
        %120 = sbr.rel (%p118) target = $region16
      $region15: #{conv_vae_forward.23} parent=11 // pred_region
        _
      $region16: #{conv_vae_forward.23} parent=11 // pred_fallthru
        _
      // Predicated region
      $region17: #{conv_vae_forward.23} parent=11 // pred_check
        %p121 = pneg %p77
      $region18: #{conv_vae_forward.23} parent=11 // pred_check_branch
        %123 = sbr.rel (%p121) target = $region20
      $region19: #{conv_vae_forward.23} parent=11 // pred_region
        _
      $region20: #{conv_vae_forward.23} parent=11 // pred_fallthru
        _
    $region12: #{conv_vae_forward.23} parent=5 // pred_fallthru
      _
    %p124 = scmp.lt.s32.totalorder %s9, 2
    // Predicated region
    $region21: #{conv_vae_forward.23} parent=5 // pred_check
      %p125 = pneg %p124
    $region22: #{conv_vae_forward.23} parent=5 // pred_check_branch
      %127 = sbr.rel (%p125) target = $region24
    $region23: #{conv_vae_forward.23} parent=5 // pred_region
      // Predicated region
      $region25: #{conv_vae_forward.23} parent=23 // pred_check
        %p128 = pneg %p29
      $region26: #{conv_vae_forward.23} parent=23 // pred_check_branch
        %130 = sbr.rel (%p128) target = $region28
      $region27: #{conv_vae_forward.23} parent=23 // pred_region
        %p131 = scmp.lt.s32.totalorder %s9, 1
        %s132 = scalar_select %p131, %s9, 1
        %s133 = smul.addr %s132, 54
        %s134 = smul.addr %s133, 4
        %s135 = scalar_lea.vmem %s0, %s134
      $region28: #{conv_vae_forward.23} parent=23 // pred_fallthru
        _
    $region24: #{conv_vae_forward.23} parent=5 // pred_fallthru
      _
    %p136 = scmp.le.s32.totalorder 1, %s9
    %p137 = scmp.lt.s32.totalorder %s9, 3
    %p138 = pnand %p136, %p137
    %p139 = pneg %p138
    // Predicated region
    $region29: #{conv_vae_forward.23} parent=5 // pred_check
      _
    $region30: #{conv_vae_forward.23} parent=5 // pred_check_branch
      %141 = sbr.rel (%p138) target = $region32
    $region31: #{conv_vae_forward.23} parent=5 // pred_region
      %s142 = ssub.s32 %s9, 1
      %p143 = scmp.lt.s32.totalorder %s14, 1
      %s144 = scalar_select %p143, %s14, 1
      %s145 = smul.addr %s144, 54
      %s146 = smul.addr %s145, 4
      %s147 = scalar_lea.vmem %s0, %s146
      %p148 = pneg %p35
      %p149 = pneg %p32
      %p150 = pneg %p56
      %p151 = pneg %p53
      %p152 = pneg %p77
      %p153 = pneg %p74
      %p154 = pneg %p103
      %p155 = pneg %p100
      %p156 = scmp.lt.s32.totalorder %s14, 1
      %s157 = scalar_select %p156, %s14, 1
      %s158 = smul.addr %s157, 51
      %s159 = smul.addr %s158, 8
      %s160 = scalar_lea.vmem %s3, %s159
      %p161 = scmp.lt.s32.totalorder %s14, 1
      %s162 = scalar_select %p161, %s14, 1
      %s163 = smul.addr %s162, 54
      %s164 = smul.addr %s163, 4
      %s165 = scalar_lea.vmem %s0, %s164
      %p166 = scmp.lt.s32.totalorder %s14, 1
      %s167 = scalar_select %p166, %s14, 1
      %s168 = smul.addr %s167, 51
      %s169 = smul.addr %s168, 8
      %s170 = scalar_lea.vmem %s3, %s169
      %v172 = vld [vmem:[%s1] sm:$0xf]
      %v173 = vld [vmem:[%s1 + $0x4] sm:$0xf]
      %s174 = scalar_lea.vmem %s1, 8
      %v175 = vld [vmem:[%s174] sm:$0xf]
      %v176 = vld [vmem:[%s174 + $0x4] sm:$0xf]
      %s177 = scalar_lea.vmem %s1, 16
      %v178 = vld [vmem:[%s177] sm:$0xf]
      %v179 = vld [vmem:[%s177 + $0x4] sm:$0xf]
      %s180 = scalar_lea.vmem %s1, 24
      %v181 = vld [vmem:[%s180] sm:$0xf]
      %v182 = vld [vmem:[%s180 + $0x4] sm:$0xf]
      %v183 = vld [vmem:[%s2] sm:$0x1]
      loop: start=0, step=1, limit=17
      $region33: #{conv_vae_forward.23} parent=31 // loop_pre_header
        _
      $region34: #{conv_vae_forward.23} parent=31 // loop_header
        %s185 = sphi 0, %s189
        %p186 = scmp.ge.s32.totalorder %s185, 17
      $region35: #{conv_vae_forward.23} parent=31 // loop_header_branch
        %188 = sbr.rel (%p186) target = $region39
      $region36: #{conv_vae_forward.23} parent=31 // loop_body
        %s190 = smul.u32 %s185, 3
        %s191 = smul.addr %s190, 4
        %s192 = scalar_lea.vmem %s165, %s191
        %v193 = vld [vmem:[%s192] sm:$0xf]
        %v194 = vld [vmem:[%s192 + $0x4] sm:$0xf]
        %v195 = vld [vmem:[%s192 + $0x8] sm:$0x1]
        %v196 = vld [vmem:[%s192 + $0xc] sm:$0xf]
        %v197 = vld [vmem:[%s192 + $0x10] sm:$0xf]
        %v198 = vld [vmem:[%s192 + $0x14] sm:$0x1]
        %v202 = vunpack.c.l.b16 %v193
        %v203 = vunpack.c.l.b16 %v194
        %v204 = vunpack.c.l.b16 %v195
        %v205 = vpack.c.b16 %v203, %v202
        %v206 = vpack.c.b16 %v204, %v204
        %v209 = vunpack.c.l.b16 %v172
        %v210 = vunpack.c.l.b16 %v173
        %v211 = vpack.c.b16 %v210, %v209
        %vm213 = vcmask 130048
        %v215 = vsel %vm213, %v205, 0
        %v218 = vsel %vm213, %v206, 0
        %220 = vmatprep.subr.bf16.mxu0 0
        %221 = vmatpush1.bf16.msra.mxu0 %v211
        %222 = vmatprep.subr.bf16.mxu0 0
        %223 = vmatpush1.bf16.msra.mxu0 0
        %224 = vmatprep.subr.bf16.mxu0 0
        %225 = vmatpush1.bf16.msra.mxu0 0
        %226 = vmatprep.subr.bf16.mxu0 0
        %227 = vmatpush1.bf16.msra.mxu0 0
        %228 = vmatprep.subr.bf16.mxu0 0
        %229 = vmatpush1.bf16.msra.mxu0 0
        %230 = vmatprep.subr.bf16.mxu0 0
        %231 = vmatpush1.bf16.msra.mxu0 0
        %232 = vmatprep.subr.bf16.mxu0 0
        %233 = vmatpush1.bf16.msra.mxu0 0
        %234 = vmatprep.subr.bf16.mxu0 0
        %235 = vmatpush1.bf16.msra.mxu0 0
        %236 = vmatprep.subr.bf16.mxu0 0
        %237 = vmatpush1.bf16.msra.mxu0 0
        %238 = vmatprep.subr.bf16.mxu0 0
        %239 = vmatpush1.bf16.msra.mxu0 0
        %240 = vmatprep.subr.bf16.mxu0 0
        %241 = vmatpush1.bf16.msra.mxu0 0
        %242 = vmatprep.subr.bf16.mxu0 0
        %243 = vmatpush1.bf16.msra.mxu0 0
        %244 = vmatprep.subr.bf16.mxu0 0
        %245 = vmatpush1.bf16.msra.mxu0 0
        %246 = vmatprep.subr.bf16.mxu0 0
        %247 = vmatpush1.bf16.msra.mxu0 0
        %248 = vmatprep.subr.bf16.mxu0 0
        %249 = vmatpush1.bf16.msra.mxu0 0
        %250 = vmatprep.subr.bf16.mxu0 0
        %251 = vmatpush1.bf16.msra.mxu0 0
        %252 = vmatprep.mubr.bf16.mxu0 0
        %253 = vmatmul.mubr.bf16.gmra.mrb[0].mxu0 %v215
        %v254 = vpop.f32.mrb[0].mxu0
        %v255 = vadd.f32 0.0, %v254
        %v256 = vpop.f32.mrb[0].mxu0
        %v257 = vpop.f32.mrb[0].mxu0
        %v258 = vadd.f32 0.0, %v257
        %v259 = vpop.f32.mrb[0].mxu0
        %260 = vmatprep.mubr.bf16.mxu0 0
        %261 = vmatmul.mubr.bf16.gmra.mrb[0].mxu0 %v218
        %v262 = vpop.f32.mrb[0].mxu0
        %v263 = vadd.f32 0.0, %v262
        %v264 = vpop.f32.mrb[0].mxu0
        %v265 = vpop.f32.mrb[0].mxu0
        %v266 = vpop.f32.mrb[0].mxu0
        %267 = vdwg.mxu0
        %v270 = vunpack.c.l.b16 %v175
        %v271 = vunpack.c.l.b16 %v176
        %v272 = vpack.c.b16 %v271, %v270
        %274 = vmatprep.subr.bf16.mxu0 0
        %275 = vmatpush1.bf16.msra.mxu0 %v272
        %276 = vmatprep.subr.bf16.mxu0 0
        %277 = vmatpush1.bf16.msra.mxu0 0
        %278 = vmatprep.subr.bf16.mxu0 0
        %279 = vmatpush1.bf16.msra.mxu0 0
        %280 = vmatprep.subr.bf16.mxu0 0
        %281 = vmatpush1.bf16.msra.mxu0 0
        %282 = vmatprep.subr.bf16.mxu0 0
        %283 = vmatpush1.bf16.msra.mxu0 0
        %284 = vmatprep.subr.bf16.mxu0 0
        %285 = vmatpush1.bf16.msra.mxu0 0
        %286 = vmatprep.subr.bf16.mxu0 0
        %287 = vmatpush1.bf16.msra.mxu0 0
        %288 = vmatprep.subr.bf16.mxu0 0
        %289 = vmatpush1.bf16.msra.mxu0 0
        %290 = vmatprep.subr.bf16.mxu0 0
        %291 = vmatpush1.bf16.msra.mxu0 0
        %292 = vmatprep.subr.bf16.mxu0 0
        %293 = vmatpush1.bf16.msra.mxu0 0
        %294 = vmatprep.subr.bf16.mxu0 0
        %295 = vmatpush1.bf16.msra.mxu0 0
        %296 = vmatprep.subr.bf16.mxu0 0
        %297 = vmatpush1.bf16.msra.mxu0 0
        %298 = vmatprep.subr.bf16.mxu0 0
        %299 = vmatpush1.bf16.msra.mxu0 0
        %300 = vmatprep.subr.bf16.mxu0 0
        %301 = vmatpush1.bf16.msra.mxu0 0
        %302 = vmatprep.subr.bf16.mxu0 0
        %303 = vmatpush1.bf16.msra.mxu0 0
        %304 = vmatprep.subr.bf16.mxu0 0
        %305 = vmatpush1.bf16.msra.mxu0 0
        %306 = vmatprep.mubr.bf16.mxu0 0
        %307 = vmatmul.mubr.bf16.gmra.mrb[0].mxu0 %v215
        %v308 = vpop.f32.mrb[0].mxu0
        %v309 = vadd.f32 0.0, %v308
        %v310 = vpop.f32.mrb[0].mxu0
        %v311 = vpop.f32.mrb[0].mxu0
        %v312 = vadd.f32 0.0, %v311
        %v313 = vpop.f32.mrb[0].mxu0
        %314 = vmatprep.mubr.bf16.mxu0 0
        %315 = vmatmul.mubr.bf16.gmra.mrb[0].mxu0 %v218
        %v316 = vpop.f32.mrb[0].mxu0
        %v317 = vadd.f32 0.0, %v316
        %v318 = vpop.f32.mrb[0].mxu0
        %v319 = vpop.f32.mrb[0].mxu0
        %v320 = vpop.f32.mrb[0].mxu0
        %321 = vdwg.mxu0
        %v325 = vunpack.c.l.b16 %v196
        %v326 = vunpack.c.l.b16 %v197
        %v327 = vunpack.c.l.b16 %v198
        %v328 = vpack.c.b16 %v326, %v325
        %v329 = vpack.c.b16 %v327, %v327
        %v332 = vunpack.c.l.b16 %v178
        %v333 = vunpack.c.l.b16 %v179
        %v334 = vpack.c.b16 %v333, %v332
        %v337 = vsel %vm213, %v328, 0
        %v340 = vsel %vm213, %v329, 0
        %342 = vmatprep.subr.bf16.mxu0 0
        %343 = vmatpush1.bf16.msra.mxu0 %v334
        %344 = vmatprep.subr.bf16.mxu0 0
        %345 = vmatpush1.bf16.msra.mxu0 0
        %346 = vmatprep.subr.bf16.mxu0 0
        %347 = vmatpush1.bf16.msra.mxu0 0
        %348 = vmatprep.subr.bf16.mxu0 0
        %349 = vmatpush1.bf16.msra.mxu0 0
        %350 = vmatprep.subr.bf16.mxu0 0
        %351 = vmatpush1.bf16.msra.mxu0 0
        %352 = vmatprep.subr.bf16.mxu0 0
        %353 = vmatpush1.bf16.msra.mxu0 0
        %354 = vmatprep.subr.bf16.mxu0 0
        %355 = vmatpush1.bf16.msra.mxu0 0
        %356 = vmatprep.subr.bf16.mxu0 0
        %357 = vmatpush1.bf16.msra.mxu0 0
        %358 = vmatprep.subr.bf16.mxu0 0
        %359 = vmatpush1.bf16.msra.mxu0 0
        %360 = vmatprep.subr.bf16.mxu0 0
        %361 = vmatpush1.bf16.msra.mxu0 0
        %362 = vmatprep.subr.bf16.mxu0 0
        %363 = vmatpush1.bf16.msra.mxu0 0
        %364 = vmatprep.subr.bf16.mxu0 0
        %365 = vmatpush1.bf16.msra.mxu0 0
        %366 = vmatprep.subr.bf16.mxu0 0
        %367 = vmatpush1.bf16.msra.mxu0 0
        %368 = vmatprep.subr.bf16.mxu0 0
        %369 = vmatpush1.bf16.msra.mxu0 0
        %370 = vmatprep.subr.bf16.mxu0 0
        %371 = vmatpush1.bf16.msra.mxu0 0
        %372 = vmatprep.subr.bf16.mxu0 0
        %373 = vmatpush1.bf16.msra.mxu0 0
        %374 = vmatprep.mubr.bf16.mxu0 0
        %375 = vmatmul.mubr.bf16.gmra.mrb[0].mxu0 %v337
        %v376 = vpop.f32.mrb[0].mxu0
        %v377 = vadd.f32 0.0, %v376
        %v378 = vpop.f32.mrb[0].mxu0
        %v379 = vpop.f32.mrb[0].mxu0
        %v380 = vadd.f32 0.0, %v379
        %v381 = vpop.f32.mrb[0].mxu0
        %382 = vmatprep.mubr.bf16.mxu0 0
        %383 = vmatmul.mubr.bf16.gmra.mrb[0].mxu0 %v340
        %v384 = vpop.f32.mrb[0].mxu0
        %v385 = vadd.f32 0.0, %v384
        %v386 = vpop.f32.mrb[0].mxu0
        %v387 = vpop.f32.mrb[0].mxu0
        %v388 = vpop.f32.mrb[0].mxu0
        %389 = vdwg.mxu0
        %v392 = vunpack.c.l.b16 %v181
        %v393 = vunpack.c.l.b16 %v182
        %v394 = vpack.c.b16 %v393, %v392
        %396 = vmatprep.subr.bf16.mxu0 0
        %397 = vmatpush1.bf16.msra.mxu0 %v394
        %398 = vmatprep.subr.bf16.mxu0 0
        %399 = vmatpush1.bf16.msra.mxu0 0
        %400 = vmatprep.subr.bf16.mxu0 0
        %401 = vmatpush1.bf16.msra.mxu0 0
        %402 = vmatprep.subr.bf16.mxu0 0
        %403 = vmatpush1.bf16.msra.mxu0 0
        %404 = vmatprep.subr.bf16.mxu0 0
        %405 = vmatpush1.bf16.msra.mxu0 0
        %406 = vmatprep.subr.bf16.mxu0 0
        %407 = vmatpush1.bf16.msra.mxu0 0
        %408 = vmatprep.subr.bf16.mxu0 0
        %409 = vmatpush1.bf16.msra.mxu0 0
        %410 = vmatprep.subr.bf16.mxu0 0
        %411 = vmatpush1.bf16.msra.mxu0 0
        %412 = vmatprep.subr.bf16.mxu0 0
        %413 = vmatpush1.bf16.msra.mxu0 0
        %414 = vmatprep.subr.bf16.mxu0 0
        %415 = vmatpush1.bf16.msra.mxu0 0
        %416 = vmatprep.subr.bf16.mxu0 0
        %417 = vmatpush1.bf16.msra.mxu0 0
        %418 = vmatprep.subr.bf16.mxu0 0
        %419 = vmatpush1.bf16.msra.mxu0 0
        %420 = vmatprep.subr.bf16.mxu0 0
        %421 = vmatpush1.bf16.msra.mxu0 0
        %422 = vmatprep.subr.bf16.mxu0 0
        %423 = vmatpush1.bf16.msra.mxu0 0
        %424 = vmatprep.subr.bf16.mxu0 0
        %425 = vmatpush1.bf16.msra.mxu0 0
        %426 = vmatprep.subr.bf16.mxu0 0
        %427 = vmatpush1.bf16.msra.mxu0 0
        %428 = vmatprep.mubr.bf16.mxu0 0
        %429 = vmatmul.mubr.bf16.gmra.mrb[0].mxu0 %v337
        %v430 = vpop.f32.mrb[0].mxu0
        %v431 = vadd.f32 0.0, %v430
        %v432 = vpop.f32.mrb[0].mxu0
        %v433 = vpop.f32.mrb[0].mxu0
        %v434 = vadd.f32 0.0, %v433
        %v435 = vpop.f32.mrb[0].mxu0
        %436 = vmatprep.mubr.bf16.mxu0 0
        %437 = vmatmul.mubr.bf16.gmra.mrb[0].mxu0 %v340
        %v438 = vpop.f32.mrb[0].mxu0
        %v439 = vadd.f32 0.0, %v438
        %v440 = vpop.f32.mrb[0].mxu0
        %v441 = vpop.f32.mrb[0].mxu0
        %v442 = vpop.f32.mrb[0].mxu0
        %443 = vdwg.mxu0
        %v444 = vadd.f32 %v255, %v377
        %v445 = vadd.f32 %v258, %v380
        %v446 = vadd.f32 %v263, %v385
        %vm450 = vcmask 1046528
        %v451 = vrot.slane %v309, 1
        %v452 = vrot.slane %v312, 1
        %v453 = vsel %vm450, %v451, %v452
        %v454 = vrot.slane %v317, 1
        %v455 = vsel %vm450, %v452, %v454
        %v459 = vadd.f32 %v444, %v453
        %v460 = vadd.f32 %v445, %v455
        %v461 = vadd.f32 %v446, %v454
        %v465 = vrot.slane %v431, 1
        %v466 = vrot.slane %v434, 1
        %v467 = vsel %vm450, %v465, %v466
        %v468 = vrot.slane %v439, 1
        %v469 = vsel %vm450, %v466, %v468
        %v473 = vadd.f32 %v459, %v467
        %v474 = vadd.f32 %v460, %v469
        %v475 = vadd.f32 %v461, %v468
        %v477 = vlaneseq
        %v478 = vshrl.u32 %v477, 7
        %v479 = vsub.s32 0, %v478
        %v480 = vrot.slane %v183, %v479
        %v482 = vadd.f32 %v473, %v480
        %v483 = vadd.f32 %v474, %v480
        %v484 = vadd.f32 %v475, %v480
        %v485 = vxor.u32 %v482, 2147483648
        %v486 = vxor.u32 %v483, 2147483648
        %v487 = vxor.u32 %v484, 2147483648
        %v488 = vmul.f32 %v485, 1.442695
        %v489 = vpow.pop %v488
        %v490 = vmul.f32 %v486, 1.442695
        %v491 = vpow.pop %v490
        %v492 = vmul.f32 %v487, 1.442695
        %v493 = vpow.pop %v492
        %v494 = vadd.f32 %v489, 1.0
        %v495 = vadd.f32 %v491, 1.0
        %v496 = vadd.f32 %v493, 1.0
        %v497 = vrcp.pop %v494
        %v498 = vmul.f32 1.0, %v497
        %v499 = vrcp.pop %v495
        %v500 = vmul.f32 1.0, %v499
        %v501 = vrcp.pop %v496
        %v502 = vmul.f32 1.0, %v501
        %s503 = smul.u32 %s185, 24
        %s504 = scalar_lea.vmem %s170, %s503
        %vm505 = vcmask 31744
        %506 = vst.msk [vmem:[%s504] sm:$0xff] %vm505, %v498
        %507 = vst.msk [vmem:[%s504 + $0x8] sm:$0xff] %vm505, %v500
        %vm508 = vcmask 24576
        %509 = vst.msk [vmem:[%s504 + $0x10] sm:$0x1] %vm508, %v502
      $region37: #{conv_vae_forward.23} parent=31 // loop_footer
        %s189 = sadd.s32 1, %s185
      $region38: #{conv_vae_forward.23} parent=31 // loop_footer_branch
        %184 = sbr.rel target = $region34
      $region39: #{conv_vae_forward.23} parent=31 // loop_exit
        _
      %p510 = scmp.lt.s32.totalorder %s14, 1
      %s511 = scalar_select %p510, %s14, 1
      %s512 = smul.addr %s511, 51
      %s513 = smul.addr %s512, 8
      %s514 = scalar_lea.vmem %s3, %s513
      // Predicated region
      $region40: #{conv_vae_forward.23} parent=31 // pred_check
        %p515 = pneg %p100
      $region41: #{conv_vae_forward.23} parent=31 // pred_check_branch
        %517 = sbr.rel (%p515) target = $region43
      $region42: #{conv_vae_forward.23} parent=31 // pred_region
        _
      $region43: #{conv_vae_forward.23} parent=31 // pred_fallthru
        _
    $region32: #{conv_vae_forward.23} parent=5 // pred_fallthru
      _
    %p518 = scmp.le.s32.totalorder 2, %s9
    // Predicated region
    $region44: #{conv_vae_forward.23} parent=5 // pred_check
      %p519 = pneg %p518
    $region45: #{conv_vae_forward.23} parent=5 // pred_check_branch
      %521 = sbr.rel (%p519) target = $region47
    $region46: #{conv_vae_forward.23} parent=5 // pred_region
      %s522 = ssub.s32 %s9, 2
      // Predicated region
      $region48: #{conv_vae_forward.23} parent=46 // pred_check
        %p523 = pneg %p106
      $region49: #{conv_vae_forward.23} parent=46 // pred_check_branch
        %525 = sbr.rel (%p523) target = $region51
      $region50: #{conv_vae_forward.23} parent=46 // pred_region
        %p526 = scmp.lt.s32.totalorder %s15, 1
        %s527 = scalar_select %p526, %s15, 1
        %s528 = smul.addr %s527, 51
        %s529 = smul.addr %s528, 8
        %s530 = scalar_lea.vmem %s3, %s529
      $region51: #{conv_vae_forward.23} parent=46 // pred_fallthru
        _
    $region47: #{conv_vae_forward.23} parent=5 // pred_fallthru
      _
  $region6: #{conv_vae_forward.23} parent=0 // loop_footer
    %s13 = sadd.s32 1, %s9
  $region7: #{conv_vae_forward.23} parent=0 // loop_footer_branch
    %8 = sbr.rel target = $region3
  $region8: #{conv_vae_forward.23} parent=0 // loop_exit
    _

</llo_original>
